<compile_context>
chip_gen: v7x
topology: tpu7x:2x2x1
jax: 0.10.0
libtpu: 0.0.40
codegen_flags: <defaults>
</compile_context>

<pallas_src>
import functools
import math

import jax
import jax.numpy as jnp
from jax.experimental import pallas as pl
from jax.experimental.pallas import tpu as pltpu

BIG = 1e30
EPS = 1e-16
LEAKY = 0.01            # nn.LeakyReLU default negative_slope

RATIO = [0.25, 0.25, 0.25, 0.25]
RADIUS = [0.2, 0.2, 0.2, 0.2, 0.2]
KSIZE = [16, 16, 16, 16, 16]


# ----------------------------------------------------------------------------
# generation-dependent tuning (v5e/v6e: 128 MiB VMEM, v7x: 64 MiB)
# ----------------------------------------------------------------------------
def _vmem_capacity_bytes():
    try:
        return int(pltpu.get_tpu_info().vmem_capacity_bytes)
    except Exception:
        return 64 * 1024 * 1024          # conservative default (v7x-like)


_VMEM_CAP = _vmem_capacity_bytes()
if _VMEM_CAP >= 100 * 1024 * 1024:       # v5e / v6e
    _VMEM_LIMIT = 96 * 1024 * 1024
    _ROW_PREF = 512
else:                                    # v7x (or unknown)
    _VMEM_LIMIT = 48 * 1024 * 1024
    _ROW_PREF = 256
_SRC_PREF = 512                          # gcrf source-stream tile (lane axis -> x128)


def _cparams(ngrid):
    return pltpu.CompilerParams(
        dimension_semantics=("parallel",) + ("arbitrary",) * (ngrid - 1),
        vmem_limit_bytes=_VMEM_LIMIT)


def _row_tile(n, pref):
    """Largest sublane-aligned row tile <= pref dividing n, preferring >=2 tiles
    (so the 'parallel' axis can shard across v7x's 2 TensorCores)."""
    if n % 8 != 0:
        return n
    best = None
    t = min(pref, n)
    t -= t % 8
    while t >= 8:
        if n % t == 0:
            if n // t >= 2:
                return t
            if best is None:
                best = t
        t -= 8
    return best if best is not None else n


def _src_tile(n, pref):
    """Source-stream tile: lane axis, so must be a multiple of 128 (or full n)."""
    if n <= pref or n % 128 != 0:
        return n
    t = (pref // 128) * 128
    while t >= 128:
        if n % t == 0:
            return t
        t -= 128
    return n


# ----------------------------------------------------------------------------
# Pallas kernels
# ----------------------------------------------------------------------------
def _pointconv_kernel(feat_ref, rel_ref, wf_ref, wp_ref, b_ref, o_ref, *, k):
    """DSPointConv stand-in: per-edge Linear([x_j, pos_j - pos_i]), max over K, ReLU.

    The MXU contraction runs only over the Cin feature channels; the 3 rel-pos
    channels are 3 VPU broadcast FMAs (no Cin+3 contraction padding).  K
    contiguous per-slice dots with a running max avoid any [K*T, C] intermediate.
    relu(max)+shared-bias == max(...)+bias then relu, applied once at the end.
    """
    # TODO(synk): exact DSPointConv internals are not in the provided source; this is
    # the canonical PointNet++-style point conv.
    wf = wf_ref[...]                                      # [Cin, C] bf16
    wp = wp_ref[...]                                      # [3, C]  f32

    def edge(j):
        h = jnp.dot(feat_ref[j], wf, preferred_element_type=jnp.float32)
        rel = rel_ref[j]                                  # [T, 3] f32
        for c in range(3):                                # 3 VPU broadcast FMAs
            h = h + rel[:, c:c + 1] * wp[c:c + 1, :]
        return h

    acc = edge(0)
    for j in range(1, k):
        acc = jnp.maximum(acc, edge(j))
    o_ref[...] = jnp.maximum(acc + b_ref[...], 0.0)


def _dense_kernel(x_ref, w_ref, b_ref, o_ref):
    """Plain Linear (used for the deconv weight, commuted through interpolation)."""
    o_ref[...] = jnp.dot(x_ref[...], w_ref[...],
                         preferred_element_type=jnp.float32) + b_ref[...]


def _gcrf_step_kernel(skip_ref, u_ref, hsrc_ref, hself_ref, posd_ref, poss_ref,
                      bt_ref, bs_ref, o_ref, acc_ref, wsum_ref,
                      *, inv_two_r2, apply_act):
    """One Gaussian mean-field step, streamed over source tiles (flash style).

    wgt_ij = exp(-|p_i - p_j|^2 / (2 r^2)) * same_batch, i != j, row-normalised.
    Per source tile: accumulate rowsum(w) and w @ h into VMEM scratch; tile pairs
    whose bounding boxes are > 4r apart are skipped (SMEM prefetch mask).  The
    diagonal is removed analytically in the finalize (its weight is exactly 1,
    its message contribution is exactly h_self in bf16); isolated points are
    gated so the tiny cancellation residue is never amplified by 1/denom.
    """
    # TODO(synk): exact GCRFConv internals are not in the provided source.
    i = pl.program_id(0)
    j = pl.program_id(1)

    @pl.when(j == 0)
    def _():
        acc_ref[...] = jnp.zeros_like(acc_ref)
        wsum_ref[...] = jnp.zeros_like(wsum_ref)

    @pl.when(skip_ref[i, j] == 0)
    def _():
        pos_d = posd_ref[...]                             # [T, 3]  f32
        pos_s = poss_ref[...]                             # [3, Ts] f32
        d2 = jnp.zeros((pos_d.shape[0], pos_s.shape[1]), jnp.float32)
        for c in range(3):                                # 3 VPU broadcast FMAs
            diff = pos_d[:, c:c + 1] - pos_s[c:c + 1, :]
            d2 = d2 + diff * diff
        same = bt_ref[...] == bs_ref[...]                 # [T, Ts]
        w = jnp.where(same, jnp.exp(-d2 * inv_two_r2), 0.0)   # incl. diagonal (== 1.0)
        wsum_ref[...] += jnp.sum(w, axis=1, keepdims=True)
        acc_ref[...] += jnp.dot(w.astype(jnp.bfloat16), hsrc_ref[...],
                                preferred_element_type=jnp.float32)

    @pl.when(j == pl.num_programs(1) - 1)
    def _():
        denom = wsum_ref[...] - 1.0                       # remove diagonal analytically
        msg = acc_ref[...] - hself_ref[...].astype(jnp.float32)
        safe = jnp.maximum(denom, 1e-3)
        gated = jnp.where(denom > 1e-3,
                          msg * pl.reciprocal(safe, approx=True), 0.0)
        h_new = u_ref[...] + gated
        if apply_act:
            h_new = jnp.where(h_new > 0.0, h_new, LEAKY * h_new)
        o_ref[...] = h_new


def _knn_interp_kernel(xs_ref, posd_ref, poss_ref, bt_ref, bs_ref, skip_ref,
                       o_ref, *, k):
    """torch_geometric.knn_interpolate (1/d^2, batch-aware) + fused skip add.

    Weights are normalised in f32 *before* the bf16 cast for the matmul.
    """
    # TODO(synk): the per-round (min d2, min index) pair could be merged into one
    # packed uint32 reduction (bitcast trick) to halve XLU work.
    pos_d = posd_ref[...]                                 # [T, 3]
    pos_s = poss_ref[...]                                 # [3, Ns]
    nt, ns = pos_d.shape[0], pos_s.shape[1]
    d2 = jnp.zeros((nt, ns), jnp.float32)
    for c in range(3):
        diff = pos_d[:, c:c + 1] - pos_s[c:c + 1, :]
        d2 = d2 + diff * diff
    same = bt_ref[...] == bs_ref[...]
    inv = pl.reciprocal(jnp.maximum(d2, 1e-12), approx=True)
    col = jax.lax.broadcasted_iota(jnp.int32, (nt, ns), 1)
    avail = same
    wsel = jnp.zeros((nt, ns), jnp.float32)
    for _ in range(k):                                    # exactly one pick per round
        cur = jnp.where(avail, d2, BIG)
        m = jnp.min(cur, axis=1, keepdims=True)
        cand = avail & (cur <= m) & (m < 0.5 * BIG)
        cmin = jnp.min(jnp.where(cand, col, jnp.int32(2 ** 30)), axis=1, keepdims=True)
        sel = cand & (col == cmin)                        # lowest-index tie-break
        wsel = wsel + jnp.where(sel, inv, 0.0)
        avail = avail & jnp.logical_not(sel)
    wsum = jnp.sum(wsel, axis=1, keepdims=True)
    wnorm = wsel * pl.reciprocal(jnp.maximum(wsum, EPS), approx=True)
    acc = jnp.dot(wnorm.astype(jnp.bfloat16), xs_ref[...],
                  preferred_element_type=jnp.float32)
    o_ref[...] = acc + skip_ref[...]                      # fused GCRF skip / unary add


def _fusion_kernel(xa_ref, xb_ref, wa_ref, wb_ref, b_ref, sc_ref, sh_ref, o_ref):
    """fusion block, concat-free: (fused gcrf LeakyReLU on xa) -> Linear ->
    folded BatchNorm1d -> LeakyReLU."""
    xa = xa_ref[...]
    xa = jnp.where(xa > 0.0, xa, LEAKY * xa)              # last gcrf step's act, fused
    h = jnp.dot(xa.astype(jnp.bfloat16), wa_ref[...],
                preferred_element_type=jnp.float32)
    h = h + jnp.dot(xb_ref[...].astype(jnp.bfloat16), wb_ref[...],
                    preferred_element_type=jnp.float32)
    h = (h + b_ref[...]) * sc_ref[...] + sh_ref[...]
    o_ref[...] = jnp.where(h > 0.0, h, LEAKY * h)


def _classifier_kernel(xa_ref, xb_ref, w1a_ref, w1b_ref, b1_ref, w2_ref, b2_ref, o_ref):
    """Linear(64,128) -> ReLU -> Linear(128, padded classes) -> log_softmax (concat-free)."""
    xa = xa_ref[...].astype(jnp.bfloat16)
    xb = xb_ref[...].astype(jnp.bfloat16)
    h = jnp.dot(xa, w1a_ref[...], preferred_element_type=jnp.float32)
    h = h + jnp.dot(xb, w1b_ref[...], preferred_element_type=jnp.float32)
    h = jnp.maximum(h + b1_ref[...], 0.0)
    logits = jnp.dot(h.astype(jnp.bfloat16), w2_ref[...],
                     preferred_element_type=jnp.float32) + b2_ref[...]
    m = jnp.max(logits, axis=-1, keepdims=True)
    z = logits - m
    lse = jnp.log(jnp.sum(jnp.exp(z), axis=-1, keepdims=True))
    o_ref[...] = z - lse


# ----------------------------------------------------------------------------
# pallas_call wrappers (row-tiled over destination points, parallel grid axis)
# ----------------------------------------------------------------------------
def pointconv(feat, rel, w, b):
    k, n, cin = feat.shape                    # feat bf16 [K, Nd, Cin], rel f32 [K, Nd, 3]
    c = w.shape[1]
    t = _row_tile(n, _ROW_PREF)
    wf = w[:cin].astype(jnp.bfloat16)         # feature rows -> MXU contraction
    wp = w[cin:]                              # rel-pos rows -> VPU FMAs (f32)
    return pl.pallas_call(
        functools.partial(_pointconv_kernel, k=k),
        out_shape=jax.ShapeDtypeStruct((n, c), jnp.float32),
        grid=(n // t,),
        in_specs=[pl.BlockSpec((k, t, cin), lambda i: (0, i, 0)),
                  pl.BlockSpec((k, t, 3), lambda i: (0, i, 0)),
                  pl.BlockSpec((cin, c), lambda i: (0, 0)),
                  pl.BlockSpec((3, c), lambda i: (0, 0)),
                  pl.BlockSpec((1, c), lambda i: (0, 0))],
        out_specs=pl.BlockSpec((t, c), lambda i: (i, 0)),
        compiler_params=_cparams(1),
    )(feat, rel, wf, wp, b)


def dense(x, w, b):
    n, cin = x.shape
    cout = w.shape[1]
    t = _row_tile(n, _ROW_PREF)
    return pl.pallas_call(
        _dense_kernel,
        out_shape=jax.ShapeDtypeStruct((n, cout), jnp.float32),
        grid=(n // t,),
        in_specs=[pl.BlockSpec((t, cin), lambda i: (i, 0)),
                  pl.BlockSpec((cin, cout), lambda i: (0, 0)),
                  pl.BlockSpec((1, cout), lambda i: (0, 0))],
        out_specs=pl.BlockSpec((t, cout), lambda i: (i, 0)),
        compiler_params=_cparams(1),
    )(x.astype(jnp.bfloat16), w.astype(jnp.bfloat16), b)


def _tile_skip_mask(pos, t, ts, r, cutoff=4.0):
    """1 where a (dst-tile, src-tile) pair is provably farther than cutoff*r."""
    n = pos.shape[0]
    ni, nj = n // t, n // ts
    pd = pos.reshape(ni, t, 3)
    ps = pos.reshape(nj, ts, 3)
    d_min, d_max = jnp.min(pd, axis=1), jnp.max(pd, axis=1)
    s_min, s_max = jnp.min(ps, axis=1), jnp.max(ps, axis=1)
    gap = jnp.maximum(0.0, jnp.maximum(d_min[:, None, :] - s_max[None, :, :],
                                       s_min[None, :, :] - d_max[None, :, :]))
    d2_lb = jnp.sum(gap * gap, axis=-1)
    return (d2_lb > (cutoff * r) ** 2).astype(jnp.int32)   # [ni, nj]


def gcrf_mean_field(u, pos, batch, *, r, steps, act_last):
    """Mean-field iterations of the Gaussian CRF, starting from unary u."""
    n, c = u.shape
    t = _row_tile(n, _ROW_PREF)
    ts = _src_tile(n, _SRC_PREF)
    ni, nj = n // t, n // ts
    skip = _tile_skip_mask(pos, t, ts, r)                  # same for every step
    pos_t = pos.T                                          # [3, N]
    bt = batch.astype(jnp.int32)[:, None]                  # [N, 1]
    bs = batch.astype(jnp.int32)[None, :]                  # [1, N]
    inv_two_r2 = 1.0 / (2.0 * r * r)

    h = u
    for s in range(steps):
        h_bf = h.astype(jnp.bfloat16)
        h = pl.pallas_call(
            functools.partial(_gcrf_step_kernel, inv_two_r2=inv_two_r2,
                              apply_act=(act_last and s == steps - 1)),
            out_shape=jax.ShapeDtypeStruct((n, c), jnp.float32),
            grid_spec=pltpu.PrefetchScalarGridSpec(
                num_scalar_prefetch=1,
                grid=(ni, nj),
                in_specs=[pl.BlockSpec((t, c), lambda i, j, sk: (i, 0)),    # unary
                          pl.BlockSpec((ts, c), lambda i, j, sk: (j, 0)),   # h source tile
                          pl.BlockSpec((t, c), lambda i, j, sk: (i, 0)),    # h self tile
                          pl.BlockSpec((t, 3), lambda i, j, sk: (i, 0)),    # pos dst
                          pl.BlockSpec((3, ts), lambda i, j, sk: (0, j)),   # pos src^T
                          pl.BlockSpec((t, 1), lambda i, j, sk: (i, 0)),    # batch dst
                          pl.BlockSpec((1, ts), lambda i, j, sk: (0, j))],  # batch src
                out_specs=pl.BlockSpec((t, c), lambda i, j, sk: (i, 0)),
                scratch_shapes=[pltpu.VMEM((t, c), jnp.float32),            # msg acc
                                pltpu.VMEM((t, 1), jnp.float32)]),          # rowsum acc
            compiler_params=_cparams(2),
        )(skip, u, h_bf, h_bf, pos, pos_t, bt, bs)
    return h


def knn_interpolate(x_src, pos_src, batch_src, pos_dst, batch_dst, skip, k=3):
    """knn_interpolate(x_src) + skip, row-tiled over destination points."""
    ns, c = x_src.shape
    nt = pos_dst.shape[0]
    k = min(k, ns)
    t = _row_tile(nt, _ROW_PREF)
    pos_st = pos_src.T
    bt = batch_dst.astype(jnp.int32)[:, None]
    bs = batch_src.astype(jnp.int32)[None, :]
    return pl.pallas_call(
        functools.partial(_knn_interp_kernel, k=k),
        out_shape=jax.ShapeDtypeStruct((nt, c), jnp.float32),
        grid=(nt // t,),
        in_specs=[pl.BlockSpec((ns, c), lambda i: (0, 0)),
                  pl.BlockSpec((t, 3), lambda i: (i, 0)),
                  pl.BlockSpec((3, ns), lambda i: (0, 0)),
                  pl.BlockSpec((t, 1), lambda i: (i, 0)),
                  pl.BlockSpec((1, ns), lambda i: (0, 0)),
                  pl.BlockSpec((t, c), lambda i: (i, 0))],
        out_specs=pl.BlockSpec((t, c), lambda i: (i, 0)),
        compiler_params=_cparams(1),
    )(x_src.astype(jnp.bfloat16), pos_dst, pos_st, bt, bs, skip)


def fusion(x_a, x_b, w, b, gamma, beta, mean, var, eps=1e-5):
    """Concat-free fusion(cat([leaky(x_a), x_b])) via split weight rows."""
    scale = gamma / jnp.sqrt(var + eps)        # BatchNorm1d folded (eval-mode stats)
    shift = beta - mean * scale
    n, ca = x_a.shape
    cb = x_b.shape[1]
    c = w.shape[1]
    t = _row_tile(n, _ROW_PREF)
    return pl.pallas_call(
        _fusion_kernel,
        out_shape=jax.ShapeDtypeStruct((n, c), jnp.float32),
        grid=(n // t,),
        in_specs=[pl.BlockSpec((t, ca), lambda i: (i, 0)),
                  pl.BlockSpec((t, cb), lambda i: (i, 0)),
                  pl.BlockSpec((ca, c), lambda i: (0, 0)),
                  pl.BlockSpec((cb, c), lambda i: (0, 0)),
                  pl.BlockSpec((1, c), lambda i: (0, 0)),
                  pl.BlockSpec((1, c), lambda i: (0, 0)),
                  pl.BlockSpec((1, c), lambda i: (0, 0))],
        out_specs=pl.BlockSpec((t, c), lambda i: (i, 0)),
        compiler_params=_cparams(1),
    )(x_a, x_b, w[:ca].astype(jnp.bfloat16), w[ca:].astype(jnp.bfloat16),
      b, scale[None, :], shift[None, :])


def classifier(x_a, x_b, w1, b1, w2, b2):
    """Concat-free classifier; output padded to 128 lanes (lane-dense stores)."""
    n, ca = x_a.shape
    cb = x_b.shape[1]
    hdim = w1.shape[1]
    c = w2.shape[1]
    c_pad = ((c + 127) // 128) * 128
    w2p = jnp.zeros((hdim, c_pad), jnp.float32).at[:, :c].set(w2).astype(jnp.bfloat16)
    b2p = jnp.full((1, c_pad), -BIG, jnp.float32).at[:, :c].set(b2)
    t = _row_tile(n, _ROW_PREF)
    out = pl.pallas_call(
        _classifier_kernel,
        out_shape=jax.ShapeDtypeStruct((n, c_pad), jnp.float32),
        grid=(n // t,),
        in_specs=[pl.BlockSpec((t, ca), lambda i: (i, 0)),
                  pl.BlockSpec((t, cb), lambda i: (i, 0)),
                  pl.BlockSpec((ca, hdim), lambda i: (0, 0)),
                  pl.BlockSpec((cb, hdim), lambda i: (0, 0)),
                  pl.BlockSpec((1, hdim), lambda i: (0, 0)),
                  pl.BlockSpec((hdim, c_pad), lambda i: (0, 0)),
                  pl.BlockSpec((1, c_pad), lambda i: (0, 0))],
        out_specs=pl.BlockSpec((t, c_pad), lambda i: (i, 0)),
        compiler_params=_cparams(1),
    )(x_a, x_b, w1[:ca].astype(jnp.bfloat16), w1[ca:].astype(jnp.bfloat16),
      b1, w2p, b2p)
    return out[:, :c]


# ----------------------------------------------------------------------------
# Plain-JAX glue: graph construction / gathers / subsampling / params
# ----------------------------------------------------------------------------
def knn_gather(x_src, pos_src, batch_src, pos_dst, batch_dst, k):
    """Brute-force batched kNN (loop=True semantics) + neighbour feature/rel-pos gather.

    Returns feat [K, N_dst, Cin] (bf16) and rel [K, N_dst, 3] (f32), K leading so
    the pointconv kernel runs contiguous per-K MXU matmuls with no +3 padding.
    Missing same-batch neighbours duplicate the nearest valid one (no-op under max).
    """
    # TODO(synk): in-kernel gather (x_src in HBM + scalar-prefetched idx + per-tile DMA)
    # would avoid materializing the K x duplicated feature tensor in HBM.
    d2 = jnp.sum((pos_dst[:, None, :] - pos_src[None, :, :]) ** 2, axis=-1)
    d2 = jnp.where(batch_dst[:, None] == batch_src[None, :], d2, BIG)
    k_eff = min(k, pos_src.shape[0])
    _, idx = jax.lax.top_k(-d2, k_eff)                      # nearest first
    nd2 = jnp.take_along_axis(d2, idx, axis=1)
    invalid = nd2 >= 0.5 * BIG
    idx = jnp.where(invalid, idx[:, :1], idx)               # duplicate nearest valid
    feat = jnp.transpose(x_src[idx], (1, 0, 2)).astype(jnp.bfloat16)      # [K, Nd, Cin]
    rel = jnp.transpose(pos_src[idx] - pos_dst[:, None, :], (1, 0, 2))    # [K, Nd, 3]
    return feat, rel


def _subsample_indices(counts, ratio):
    # TODO(synk): farthest-point sampling (torch_geometric.fps) replaced with
    # deterministic per-batch prefix subsampling; greedy data-dependent FPS has no
    # clean Pallas mapping at these shapes.
    idx, new_counts, off = [], [], 0
    for c in counts:
        m = max(1, int(math.ceil(ratio * c)))
        idx.extend(range(off, off + m))
        new_counts.append(m)
        off += c
    return jnp.asarray(idx, jnp.int32), new_counts


def _dense(key, din, dout, scale=0.1):
    kw, kb = jax.random.split(key)
    return (scale * jax.random.normal(kw, (din, dout), jnp.float32),
            scale * jax.random.normal(kb, (1, dout), jnp.float32))


def init_params(key, in_channels, n_classes):
    keys = iter(jax.random.split(key, 32))
    p = {}
    conv_dims = [('conv1_1', in_channels, 32), ('conv1_2', 32, 32),
                 ('conv2_1', 32, 64), ('conv2_2', 64, 64),
                 ('conv3_1', 64, 128), ('conv3_2', 128, 128),
                 ('conv4_1', 128, 256), ('conv4_2', 256, 256),
                 ('conv5_1', 256, 512), ('conv5_2', 512, 512)]
    for name, cin, cout in conv_dims:
        p[name] = _dense(next(keys), cin + 3, cout)          # +3 for relative position
    for name, cin, cout in [('deconv4', 512, 256), ('deconv3', 256, 128),
                            ('deconv2', 128, 64), ('deconv1', 64, 32)]:
        p[name] = _dense(next(keys), cin, cout)
    for name, cin, cout in [('fusion3', 512, 256), ('fusion2', 256, 128),
                            ('fusion1', 128, 64)]:
        w, b = _dense(next(keys), cin, cout)
        p[name] = (w, b,
                   jnp.ones((cout,), jnp.float32), jnp.zeros((cout,), jnp.float32),
                   jnp.zeros((cout,), jnp.float32), jnp.ones((cout,), jnp.float32))
    p['cls1'] = _dense(next(keys), 32 + 32, 128)
    p['cls2'] = _dense(next(keys), 128, n_classes)
    return p


# ----------------------------------------------------------------------------
# Full forward pass
# ----------------------------------------------------------------------------
def crf_segnet_forward(params, x, pos, batch, counts, steps=1):
    levels = [(pos, batch, counts)]

    # ---------------- encoder ----------------
    x0 = pointconv(*knn_gather(x, pos, batch, pos, batch, KSIZE[0]), *params['conv1_1'])
    x0 = pointconv(*knn_gather(x0, pos, batch, pos, batch, KSIZE[0]), *params['conv1_2'])

    feats = [x0]
    cur_x, cur_pos, cur_batch, cur_counts = x0, pos, batch, counts
    down_names = [('conv2_1', 'conv2_2'), ('conv3_1', 'conv3_2'),
                  ('conv4_1', 'conv4_2'), ('conv5_1', 'conv5_2')]
    for lvl, (n_a, n_b) in enumerate(down_names):
        idx, new_counts = _subsample_indices(cur_counts, RATIO[lvl])
        new_pos, new_batch = cur_pos[idx], cur_batch[idx]
        xs = pointconv(*knn_gather(cur_x, cur_pos, cur_batch, new_pos, new_batch,
                                   KSIZE[lvl]), *params[n_a])
        xs = pointconv(*knn_gather(xs, new_pos, new_batch, new_pos, new_batch,
                                   KSIZE[lvl + 1]), *params[n_b])
        cur_x, cur_pos, cur_batch, cur_counts = xs, new_pos, new_batch, new_counts
        levels.append((new_pos, new_batch, new_counts))
        feats.append(xs)
    # feats = [x(32), x1(64), x2(128), x3(256), x4(512)]

    # ---------------- decoder ----------------
    # deconv Linear is commuted through knn_interpolate (interp weights sum to 1):
    #   interp(x) @ W + b + skip == interp(x @ W + b) + skip
    # so the Linear runs on the coarse (4x smaller) level and the skip add is fused
    # into the interpolation kernel; the final LeakyReLU of each gcrf is fused into
    # the following fusion kernel.
    x_ = feats[4]
    src_lvl = 4
    for dname, fname, tgt_lvl in [('deconv4', 'fusion3', 3),
                                  ('deconv3', 'fusion2', 2),
                                  ('deconv2', 'fusion1', 1)]:
        pos_s, batch_s, _ = levels[src_lvl]
        pos_t, batch_t, _ = levels[tgt_lvl]
        w, b = params[dname]
        pre = dense(x_, w, b)                                     # coarse rows
        u = knn_interpolate(pre, pos_s, batch_s, pos_t, batch_t,
                            feats[tgt_lvl], k=3)                  # + skip fused
        x_ = gcrf_mean_field(u, pos_t, batch_t, r=RADIUS[tgt_lvl],
                             steps=steps, act_last=False)         # act fused in fusion
        x_ = fusion(x_, feats[tgt_lvl], *params[fname])
        src_lvl = tgt_lvl

    pos_s, batch_s, _ = levels[1]
    w, b = params['deconv1']
    pre = dense(x_, w, b)
    u = knn_interpolate(pre, pos_s, batch_s, pos, batch, feats[0], k=3)
    x_ = gcrf_mean_field(u, pos, batch, r=RADIUS[0], steps=steps, act_last=True)

    # classifier(cat([x_, x0])) done concat-free inside the kernel
    return classifier(x_, feats[0], *params['cls1'], *params['cls2'])


if __name__ == "__main__":
    key = jax.random.PRNGKey(0)
    in_channels, n_classes = 4, 2
    pts_per_batch = [64, 64]                  # 2 point clouds, 64 points each
    n = sum(pts_per_batch)

    kx, kp, kparam = jax.random.split(key, 3)
    x = jax.random.normal(kx, (n, in_channels), jnp.float32)       # data.x
    pos = jax.random.uniform(kp, (n, 3), jnp.float32)              # data.pos
    batch = jnp.concatenate([jnp.full((c,), i, jnp.int32)
                             for i, c in enumerate(pts_per_batch)])  # data.batch

    params = init_params(kparam, in_channels, n_classes)
    out = crf_segnet_forward(params, x, pos, batch, pts_per_batch, steps=1)
    out = jax.block_until_ready(out)
    assert out.shape == (n, n_classes)
    assert bool(jnp.all(jnp.isfinite(out)))
    print("KERNEL_OK")
</pallas_src>

<mosaic_0001>
module attributes {stable_mosaic.version = 11 : i64} {
  func.func @_pointconv_kernel(%arg0: i32, %arg1: memref<16x64x4xbf16, #tpu.memory_space<vmem>>, %arg2: memref<16x64x3xf32, #tpu.memory_space<vmem>>, %arg3: memref<4x32xbf16, #tpu.memory_space<vmem>>, %arg4: memref<3x32xf32, #tpu.memory_space<vmem>>, %arg5: memref<1x32xf32, #tpu.memory_space<vmem>>, %arg6: memref<64x32xf32, #tpu.memory_space<vmem>>) attributes {dimension_semantics = [#tpu.dimension_semantics<parallel>], iteration_bounds = array<i64: 2>, scalar_prefetch = 0 : i64, scratch_operands = 0 : i64, tpu.core_type = #tpu.core_type<tc>, window_params = [{transform_indices = @transform_0, window_bounds = array<i64: 16, 64, 4>}, {transform_indices = @transform_1, window_bounds = array<i64: 16, 64, 3>}, {pipeline_mode = #tpu.pipeline_mode<synchronous>, transform_indices = @transform_2, window_bounds = array<i64: 4, 32>}, {pipeline_mode = #tpu.pipeline_mode<synchronous>, transform_indices = @transform_3, window_bounds = array<i64: 3, 32>}, {pipeline_mode = #tpu.pipeline_mode<synchronous>, transform_indices = @transform_4, window_bounds = array<i64: 1, 32>}, {transform_indices = @transform_5, window_bounds = array<i64: 64, 32>}]} {
    %c0 = arith.constant 0 : index
    %c0_0 = arith.constant 0 : index
    %0 = vector.load %arg3[%c0, %c0_0] : memref<4x32xbf16, #tpu.memory_space<vmem>>, vector<4x32xbf16>
    %c0_1 = arith.constant 0 : index
    %c0_2 = arith.constant 0 : index
    %1 = vector.load %arg4[%c0_1, %c0_2] : memref<3x32xf32, #tpu.memory_space<vmem>>, vector<3x32xf32>
    %c0_3 = arith.constant 0 : index
    %c0_4 = arith.constant 0 : index
    %c0_5 = arith.constant 0 : index
    %2 = vector.load %arg1[%c0_3, %c0_4, %c0_5] : memref<16x64x4xbf16, #tpu.memory_space<vmem>>, vector<1x64x4xbf16>
    %3 = vector.shape_cast %2 : vector<1x64x4xbf16> to vector<64x4xbf16>
    %cst = arith.constant dense<0.000000e+00> : vector<64x32xf32>
    %4 = tpu.matmul %3, %0, %cst {dimension_numbers = #tpu.dot_dimension_numbers<[1], [0], [0], [1], [0, 0, 1, 1], [], []>} : vector<64x4xbf16>, vector<4x32xbf16>, vector<64x32xf32> -> vector<64x32xf32>
    %c0_6 = arith.constant 0 : index
    %c0_7 = arith.constant 0 : index
    %c0_8 = arith.constant 0 : index
    %5 = vector.load %arg2[%c0_6, %c0_7, %c0_8] : memref<16x64x3xf32, #tpu.memory_space<vmem>>, vector<1x64x3xf32>
    %6 = vector.shape_cast %5 : vector<1x64x3xf32> to vector<64x3xf32>
    %7 = vector.extract_strided_slice %6 {offsets = [0, 0], sizes = [64, 1], strides = [1, 1]} : vector<64x3xf32> to vector<64x1xf32>
    %8 = vector.extract_strided_slice %1 {offsets = [0, 0], sizes = [1, 32], strides = [1, 1]} : vector<3x32xf32> to vector<1x32xf32>
    %9 = vector.broadcast %7 : vector<64x1xf32> to vector<64x32xf32>
    %10 = vector.broadcast %8 : vector<1x32xf32> to vector<64x32xf32>
    %11 = arith.mulf %9, %10 : vector<64x32xf32>
    %12 = arith.addf %4, %11 : vector<64x32xf32>
    %13 = vector.extract_strided_slice %6 {offsets = [0, 1], sizes = [64, 1], strides = [1, 1]} : vector<64x3xf32> to vector<64x1xf32>
    %14 = vector.extract_strided_slice %1 {offsets = [1, 0], sizes = [1, 32], strides = [1, 1]} : vector<3x32xf32> to vector<1x32xf32>
    %15 = vector.broadcast %13 : vector<64x1xf32> to vector<64x32xf32>
    %16 = vector.broadcast %14 : vector<1x32xf32> to vector<64x32xf32>
    %17 = arith.mulf %15, %16 : vector<64x32xf32>
    %18 = arith.addf %12, %17 : vector<64x32xf32>
    %19 = vector.extract_strided_slice %6 {offsets = [0, 2], sizes = [64, 1], strides = [1, 1]} : vector<64x3xf32> to vector<64x1xf32>
    %20 = vector.extract_strided_slice %1 {offsets = [2, 0], sizes = [1, 32], strides = [1, 1]} : vector<3x32xf32> to vector<1x32xf32>
    %21 = vector.broadcast %19 : vector<64x1xf32> to vector<64x32xf32>
    %22 = vector.broadcast %20 : vector<1x32xf32> to vector<64x32xf32>
    %23 = arith.mulf %21, %22 : vector<64x32xf32>
    %24 = arith.addf %18, %23 : vector<64x32xf32>
    %c1 = arith.constant 1 : index
    %c0_9 = arith.constant 0 : index
    %c0_10 = arith.constant 0 : index
    %25 = vector.load %arg1[%c1, %c0_9, %c0_10] : memref<16x64x4xbf16, #tpu.memory_space<vmem>>, vector<1x64x4xbf16>
    %26 = vector.shape_cast %25 : vector<1x64x4xbf16> to vector<64x4xbf16>
    %cst_11 = arith.constant dense<0.000000e+00> : vector<64x32xf32>
    %27 = tpu.matmul %26, %0, %cst_11 {dimension_numbers = #tpu.dot_dimension_numbers<[1], [0], [0], [1], [0, 0, 1, 1], [], []>} : vector<64x4xbf16>, vector<4x32xbf16>, vector<64x32xf32> -> vector<64x32xf32>
    %c1_12 = arith.constant 1 : index
    %c0_13 = arith.constant 0 : index
    %c0_14 = arith.constant 0 : index
    %28 = vector.load %arg2[%c1_12, %c0_13, %c0_14] : memref<16x64x3xf32, #tpu.memory_space<vmem>>, vector<1x64x3xf32>
    %29 = vector.shape_cast %28 : vector<1x64x3xf32> to vector<64x3xf32>
    %30 = vector.extract_strided_slice %29 {offsets = [0, 0], sizes = [64, 1], strides = [1, 1]} : vector<64x3xf32> to vector<64x1xf32>
    %31 = vector.extract_strided_slice %1 {offsets = [0, 0], sizes = [1, 32], strides = [1, 1]} : vector<3x32xf32> to vector<1x32xf32>
    %32 = vector.broadcast %30 : vector<64x1xf32> to vector<64x32xf32>
    %33 = vector.broadcast %31 : vector<1x32xf32> to vector<64x32xf32>
    %34 = arith.mulf %32, %33 : vector<64x32xf32>
    %35 = arith.addf %27, %34 : vector<64x32xf32>
    %36 = vector.extract_strided_slice %29 {offsets = [0, 1], sizes = [64, 1], strides = [1, 1]} : vector<64x3xf32> to vector<64x1xf32>
    %37 = vector.extract_strided_slice %1 {offsets = [1, 0], sizes = [1, 32], strides = [1, 1]} : vector<3x32xf32> to vector<1x32xf32>
    %38 = vector.broadcast %36 : vector<64x1xf32> to vector<64x32xf32>
    %39 = vector.broadcast %37 : vector<1x32xf32> to vector<64x32xf32>
    %40 = arith.mulf %38, %39 : vector<64x32xf32>
    %41 = arith.addf %35, %40 : vector<64x32xf32>
    %42 = vector.extract_strided_slice %29 {offsets = [0, 2], sizes = [64, 1], strides = [1, 1]} : vector<64x3xf32> to vector<64x1xf32>
    %43 = vector.extract_strided_slice %1 {offsets = [2, 0], sizes = [1, 32], strides = [1, 1]} : vector<3x32xf32> to vector<1x32xf32>
    %44 = vector.broadcast %42 : vector<64x1xf32> to vector<64x32xf32>
    %45 = vector.broadcast %43 : vector<1x32xf32> to vector<64x32xf32>
    %46 = arith.mulf %44, %45 : vector<64x32xf32>
    %47 = arith.addf %41, %46 : vector<64x32xf32>
    %48 = arith.maximumf %24, %47 : vector<64x32xf32>
    %c2 = arith.constant 2 : index
    %c0_15 = arith.constant 0 : index
    %c0_16 = arith.constant 0 : index
    %49 = vector.load %arg1[%c2, %c0_15, %c0_16] : memref<16x64x4xbf16, #tpu.memory_space<vmem>>, vector<1x64x4xbf16>
    %50 = vector.shape_cast %49 : vector<1x64x4xbf16> to vector<64x4xbf16>
    %cst_17 = arith.constant dense<0.000000e+00> : vector<64x32xf32>
    %51 = tpu.matmul %50, %0, %cst_17 {dimension_numbers = #tpu.dot_dimension_numbers<[1], [0], [0], [1], [0, 0, 1, 1], [], []>} : vector<64x4xbf16>, vector<4x32xbf16>, vector<64x32xf32> -> vector<64x32xf32>
    %c2_18 = arith.constant 2 : index
    %c0_19 = arith.constant 0 : index
    %c0_20 = arith.constant 0 : index
    %52 = vector.load %arg2[%c2_18, %c0_19, %c0_20] : memref<16x64x3xf32, #tpu.memory_space<vmem>>, vector<1x64x3xf32>
    %53 = vector.shape_cast %52 : vector<1x64x3xf32> to vector<64x3xf32>
    %54 = vector.extract_strided_slice %53 {offsets = [0, 0], sizes = [64, 1], strides = [1, 1]} : vector<64x3xf32> to vector<64x1xf32>
    %55 = vector.extract_strided_slice %1 {offsets = [0, 0], sizes = [1, 32], strides = [1, 1]} : vector<3x32xf32> to vector<1x32xf32>
    %56 = vector.broadcast %54 : vector<64x1xf32> to vector<64x32xf32>
    %57 = vector.broadcast %55 : vector<1x32xf32> to vector<64x32xf32>
    %58 = arith.mulf %56, %57 : vector<64x32xf32>
    %59 = arith.addf %51, %58 : vector<64x32xf32>
    %60 = vector.extract_strided_slice %53 {offsets = [0, 1], sizes = [64, 1], strides = [1, 1]} : vector<64x3xf32> to vector<64x1xf32>
    %61 = vector.extract_strided_slice %1 {offsets = [1, 0], sizes = [1, 32], strides = [1, 1]} : vector<3x32xf32> to vector<1x32xf32>
    %62 = vector.broadcast %60 : vector<64x1xf32> to vector<64x32xf32>
    %63 = vector.broadcast %61 : vector<1x32xf32> to vector<64x32xf32>
    %64 = arith.mulf %62, %63 : vector<64x32xf32>
    %65 = arith.addf %59, %64 : vector<64x32xf32>
    %66 = vector.extract_strided_slice %53 {offsets = [0, 2], sizes = [64, 1], strides = [1, 1]} : vector<64x3xf32> to vector<64x1xf32>
    %67 = vector.extract_strided_slice %1 {offsets = [2, 0], sizes = [1, 32], strides = [1, 1]} : vector<3x32xf32> to vector<1x32xf32>
    %68 = vector.broadcast %66 : vector<64x1xf32> to vector<64x32xf32>
    %69 = vector.broadcast %67 : vector<1x32xf32> to vector<64x32xf32>
    %70 = arith.mulf %68, %69 : vector<64x32xf32>
    %71 = arith.addf %65, %70 : vector<64x32xf32>
    %72 = arith.maximumf %48, %71 : vector<64x32xf32>
    %c3 = arith.constant 3 : index
    %c0_21 = arith.constant 0 : index
    %c0_22 = arith.constant 0 : index
    %73 = vector.load %arg1[%c3, %c0_21, %c0_22] : memref<16x64x4xbf16, #tpu.memory_space<vmem>>, vector<1x64x4xbf16>
    %74 = vector.shape_cast %73 : vector<1x64x4xbf16> to vector<64x4xbf16>
    %cst_23 = arith.constant dense<0.000000e+00> : vector<64x32xf32>
    %75 = tpu.matmul %74, %0, %cst_23 {dimension_numbers = #tpu.dot_dimension_numbers<[1], [0], [0], [1], [0, 0, 1, 1], [], []>} : vector<64x4xbf16>, vector<4x32xbf16>, vector<64x32xf32> -> vector<64x32xf32>
    %c3_24 = arith.constant 3 : index
    %c0_25 = arith.constant 0 : index
    %c0_26 = arith.constant 0 : index
    %76 = vector.load %arg2[%c3_24, %c0_25, %c0_26] : memref<16x64x3xf32, #tpu.memory_space<vmem>>, vector<1x64x3xf32>
    %77 = vector.shape_cast %76 : vector<1x64x3xf32> to vector<64x3xf32>
    %78 = vector.extract_strided_slice %77 {offsets = [0, 0], sizes = [64, 1], strides = [1, 1]} : vector<64x3xf32> to vector<64x1xf32>
    %79 = vector.extract_strided_slice %1 {offsets = [0, 0], sizes = [1, 32], strides = [1, 1]} : vector<3x32xf32> to vector<1x32xf32>
    %80 = vector.broadcast %78 : vector<64x1xf32> to vector<64x32xf32>
    %81 = vector.broadcast %79 : vector<1x32xf32> to vector<64x32xf32>
    %82 = arith.mulf %80, %81 : vector<64x32xf32>
    %83 = arith.addf %75, %82 : vector<64x32xf32>
    %84 = vector.extract_strided_slice %77 {offsets = [0, 1], sizes = [64, 1], strides = [1, 1]} : vector<64x3xf32> to vector<64x1xf32>
    %85 = vector.extract_strided_slice %1 {offsets = [1, 0], sizes = [1, 32], strides = [1, 1]} : vector<3x32xf32> to vector<1x32xf32>
    %86 = vector.broadcast %84 : vector<64x1xf32> to vector<64x32xf32>
    %87 = vector.broadcast %85 : vector<1x32xf32> to vector<64x32xf32>
    %88 = arith.mulf %86, %87 : vector<64x32xf32>
    %89 = arith.addf %83, %88 : vector<64x32xf32>
    %90 = vector.extract_strided_slice %77 {offsets = [0, 2], sizes = [64, 1], strides = [1, 1]} : vector<64x3xf32> to vector<64x1xf32>
    %91 = vector.extract_strided_slice %1 {offsets = [2, 0], sizes = [1, 32], strides = [1, 1]} : vector<3x32xf32> to vector<1x32xf32>
    %92 = vector.broadcast %90 : vector<64x1xf32> to vector<64x32xf32>
    %93 = vector.broadcast %91 : vector<1x32xf32> to vector<64x32xf32>
    %94 = arith.mulf %92, %93 : vector<64x32xf32>
    %95 = arith.addf %89, %94 : vector<64x32xf32>
    %96 = arith.maximumf %72, %95 : vector<64x32xf32>
    %c4 = arith.constant 4 : index
    %c0_27 = arith.constant 0 : index
    %c0_28 = arith.constant 0 : index
    %97 = vector.load %arg1[%c4, %c0_27, %c0_28] : memref<16x64x4xbf16, #tpu.memory_space<vmem>>, vector<1x64x4xbf16>
    %98 = vector.shape_cast %97 : vector<1x64x4xbf16> to vector<64x4xbf16>
    %cst_29 = arith.constant dense<0.000000e+00> : vector<64x32xf32>
    %99 = tpu.matmul %98, %0, %cst_29 {dimension_numbers = #tpu.dot_dimension_numbers<[1], [0], [0], [1], [0, 0, 1, 1], [], []>} : vector<64x4xbf16>, vector<4x32xbf16>, vector<64x32xf32> -> vector<64x32xf32>
    %c4_30 = arith.constant 4 : index
    %c0_31 = arith.constant 0 : index
    %c0_32 = arith.constant 0 : index
    %100 = vector.load %arg2[%c4_30, %c0_31, %c0_32] : memref<16x64x3xf32, #tpu.memory_space<vmem>>, vector<1x64x3xf32>
    %101 = vector.shape_cast %100 : vector<1x64x3xf32> to vector<64x3xf32>
    %102 = vector.extract_strided_slice %101 {offsets = [0, 0], sizes = [64, 1], strides = [1, 1]} : vector<64x3xf32> to vector<64x1xf32>
    %103 = vector.extract_strided_slice %1 {offsets = [0, 0], sizes = [1, 32], strides = [1, 1]} : vector<3x32xf32> to vector<1x32xf32>
    %104 = vector.broadcast %102 : vector<64x1xf32> to vector<64x32xf32>
    %105 = vector.broadcast %103 : vector<1x32xf32> to vector<64x32xf32>
    %106 = arith.mulf %104, %105 : vector<64x32xf32>
    %107 = arith.addf %99, %106 : vector<64x32xf32>
    %108 = vector.extract_strided_slice %101 {offsets = [0, 1], sizes = [64, 1], strides = [1, 1]} : vector<64x3xf32> to vector<64x1xf32>
    %109 = vector.extract_strided_slice %1 {offsets = [1, 0], sizes = [1, 32], strides = [1, 1]} : vector<3x32xf32> to vector<1x32xf32>
    %110 = vector.broadcast %108 : vector<64x1xf32> to vector<64x32xf32>
    %111 = vector.broadcast %109 : vector<1x32xf32> to vector<64x32xf32>
    %112 = arith.mulf %110, %111 : vector<64x32xf32>
    %113 = arith.addf %107, %112 : vector<64x32xf32>
    %114 = vector.extract_strided_slice %101 {offsets = [0, 2], sizes = [64, 1], strides = [1, 1]} : vector<64x3xf32> to vector<64x1xf32>
    %115 = vector.extract_strided_slice %1 {offsets = [2, 0], sizes = [1, 32], strides = [1, 1]} : vector<3x32xf32> to vector<1x32xf32>
    %116 = vector.broadcast %114 : vector<64x1xf32> to vector<64x32xf32>
    %117 = vector.broadcast %115 : vector<1x32xf32> to vector<64x32xf32>
    %118 = arith.mulf %116, %117 : vector<64x32xf32>
    %119 = arith.addf %113, %118 : vector<64x32xf32>
    %120 = arith.maximumf %96, %119 : vector<64x32xf32>
    %c5 = arith.constant 5 : index
    %c0_33 = arith.constant 0 : index
    %c0_34 = arith.constant 0 : index
    %121 = vector.load %arg1[%c5, %c0_33, %c0_34] : memref<16x64x4xbf16, #tpu.memory_space<vmem>>, vector<1x64x4xbf16>
    %122 = vector.shape_cast %121 : vector<1x64x4xbf16> to vector<64x4xbf16>
    %cst_35 = arith.constant dense<0.000000e+00> : vector<64x32xf32>
    %123 = tpu.matmul %122, %0, %cst_35 {dimension_numbers = #tpu.dot_dimension_numbers<[1], [0], [0], [1], [0, 0, 1, 1], [], []>} : vector<64x4xbf16>, vector<4x32xbf16>, vector<64x32xf32> -> vector<64x32xf32>
    %c5_36 = arith.constant 5 : index
    %c0_37 = arith.constant 0 : index
    %c0_38 = arith.constant 0 : index
    %124 = vector.load %arg2[%c5_36, %c0_37, %c0_38] : memref<16x64x3xf32, #tpu.memory_space<vmem>>, vector<1x64x3xf32>
    %125 = vector.shape_cast %124 : vector<1x64x3xf32> to vector<64x3xf32>
    %126 = vector.extract_strided_slice %125 {offsets = [0, 0], sizes = [64, 1], strides = [1, 1]} : vector<64x3xf32> to vector<64x1xf32>
    %127 = vector.extract_strided_slice %1 {offsets = [0, 0], sizes = [1, 32], strides = [1, 1]} : vector<3x32xf32> to vector<1x32xf32>
    %128 = vector.broadcast %126 : vector<64x1xf32> to vector<64x32xf32>
    %129 = vector.broadcast %127 : vector<1x32xf32> to vector<64x32xf32>
    %130 = arith.mulf %128, %129 : vector<64x32xf32>
    %131 = arith.addf %123, %130 : vector<64x32xf32>
    %132 = vector.extract_strided_slice %125 {offsets = [0, 1], sizes = [64, 1], strides = [1, 1]} : vector<64x3xf32> to vector<64x1xf32>
    %133 = vector.extract_strided_slice %1 {offsets = [1, 0], sizes = [1, 32], strides = [1, 1]} : vector<3x32xf32> to vector<1x32xf32>
    %134 = vector.broadcast %132 : vector<64x1xf32> to vector<64x32xf32>
    %135 = vector.broadcast %133 : vector<1x32xf32> to vector<64x32xf32>
    %136 = arith.mulf %134, %135 : vector<64x32xf32>
    %137 = arith.addf %131, %136 : vector<64x32xf32>
    %138 = vector.extract_strided_slice %125 {offsets = [0, 2], sizes = [64, 1], strides = [1, 1]} : vector<64x3xf32> to vector<64x1xf32>
    %139 = vector.extract_strided_slice %1 {offsets = [2, 0], sizes = [1, 32], strides = [1, 1]} : vector<3x32xf32> to vector<1x32xf32>
    %140 = vector.broadcast %138 : vector<64x1xf32> to vector<64x32xf32>
    %141 = vector.broadcast %139 : vector<1x32xf32> to vector<64x32xf32>
    %142 = arith.mulf %140, %141 : vector<64x32xf32>
    %143 = arith.addf %137, %142 : vector<64x32xf32>
    %144 = arith.maximumf %120, %143 : vector<64x32xf32>
    %c6 = arith.constant 6 : index
    %c0_39 = arith.constant 0 : index
    %c0_40 = arith.constant 0 : index
    %145 = vector.load %arg1[%c6, %c0_39, %c0_40] : memref<16x64x4xbf16, #tpu.memory_space<vmem>>, vector<1x64x4xbf16>
    %146 = vector.shape_cast %145 : vector<1x64x4xbf16> to vector<64x4xbf16>
    %cst_41 = arith.constant dense<0.000000e+00> : vector<64x32xf32>
    %147 = tpu.matmul %146, %0, %cst_41 {dimension_numbers = #tpu.dot_dimension_numbers<[1], [0], [0], [1], [0, 0, 1, 1], [], []>} : vector<64x4xbf16>, vector<4x32xbf16>, vector<64x32xf32> -> vector<64x32xf32>
    %c6_42 = arith.constant 6 : index
    %c0_43 = arith.constant 0 : index
    %c0_44 = arith.constant 0 : index
    %148 = vector.load %arg2[%c6_42, %c0_43, %c0_44] : memref<16x64x3xf32, #tpu.memory_space<vmem>>, vector<1x64x3xf32>
    %149 = vector.shape_cast %148 : vector<1x64x3xf32> to vector<64x3xf32>
    %150 = vector.extract_strided_slice %149 {offsets = [0, 0], sizes = [64, 1], strides = [1, 1]} : vector<64x3xf32> to vector<64x1xf32>
    %151 = vector.extract_strided_slice %1 {offsets = [0, 0], sizes = [1, 32], strides = [1, 1]} : vector<3x32xf32> to vector<1x32xf32>
    %152 = vector.broadcast %150 : vector<64x1xf32> to vector<64x32xf32>
    %153 = vector.broadcast %151 : vector<1x32xf32> to vector<64x32xf32>
    %154 = arith.mulf %152, %153 : vector<64x32xf32>
    %155 = arith.addf %147, %154 : vector<64x32xf32>
    %156 = vector.extract_strided_slice %149 {offsets = [0, 1], sizes = [64, 1], strides = [1, 1]} : vector<64x3xf32> to vector<64x1xf32>
    %157 = vector.extract_strided_slice %1 {offsets = [1, 0], sizes = [1, 32], strides = [1, 1]} : vector<3x32xf32> to vector<1x32xf32>
    %158 = vector.broadcast %156 : vector<64x1xf32> to vector<64x32xf32>
    %159 = vector.broadcast %157 : vector<1x32xf32> to vector<64x32xf32>
    %160 = arith.mulf %158, %159 : vector<64x32xf32>
    %161 = arith.addf %155, %160 : vector<64x32xf32>
    %162 = vector.extract_strided_slice %149 {offsets = [0, 2], sizes = [64, 1], strides = [1, 1]} : vector<64x3xf32> to vector<64x1xf32>
    %163 = vector.extract_strided_slice %1 {offsets = [2, 0], sizes = [1, 32], strides = [1, 1]} : vector<3x32xf32> to vector<1x32xf32>
    %164 = vector.broadcast %162 : vector<64x1xf32> to vector<64x32xf32>
    %165 = vector.broadcast %163 : vector<1x32xf32> to vector<64x32xf32>
    %166 = arith.mulf %164, %165 : vector<64x32xf32>
    %167 = arith.addf %161, %166 : vector<64x32xf32>
    %168 = arith.maximumf %144, %167 : vector<64x32xf32>
    %c7 = arith.constant 7 : index
    %c0_45 = arith.constant 0 : index
    %c0_46 = arith.constant 0 : index
    %169 = vector.load %arg1[%c7, %c0_45, %c0_46] : memref<16x64x4xbf16, #tpu.memory_space<vmem>>, vector<1x64x4xbf16>
    %170 = vector.shape_cast %169 : vector<1x64x4xbf16> to vector<64x4xbf16>
    %cst_47 = arith.constant dense<0.000000e+00> : vector<64x32xf32>
    %171 = tpu.matmul %170, %0, %cst_47 {dimension_numbers = #tpu.dot_dimension_numbers<[1], [0], [0], [1], [0, 0, 1, 1], [], []>} : vector<64x4xbf16>, vector<4x32xbf16>, vector<64x32xf32> -> vector<64x32xf32>
    %c7_48 = arith.constant 7 : index
    %c0_49 = arith.constant 0 : index
    %c0_50 = arith.constant 0 : index
    %172 = vector.load %arg2[%c7_48, %c0_49, %c0_50] : memref<16x64x3xf32, #tpu.memory_space<vmem>>, vector<1x64x3xf32>
    %173 = vector.shape_cast %172 : vector<1x64x3xf32> to vector<64x3xf32>
    %174 = vector.extract_strided_slice %173 {offsets = [0, 0], sizes = [64, 1], strides = [1, 1]} : vector<64x3xf32> to vector<64x1xf32>
    %175 = vector.extract_strided_slice %1 {offsets = [0, 0], sizes = [1, 32], strides = [1, 1]} : vector<3x32xf32> to vector<1x32xf32>
    %176 = vector.broadcast %174 : vector<64x1xf32> to vector<64x32xf32>
    %177 = vector.broadcast %175 : vector<1x32xf32> to vector<64x32xf32>
    %178 = arith.mulf %176, %177 : vector<64x32xf32>
    %179 = arith.addf %171, %178 : vector<64x32xf32>
    %180 = vector.extract_strided_slice %173 {offsets = [0, 1], sizes = [64, 1], strides = [1, 1]} : vector<64x3xf32> to vector<64x1xf32>
    %181 = vector.extract_strided_slice %1 {offsets = [1, 0], sizes = [1, 32], strides = [1, 1]} : vector<3x32xf32> to vector<1x32xf32>
    %182 = vector.broadcast %180 : vector<64x1xf32> to vector<64x32xf32>
    %183 = vector.broadcast %181 : vector<1x32xf32> to vector<64x32xf32>
    %184 = arith.mulf %182, %183 : vector<64x32xf32>
    %185 = arith.addf %179, %184 : vector<64x32xf32>
    %186 = vector.extract_strided_slice %173 {offsets = [0, 2], sizes = [64, 1], strides = [1, 1]} : vector<64x3xf32> to vector<64x1xf32>
    %187 = vector.extract_strided_slice %1 {offsets = [2, 0], sizes = [1, 32], strides = [1, 1]} : vector<3x32xf32> to vector<1x32xf32>
    %188 = vector.broadcast %186 : vector<64x1xf32> to vector<64x32xf32>
    %189 = vector.broadcast %187 : vector<1x32xf32> to vector<64x32xf32>
    %190 = arith.mulf %188, %189 : vector<64x32xf32>
    %191 = arith.addf %185, %190 : vector<64x32xf32>
    %192 = arith.maximumf %168, %191 : vector<64x32xf32>
    %c8 = arith.constant 8 : index
    %c0_51 = arith.constant 0 : index
    %c0_52 = arith.constant 0 : index
    %193 = vector.load %arg1[%c8, %c0_51, %c0_52] : memref<16x64x4xbf16, #tpu.memory_space<vmem>>, vector<1x64x4xbf16>
    %194 = vector.shape_cast %193 : vector<1x64x4xbf16> to vector<64x4xbf16>
    %cst_53 = arith.constant dense<0.000000e+00> : vector<64x32xf32>
    %195 = tpu.matmul %194, %0, %cst_53 {dimension_numbers = #tpu.dot_dimension_numbers<[1], [0], [0], [1], [0, 0, 1, 1], [], []>} : vector<64x4xbf16>, vector<4x32xbf16>, vector<64x32xf32> -> vector<64x32xf32>
    %c8_54 = arith.constant 8 : index
    %c0_55 = arith.constant 0 : index
    %c0_56 = arith.constant 0 : index
    %196 = vector.load %arg2[%c8_54, %c0_55, %c0_56] : memref<16x64x3xf32, #tpu.memory_space<vmem>>, vector<1x64x3xf32>
    %197 = vector.shape_cast %196 : vector<1x64x3xf32> to vector<64x3xf32>
    %198 = vector.extract_strided_slice %197 {offsets = [0, 0], sizes = [64, 1], strides = [1, 1]} : vector<64x3xf32> to vector<64x1xf32>
    %199 = vector.extract_strided_slice %1 {offsets = [0, 0], sizes = [1, 32], strides = [1, 1]} : vector<3x32xf32> to vector<1x32xf32>
    %200 = vector.broadcast %198 : vector<64x1xf32> to vector<64x32xf32>
    %201 = vector.broadcast %199 : vector<1x32xf32> to vector<64x32xf32>
    %202 = arith.mulf %200, %201 : vector<64x32xf32>
    %203 = arith.addf %195, %202 : vector<64x32xf32>
    %204 = vector.extract_strided_slice %197 {offsets = [0, 1], sizes = [64, 1], strides = [1, 1]} : vector<64x3xf32> to vector<64x1xf32>
    %205 = vector.extract_strided_slice %1 {offsets = [1, 0], sizes = [1, 32], strides = [1, 1]} : vector<3x32xf32> to vector<1x32xf32>
    %206 = vector.broadcast %204 : vector<64x1xf32> to vector<64x32xf32>
    %207 = vector.broadcast %205 : vector<1x32xf32> to vector<64x32xf32>
    %208 = arith.mulf %206, %207 : vector<64x32xf32>
    %209 = arith.addf %203, %208 : vector<64x32xf32>
    %210 = vector.extract_strided_slice %197 {offsets = [0, 2], sizes = [64, 1], strides = [1, 1]} : vector<64x3xf32> to vector<64x1xf32>
    %211 = vector.extract_strided_slice %1 {offsets = [2, 0], sizes = [1, 32], strides = [1, 1]} : vector<3x32xf32> to vector<1x32xf32>
    %212 = vector.broadcast %210 : vector<64x1xf32> to vector<64x32xf32>
    %213 = vector.broadcast %211 : vector<1x32xf32> to vector<64x32xf32>
    %214 = arith.mulf %212, %213 : vector<64x32xf32>
    %215 = arith.addf %209, %214 : vector<64x32xf32>
    %216 = arith.maximumf %192, %215 : vector<64x32xf32>
    %c9 = arith.constant 9 : index
    %c0_57 = arith.constant 0 : index
    %c0_58 = arith.constant 0 : index
    %217 = vector.load %arg1[%c9, %c0_57, %c0_58] : memref<16x64x4xbf16, #tpu.memory_space<vmem>>, vector<1x64x4xbf16>
    %218 = vector.shape_cast %217 : vector<1x64x4xbf16> to vector<64x4xbf16>
    %cst_59 = arith.constant dense<0.000000e+00> : vector<64x32xf32>
    %219 = tpu.matmul %218, %0, %cst_59 {dimension_numbers = #tpu.dot_dimension_numbers<[1], [0], [0], [1], [0, 0, 1, 1], [], []>} : vector<64x4xbf16>, vector<4x32xbf16>, vector<64x32xf32> -> vector<64x32xf32>
    %c9_60 = arith.constant 9 : index
    %c0_61 = arith.constant 0 : index
    %c0_62 = arith.constant 0 : index
    %220 = vector.load %arg2[%c9_60, %c0_61, %c0_62] : memref<16x64x3xf32, #tpu.memory_space<vmem>>, vector<1x64x3xf32>
    %221 = vector.shape_cast %220 : vector<1x64x3xf32> to vector<64x3xf32>
    %222 = vector.extract_strided_slice %221 {offsets = [0, 0], sizes = [64, 1], strides = [1, 1]} : vector<64x3xf32> to vector<64x1xf32>
    %223 = vector.extract_strided_slice %1 {offsets = [0, 0], sizes = [1, 32], strides = [1, 1]} : vector<3x32xf32> to vector<1x32xf32>
    %224 = vector.broadcast %222 : vector<64x1xf32> to vector<64x32xf32>
    %225 = vector.broadcast %223 : vector<1x32xf32> to vector<64x32xf32>
    %226 = arith.mulf %224, %225 : vector<64x32xf32>
    %227 = arith.addf %219, %226 : vector<64x32xf32>
    %228 = vector.extract_strided_slice %221 {offsets = [0, 1], sizes = [64, 1], strides = [1, 1]} : vector<64x3xf32> to vector<64x1xf32>
    %229 = vector.extract_strided_slice %1 {offsets = [1, 0], sizes = [1, 32], strides = [1, 1]} : vector<3x32xf32> to vector<1x32xf32>
    %230 = vector.broadcast %228 : vector<64x1xf32> to vector<64x32xf32>
    %231 = vector.broadcast %229 : vector<1x32xf32> to vector<64x32xf32>
    %232 = arith.mulf %230, %231 : vector<64x32xf32>
    %233 = arith.addf %227, %232 : vector<64x32xf32>
    %234 = vector.extract_strided_slice %221 {offsets = [0, 2], sizes = [64, 1], strides = [1, 1]} : vector<64x3xf32> to vector<64x1xf32>
    %235 = vector.extract_strided_slice %1 {offsets = [2, 0], sizes = [1, 32], strides = [1, 1]} : vector<3x32xf32> to vector<1x32xf32>
    %236 = vector.broadcast %234 : vector<64x1xf32> to vector<64x32xf32>
    %237 = vector.broadcast %235 : vector<1x32xf32> to vector<64x32xf32>
    %238 = arith.mulf %236, %237 : vector<64x32xf32>
    %239 = arith.addf %233, %238 : vector<64x32xf32>
    %240 = arith.maximumf %216, %239 : vector<64x32xf32>
    %c10 = arith.constant 10 : index
    %c0_63 = arith.constant 0 : index
    %c0_64 = arith.constant 0 : index
    %241 = vector.load %arg1[%c10, %c0_63, %c0_64] : memref<16x64x4xbf16, #tpu.memory_space<vmem>>, vector<1x64x4xbf16>
    %242 = vector.shape_cast %241 : vector<1x64x4xbf16> to vector<64x4xbf16>
    %cst_65 = arith.constant dense<0.000000e+00> : vector<64x32xf32>
    %243 = tpu.matmul %242, %0, %cst_65 {dimension_numbers = #tpu.dot_dimension_numbers<[1], [0], [0], [1], [0, 0, 1, 1], [], []>} : vector<64x4xbf16>, vector<4x32xbf16>, vector<64x32xf32> -> vector<64x32xf32>
    %c10_66 = arith.constant 10 : index
    %c0_67 = arith.constant 0 : index
    %c0_68 = arith.constant 0 : index
    %244 = vector.load %arg2[%c10_66, %c0_67, %c0_68] : memref<16x64x3xf32, #tpu.memory_space<vmem>>, vector<1x64x3xf32>
    %245 = vector.shape_cast %244 : vector<1x64x3xf32> to vector<64x3xf32>
    %246 = vector.extract_strided_slice %245 {offsets = [0, 0], sizes = [64, 1], strides = [1, 1]} : vector<64x3xf32> to vector<64x1xf32>
    %247 = vector.extract_strided_slice %1 {offsets = [0, 0], sizes = [1, 32], strides = [1, 1]} : vector<3x32xf32> to vector<1x32xf32>
    %248 = vector.broadcast %246 : vector<64x1xf32> to vector<64x32xf32>
    %249 = vector.broadcast %247 : vector<1x32xf32> to vector<64x32xf32>
    %250 = arith.mulf %248, %249 : vector<64x32xf32>
    %251 = arith.addf %243, %250 : vector<64x32xf32>
    %252 = vector.extract_strided_slice %245 {offsets = [0, 1], sizes = [64, 1], strides = [1, 1]} : vector<64x3xf32> to vector<64x1xf32>
    %253 = vector.extract_strided_slice %1 {offsets = [1, 0], sizes = [1, 32], strides = [1, 1]} : vector<3x32xf32> to vector<1x32xf32>
    %254 = vector.broadcast %252 : vector<64x1xf32> to vector<64x32xf32>
    %255 = vector.broadcast %253 : vector<1x32xf32> to vector<64x32xf32>
    %256 = arith.mulf %254, %255 : vector<64x32xf32>
    %257 = arith.addf %251, %256 : vector<64x32xf32>
    %258 = vector.extract_strided_slice %245 {offsets = [0, 2], sizes = [64, 1], strides = [1, 1]} : vector<64x3xf32> to vector<64x1xf32>
    %259 = vector.extract_strided_slice %1 {offsets = [2, 0], sizes = [1, 32], strides = [1, 1]} : vector<3x32xf32> to vector<1x32xf32>
    %260 = vector.broadcast %258 : vector<64x1xf32> to vector<64x32xf32>
    %261 = vector.broadcast %259 : vector<1x32xf32> to vector<64x32xf32>
    %262 = arith.mulf %260, %261 : vector<64x32xf32>
    %263 = arith.addf %257, %262 : vector<64x32xf32>
    %264 = arith.maximumf %240, %263 : vector<64x32xf32>
    %c11 = arith.constant 11 : index
    %c0_69 = arith.constant 0 : index
    %c0_70 = arith.constant 0 : index
    %265 = vector.load %arg1[%c11, %c0_69, %c0_70] : memref<16x64x4xbf16, #tpu.memory_space<vmem>>, vector<1x64x4xbf16>
    %266 = vector.shape_cast %265 : vector<1x64x4xbf16> to vector<64x4xbf16>
    %cst_71 = arith.constant dense<0.000000e+00> : vector<64x32xf32>
    %267 = tpu.matmul %266, %0, %cst_71 {dimension_numbers = #tpu.dot_dimension_numbers<[1], [0], [0], [1], [0, 0, 1, 1], [], []>} : vector<64x4xbf16>, vector<4x32xbf16>, vector<64x32xf32> -> vector<64x32xf32>
    %c11_72 = arith.constant 11 : index
    %c0_73 = arith.constant 0 : index
    %c0_74 = arith.constant 0 : index
    %268 = vector.load %arg2[%c11_72, %c0_73, %c0_74] : memref<16x64x3xf32, #tpu.memory_space<vmem>>, vector<1x64x3xf32>
    %269 = vector.shape_cast %268 : vector<1x64x3xf32> to vector<64x3xf32>
    %270 = vector.extract_strided_slice %269 {offsets = [0, 0], sizes = [64, 1], strides = [1, 1]} : vector<64x3xf32> to vector<64x1xf32>
    %271 = vector.extract_strided_slice %1 {offsets = [0, 0], sizes = [1, 32], strides = [1, 1]} : vector<3x32xf32> to vector<1x32xf32>
    %272 = vector.broadcast %270 : vector<64x1xf32> to vector<64x32xf32>
    %273 = vector.broadcast %271 : vector<1x32xf32> to vector<64x32xf32>
    %274 = arith.mulf %272, %273 : vector<64x32xf32>
    %275 = arith.addf %267, %274 : vector<64x32xf32>
    %276 = vector.extract_strided_slice %269 {offsets = [0, 1], sizes = [64, 1], strides = [1, 1]} : vector<64x3xf32> to vector<64x1xf32>
    %277 = vector.extract_strided_slice %1 {offsets = [1, 0], sizes = [1, 32], strides = [1, 1]} : vector<3x32xf32> to vector<1x32xf32>
    %278 = vector.broadcast %276 : vector<64x1xf32> to vector<64x32xf32>
    %279 = vector.broadcast %277 : vector<1x32xf32> to vector<64x32xf32>
    %280 = arith.mulf %278, %279 : vector<64x32xf32>
    %281 = arith.addf %275, %280 : vector<64x32xf32>
    %282 = vector.extract_strided_slice %269 {offsets = [0, 2], sizes = [64, 1], strides = [1, 1]} : vector<64x3xf32> to vector<64x1xf32>
    %283 = vector.extract_strided_slice %1 {offsets = [2, 0], sizes = [1, 32], strides = [1, 1]} : vector<3x32xf32> to vector<1x32xf32>
    %284 = vector.broadcast %282 : vector<64x1xf32> to vector<64x32xf32>
    %285 = vector.broadcast %283 : vector<1x32xf32> to vector<64x32xf32>
    %286 = arith.mulf %284, %285 : vector<64x32xf32>
    %287 = arith.addf %281, %286 : vector<64x32xf32>
    %288 = arith.maximumf %264, %287 : vector<64x32xf32>
    %c12 = arith.constant 12 : index
    %c0_75 = arith.constant 0 : index
    %c0_76 = arith.constant 0 : index
    %289 = vector.load %arg1[%c12, %c0_75, %c0_76] : memref<16x64x4xbf16, #tpu.memory_space<vmem>>, vector<1x64x4xbf16>
    %290 = vector.shape_cast %289 : vector<1x64x4xbf16> to vector<64x4xbf16>
    %cst_77 = arith.constant dense<0.000000e+00> : vector<64x32xf32>
    %291 = tpu.matmul %290, %0, %cst_77 {dimension_numbers = #tpu.dot_dimension_numbers<[1], [0], [0], [1], [0, 0, 1, 1], [], []>} : vector<64x4xbf16>, vector<4x32xbf16>, vector<64x32xf32> -> vector<64x32xf32>
    %c12_78 = arith.constant 12 : index
    %c0_79 = arith.constant 0 : index
    %c0_80 = arith.constant 0 : index
    %292 = vector.load %arg2[%c12_78, %c0_79, %c0_80] : memref<16x64x3xf32, #tpu.memory_space<vmem>>, vector<1x64x3xf32>
    %293 = vector.shape_cast %292 : vector<1x64x3xf32> to vector<64x3xf32>
    %294 = vector.extract_strided_slice %293 {offsets = [0, 0], sizes = [64, 1], strides = [1, 1]} : vector<64x3xf32> to vector<64x1xf32>
    %295 = vector.extract_strided_slice %1 {offsets = [0, 0], sizes = [1, 32], strides = [1, 1]} : vector<3x32xf32> to vector<1x32xf32>
    %296 = vector.broadcast %294 : vector<64x1xf32> to vector<64x32xf32>
    %297 = vector.broadcast %295 : vector<1x32xf32> to vector<64x32xf32>
    %298 = arith.mulf %296, %297 : vector<64x32xf32>
    %299 = arith.addf %291, %298 : vector<64x32xf32>
    %300 = vector.extract_strided_slice %293 {offsets = [0, 1], sizes = [64, 1], strides = [1, 1]} : vector<64x3xf32> to vector<64x1xf32>
    %301 = vector.extract_strided_slice %1 {offsets = [1, 0], sizes = [1, 32], strides = [1, 1]} : vector<3x32xf32> to vector<1x32xf32>
    %302 = vector.broadcast %300 : vector<64x1xf32> to vector<64x32xf32>
    %303 = vector.broadcast %301 : vector<1x32xf32> to vector<64x32xf32>
    %304 = arith.mulf %302, %303 : vector<64x32xf32>
    %305 = arith.addf %299, %304 : vector<64x32xf32>
    %306 = vector.extract_strided_slice %293 {offsets = [0, 2], sizes = [64, 1], strides = [1, 1]} : vector<64x3xf32> to vector<64x1xf32>
    %307 = vector.extract_strided_slice %1 {offsets = [2, 0], sizes = [1, 32], strides = [1, 1]} : vector<3x32xf32> to vector<1x32xf32>
    %308 = vector.broadcast %306 : vector<64x1xf32> to vector<64x32xf32>
    %309 = vector.broadcast %307 : vector<1x32xf32> to vector<64x32xf32>
    %310 = arith.mulf %308, %309 : vector<64x32xf32>
    %311 = arith.addf %305, %310 : vector<64x32xf32>
    %312 = arith.maximumf %288, %311 : vector<64x32xf32>
    %c13 = arith.constant 13 : index
    %c0_81 = arith.constant 0 : index
    %c0_82 = arith.constant 0 : index
    %313 = vector.load %arg1[%c13, %c0_81, %c0_82] : memref<16x64x4xbf16, #tpu.memory_space<vmem>>, vector<1x64x4xbf16>
    %314 = vector.shape_cast %313 : vector<1x64x4xbf16> to vector<64x4xbf16>
    %cst_83 = arith.constant dense<0.000000e+00> : vector<64x32xf32>
    %315 = tpu.matmul %314, %0, %cst_83 {dimension_numbers = #tpu.dot_dimension_numbers<[1], [0], [0], [1], [0, 0, 1, 1], [], []>} : vector<64x4xbf16>, vector<4x32xbf16>, vector<64x32xf32> -> vector<64x32xf32>
    %c13_84 = arith.constant 13 : index
    %c0_85 = arith.constant 0 : index
    %c0_86 = arith.constant 0 : index
    %316 = vector.load %arg2[%c13_84, %c0_85, %c0_86] : memref<16x64x3xf32, #tpu.memory_space<vmem>>, vector<1x64x3xf32>
    %317 = vector.shape_cast %316 : vector<1x64x3xf32> to vector<64x3xf32>
    %318 = vector.extract_strided_slice %317 {offsets = [0, 0], sizes = [64, 1], strides = [1, 1]} : vector<64x3xf32> to vector<64x1xf32>
    %319 = vector.extract_strided_slice %1 {offsets = [0, 0], sizes = [1, 32], strides = [1, 1]} : vector<3x32xf32> to vector<1x32xf32>
    %320 = vector.broadcast %318 : vector<64x1xf32> to vector<64x32xf32>
    %321 = vector.broadcast %319 : vector<1x32xf32> to vector<64x32xf32>
    %322 = arith.mulf %320, %321 : vector<64x32xf32>
    %323 = arith.addf %315, %322 : vector<64x32xf32>
    %324 = vector.extract_strided_slice %317 {offsets = [0, 1], sizes = [64, 1], strides = [1, 1]} : vector<64x3xf32> to vector<64x1xf32>
    %325 = vector.extract_strided_slice %1 {offsets = [1, 0], sizes = [1, 32], strides = [1, 1]} : vector<3x32xf32> to vector<1x32xf32>
    %326 = vector.broadcast %324 : vector<64x1xf32> to vector<64x32xf32>
    %327 = vector.broadcast %325 : vector<1x32xf32> to vector<64x32xf32>
    %328 = arith.mulf %326, %327 : vector<64x32xf32>
    %329 = arith.addf %323, %328 : vector<64x32xf32>
    %330 = vector.extract_strided_slice %317 {offsets = [0, 2], sizes = [64, 1], strides = [1, 1]} : vector<64x3xf32> to vector<64x1xf32>
    %331 = vector.extract_strided_slice %1 {offsets = [2, 0], sizes = [1, 32], strides = [1, 1]} : vector<3x32xf32> to vector<1x32xf32>
    %332 = vector.broadcast %330 : vector<64x1xf32> to vector<64x32xf32>
    %333 = vector.broadcast %331 : vector<1x32xf32> to vector<64x32xf32>
    %334 = arith.mulf %332, %333 : vector<64x32xf32>
    %335 = arith.addf %329, %334 : vector<64x32xf32>
    %336 = arith.maximumf %312, %335 : vector<64x32xf32>
    %c14 = arith.constant 14 : index
    %c0_87 = arith.constant 0 : index
    %c0_88 = arith.constant 0 : index
    %337 = vector.load %arg1[%c14, %c0_87, %c0_88] : memref<16x64x4xbf16, #tpu.memory_space<vmem>>, vector<1x64x4xbf16>
    %338 = vector.shape_cast %337 : vector<1x64x4xbf16> to vector<64x4xbf16>
    %cst_89 = arith.constant dense<0.000000e+00> : vector<64x32xf32>
    %339 = tpu.matmul %338, %0, %cst_89 {dimension_numbers = #tpu.dot_dimension_numbers<[1], [0], [0], [1], [0, 0, 1, 1], [], []>} : vector<64x4xbf16>, vector<4x32xbf16>, vector<64x32xf32> -> vector<64x32xf32>
    %c14_90 = arith.constant 14 : index
    %c0_91 = arith.constant 0 : index
    %c0_92 = arith.constant 0 : index
    %340 = vector.load %arg2[%c14_90, %c0_91, %c0_92] : memref<16x64x3xf32, #tpu.memory_space<vmem>>, vector<1x64x3xf32>
    %341 = vector.shape_cast %340 : vector<1x64x3xf32> to vector<64x3xf32>
    %342 = vector.extract_strided_slice %341 {offsets = [0, 0], sizes = [64, 1], strides = [1, 1]} : vector<64x3xf32> to vector<64x1xf32>
    %343 = vector.extract_strided_slice %1 {offsets = [0, 0], sizes = [1, 32], strides = [1, 1]} : vector<3x32xf32> to vector<1x32xf32>
    %344 = vector.broadcast %342 : vector<64x1xf32> to vector<64x32xf32>
    %345 = vector.broadcast %343 : vector<1x32xf32> to vector<64x32xf32>
    %346 = arith.mulf %344, %345 : vector<64x32xf32>
    %347 = arith.addf %339, %346 : vector<64x32xf32>
    %348 = vector.extract_strided_slice %341 {offsets = [0, 1], sizes = [64, 1], strides = [1, 1]} : vector<64x3xf32> to vector<64x1xf32>
    %349 = vector.extract_strided_slice %1 {offsets = [1, 0], sizes = [1, 32], strides = [1, 1]} : vector<3x32xf32> to vector<1x32xf32>
    %350 = vector.broadcast %348 : vector<64x1xf32> to vector<64x32xf32>
    %351 = vector.broadcast %349 : vector<1x32xf32> to vector<64x32xf32>
    %352 = arith.mulf %350, %351 : vector<64x32xf32>
    %353 = arith.addf %347, %352 : vector<64x32xf32>
    %354 = vector.extract_strided_slice %341 {offsets = [0, 2], sizes = [64, 1], strides = [1, 1]} : vector<64x3xf32> to vector<64x1xf32>
    %355 = vector.extract_strided_slice %1 {offsets = [2, 0], sizes = [1, 32], strides = [1, 1]} : vector<3x32xf32> to vector<1x32xf32>
    %356 = vector.broadcast %354 : vector<64x1xf32> to vector<64x32xf32>
    %357 = vector.broadcast %355 : vector<1x32xf32> to vector<64x32xf32>
    %358 = arith.mulf %356, %357 : vector<64x32xf32>
    %359 = arith.addf %353, %358 : vector<64x32xf32>
    %360 = arith.maximumf %336, %359 : vector<64x32xf32>
    %c15 = arith.constant 15 : index
    %c0_93 = arith.constant 0 : index
    %c0_94 = arith.constant 0 : index
    %361 = vector.load %arg1[%c15, %c0_93, %c0_94] : memref<16x64x4xbf16, #tpu.memory_space<vmem>>, vector<1x64x4xbf16>
    %362 = vector.shape_cast %361 : vector<1x64x4xbf16> to vector<64x4xbf16>
    %cst_95 = arith.constant dense<0.000000e+00> : vector<64x32xf32>
    %363 = tpu.matmul %362, %0, %cst_95 {dimension_numbers = #tpu.dot_dimension_numbers<[1], [0], [0], [1], [0, 0, 1, 1], [], []>} : vector<64x4xbf16>, vector<4x32xbf16>, vector<64x32xf32> -> vector<64x32xf32>
    %c15_96 = arith.constant 15 : index
    %c0_97 = arith.constant 0 : index
    %c0_98 = arith.constant 0 : index
    %364 = vector.load %arg2[%c15_96, %c0_97, %c0_98] : memref<16x64x3xf32, #tpu.memory_space<vmem>>, vector<1x64x3xf32>
    %365 = vector.shape_cast %364 : vector<1x64x3xf32> to vector<64x3xf32>
    %366 = vector.extract_strided_slice %365 {offsets = [0, 0], sizes = [64, 1], strides = [1, 1]} : vector<64x3xf32> to vector<64x1xf32>
    %367 = vector.extract_strided_slice %1 {offsets = [0, 0], sizes = [1, 32], strides = [1, 1]} : vector<3x32xf32> to vector<1x32xf32>
    %368 = vector.broadcast %366 : vector<64x1xf32> to vector<64x32xf32>
    %369 = vector.broadcast %367 : vector<1x32xf32> to vector<64x32xf32>
    %370 = arith.mulf %368, %369 : vector<64x32xf32>
    %371 = arith.addf %363, %370 : vector<64x32xf32>
    %372 = vector.extract_strided_slice %365 {offsets = [0, 1], sizes = [64, 1], strides = [1, 1]} : vector<64x3xf32> to vector<64x1xf32>
    %373 = vector.extract_strided_slice %1 {offsets = [1, 0], sizes = [1, 32], strides = [1, 1]} : vector<3x32xf32> to vector<1x32xf32>
    %374 = vector.broadcast %372 : vector<64x1xf32> to vector<64x32xf32>
    %375 = vector.broadcast %373 : vector<1x32xf32> to vector<64x32xf32>
    %376 = arith.mulf %374, %375 : vector<64x32xf32>
    %377 = arith.addf %371, %376 : vector<64x32xf32>
    %378 = vector.extract_strided_slice %365 {offsets = [0, 2], sizes = [64, 1], strides = [1, 1]} : vector<64x3xf32> to vector<64x1xf32>
    %379 = vector.extract_strided_slice %1 {offsets = [2, 0], sizes = [1, 32], strides = [1, 1]} : vector<3x32xf32> to vector<1x32xf32>
    %380 = vector.broadcast %378 : vector<64x1xf32> to vector<64x32xf32>
    %381 = vector.broadcast %379 : vector<1x32xf32> to vector<64x32xf32>
    %382 = arith.mulf %380, %381 : vector<64x32xf32>
    %383 = arith.addf %377, %382 : vector<64x32xf32>
    %384 = arith.maximumf %360, %383 : vector<64x32xf32>
    %c0_99 = arith.constant 0 : index
    %c0_100 = arith.constant 0 : index
    %385 = vector.load %arg5[%c0_99, %c0_100] : memref<1x32xf32, #tpu.memory_space<vmem>>, vector<1x32xf32>
    %386 = vector.broadcast %385 : vector<1x32xf32> to vector<64x32xf32>
    %387 = arith.addf %384, %386 : vector<64x32xf32>
    %cst_101 = arith.constant 0.000000e+00 : f32
    %388 = vector.broadcast %cst_101 : f32 to vector<64x32xf32>
    %389 = arith.maximumf %387, %388 : vector<64x32xf32>
    %c0_102 = arith.constant 0 : index
    %c0_103 = arith.constant 0 : index
    %390 = vector.load %arg6[%c0_102, %c0_103] : memref<64x32xf32, #tpu.memory_space<vmem>>, vector<64x32xf32>
    tpu.vector_store %arg6[%c0_102, %c0_103], %389 {strides = array<i32>} : memref<64x32xf32, #tpu.memory_space<vmem>>, vector<64x32xf32>,
    return
  }
  func.func @transform_0(%arg0: i32) -> (i32, i32, i32) {
    %c0_i32 = arith.constant 0 : i32
    %c0_i32_0 = arith.constant 0 : i32
    %c0_i32_1 = arith.constant 0 : i32
    return %c0_i32, %arg0, %c0_i32_0 : i32, i32, i32
  }
  func.func @transform_1(%arg0: i32) -> (i32, i32, i32) {
    %c0_i32 = arith.constant 0 : i32
    %c0_i32_0 = arith.constant 0 : i32
    %c0_i32_1 = arith.constant 0 : i32
    return %c0_i32, %arg0, %c0_i32_0 : i32, i32, i32
  }
  func.func @transform_2(%arg0: i32) -> (i32, i32) {
    %c0_i32 = arith.constant 0 : i32
    %c0_i32_0 = arith.constant 0 : i32
    %c0_i32_1 = arith.constant 0 : i32
    return %c0_i32, %c0_i32_0 : i32, i32
  }
  func.func @transform_3(%arg0: i32) -> (i32, i32) {
    %c0_i32 = arith.constant 0 : i32
    %c0_i32_0 = arith.constant 0 : i32
    %c0_i32_1 = arith.constant 0 : i32
    return %c0_i32, %c0_i32_0 : i32, i32
  }
  func.func @transform_4(%arg0: i32) -> (i32, i32) {
    %c0_i32 = arith.constant 0 : i32
    %c0_i32_0 = arith.constant 0 : i32
    %c0_i32_1 = arith.constant 0 : i32
    return %c0_i32, %c0_i32_0 : i32, i32
  }
  func.func @transform_5(%arg0: i32) -> (i32, i32) {
    %c0_i32 = arith.constant 0 : i32
    %c0_i32_0 = arith.constant 0 : i32
    return %arg0, %c0_i32 : i32, i32
  }
}

</mosaic_0001>

<llo_original>
// kernel: tpu_custom_call.1
$region0: #{tpu_custom_call.1}
  #allocation0 [shape = 'u32[]', space=smem, size = 0x4, offset = 0x4, fixed_abs, tag = 'smem constant byte address 0x4 - core index']
  #allocation1 [shape = 'u32[144,128]{1,0:T(1,128)}', space=vmem, size = 0x12000, scoped, tag = 'internal scratch']
  %s0 = inlined_call_operand.vmem [shape: bf16[16,128,4], index: 0, kind: input, shape index: {}]
  %s1 = inlined_call_operand.vmem [shape: f32[16,128,3], index: 1, kind: input, shape index: {}]
  %s2 = inlined_call_operand.vmem [shape: bf16[4,32], index: 2, kind: input, shape index: {}]
  %s3 = inlined_call_operand.vmem [shape: f32[3,32], index: 3, kind: input, shape index: {}]
  %s4 = inlined_call_operand.vmem [shape: f32[1,32], index: 4, kind: input, shape index: {}]
  %s5 = inlined_call_operand.vmem [shape: f32[128,32], index: 5, kind: output, shape index: {}]
  %s6 = sld [smem:[#allocation0]]
  $region132: #{tpu_custom_call.1} parent=0
    _
  %s8 = ssub.s32 1, %s6
  %s9 = scalar_select 0, %s8, %s6
  $region1: #{tpu_custom_call.1} parent=0
    #allocation2 [shape = 'u8[524288]{0}', space=vmem, size = 0x80000, scoped, tag = 'input window, operand 0']
    #allocation3 [shape = 'u8[1048576]{0}', space=vmem, size = 0x100000, scoped, tag = 'input window, operand 1']
    loop: start=0, step=1, limit=4
    $region2: #{tpu_custom_call.1} parent=1 // loop_pre_header
      _
    $region3: #{tpu_custom_call.1} parent=1 // loop_header
      %s11 = sphi 0, %s15
      %p12 = scmp.ge.s32.totalorder %s11, 4
      %s21 = sphi 0, %s23
      %s24 = sphi 0, %s21
      %s25 = sphi 0, %s24
      %s41 = sphi 0, %s25
      %s47 = sphi 0, %s49
      %s50 = sphi 0, %s47
      %s51 = sphi 0, %s50
      %s67 = sphi 0, %s51
      %s71 = sphi 0, %s71
      %s73 = sphi 0, %s71
      %s74 = sphi 0, %s73
      %s88 = sphi 0, %s74
      %s92 = sphi 0, %s92
      %s94 = sphi 0, %s92
      %s95 = sphi 0, %s94
      %s109 = sphi 0, %s95
      %s113 = sphi 0, %s113
      %s115 = sphi 0, %s113
      %s116 = sphi 0, %s115
      %s130 = sphi 0, %s116
      %s136 = sphi 0, %s138
      %s139 = sphi 0, %s136
      %s140 = sphi 0, %s139
      %s156 = sphi 0, %s140
    $region4: #{tpu_custom_call.1} parent=1 // loop_header_branch
      %14 = sbr.rel (%p12) target = $region8
    $region5: #{tpu_custom_call.1} parent=1 // loop_body
      %s16 = ssub.s32 %s11, 1
      %s17 = ssub.s32 %s11, 2
      %s18 = sadd.s32 %s11, 1
      %s19 = ssub.s32 %s11, %s18
      %p20 = scmp.eq.s32.totalorder %s19, 0
      %s22 = sadd.s32 %s21, 1
      %s23 = scalar_select %p20, %s21, %s22
      %p26 = pneg %p20
      %p27 = scmp.eq.s32.totalorder %s11, 1
      %p28 = por %p26, %p27
      %p29 = scmp.ne.s32.totalorder %s21, %s24
      %p30 = scmp.eq.s32.totalorder %s11, 0
      %p31 = por %p29, %p30
      %p32 = scmp.ne.s32.totalorder %s21, %s24
      %p33 = scmp.eq.s32.totalorder %s16, 1
      %p34 = por %p32, %p33
      %p35 = scmp.ne.s32.totalorder %s24, %s25
      %p36 = scmp.eq.s32.totalorder %s16, 0
      %p37 = por %p35, %p36
      %p38 = scmp.ne.s32.totalorder %s24, %s25
      %p39 = scmp.eq.s32.totalorder %s17, 1
      %p40 = por %p38, %p39
      %p42 = scmp.ne.s32.totalorder %s25, %s41
      %p43 = scmp.eq.s32.totalorder %s17, 0
      %p44 = por %p42, %p43
      %s45 = ssub.s32 %s11, %s18
      %p46 = scmp.eq.s32.totalorder %s45, 0
      %s48 = sadd.s32 %s47, 1
      %s49 = scalar_select %p46, %s47, %s48
      %p52 = pneg %p46
      %p53 = scmp.eq.s32.totalorder %s11, 1
      %p54 = por %p52, %p53
      %p55 = scmp.ne.s32.totalorder %s47, %s50
      %p56 = scmp.eq.s32.totalorder %s11, 0
      %p57 = por %p55, %p56
      %p58 = scmp.ne.s32.totalorder %s47, %s50
      %p59 = scmp.eq.s32.totalorder %s16, 1
      %p60 = por %p58, %p59
      %p61 = scmp.ne.s32.totalorder %s50, %s51
      %p62 = scmp.eq.s32.totalorder %s16, 0
      %p63 = por %p61, %p62
      %p64 = scmp.ne.s32.totalorder %s50, %s51
      %p65 = scmp.eq.s32.totalorder %s17, 1
      %p66 = por %p64, %p65
      %p68 = scmp.ne.s32.totalorder %s51, %s67
      %p69 = scmp.eq.s32.totalorder %s17, 0
      %p70 = por %p68, %p69
      %s72 = sadd.s32 %s71, 1
      %p75 = scmp.eq.s32.totalorder %s11, 1
      %p76 = scmp.ne.s32.totalorder %s71, %s73
      %p77 = scmp.eq.s32.totalorder %s11, 0
      %p78 = por %p76, %p77
      %p79 = scmp.ne.s32.totalorder %s71, %s73
      %p80 = scmp.eq.s32.totalorder %s16, 1
      %p81 = por %p79, %p80
      %p82 = scmp.ne.s32.totalorder %s73, %s74
      %p83 = scmp.eq.s32.totalorder %s16, 0
      %p84 = por %p82, %p83
      %p85 = scmp.ne.s32.totalorder %s73, %s74
      %p86 = scmp.eq.s32.totalorder %s17, 1
      %p87 = por %p85, %p86
      %p89 = scmp.ne.s32.totalorder %s74, %s88
      %p90 = scmp.eq.s32.totalorder %s17, 0
      %p91 = por %p89, %p90
      %s93 = sadd.s32 %s92, 1
      %p96 = scmp.eq.s32.totalorder %s11, 1
      %p97 = scmp.ne.s32.totalorder %s92, %s94
      %p98 = scmp.eq.s32.totalorder %s11, 0
      %p99 = por %p97, %p98
      %p100 = scmp.ne.s32.totalorder %s92, %s94
      %p101 = scmp.eq.s32.totalorder %s16, 1
      %p102 = por %p100, %p101
      %p103 = scmp.ne.s32.totalorder %s94, %s95
      %p104 = scmp.eq.s32.totalorder %s16, 0
      %p105 = por %p103, %p104
      %p106 = scmp.ne.s32.totalorder %s94, %s95
      %p107 = scmp.eq.s32.totalorder %s17, 1
      %p108 = por %p106, %p107
      %p110 = scmp.ne.s32.totalorder %s95, %s109
      %p111 = scmp.eq.s32.totalorder %s17, 0
      %p112 = por %p110, %p111
      %s114 = sadd.s32 %s113, 1
      %p117 = scmp.eq.s32.totalorder %s11, 1
      %p118 = scmp.ne.s32.totalorder %s113, %s115
      %p119 = scmp.eq.s32.totalorder %s11, 0
      %p120 = por %p118, %p119
      %p121 = scmp.ne.s32.totalorder %s113, %s115
      %p122 = scmp.eq.s32.totalorder %s16, 1
      %p123 = por %p121, %p122
      %p124 = scmp.ne.s32.totalorder %s115, %s116
      %p125 = scmp.eq.s32.totalorder %s16, 0
      %p126 = por %p124, %p125
      %p127 = scmp.ne.s32.totalorder %s115, %s116
      %p128 = scmp.eq.s32.totalorder %s17, 1
      %p129 = por %p127, %p128
      %p131 = scmp.ne.s32.totalorder %s116, %s130
      %p132 = scmp.eq.s32.totalorder %s17, 0
      %p133 = por %p131, %p132
      %s134 = ssub.s32 %s11, %s18
      %p135 = scmp.eq.s32.totalorder %s134, 0
      %s137 = sadd.s32 %s136, 1
      %s138 = scalar_select %p135, %s136, %s137
      %p141 = pneg %p135
      %p142 = scmp.eq.s32.totalorder %s11, 1
      %p143 = por %p141, %p142
      %p144 = scmp.ne.s32.totalorder %s136, %s139
      %p145 = scmp.eq.s32.totalorder %s11, 0
      %p146 = por %p144, %p145
      %p147 = scmp.ne.s32.totalorder %s136, %s139
      %p148 = scmp.eq.s32.totalorder %s16, 1
      %p149 = por %p147, %p148
      %p150 = scmp.ne.s32.totalorder %s139, %s140
      %p151 = scmp.eq.s32.totalorder %s16, 0
      %p152 = por %p150, %p151
      %p153 = scmp.ne.s32.totalorder %s139, %s140
      %p154 = scmp.eq.s32.totalorder %s17, 1
      %p155 = por %p153, %p154
      %p157 = scmp.ne.s32.totalorder %s140, %s156
      %p158 = scmp.eq.s32.totalorder %s17, 0
      %p159 = por %p157, %p158
      %p160 = scmp.le.s32.totalorder 1, %s11
      %p161 = scmp.lt.s32.totalorder %s11, 3
      %p162 = pnand %p160, %p161
      %p163 = pneg %p162
      // Predicated region
      $region9: #{tpu_custom_call.1} parent=5 // pred_check
        _
      $region10: #{tpu_custom_call.1} parent=5 // pred_check_branch
        %165 = sbr.rel (%p162) target = $region12
      $region11: #{tpu_custom_call.1} parent=5 // pred_region
        %s166 = ssub.s32 %s11, 1
        // Predicated region
        $region13: #{tpu_custom_call.1} parent=11 // pred_check
          %p167 = pneg %p84
        $region14: #{tpu_custom_call.1} parent=11 // pred_check_branch
          %169 = sbr.rel (%p167) target = $region16
        $region15: #{tpu_custom_call.1} parent=11 // pred_region
          _
        $region16: #{tpu_custom_call.1} parent=11 // pred_fallthru
          _
        // Predicated region
        $region17: #{tpu_custom_call.1} parent=11 // pred_check
          %p170 = pneg %p105
        $region18: #{tpu_custom_call.1} parent=11 // pred_check_branch
          %172 = sbr.rel (%p170) target = $region20
        $region19: #{tpu_custom_call.1} parent=11 // pred_region
          _
        $region20: #{tpu_custom_call.1} parent=11 // pred_fallthru
          _
        // Predicated region
        $region21: #{tpu_custom_call.1} parent=11 // pred_check
          %p173 = pneg %p126
        $region22: #{tpu_custom_call.1} parent=11 // pred_check_branch
          %175 = sbr.rel (%p173) target = $region24
        $region23: #{tpu_custom_call.1} parent=11 // pred_region
          _
        $region24: #{tpu_custom_call.1} parent=11 // pred_fallthru
          _
      $region12: #{tpu_custom_call.1} parent=5 // pred_fallthru
        _
      %p176 = scmp.lt.s32.totalorder %s11, 2
      // Predicated region
      $region25: #{tpu_custom_call.1} parent=5 // pred_check
        %p177 = pneg %p176
      $region26: #{tpu_custom_call.1} parent=5 // pred_check_branch
        %179 = sbr.rel (%p177) target = $region28
      $region27: #{tpu_custom_call.1} parent=5 // pred_region
        // Predicated region
        $region29: #{tpu_custom_call.1} parent=27 // pred_check
          %p180 = pneg %p31
        $region30: #{tpu_custom_call.1} parent=27 // pred_check_branch
          %182 = sbr.rel (%p180) target = $region32
        $region31: #{tpu_custom_call.1} parent=27 // pred_region
          %s183 = sand.u32 %s21, 1
          %s184 = sand.u32 %s21, 1
          %s185 = smul.addr %s184, 512
          %s186 = scalar_lea.vmem [#allocation2], %s185
          %s187 = smul.u32 8, %s11
          %s188 = smul.addr %s187, 4
          %s189 = scalar_lea.vmem %s0, %s188
          // Predicated region
          $region33: #{tpu_custom_call.1} parent=31 // pred_check
            _
          $region34: #{tpu_custom_call.1} parent=31 // pred_check_branch
            %191 = sbr.rel (0) target = $region36
          $region35: #{tpu_custom_call.1} parent=31 // pred_region
            // Predicated region
            $region37: #{tpu_custom_call.1} parent=35 // pred_check
              _
            $region38: #{tpu_custom_call.1} parent=35 // pred_check_branch
              %193 = sbr.rel target = $region40
            $region39: #{tpu_custom_call.1} parent=35 // pred_region
              // Predicated region
              $region52: #{tpu_custom_call.1} parent=39 // pred_check
                _
              $region53: #{tpu_custom_call.1} parent=39 // pred_check_branch
                %462 = sbr.rel (0) target = $region55
              $region54: #{tpu_custom_call.1} parent=39 // pred_region
                loop: start=0, step=1, limit=1
                $region56: #{tpu_custom_call.1} parent=54 // loop_pre_header
                  _
                $region57: #{tpu_custom_call.1} parent=54 // loop_header
                  %s464 = sphi 0, %s468
                  %p465 = scmp.ge.s32.totalorder %s464, 1
                  %s469 = sphi %s189, %s189
                  %s470 = sphi %s186, %s186
                $region58: #{tpu_custom_call.1} parent=54 // loop_header_branch
                  %467 = sbr.rel (%p465) target = $region62
                $region59: #{tpu_custom_call.1} parent=54 // loop_body
                  _
                $region60: #{tpu_custom_call.1} parent=54 // loop_footer
                  %s468 = sadd.s32 1, %s464
                $region61: #{tpu_custom_call.1} parent=54 // loop_footer_branch
                  %463 = sbr.rel target = $region57
                $region62: #{tpu_custom_call.1} parent=54 // loop_exit
                  _
                loop: start=0, step=1, limit=1
                $region63: #{tpu_custom_call.1} parent=54 // loop_pre_header
                  _
                $region64: #{tpu_custom_call.1} parent=54 // loop_header
                  %s473 = sphi 0, %s477
                  %p474 = scmp.ge.s32.totalorder %s473, 1
                  %s478 = sphi %s189, %s189
                  %s479 = sphi %s186, %s186
                $region65: #{tpu_custom_call.1} parent=54 // loop_header_branch
                  %476 = sbr.rel (%p474) target = $region69
                $region66: #{tpu_custom_call.1} parent=54 // loop_body
                  %v480 = vld [vmem:[%s478] sm:$0xf]
                  %481 = vst [vmem:[%s479] sm:$0xf] %v480
                  %v482 = vld [vmem:[%s478 + $0x4] sm:$0xf]
                  %483 = vst [vmem:[%s479 + $0x4] sm:$0xf] %v482
                  %v484 = vld [vmem:[%s478 + $0x8] sm:$0xf]
                  %485 = vst [vmem:[%s479 + $0x8] sm:$0xf] %v484
                  %v486 = vld [vmem:[%s478 + $0xc] sm:$0xf]
                  %487 = vst [vmem:[%s479 + $0xc] sm:$0xf] %v486
                  %v488 = vld [vmem:[%s478 + $0x10] sm:$0xf]
                  %489 = vst [vmem:[%s479 + $0x10] sm:$0xf] %v488
                  %v490 = vld [vmem:[%s478 + $0x14] sm:$0xf]
                  %491 = vst [vmem:[%s479 + $0x14] sm:$0xf] %v490
                  %v492 = vld [vmem:[%s478 + $0x18] sm:$0xf]
                  %493 = vst [vmem:[%s479 + $0x18] sm:$0xf] %v492
                  %v494 = vld [vmem:[%s478 + $0x1c] sm:$0xf]
                  %495 = vst [vmem:[%s479 + $0x1c] sm:$0xf] %v494
                  %v496 = vld [vmem:[%s478 + $0x40] sm:$0xf]
                  %497 = vst [vmem:[%s479 + $0x20] sm:$0xf] %v496
                  %v498 = vld [vmem:[%s478 + $0x44] sm:$0xf]
                  %499 = vst [vmem:[%s479 + $0x24] sm:$0xf] %v498
                  %v500 = vld [vmem:[%s478 + $0x48] sm:$0xf]
                  %501 = vst [vmem:[%s479 + $0x28] sm:$0xf] %v500
                  %v502 = vld [vmem:[%s478 + $0x4c] sm:$0xf]
                  %503 = vst [vmem:[%s479 + $0x2c] sm:$0xf] %v502
                  %v504 = vld [vmem:[%s478 + $0x50] sm:$0xf]
                  %505 = vst [vmem:[%s479 + $0x30] sm:$0xf] %v504
                  %v506 = vld [vmem:[%s478 + $0x54] sm:$0xf]
                  %507 = vst [vmem:[%s479 + $0x34] sm:$0xf] %v506
                  %v508 = vld [vmem:[%s478 + $0x58] sm:$0xf]
                  %509 = vst [vmem:[%s479 + $0x38] sm:$0xf] %v508
                  %v510 = vld [vmem:[%s478 + $0x5c] sm:$0xf]
                  %511 = vst [vmem:[%s479 + $0x3c] sm:$0xf] %v510
                  %v512 = vld [vmem:[%s478 + $0x80] sm:$0xf]
                  %513 = vst [vmem:[%s479 + $0x40] sm:$0xf] %v512
                  %v514 = vld [vmem:[%s478 + $0x84] sm:$0xf]
                  %515 = vst [vmem:[%s479 + $0x44] sm:$0xf] %v514
                  %v516 = vld [vmem:[%s478 + $0x88] sm:$0xf]
                  %517 = vst [vmem:[%s479 + $0x48] sm:$0xf] %v516
                  %v518 = vld [vmem:[%s478 + $0x8c] sm:$0xf]
                  %519 = vst [vmem:[%s479 + $0x4c] sm:$0xf] %v518
                  %v520 = vld [vmem:[%s478 + $0x90] sm:$0xf]
                  %521 = vst [vmem:[%s479 + $0x50] sm:$0xf] %v520
                  %v522 = vld [vmem:[%s478 + $0x94] sm:$0xf]
                  %523 = vst [vmem:[%s479 + $0x54] sm:$0xf] %v522
                  %v524 = vld [vmem:[%s478 + $0x98] sm:$0xf]
                  %525 = vst [vmem:[%s479 + $0x58] sm:$0xf] %v524
                  %v526 = vld [vmem:[%s478 + $0x9c] sm:$0xf]
                  %527 = vst [vmem:[%s479 + $0x5c] sm:$0xf] %v526
                  %v528 = vld [vmem:[%s478 + $0xc0] sm:$0xf]
                  %529 = vst [vmem:[%s479 + $0x60] sm:$0xf] %v528
                  %v530 = vld [vmem:[%s478 + $0xc4] sm:$0xf]
                  %531 = vst [vmem:[%s479 + $0x64] sm:$0xf] %v530
                  %v532 = vld [vmem:[%s478 + $0xc8] sm:$0xf]
                  %533 = vst [vmem:[%s479 + $0x68] sm:$0xf] %v532
                  %v534 = vld [vmem:[%s478 + $0xcc] sm:$0xf]
                  %535 = vst [vmem:[%s479 + $0x6c] sm:$0xf] %v534
                  %v536 = vld [vmem:[%s478 + $0xd0] sm:$0xf]
                  %537 = vst [vmem:[%s479 + $0x70] sm:$0xf] %v536
                  %v538 = vld [vmem:[%s478 + $0xd4] sm:$0xf]
                  %539 = vst [vmem:[%s479 + $0x74] sm:$0xf] %v538
                  %v540 = vld [vmem:[%s478 + $0xd8] sm:$0xf]
                  %541 = vst [vmem:[%s479 + $0x78] sm:$0xf] %v540
                  %v542 = vld [vmem:[%s478 + $0xdc] sm:$0xf]
                  %543 = vst [vmem:[%s479 + $0x7c] sm:$0xf] %v542
                  %v544 = vld [vmem:[%s478 + $0x100] sm:$0xf]
                  %545 = vst [vmem:[%s479 + $0x80] sm:$0xf] %v544
                  %v546 = vld [vmem:[%s478 + $0x104] sm:$0xf]
                  %547 = vst [vmem:[%s479 + $0x84] sm:$0xf] %v546
                  %v548 = vld [vmem:[%s478 + $0x108] sm:$0xf]
                  %549 = vst [vmem:[%s479 + $0x88] sm:$0xf] %v548
                  %v550 = vld [vmem:[%s478 + $0x10c] sm:$0xf]
                  %551 = vst [vmem:[%s479 + $0x8c] sm:$0xf] %v550
                  %v552 = vld [vmem:[%s478 + $0x110] sm:$0xf]
                  %553 = vst [vmem:[%s479 + $0x90] sm:$0xf] %v552
                  %v554 = vld [vmem:[%s478 + $0x114] sm:$0xf]
                  %555 = vst [vmem:[%s479 + $0x94] sm:$0xf] %v554
                  %v556 = vld [vmem:[%s478 + $0x118] sm:$0xf]
                  %557 = vst [vmem:[%s479 + $0x98] sm:$0xf] %v556
                  %v558 = vld [vmem:[%s478 + $0x11c] sm:$0xf]
                  %559 = vst [vmem:[%s479 + $0x9c] sm:$0xf] %v558
                  %v560 = vld [vmem:[%s478 + $0x140] sm:$0xf]
                  %561 = vst [vmem:[%s479 + $0xa0] sm:$0xf] %v560
                  %v562 = vld [vmem:[%s478 + $0x144] sm:$0xf]
                  %563 = vst [vmem:[%s479 + $0xa4] sm:$0xf] %v562
                  %v564 = vld [vmem:[%s478 + $0x148] sm:$0xf]
                  %565 = vst [vmem:[%s479 + $0xa8] sm:$0xf] %v564
                  %v566 = vld [vmem:[%s478 + $0x14c] sm:$0xf]
                  %567 = vst [vmem:[%s479 + $0xac] sm:$0xf] %v566
                  %v568 = vld [vmem:[%s478 + $0x150] sm:$0xf]
                  %569 = vst [vmem:[%s479 + $0xb0] sm:$0xf] %v568
                  %v570 = vld [vmem:[%s478 + $0x154] sm:$0xf]
                  %571 = vst [vmem:[%s479 + $0xb4] sm:$0xf] %v570
                  %v572 = vld [vmem:[%s478 + $0x158] sm:$0xf]
                  %573 = vst [vmem:[%s479 + $0xb8] sm:$0xf] %v572
                  %v574 = vld [vmem:[%s478 + $0x15c] sm:$0xf]
                  %575 = vst [vmem:[%s479 + $0xbc] sm:$0xf] %v574
                  %v576 = vld [vmem:[%s478 + $0x180] sm:$0xf]
                  %577 = vst [vmem:[%s479 + $0xc0] sm:$0xf] %v576
                  %v578 = vld [vmem:[%s478 + $0x184] sm:$0xf]
                  %579 = vst [vmem:[%s479 + $0xc4] sm:$0xf] %v578
                  %v580 = vld [vmem:[%s478 + $0x188] sm:$0xf]
                  %581 = vst [vmem:[%s479 + $0xc8] sm:$0xf] %v580
                  %v582 = vld [vmem:[%s478 + $0x18c] sm:$0xf]
                  %583 = vst [vmem:[%s479 + $0xcc] sm:$0xf] %v582
                  %v584 = vld [vmem:[%s478 + $0x190] sm:$0xf]
                  %585 = vst [vmem:[%s479 + $0xd0] sm:$0xf] %v584
                  %v586 = vld [vmem:[%s478 + $0x194] sm:$0xf]
                  %587 = vst [vmem:[%s479 + $0xd4] sm:$0xf] %v586
                  %v588 = vld [vmem:[%s478 + $0x198] sm:$0xf]
                  %589 = vst [vmem:[%s479 + $0xd8] sm:$0xf] %v588
                  %v590 = vld [vmem:[%s478 + $0x19c] sm:$0xf]
                  %591 = vst [vmem:[%s479 + $0xdc] sm:$0xf] %v590
                  %v592 = vld [vmem:[%s478 + $0x1c0] sm:$0xf]
                  %593 = vst [vmem:[%s479 + $0xe0] sm:$0xf] %v592
                  %v594 = vld [vmem:[%s478 + $0x1c4] sm:$0xf]
                  %595 = vst [vmem:[%s479 + $0xe4] sm:$0xf] %v594
                  %v596 = vld [vmem:[%s478 + $0x1c8] sm:$0xf]
                  %597 = vst [vmem:[%s479 + $0xe8] sm:$0xf] %v596
                  %v598 = vld [vmem:[%s478 + $0x1cc] sm:$0xf]
                  %599 = vst [vmem:[%s479 + $0xec] sm:$0xf] %v598
                  %v600 = vld [vmem:[%s478 + $0x1d0] sm:$0xf]
                  %601 = vst [vmem:[%s479 + $0xf0] sm:$0xf] %v600
                  %v602 = vld [vmem:[%s478 + $0x1d4] sm:$0xf]
                  %603 = vst [vmem:[%s479 + $0xf4] sm:$0xf] %v602
                  %v604 = vld [vmem:[%s478 + $0x1d8] sm:$0xf]
                  %605 = vst [vmem:[%s479 + $0xf8] sm:$0xf] %v604
                  %v606 = vld [vmem:[%s478 + $0x1dc] sm:$0xf]
                  %607 = vst [vmem:[%s479 + $0xfc] sm:$0xf] %v606
                  %v608 = vld [vmem:[%s478 + $0x200] sm:$0xf]
                  %609 = vst [vmem:[%s479 + $0x100] sm:$0xf] %v608
                  %v610 = vld [vmem:[%s478 + $0x204] sm:$0xf]
                  %611 = vst [vmem:[%s479 + $0x104] sm:$0xf] %v610
                  %v612 = vld [vmem:[%s478 + $0x208] sm:$0xf]
                  %613 = vst [vmem:[%s479 + $0x108] sm:$0xf] %v612
                  %v614 = vld [vmem:[%s478 + $0x20c] sm:$0xf]
                  %615 = vst [vmem:[%s479 + $0x10c] sm:$0xf] %v614
                  %v616 = vld [vmem:[%s478 + $0x210] sm:$0xf]
                  %617 = vst [vmem:[%s479 + $0x110] sm:$0xf] %v616
                  %v618 = vld [vmem:[%s478 + $0x214] sm:$0xf]
                  %619 = vst [vmem:[%s479 + $0x114] sm:$0xf] %v618
                  %v620 = vld [vmem:[%s478 + $0x218] sm:$0xf]
                  %621 = vst [vmem:[%s479 + $0x118] sm:$0xf] %v620
                  %v622 = vld [vmem:[%s478 + $0x21c] sm:$0xf]
                  %623 = vst [vmem:[%s479 + $0x11c] sm:$0xf] %v622
                  %v624 = vld [vmem:[%s478 + $0x240] sm:$0xf]
                  %625 = vst [vmem:[%s479 + $0x120] sm:$0xf] %v624
                  %v626 = vld [vmem:[%s478 + $0x244] sm:$0xf]
                  %627 = vst [vmem:[%s479 + $0x124] sm:$0xf] %v626
                  %v628 = vld [vmem:[%s478 + $0x248] sm:$0xf]
                  %629 = vst [vmem:[%s479 + $0x128] sm:$0xf] %v628
                  %v630 = vld [vmem:[%s478 + $0x24c] sm:$0xf]
                  %631 = vst [vmem:[%s479 + $0x12c] sm:$0xf] %v630
                  %v632 = vld [vmem:[%s478 + $0x250] sm:$0xf]
                  %633 = vst [vmem:[%s479 + $0x130] sm:$0xf] %v632
                  %v634 = vld [vmem:[%s478 + $0x254] sm:$0xf]
                  %635 = vst [vmem:[%s479 + $0x134] sm:$0xf] %v634
                  %v636 = vld [vmem:[%s478 + $0x258] sm:$0xf]
                  %637 = vst [vmem:[%s479 + $0x138] sm:$0xf] %v636
                  %v638 = vld [vmem:[%s478 + $0x25c] sm:$0xf]
                  %639 = vst [vmem:[%s479 + $0x13c] sm:$0xf] %v638
                  %v640 = vld [vmem:[%s478 + $0x280] sm:$0xf]
                  %641 = vst [vmem:[%s479 + $0x140] sm:$0xf] %v640
                  %v642 = vld [vmem:[%s478 + $0x284] sm:$0xf]
                  %643 = vst [vmem:[%s479 + $0x144] sm:$0xf] %v642
                  %v644 = vld [vmem:[%s478 + $0x288] sm:$0xf]
                  %645 = vst [vmem:[%s479 + $0x148] sm:$0xf] %v644
                  %v646 = vld [vmem:[%s478 + $0x28c] sm:$0xf]
                  %647 = vst [vmem:[%s479 + $0x14c] sm:$0xf] %v646
                  %v648 = vld [vmem:[%s478 + $0x290] sm:$0xf]
                  %649 = vst [vmem:[%s479 + $0x150] sm:$0xf] %v648
                  %v650 = vld [vmem:[%s478 + $0x294] sm:$0xf]
                  %651 = vst [vmem:[%s479 + $0x154] sm:$0xf] %v650
                  %v652 = vld [vmem:[%s478 + $0x298] sm:$0xf]
                  %653 = vst [vmem:[%s479 + $0x158] sm:$0xf] %v652
                  %v654 = vld [vmem:[%s478 + $0x29c] sm:$0xf]
                  %655 = vst [vmem:[%s479 + $0x15c] sm:$0xf] %v654
                  %v656 = vld [vmem:[%s478 + $0x2c0] sm:$0xf]
                  %657 = vst [vmem:[%s479 + $0x160] sm:$0xf] %v656
                  %v658 = vld [vmem:[%s478 + $0x2c4] sm:$0xf]
                  %659 = vst [vmem:[%s479 + $0x164] sm:$0xf] %v658
                  %v660 = vld [vmem:[%s478 + $0x2c8] sm:$0xf]
                  %661 = vst [vmem:[%s479 + $0x168] sm:$0xf] %v660
                  %v662 = vld [vmem:[%s478 + $0x2cc] sm:$0xf]
                  %663 = vst [vmem:[%s479 + $0x16c] sm:$0xf] %v662
                  %v664 = vld [vmem:[%s478 + $0x2d0] sm:$0xf]
                  %665 = vst [vmem:[%s479 + $0x170] sm:$0xf] %v664
                  %v666 = vld [vmem:[%s478 + $0x2d4] sm:$0xf]
                  %667 = vst [vmem:[%s479 + $0x174] sm:$0xf] %v666
                  %v668 = vld [vmem:[%s478 + $0x2d8] sm:$0xf]
                  %669 = vst [vmem:[%s479 + $0x178] sm:$0xf] %v668
                  %v670 = vld [vmem:[%s478 + $0x2dc] sm:$0xf]
                  %671 = vst [vmem:[%s479 + $0x17c] sm:$0xf] %v670
                  %v672 = vld [vmem:[%s478 + $0x300] sm:$0xf]
                  %673 = vst [vmem:[%s479 + $0x180] sm:$0xf] %v672
                  %v674 = vld [vmem:[%s478 + $0x304] sm:$0xf]
                  %675 = vst [vmem:[%s479 + $0x184] sm:$0xf] %v674
                  %v676 = vld [vmem:[%s478 + $0x308] sm:$0xf]
                  %677 = vst [vmem:[%s479 + $0x188] sm:$0xf] %v676
                  %v678 = vld [vmem:[%s478 + $0x30c] sm:$0xf]
                  %679 = vst [vmem:[%s479 + $0x18c] sm:$0xf] %v678
                  %v680 = vld [vmem:[%s478 + $0x310] sm:$0xf]
                  %681 = vst [vmem:[%s479 + $0x190] sm:$0xf] %v680
                  %v682 = vld [vmem:[%s478 + $0x314] sm:$0xf]
                  %683 = vst [vmem:[%s479 + $0x194] sm:$0xf] %v682
                  %v684 = vld [vmem:[%s478 + $0x318] sm:$0xf]
                  %685 = vst [vmem:[%s479 + $0x198] sm:$0xf] %v684
                  %v686 = vld [vmem:[%s478 + $0x31c] sm:$0xf]
                  %687 = vst [vmem:[%s479 + $0x19c] sm:$0xf] %v686
                  %v688 = vld [vmem:[%s478 + $0x340] sm:$0xf]
                  %689 = vst [vmem:[%s479 + $0x1a0] sm:$0xf] %v688
                  %v690 = vld [vmem:[%s478 + $0x344] sm:$0xf]
                  %691 = vst [vmem:[%s479 + $0x1a4] sm:$0xf] %v690
                  %v692 = vld [vmem:[%s478 + $0x348] sm:$0xf]
                  %693 = vst [vmem:[%s479 + $0x1a8] sm:$0xf] %v692
                  %v694 = vld [vmem:[%s478 + $0x34c] sm:$0xf]
                  %695 = vst [vmem:[%s479 + $0x1ac] sm:$0xf] %v694
                  %v696 = vld [vmem:[%s478 + $0x350] sm:$0xf]
                  %697 = vst [vmem:[%s479 + $0x1b0] sm:$0xf] %v696
                  %v698 = vld [vmem:[%s478 + $0x354] sm:$0xf]
                  %699 = vst [vmem:[%s479 + $0x1b4] sm:$0xf] %v698
                  %v700 = vld [vmem:[%s478 + $0x358] sm:$0xf]
                  %701 = vst [vmem:[%s479 + $0x1b8] sm:$0xf] %v700
                  %v702 = vld [vmem:[%s478 + $0x35c] sm:$0xf]
                  %703 = vst [vmem:[%s479 + $0x1bc] sm:$0xf] %v702
                  %v704 = vld [vmem:[%s478 + $0x380] sm:$0xf]
                  %705 = vst [vmem:[%s479 + $0x1c0] sm:$0xf] %v704
                  %v706 = vld [vmem:[%s478 + $0x384] sm:$0xf]
                  %707 = vst [vmem:[%s479 + $0x1c4] sm:$0xf] %v706
                  %v708 = vld [vmem:[%s478 + $0x388] sm:$0xf]
                  %709 = vst [vmem:[%s479 + $0x1c8] sm:$0xf] %v708
                  %v710 = vld [vmem:[%s478 + $0x38c] sm:$0xf]
                  %711 = vst [vmem:[%s479 + $0x1cc] sm:$0xf] %v710
                  %v712 = vld [vmem:[%s478 + $0x390] sm:$0xf]
                  %713 = vst [vmem:[%s479 + $0x1d0] sm:$0xf] %v712
                  %v714 = vld [vmem:[%s478 + $0x394] sm:$0xf]
                  %715 = vst [vmem:[%s479 + $0x1d4] sm:$0xf] %v714
                  %v716 = vld [vmem:[%s478 + $0x398] sm:$0xf]
                  %717 = vst [vmem:[%s479 + $0x1d8] sm:$0xf] %v716
                  %v718 = vld [vmem:[%s478 + $0x39c] sm:$0xf]
                  %719 = vst [vmem:[%s479 + $0x1dc] sm:$0xf] %v718
                  %v720 = vld [vmem:[%s478 + $0x3c0] sm:$0xf]
                  %721 = vst [vmem:[%s479 + $0x1e0] sm:$0xf] %v720
                  %v722 = vld [vmem:[%s478 + $0x3c4] sm:$0xf]
                  %723 = vst [vmem:[%s479 + $0x1e4] sm:$0xf] %v722
                  %v724 = vld [vmem:[%s478 + $0x3c8] sm:$0xf]
                  %725 = vst [vmem:[%s479 + $0x1e8] sm:$0xf] %v724
                  %v726 = vld [vmem:[%s478 + $0x3cc] sm:$0xf]
                  %727 = vst [vmem:[%s479 + $0x1ec] sm:$0xf] %v726
                  %v728 = vld [vmem:[%s478 + $0x3d0] sm:$0xf]
                  %729 = vst [vmem:[%s479 + $0x1f0] sm:$0xf] %v728
                  %v730 = vld [vmem:[%s478 + $0x3d4] sm:$0xf]
                  %731 = vst [vmem:[%s479 + $0x1f4] sm:$0xf] %v730
                  %v732 = vld [vmem:[%s478 + $0x3d8] sm:$0xf]
                  %733 = vst [vmem:[%s479 + $0x1f8] sm:$0xf] %v732
                  %v734 = vld [vmem:[%s478 + $0x3dc] sm:$0xf]
                  %735 = vst [vmem:[%s479 + $0x1fc] sm:$0xf] %v734
                $region67: #{tpu_custom_call.1} parent=54 // loop_footer
                  %s477 = sadd.s32 1, %s473
                $region68: #{tpu_custom_call.1} parent=54 // loop_footer_branch
                  %472 = sbr.rel target = $region64
                $region69: #{tpu_custom_call.1} parent=54 // loop_exit
                  _
              $region55: #{tpu_custom_call.1} parent=39 // pred_fallthru
                _
            $region40: #{tpu_custom_call.1} parent=35 // pred_fallthru
              _
            // Predicated region
            $region41: #{tpu_custom_call.1} parent=35 // pred_check
              _
            $region42: #{tpu_custom_call.1} parent=35 // pred_check_branch
              %195 = sbr.rel (0) target = $region44
            $region43: #{tpu_custom_call.1} parent=35 // pred_region
              loop: start=0, step=1, limit=1
              $region45: #{tpu_custom_call.1} parent=43 // loop_pre_header
                _
              $region46: #{tpu_custom_call.1} parent=43 // loop_header
                %s198 = sphi 0, %s202
                %p199 = scmp.ge.s32.totalorder %s198, 1
                %s203 = sphi %s189, %s189
                %s204 = sphi %s186, %s186
              $region47: #{tpu_custom_call.1} parent=43 // loop_header_branch
                %201 = sbr.rel (%p199) target = $region51
              $region48: #{tpu_custom_call.1} parent=43 // loop_body
                %v205 = vld [vmem:[%s203] sm:$0xf]
                %206 = vst [vmem:[%s204] sm:$0xf] %v205
                %v207 = vld [vmem:[%s203 + $0x4] sm:$0xf]
                %208 = vst [vmem:[%s204 + $0x4] sm:$0xf] %v207
                %v209 = vld [vmem:[%s203 + $0x8] sm:$0xf]
                %210 = vst [vmem:[%s204 + $0x8] sm:$0xf] %v209
                %v211 = vld [vmem:[%s203 + $0xc] sm:$0xf]
                %212 = vst [vmem:[%s204 + $0xc] sm:$0xf] %v211
                %v213 = vld [vmem:[%s203 + $0x10] sm:$0xf]
                %214 = vst [vmem:[%s204 + $0x10] sm:$0xf] %v213
                %v215 = vld [vmem:[%s203 + $0x14] sm:$0xf]
                %216 = vst [vmem:[%s204 + $0x14] sm:$0xf] %v215
                %v217 = vld [vmem:[%s203 + $0x18] sm:$0xf]
                %218 = vst [vmem:[%s204 + $0x18] sm:$0xf] %v217
                %v219 = vld [vmem:[%s203 + $0x1c] sm:$0xf]
                %220 = vst [vmem:[%s204 + $0x1c] sm:$0xf] %v219
                %v221 = vld [vmem:[%s203 + $0x40] sm:$0xf]
                %222 = vst [vmem:[%s204 + $0x20] sm:$0xf] %v221
                %v223 = vld [vmem:[%s203 + $0x44] sm:$0xf]
                %224 = vst [vmem:[%s204 + $0x24] sm:$0xf] %v223
                %v225 = vld [vmem:[%s203 + $0x48] sm:$0xf]
                %226 = vst [vmem:[%s204 + $0x28] sm:$0xf] %v225
                %v227 = vld [vmem:[%s203 + $0x4c] sm:$0xf]
                %228 = vst [vmem:[%s204 + $0x2c] sm:$0xf] %v227
                %v229 = vld [vmem:[%s203 + $0x50] sm:$0xf]
                %230 = vst [vmem:[%s204 + $0x30] sm:$0xf] %v229
                %v231 = vld [vmem:[%s203 + $0x54] sm:$0xf]
                %232 = vst [vmem:[%s204 + $0x34] sm:$0xf] %v231
                %v233 = vld [vmem:[%s203 + $0x58] sm:$0xf]
                %234 = vst [vmem:[%s204 + $0x38] sm:$0xf] %v233
                %v235 = vld [vmem:[%s203 + $0x5c] sm:$0xf]
                %236 = vst [vmem:[%s204 + $0x3c] sm:$0xf] %v235
                %v237 = vld [vmem:[%s203 + $0x80] sm:$0xf]
                %238 = vst [vmem:[%s204 + $0x40] sm:$0xf] %v237
                %v239 = vld [vmem:[%s203 + $0x84] sm:$0xf]
                %240 = vst [vmem:[%s204 + $0x44] sm:$0xf] %v239
                %v241 = vld [vmem:[%s203 + $0x88] sm:$0xf]
                %242 = vst [vmem:[%s204 + $0x48] sm:$0xf] %v241
                %v243 = vld [vmem:[%s203 + $0x8c] sm:$0xf]
                %244 = vst [vmem:[%s204 + $0x4c] sm:$0xf] %v243
                %v245 = vld [vmem:[%s203 + $0x90] sm:$0xf]
                %246 = vst [vmem:[%s204 + $0x50] sm:$0xf] %v245
                %v247 = vld [vmem:[%s203 + $0x94] sm:$0xf]
                %248 = vst [vmem:[%s204 + $0x54] sm:$0xf] %v247
                %v249 = vld [vmem:[%s203 + $0x98] sm:$0xf]
                %250 = vst [vmem:[%s204 + $0x58] sm:$0xf] %v249
                %v251 = vld [vmem:[%s203 + $0x9c] sm:$0xf]
                %252 = vst [vmem:[%s204 + $0x5c] sm:$0xf] %v251
                %v253 = vld [vmem:[%s203 + $0xc0] sm:$0xf]
                %254 = vst [vmem:[%s204 + $0x60] sm:$0xf] %v253
                %v255 = vld [vmem:[%s203 + $0xc4] sm:$0xf]
                %256 = vst [vmem:[%s204 + $0x64] sm:$0xf] %v255
                %v257 = vld [vmem:[%s203 + $0xc8] sm:$0xf]
                %258 = vst [vmem:[%s204 + $0x68] sm:$0xf] %v257
                %v259 = vld [vmem:[%s203 + $0xcc] sm:$0xf]
                %260 = vst [vmem:[%s204 + $0x6c] sm:$0xf] %v259
                %v261 = vld [vmem:[%s203 + $0xd0] sm:$0xf]
                %262 = vst [vmem:[%s204 + $0x70] sm:$0xf] %v261
                %v263 = vld [vmem:[%s203 + $0xd4] sm:$0xf]
                %264 = vst [vmem:[%s204 + $0x74] sm:$0xf] %v263
                %v265 = vld [vmem:[%s203 + $0xd8] sm:$0xf]
                %266 = vst [vmem:[%s204 + $0x78] sm:$0xf] %v265
                %v267 = vld [vmem:[%s203 + $0xdc] sm:$0xf]
                %268 = vst [vmem:[%s204 + $0x7c] sm:$0xf] %v267
                %v269 = vld [vmem:[%s203 + $0x100] sm:$0xf]
                %270 = vst [vmem:[%s204 + $0x80] sm:$0xf] %v269
                %v271 = vld [vmem:[%s203 + $0x104] sm:$0xf]
                %272 = vst [vmem:[%s204 + $0x84] sm:$0xf] %v271
                %v273 = vld [vmem:[%s203 + $0x108] sm:$0xf]
                %274 = vst [vmem:[%s204 + $0x88] sm:$0xf] %v273
                %v275 = vld [vmem:[%s203 + $0x10c] sm:$0xf]
                %276 = vst [vmem:[%s204 + $0x8c] sm:$0xf] %v275
                %v277 = vld [vmem:[%s203 + $0x110] sm:$0xf]
                %278 = vst [vmem:[%s204 + $0x90] sm:$0xf] %v277
                %v279 = vld [vmem:[%s203 + $0x114] sm:$0xf]
                %280 = vst [vmem:[%s204 + $0x94] sm:$0xf] %v279
                %v281 = vld [vmem:[%s203 + $0x118] sm:$0xf]
                %282 = vst [vmem:[%s204 + $0x98] sm:$0xf] %v281
                %v283 = vld [vmem:[%s203 + $0x11c] sm:$0xf]
                %284 = vst [vmem:[%s204 + $0x9c] sm:$0xf] %v283
                %v285 = vld [vmem:[%s203 + $0x140] sm:$0xf]
                %286 = vst [vmem:[%s204 + $0xa0] sm:$0xf] %v285
                %v287 = vld [vmem:[%s203 + $0x144] sm:$0xf]
                %288 = vst [vmem:[%s204 + $0xa4] sm:$0xf] %v287
                %v289 = vld [vmem:[%s203 + $0x148] sm:$0xf]
                %290 = vst [vmem:[%s204 + $0xa8] sm:$0xf] %v289
                %v291 = vld [vmem:[%s203 + $0x14c] sm:$0xf]
                %292 = vst [vmem:[%s204 + $0xac] sm:$0xf] %v291
                %v293 = vld [vmem:[%s203 + $0x150] sm:$0xf]
                %294 = vst [vmem:[%s204 + $0xb0] sm:$0xf] %v293
                %v295 = vld [vmem:[%s203 + $0x154] sm:$0xf]
                %296 = vst [vmem:[%s204 + $0xb4] sm:$0xf] %v295
                %v297 = vld [vmem:[%s203 + $0x158] sm:$0xf]
                %298 = vst [vmem:[%s204 + $0xb8] sm:$0xf] %v297
                %v299 = vld [vmem:[%s203 + $0x15c] sm:$0xf]
                %300 = vst [vmem:[%s204 + $0xbc] sm:$0xf] %v299
                %v301 = vld [vmem:[%s203 + $0x180] sm:$0xf]
                %302 = vst [vmem:[%s204 + $0xc0] sm:$0xf] %v301
                %v303 = vld [vmem:[%s203 + $0x184] sm:$0xf]
                %304 = vst [vmem:[%s204 + $0xc4] sm:$0xf] %v303
                %v305 = vld [vmem:[%s203 + $0x188] sm:$0xf]
                %306 = vst [vmem:[%s204 + $0xc8] sm:$0xf] %v305
                %v307 = vld [vmem:[%s203 + $0x18c] sm:$0xf]
                %308 = vst [vmem:[%s204 + $0xcc] sm:$0xf] %v307
                %v309 = vld [vmem:[%s203 + $0x190] sm:$0xf]
                %310 = vst [vmem:[%s204 + $0xd0] sm:$0xf] %v309
                %v311 = vld [vmem:[%s203 + $0x194] sm:$0xf]
                %312 = vst [vmem:[%s204 + $0xd4] sm:$0xf] %v311
                %v313 = vld [vmem:[%s203 + $0x198] sm:$0xf]
                %314 = vst [vmem:[%s204 + $0xd8] sm:$0xf] %v313
                %v315 = vld [vmem:[%s203 + $0x19c] sm:$0xf]
                %316 = vst [vmem:[%s204 + $0xdc] sm:$0xf] %v315
                %v317 = vld [vmem:[%s203 + $0x1c0] sm:$0xf]
                %318 = vst [vmem:[%s204 + $0xe0] sm:$0xf] %v317
                %v319 = vld [vmem:[%s203 + $0x1c4] sm:$0xf]
                %320 = vst [vmem:[%s204 + $0xe4] sm:$0xf] %v319
                %v321 = vld [vmem:[%s203 + $0x1c8] sm:$0xf]
                %322 = vst [vmem:[%s204 + $0xe8] sm:$0xf] %v321
                %v323 = vld [vmem:[%s203 + $0x1cc] sm:$0xf]
                %324 = vst [vmem:[%s204 + $0xec] sm:$0xf] %v323
                %v325 = vld [vmem:[%s203 + $0x1d0] sm:$0xf]
                %326 = vst [vmem:[%s204 + $0xf0] sm:$0xf] %v325
                %v327 = vld [vmem:[%s203 + $0x1d4] sm:$0xf]
                %328 = vst [vmem:[%s204 + $0xf4] sm:$0xf] %v327
                %v329 = vld [vmem:[%s203 + $0x1d8] sm:$0xf]
                %330 = vst [vmem:[%s204 + $0xf8] sm:$0xf] %v329
                %v331 = vld [vmem:[%s203 + $0x1dc] sm:$0xf]
                %332 = vst [vmem:[%s204 + $0xfc] sm:$0xf] %v331
                %v333 = vld [vmem:[%s203 + $0x200] sm:$0xf]
                %334 = vst [vmem:[%s204 + $0x100] sm:$0xf] %v333
                %v335 = vld [vmem:[%s203 + $0x204] sm:$0xf]
                %336 = vst [vmem:[%s204 + $0x104] sm:$0xf] %v335
                %v337 = vld [vmem:[%s203 + $0x208] sm:$0xf]
                %338 = vst [vmem:[%s204 + $0x108] sm:$0xf] %v337
                %v339 = vld [vmem:[%s203 + $0x20c] sm:$0xf]
                %340 = vst [vmem:[%s204 + $0x10c] sm:$0xf] %v339
                %v341 = vld [vmem:[%s203 + $0x210] sm:$0xf]
                %342 = vst [vmem:[%s204 + $0x110] sm:$0xf] %v341
                %v343 = vld [vmem:[%s203 + $0x214] sm:$0xf]
                %344 = vst [vmem:[%s204 + $0x114] sm:$0xf] %v343
                %v345 = vld [vmem:[%s203 + $0x218] sm:$0xf]
                %346 = vst [vmem:[%s204 + $0x118] sm:$0xf] %v345
                %v347 = vld [vmem:[%s203 + $0x21c] sm:$0xf]
                %348 = vst [vmem:[%s204 + $0x11c] sm:$0xf] %v347
                %v349 = vld [vmem:[%s203 + $0x240] sm:$0xf]
                %350 = vst [vmem:[%s204 + $0x120] sm:$0xf] %v349
                %v351 = vld [vmem:[%s203 + $0x244] sm:$0xf]
                %352 = vst [vmem:[%s204 + $0x124] sm:$0xf] %v351
                %v353 = vld [vmem:[%s203 + $0x248] sm:$0xf]
                %354 = vst [vmem:[%s204 + $0x128] sm:$0xf] %v353
                %v355 = vld [vmem:[%s203 + $0x24c] sm:$0xf]
                %356 = vst [vmem:[%s204 + $0x12c] sm:$0xf] %v355
                %v357 = vld [vmem:[%s203 + $0x250] sm:$0xf]
                %358 = vst [vmem:[%s204 + $0x130] sm:$0xf] %v357
                %v359 = vld [vmem:[%s203 + $0x254] sm:$0xf]
                %360 = vst [vmem:[%s204 + $0x134] sm:$0xf] %v359
                %v361 = vld [vmem:[%s203 + $0x258] sm:$0xf]
                %362 = vst [vmem:[%s204 + $0x138] sm:$0xf] %v361
                %v363 = vld [vmem:[%s203 + $0x25c] sm:$0xf]
                %364 = vst [vmem:[%s204 + $0x13c] sm:$0xf] %v363
                %v365 = vld [vmem:[%s203 + $0x280] sm:$0xf]
                %366 = vst [vmem:[%s204 + $0x140] sm:$0xf] %v365
                %v367 = vld [vmem:[%s203 + $0x284] sm:$0xf]
                %368 = vst [vmem:[%s204 + $0x144] sm:$0xf] %v367
                %v369 = vld [vmem:[%s203 + $0x288] sm:$0xf]
                %370 = vst [vmem:[%s204 + $0x148] sm:$0xf] %v369
                %v371 = vld [vmem:[%s203 + $0x28c] sm:$0xf]
                %372 = vst [vmem:[%s204 + $0x14c] sm:$0xf] %v371
                %v373 = vld [vmem:[%s203 + $0x290] sm:$0xf]
                %374 = vst [vmem:[%s204 + $0x150] sm:$0xf] %v373
                %v375 = vld [vmem:[%s203 + $0x294] sm:$0xf]
                %376 = vst [vmem:[%s204 + $0x154] sm:$0xf] %v375
                %v377 = vld [vmem:[%s203 + $0x298] sm:$0xf]
                %378 = vst [vmem:[%s204 + $0x158] sm:$0xf] %v377
                %v379 = vld [vmem:[%s203 + $0x29c] sm:$0xf]
                %380 = vst [vmem:[%s204 + $0x15c] sm:$0xf] %v379
                %v381 = vld [vmem:[%s203 + $0x2c0] sm:$0xf]
                %382 = vst [vmem:[%s204 + $0x160] sm:$0xf] %v381
                %v383 = vld [vmem:[%s203 + $0x2c4] sm:$0xf]
                %384 = vst [vmem:[%s204 + $0x164] sm:$0xf] %v383
                %v385 = vld [vmem:[%s203 + $0x2c8] sm:$0xf]
                %386 = vst [vmem:[%s204 + $0x168] sm:$0xf] %v385
                %v387 = vld [vmem:[%s203 + $0x2cc] sm:$0xf]
                %388 = vst [vmem:[%s204 + $0x16c] sm:$0xf] %v387
                %v389 = vld [vmem:[%s203 + $0x2d0] sm:$0xf]
                %390 = vst [vmem:[%s204 + $0x170] sm:$0xf] %v389
                %v391 = vld [vmem:[%s203 + $0x2d4] sm:$0xf]
                %392 = vst [vmem:[%s204 + $0x174] sm:$0xf] %v391
                %v393 = vld [vmem:[%s203 + $0x2d8] sm:$0xf]
                %394 = vst [vmem:[%s204 + $0x178] sm:$0xf] %v393
                %v395 = vld [vmem:[%s203 + $0x2dc] sm:$0xf]
                %396 = vst [vmem:[%s204 + $0x17c] sm:$0xf] %v395
                %v397 = vld [vmem:[%s203 + $0x300] sm:$0xf]
                %398 = vst [vmem:[%s204 + $0x180] sm:$0xf] %v397
                %v399 = vld [vmem:[%s203 + $0x304] sm:$0xf]
                %400 = vst [vmem:[%s204 + $0x184] sm:$0xf] %v399
                %v401 = vld [vmem:[%s203 + $0x308] sm:$0xf]
                %402 = vst [vmem:[%s204 + $0x188] sm:$0xf] %v401
                %v403 = vld [vmem:[%s203 + $0x30c] sm:$0xf]
                %404 = vst [vmem:[%s204 + $0x18c] sm:$0xf] %v403
                %v405 = vld [vmem:[%s203 + $0x310] sm:$0xf]
                %406 = vst [vmem:[%s204 + $0x190] sm:$0xf] %v405
                %v407 = vld [vmem:[%s203 + $0x314] sm:$0xf]
                %408 = vst [vmem:[%s204 + $0x194] sm:$0xf] %v407
                %v409 = vld [vmem:[%s203 + $0x318] sm:$0xf]
                %410 = vst [vmem:[%s204 + $0x198] sm:$0xf] %v409
                %v411 = vld [vmem:[%s203 + $0x31c] sm:$0xf]
                %412 = vst [vmem:[%s204 + $0x19c] sm:$0xf] %v411
                %v413 = vld [vmem:[%s203 + $0x340] sm:$0xf]
                %414 = vst [vmem:[%s204 + $0x1a0] sm:$0xf] %v413
                %v415 = vld [vmem:[%s203 + $0x344] sm:$0xf]
                %416 = vst [vmem:[%s204 + $0x1a4] sm:$0xf] %v415
                %v417 = vld [vmem:[%s203 + $0x348] sm:$0xf]
                %418 = vst [vmem:[%s204 + $0x1a8] sm:$0xf] %v417
                %v419 = vld [vmem:[%s203 + $0x34c] sm:$0xf]
                %420 = vst [vmem:[%s204 + $0x1ac] sm:$0xf] %v419
                %v421 = vld [vmem:[%s203 + $0x350] sm:$0xf]
                %422 = vst [vmem:[%s204 + $0x1b0] sm:$0xf] %v421
                %v423 = vld [vmem:[%s203 + $0x354] sm:$0xf]
                %424 = vst [vmem:[%s204 + $0x1b4] sm:$0xf] %v423
                %v425 = vld [vmem:[%s203 + $0x358] sm:$0xf]
                %426 = vst [vmem:[%s204 + $0x1b8] sm:$0xf] %v425
                %v427 = vld [vmem:[%s203 + $0x35c] sm:$0xf]
                %428 = vst [vmem:[%s204 + $0x1bc] sm:$0xf] %v427
                %v429 = vld [vmem:[%s203 + $0x380] sm:$0xf]
                %430 = vst [vmem:[%s204 + $0x1c0] sm:$0xf] %v429
                %v431 = vld [vmem:[%s203 + $0x384] sm:$0xf]
                %432 = vst [vmem:[%s204 + $0x1c4] sm:$0xf] %v431
                %v433 = vld [vmem:[%s203 + $0x388] sm:$0xf]
                %434 = vst [vmem:[%s204 + $0x1c8] sm:$0xf] %v433
                %v435 = vld [vmem:[%s203 + $0x38c] sm:$0xf]
                %436 = vst [vmem:[%s204 + $0x1cc] sm:$0xf] %v435
                %v437 = vld [vmem:[%s203 + $0x390] sm:$0xf]
                %438 = vst [vmem:[%s204 + $0x1d0] sm:$0xf] %v437
                %v439 = vld [vmem:[%s203 + $0x394] sm:$0xf]
                %440 = vst [vmem:[%s204 + $0x1d4] sm:$0xf] %v439
                %v441 = vld [vmem:[%s203 + $0x398] sm:$0xf]
                %442 = vst [vmem:[%s204 + $0x1d8] sm:$0xf] %v441
                %v443 = vld [vmem:[%s203 + $0x39c] sm:$0xf]
                %444 = vst [vmem:[%s204 + $0x1dc] sm:$0xf] %v443
                %v445 = vld [vmem:[%s203 + $0x3c0] sm:$0xf]
                %446 = vst [vmem:[%s204 + $0x1e0] sm:$0xf] %v445
                %v447 = vld [vmem:[%s203 + $0x3c4] sm:$0xf]
                %448 = vst [vmem:[%s204 + $0x1e4] sm:$0xf] %v447
                %v449 = vld [vmem:[%s203 + $0x3c8] sm:$0xf]
                %450 = vst [vmem:[%s204 + $0x1e8] sm:$0xf] %v449
                %v451 = vld [vmem:[%s203 + $0x3cc] sm:$0xf]
                %452 = vst [vmem:[%s204 + $0x1ec] sm:$0xf] %v451
                %v453 = vld [vmem:[%s203 + $0x3d0] sm:$0xf]
                %454 = vst [vmem:[%s204 + $0x1f0] sm:$0xf] %v453
                %v455 = vld [vmem:[%s203 + $0x3d4] sm:$0xf]
                %456 = vst [vmem:[%s204 + $0x1f4] sm:$0xf] %v455
                %v457 = vld [vmem:[%s203 + $0x3d8] sm:$0xf]
                %458 = vst [vmem:[%s204 + $0x1f8] sm:$0xf] %v457
                %v459 = vld [vmem:[%s203 + $0x3dc] sm:$0xf]
                %460 = vst [vmem:[%s204 + $0x1fc] sm:$0xf] %v459
              $region49: #{tpu_custom_call.1} parent=43 // loop_footer
                %s202 = sadd.s32 1, %s198
              $region50: #{tpu_custom_call.1} parent=43 // loop_footer_branch
                %197 = sbr.rel target = $region46
              $region51: #{tpu_custom_call.1} parent=43 // loop_exit
                _
            $region44: #{tpu_custom_call.1} parent=35 // pred_fallthru
              _
          $region36: #{tpu_custom_call.1} parent=31 // pred_fallthru
            _
          %736 = vnop
        $region32: #{tpu_custom_call.1} parent=27 // pred_fallthru
          _
        // Predicated region
        $region70: #{tpu_custom_call.1} parent=27 // pred_check
          %p737 = pneg %p57
        $region71: #{tpu_custom_call.1} parent=27 // pred_check_branch
          %739 = sbr.rel (%p737) target = $region73
        $region72: #{tpu_custom_call.1} parent=27 // pred_region
          %s740 = sand.u32 %s47, 1
          %s741 = sand.u32 %s47, 1
          %s742 = smul.addr %s741, 1024
          %s743 = scalar_lea.vmem [#allocation3], %s742
          %s744 = smul.u32 8, %s11
          %s745 = smul.addr %s744, 8
          %s746 = scalar_lea.vmem %s1, %s745
          // Predicated region
          $region74: #{tpu_custom_call.1} parent=72 // pred_check
            _
          $region75: #{tpu_custom_call.1} parent=72 // pred_check_branch
            %748 = sbr.rel (0) target = $region77
          $region76: #{tpu_custom_call.1} parent=72 // pred_region
            // Predicated region
            $region78: #{tpu_custom_call.1} parent=76 // pred_check
              _
            $region79: #{tpu_custom_call.1} parent=76 // pred_check_branch
              %750 = sbr.rel (0) target = $region81
            $region80: #{tpu_custom_call.1} parent=76 // pred_region
              // Predicated region
              $region93: #{tpu_custom_call.1} parent=80 // pred_check
                _
              $region94: #{tpu_custom_call.1} parent=80 // pred_check_branch
                %1019 = sbr.rel (0) target = $region96
              $region95: #{tpu_custom_call.1} parent=80 // pred_region
                loop: start=0, step=1, limit=1
                $region97: #{tpu_custom_call.1} parent=95 // loop_pre_header
                  _
                $region98: #{tpu_custom_call.1} parent=95 // loop_header
                  %s1021 = sphi 0, %s1025
                  %p1022 = scmp.ge.s32.totalorder %s1021, 1
                  %s1026 = sphi %s746, %s746
                  %s1027 = sphi %s743, %s743
                $region99: #{tpu_custom_call.1} parent=95 // loop_header_branch
                  %1024 = sbr.rel (%p1022) target = $region103
                $region100: #{tpu_custom_call.1} parent=95 // loop_body
                  %v1028 = vld [vmem:[%s1026] sm:$0xff]
                  %1029 = vst [vmem:[%s1027] sm:$0xff] %v1028
                  %v1030 = vld [vmem:[%s1026 + $0x8] sm:$0xff]
                  %1031 = vst [vmem:[%s1027 + $0x8] sm:$0xff] %v1030
                  %v1032 = vld [vmem:[%s1026 + $0x10] sm:$0xff]
                  %1033 = vst [vmem:[%s1027 + $0x10] sm:$0xff] %v1032
                  %v1034 = vld [vmem:[%s1026 + $0x18] sm:$0xff]
                  %1035 = vst [vmem:[%s1027 + $0x18] sm:$0xff] %v1034
                  %v1036 = vld [vmem:[%s1026 + $0x20] sm:$0xff]
                  %1037 = vst [vmem:[%s1027 + $0x20] sm:$0xff] %v1036
                  %v1038 = vld [vmem:[%s1026 + $0x28] sm:$0xff]
                  %1039 = vst [vmem:[%s1027 + $0x28] sm:$0xff] %v1038
                  %v1040 = vld [vmem:[%s1026 + $0x30] sm:$0xff]
                  %1041 = vst [vmem:[%s1027 + $0x30] sm:$0xff] %v1040
                  %v1042 = vld [vmem:[%s1026 + $0x38] sm:$0xff]
                  %1043 = vst [vmem:[%s1027 + $0x38] sm:$0xff] %v1042
                  %v1044 = vld [vmem:[%s1026 + $0x80] sm:$0xff]
                  %1045 = vst [vmem:[%s1027 + $0x40] sm:$0xff] %v1044
                  %v1046 = vld [vmem:[%s1026 + $0x88] sm:$0xff]
                  %1047 = vst [vmem:[%s1027 + $0x48] sm:$0xff] %v1046
                  %v1048 = vld [vmem:[%s1026 + $0x90] sm:$0xff]
                  %1049 = vst [vmem:[%s1027 + $0x50] sm:$0xff] %v1048
                  %v1050 = vld [vmem:[%s1026 + $0x98] sm:$0xff]
                  %1051 = vst [vmem:[%s1027 + $0x58] sm:$0xff] %v1050
                  %v1052 = vld [vmem:[%s1026 + $0xa0] sm:$0xff]
                  %1053 = vst [vmem:[%s1027 + $0x60] sm:$0xff] %v1052
                  %v1054 = vld [vmem:[%s1026 + $0xa8] sm:$0xff]
                  %1055 = vst [vmem:[%s1027 + $0x68] sm:$0xff] %v1054
                  %v1056 = vld [vmem:[%s1026 + $0xb0] sm:$0xff]
                  %1057 = vst [vmem:[%s1027 + $0x70] sm:$0xff] %v1056
                  %v1058 = vld [vmem:[%s1026 + $0xb8] sm:$0xff]
                  %1059 = vst [vmem:[%s1027 + $0x78] sm:$0xff] %v1058
                  %v1060 = vld [vmem:[%s1026 + $0x100] sm:$0xff]
                  %1061 = vst [vmem:[%s1027 + $0x80] sm:$0xff] %v1060
                  %v1062 = vld [vmem:[%s1026 + $0x108] sm:$0xff]
                  %1063 = vst [vmem:[%s1027 + $0x88] sm:$0xff] %v1062
                  %v1064 = vld [vmem:[%s1026 + $0x110] sm:$0xff]
                  %1065 = vst [vmem:[%s1027 + $0x90] sm:$0xff] %v1064
                  %v1066 = vld [vmem:[%s1026 + $0x118] sm:$0xff]
                  %1067 = vst [vmem:[%s1027 + $0x98] sm:$0xff] %v1066
                  %v1068 = vld [vmem:[%s1026 + $0x120] sm:$0xff]
                  %1069 = vst [vmem:[%s1027 + $0xa0] sm:$0xff] %v1068
                  %v1070 = vld [vmem:[%s1026 + $0x128] sm:$0xff]
                  %1071 = vst [vmem:[%s1027 + $0xa8] sm:$0xff] %v1070
                  %v1072 = vld [vmem:[%s1026 + $0x130] sm:$0xff]
                  %1073 = vst [vmem:[%s1027 + $0xb0] sm:$0xff] %v1072
                  %v1074 = vld [vmem:[%s1026 + $0x138] sm:$0xff]
                  %1075 = vst [vmem:[%s1027 + $0xb8] sm:$0xff] %v1074
                  %v1076 = vld [vmem:[%s1026 + $0x180] sm:$0xff]
                  %1077 = vst [vmem:[%s1027 + $0xc0] sm:$0xff] %v1076
                  %v1078 = vld [vmem:[%s1026 + $0x188] sm:$0xff]
                  %1079 = vst [vmem:[%s1027 + $0xc8] sm:$0xff] %v1078
                  %v1080 = vld [vmem:[%s1026 + $0x190] sm:$0xff]
                  %1081 = vst [vmem:[%s1027 + $0xd0] sm:$0xff] %v1080
                  %v1082 = vld [vmem:[%s1026 + $0x198] sm:$0xff]
                  %1083 = vst [vmem:[%s1027 + $0xd8] sm:$0xff] %v1082
                  %v1084 = vld [vmem:[%s1026 + $0x1a0] sm:$0xff]
                  %1085 = vst [vmem:[%s1027 + $0xe0] sm:$0xff] %v1084
                  %v1086 = vld [vmem:[%s1026 + $0x1a8] sm:$0xff]
                  %1087 = vst [vmem:[%s1027 + $0xe8] sm:$0xff] %v1086
                  %v1088 = vld [vmem:[%s1026 + $0x1b0] sm:$0xff]
                  %1089 = vst [vmem:[%s1027 + $0xf0] sm:$0xff] %v1088
                  %v1090 = vld [vmem:[%s1026 + $0x1b8] sm:$0xff]
                  %1091 = vst [vmem:[%s1027 + $0xf8] sm:$0xff] %v1090
                  %v1092 = vld [vmem:[%s1026 + $0x200] sm:$0xff]
                  %1093 = vst [vmem:[%s1027 + $0x100] sm:$0xff] %v1092
                  %v1094 = vld [vmem:[%s1026 + $0x208] sm:$0xff]
                  %1095 = vst [vmem:[%s1027 + $0x108] sm:$0xff] %v1094
                  %v1096 = vld [vmem:[%s1026 + $0x210] sm:$0xff]
                  %1097 = vst [vmem:[%s1027 + $0x110] sm:$0xff] %v1096
                  %v1098 = vld [vmem:[%s1026 + $0x218] sm:$0xff]
                  %1099 = vst [vmem:[%s1027 + $0x118] sm:$0xff] %v1098
                  %v1100 = vld [vmem:[%s1026 + $0x220] sm:$0xff]
                  %1101 = vst [vmem:[%s1027 + $0x120] sm:$0xff] %v1100
                  %v1102 = vld [vmem:[%s1026 + $0x228] sm:$0xff]
                  %1103 = vst [vmem:[%s1027 + $0x128] sm:$0xff] %v1102
                  %v1104 = vld [vmem:[%s1026 + $0x230] sm:$0xff]
                  %1105 = vst [vmem:[%s1027 + $0x130] sm:$0xff] %v1104
                  %v1106 = vld [vmem:[%s1026 + $0x238] sm:$0xff]
                  %1107 = vst [vmem:[%s1027 + $0x138] sm:$0xff] %v1106
                  %v1108 = vld [vmem:[%s1026 + $0x280] sm:$0xff]
                  %1109 = vst [vmem:[%s1027 + $0x140] sm:$0xff] %v1108
                  %v1110 = vld [vmem:[%s1026 + $0x288] sm:$0xff]
                  %1111 = vst [vmem:[%s1027 + $0x148] sm:$0xff] %v1110
                  %v1112 = vld [vmem:[%s1026 + $0x290] sm:$0xff]
                  %1113 = vst [vmem:[%s1027 + $0x150] sm:$0xff] %v1112
                  %v1114 = vld [vmem:[%s1026 + $0x298] sm:$0xff]
                  %1115 = vst [vmem:[%s1027 + $0x158] sm:$0xff] %v1114
                  %v1116 = vld [vmem:[%s1026 + $0x2a0] sm:$0xff]
                  %1117 = vst [vmem:[%s1027 + $0x160] sm:$0xff] %v1116
                  %v1118 = vld [vmem:[%s1026 + $0x2a8] sm:$0xff]
                  %1119 = vst [vmem:[%s1027 + $0x168] sm:$0xff] %v1118
                  %v1120 = vld [vmem:[%s1026 + $0x2b0] sm:$0xff]
                  %1121 = vst [vmem:[%s1027 + $0x170] sm:$0xff] %v1120
                  %v1122 = vld [vmem:[%s1026 + $0x2b8] sm:$0xff]
                  %1123 = vst [vmem:[%s1027 + $0x178] sm:$0xff] %v1122
                  %v1124 = vld [vmem:[%s1026 + $0x300] sm:$0xff]
                  %1125 = vst [vmem:[%s1027 + $0x180] sm:$0xff] %v1124
                  %v1126 = vld [vmem:[%s1026 + $0x308] sm:$0xff]
                  %1127 = vst [vmem:[%s1027 + $0x188] sm:$0xff] %v1126
                  %v1128 = vld [vmem:[%s1026 + $0x310] sm:$0xff]
                  %1129 = vst [vmem:[%s1027 + $0x190] sm:$0xff] %v1128
                  %v1130 = vld [vmem:[%s1026 + $0x318] sm:$0xff]
                  %1131 = vst [vmem:[%s1027 + $0x198] sm:$0xff] %v1130
                  %v1132 = vld [vmem:[%s1026 + $0x320] sm:$0xff]
                  %1133 = vst [vmem:[%s1027 + $0x1a0] sm:$0xff] %v1132
                  %v1134 = vld [vmem:[%s1026 + $0x328] sm:$0xff]
                  %1135 = vst [vmem:[%s1027 + $0x1a8] sm:$0xff] %v1134
                  %v1136 = vld [vmem:[%s1026 + $0x330] sm:$0xff]
                  %1137 = vst [vmem:[%s1027 + $0x1b0] sm:$0xff] %v1136
                  %v1138 = vld [vmem:[%s1026 + $0x338] sm:$0xff]
                  %1139 = vst [vmem:[%s1027 + $0x1b8] sm:$0xff] %v1138
                  %v1140 = vld [vmem:[%s1026 + $0x380] sm:$0xff]
                  %1141 = vst [vmem:[%s1027 + $0x1c0] sm:$0xff] %v1140
                  %v1142 = vld [vmem:[%s1026 + $0x388] sm:$0xff]
                  %1143 = vst [vmem:[%s1027 + $0x1c8] sm:$0xff] %v1142
                  %v1144 = vld [vmem:[%s1026 + $0x390] sm:$0xff]
                  %1145 = vst [vmem:[%s1027 + $0x1d0] sm:$0xff] %v1144
                  %v1146 = vld [vmem:[%s1026 + $0x398] sm:$0xff]
                  %1147 = vst [vmem:[%s1027 + $0x1d8] sm:$0xff] %v1146
                  %v1148 = vld [vmem:[%s1026 + $0x3a0] sm:$0xff]
                  %1149 = vst [vmem:[%s1027 + $0x1e0] sm:$0xff] %v1148
                  %v1150 = vld [vmem:[%s1026 + $0x3a8] sm:$0xff]
                  %1151 = vst [vmem:[%s1027 + $0x1e8] sm:$0xff] %v1150
                  %v1152 = vld [vmem:[%s1026 + $0x3b0] sm:$0xff]
                  %1153 = vst [vmem:[%s1027 + $0x1f0] sm:$0xff] %v1152
                  %v1154 = vld [vmem:[%s1026 + $0x3b8] sm:$0xff]
                  %1155 = vst [vmem:[%s1027 + $0x1f8] sm:$0xff] %v1154
                  %v1156 = vld [vmem:[%s1026 + $0x400] sm:$0xff]
                  %1157 = vst [vmem:[%s1027 + $0x200] sm:$0xff] %v1156
                  %v1158 = vld [vmem:[%s1026 + $0x408] sm:$0xff]
                  %1159 = vst [vmem:[%s1027 + $0x208] sm:$0xff] %v1158
                  %v1160 = vld [vmem:[%s1026 + $0x410] sm:$0xff]
                  %1161 = vst [vmem:[%s1027 + $0x210] sm:$0xff] %v1160
                  %v1162 = vld [vmem:[%s1026 + $0x418] sm:$0xff]
                  %1163 = vst [vmem:[%s1027 + $0x218] sm:$0xff] %v1162
                  %v1164 = vld [vmem:[%s1026 + $0x420] sm:$0xff]
                  %1165 = vst [vmem:[%s1027 + $0x220] sm:$0xff] %v1164
                  %v1166 = vld [vmem:[%s1026 + $0x428] sm:$0xff]
                  %1167 = vst [vmem:[%s1027 + $0x228] sm:$0xff] %v1166
                  %v1168 = vld [vmem:[%s1026 + $0x430] sm:$0xff]
                  %1169 = vst [vmem:[%s1027 + $0x230] sm:$0xff] %v1168
                  %v1170 = vld [vmem:[%s1026 + $0x438] sm:$0xff]
                  %1171 = vst [vmem:[%s1027 + $0x238] sm:$0xff] %v1170
                  %v1172 = vld [vmem:[%s1026 + $0x480] sm:$0xff]
                  %1173 = vst [vmem:[%s1027 + $0x240] sm:$0xff] %v1172
                  %v1174 = vld [vmem:[%s1026 + $0x488] sm:$0xff]
                  %1175 = vst [vmem:[%s1027 + $0x248] sm:$0xff] %v1174
                  %v1176 = vld [vmem:[%s1026 + $0x490] sm:$0xff]
                  %1177 = vst [vmem:[%s1027 + $0x250] sm:$0xff] %v1176
                  %v1178 = vld [vmem:[%s1026 + $0x498] sm:$0xff]
                  %1179 = vst [vmem:[%s1027 + $0x258] sm:$0xff] %v1178
                  %v1180 = vld [vmem:[%s1026 + $0x4a0] sm:$0xff]
                  %1181 = vst [vmem:[%s1027 + $0x260] sm:$0xff] %v1180
                  %v1182 = vld [vmem:[%s1026 + $0x4a8] sm:$0xff]
                  %1183 = vst [vmem:[%s1027 + $0x268] sm:$0xff] %v1182
                  %v1184 = vld [vmem:[%s1026 + $0x4b0] sm:$0xff]
                  %1185 = vst [vmem:[%s1027 + $0x270] sm:$0xff] %v1184
                  %v1186 = vld [vmem:[%s1026 + $0x4b8] sm:$0xff]
                  %1187 = vst [vmem:[%s1027 + $0x278] sm:$0xff] %v1186
                  %v1188 = vld [vmem:[%s1026 + $0x500] sm:$0xff]
                  %1189 = vst [vmem:[%s1027 + $0x280] sm:$0xff] %v1188
                  %v1190 = vld [vmem:[%s1026 + $0x508] sm:$0xff]
                  %1191 = vst [vmem:[%s1027 + $0x288] sm:$0xff] %v1190
                  %v1192 = vld [vmem:[%s1026 + $0x510] sm:$0xff]
                  %1193 = vst [vmem:[%s1027 + $0x290] sm:$0xff] %v1192
                  %v1194 = vld [vmem:[%s1026 + $0x518] sm:$0xff]
                  %1195 = vst [vmem:[%s1027 + $0x298] sm:$0xff] %v1194
                  %v1196 = vld [vmem:[%s1026 + $0x520] sm:$0xff]
                  %1197 = vst [vmem:[%s1027 + $0x2a0] sm:$0xff] %v1196
                  %v1198 = vld [vmem:[%s1026 + $0x528] sm:$0xff]
                  %1199 = vst [vmem:[%s1027 + $0x2a8] sm:$0xff] %v1198
                  %v1200 = vld [vmem:[%s1026 + $0x530] sm:$0xff]
                  %1201 = vst [vmem:[%s1027 + $0x2b0] sm:$0xff] %v1200
                  %v1202 = vld [vmem:[%s1026 + $0x538] sm:$0xff]
                  %1203 = vst [vmem:[%s1027 + $0x2b8] sm:$0xff] %v1202
                  %v1204 = vld [vmem:[%s1026 + $0x580] sm:$0xff]
                  %1205 = vst [vmem:[%s1027 + $0x2c0] sm:$0xff] %v1204
                  %v1206 = vld [vmem:[%s1026 + $0x588] sm:$0xff]
                  %1207 = vst [vmem:[%s1027 + $0x2c8] sm:$0xff] %v1206
                  %v1208 = vld [vmem:[%s1026 + $0x590] sm:$0xff]
                  %1209 = vst [vmem:[%s1027 + $0x2d0] sm:$0xff] %v1208
                  %v1210 = vld [vmem:[%s1026 + $0x598] sm:$0xff]
                  %1211 = vst [vmem:[%s1027 + $0x2d8] sm:$0xff] %v1210
                  %v1212 = vld [vmem:[%s1026 + $0x5a0] sm:$0xff]
                  %1213 = vst [vmem:[%s1027 + $0x2e0] sm:$0xff] %v1212
                  %v1214 = vld [vmem:[%s1026 + $0x5a8] sm:$0xff]
                  %1215 = vst [vmem:[%s1027 + $0x2e8] sm:$0xff] %v1214
                  %v1216 = vld [vmem:[%s1026 + $0x5b0] sm:$0xff]
                  %1217 = vst [vmem:[%s1027 + $0x2f0] sm:$0xff] %v1216
                  %v1218 = vld [vmem:[%s1026 + $0x5b8] sm:$0xff]
                  %1219 = vst [vmem:[%s1027 + $0x2f8] sm:$0xff] %v1218
                  %v1220 = vld [vmem:[%s1026 + $0x600] sm:$0xff]
                  %1221 = vst [vmem:[%s1027 + $0x300] sm:$0xff] %v1220
                  %v1222 = vld [vmem:[%s1026 + $0x608] sm:$0xff]
                  %1223 = vst [vmem:[%s1027 + $0x308] sm:$0xff] %v1222
                  %v1224 = vld [vmem:[%s1026 + $0x610] sm:$0xff]
                  %1225 = vst [vmem:[%s1027 + $0x310] sm:$0xff] %v1224
                  %v1226 = vld [vmem:[%s1026 + $0x618] sm:$0xff]
                  %1227 = vst [vmem:[%s1027 + $0x318] sm:$0xff] %v1226
                  %v1228 = vld [vmem:[%s1026 + $0x620] sm:$0xff]
                  %1229 = vst [vmem:[%s1027 + $0x320] sm:$0xff] %v1228
                  %v1230 = vld [vmem:[%s1026 + $0x628] sm:$0xff]
                  %1231 = vst [vmem:[%s1027 + $0x328] sm:$0xff] %v1230
                  %v1232 = vld [vmem:[%s1026 + $0x630] sm:$0xff]
                  %1233 = vst [vmem:[%s1027 + $0x330] sm:$0xff] %v1232
                  %v1234 = vld [vmem:[%s1026 + $0x638] sm:$0xff]
                  %1235 = vst [vmem:[%s1027 + $0x338] sm:$0xff] %v1234
                  %v1236 = vld [vmem:[%s1026 + $0x680] sm:$0xff]
                  %1237 = vst [vmem:[%s1027 + $0x340] sm:$0xff] %v1236
                  %v1238 = vld [vmem:[%s1026 + $0x688] sm:$0xff]
                  %1239 = vst [vmem:[%s1027 + $0x348] sm:$0xff] %v1238
                  %v1240 = vld [vmem:[%s1026 + $0x690] sm:$0xff]
                  %1241 = vst [vmem:[%s1027 + $0x350] sm:$0xff] %v1240
                  %v1242 = vld [vmem:[%s1026 + $0x698] sm:$0xff]
                  %1243 = vst [vmem:[%s1027 + $0x358] sm:$0xff] %v1242
                  %v1244 = vld [vmem:[%s1026 + $0x6a0] sm:$0xff]
                  %1245 = vst [vmem:[%s1027 + $0x360] sm:$0xff] %v1244
                  %v1246 = vld [vmem:[%s1026 + $0x6a8] sm:$0xff]
                  %1247 = vst [vmem:[%s1027 + $0x368] sm:$0xff] %v1246
                  %v1248 = vld [vmem:[%s1026 + $0x6b0] sm:$0xff]
                  %1249 = vst [vmem:[%s1027 + $0x370] sm:$0xff] %v1248
                  %v1250 = vld [vmem:[%s1026 + $0x6b8] sm:$0xff]
                  %1251 = vst [vmem:[%s1027 + $0x378] sm:$0xff] %v1250
                  %v1252 = vld [vmem:[%s1026 + $0x700] sm:$0xff]
                  %1253 = vst [vmem:[%s1027 + $0x380] sm:$0xff] %v1252
                  %v1254 = vld [vmem:[%s1026 + $0x708] sm:$0xff]
                  %1255 = vst [vmem:[%s1027 + $0x388] sm:$0xff] %v1254
                  %v1256 = vld [vmem:[%s1026 + $0x710] sm:$0xff]
                  %1257 = vst [vmem:[%s1027 + $0x390] sm:$0xff] %v1256
                  %v1258 = vld [vmem:[%s1026 + $0x718] sm:$0xff]
                  %1259 = vst [vmem:[%s1027 + $0x398] sm:$0xff] %v1258
                  %v1260 = vld [vmem:[%s1026 + $0x720] sm:$0xff]
                  %1261 = vst [vmem:[%s1027 + $0x3a0] sm:$0xff] %v1260
                  %v1262 = vld [vmem:[%s1026 + $0x728] sm:$0xff]
                  %1263 = vst [vmem:[%s1027 + $0x3a8] sm:$0xff] %v1262
                  %v1264 = vld [vmem:[%s1026 + $0x730] sm:$0xff]
                  %1265 = vst [vmem:[%s1027 + $0x3b0] sm:$0xff] %v1264
                  %v1266 = vld [vmem:[%s1026 + $0x738] sm:$0xff]
                  %1267 = vst [vmem:[%s1027 + $0x3b8] sm:$0xff] %v1266
                  %v1268 = vld [vmem:[%s1026 + $0x780] sm:$0xff]
                  %1269 = vst [vmem:[%s1027 + $0x3c0] sm:$0xff] %v1268
                  %v1270 = vld [vmem:[%s1026 + $0x788] sm:$0xff]
                  %1271 = vst [vmem:[%s1027 + $0x3c8] sm:$0xff] %v1270
                  %v1272 = vld [vmem:[%s1026 + $0x790] sm:$0xff]
                  %1273 = vst [vmem:[%s1027 + $0x3d0] sm:$0xff] %v1272
                  %v1274 = vld [vmem:[%s1026 + $0x798] sm:$0xff]
                  %1275 = vst [vmem:[%s1027 + $0x3d8] sm:$0xff] %v1274
                  %v1276 = vld [vmem:[%s1026 + $0x7a0] sm:$0xff]
                  %1277 = vst [vmem:[%s1027 + $0x3e0] sm:$0xff] %v1276
                  %v1278 = vld [vmem:[%s1026 + $0x7a8] sm:$0xff]
                  %1279 = vst [vmem:[%s1027 + $0x3e8] sm:$0xff] %v1278
                  %v1280 = vld [vmem:[%s1026 + $0x7b0] sm:$0xff]
                  %1281 = vst [vmem:[%s1027 + $0x3f0] sm:$0xff] %v1280
                  %v1282 = vld [vmem:[%s1026 + $0x7b8] sm:$0xff]
                  %1283 = vst [vmem:[%s1027 + $0x3f8] sm:$0xff] %v1282
                $region101: #{tpu_custom_call.1} parent=95 // loop_footer
                  %s1025 = sadd.s32 1, %s1021
                $region102: #{tpu_custom_call.1} parent=95 // loop_footer_branch
                  %1020 = sbr.rel target = $region98
                $region103: #{tpu_custom_call.1} parent=95 // loop_exit
                  _
              $region96: #{tpu_custom_call.1} parent=80 // pred_fallthru
                _
              // Predicated region
              $region104: #{tpu_custom_call.1} parent=80 // pred_check
                _
              $region105: #{tpu_custom_call.1} parent=80 // pred_check_branch
                %1285 = sbr.rel target = $region107
              $region106: #{tpu_custom_call.1} parent=80 // pred_region
                _
              $region107: #{tpu_custom_call.1} parent=80 // pred_fallthru
                _
            $region81: #{tpu_custom_call.1} parent=76 // pred_fallthru
              _
            // Predicated region
            $region82: #{tpu_custom_call.1} parent=76 // pred_check
              _
            $region83: #{tpu_custom_call.1} parent=76 // pred_check_branch
              %752 = sbr.rel target = $region85
            $region84: #{tpu_custom_call.1} parent=76 // pred_region
              loop: start=0, step=1, limit=1
              $region86: #{tpu_custom_call.1} parent=84 // loop_pre_header
                _
              $region87: #{tpu_custom_call.1} parent=84 // loop_header
                %s755 = sphi 0, %s759
                %p756 = scmp.ge.s32.totalorder %s755, 1
                %s760 = sphi %s746, %s746
                %s761 = sphi %s743, %s743
              $region88: #{tpu_custom_call.1} parent=84 // loop_header_branch
                %758 = sbr.rel (%p756) target = $region92
              $region89: #{tpu_custom_call.1} parent=84 // loop_body
                %v762 = vld [vmem:[%s760] sm:$0xff]
                %763 = vst [vmem:[%s761] sm:$0xff] %v762
                %v764 = vld [vmem:[%s760 + $0x8] sm:$0xff]
                %765 = vst [vmem:[%s761 + $0x8] sm:$0xff] %v764
                %v766 = vld [vmem:[%s760 + $0x10] sm:$0xff]
                %767 = vst [vmem:[%s761 + $0x10] sm:$0xff] %v766
                %v768 = vld [vmem:[%s760 + $0x18] sm:$0xff]
                %769 = vst [vmem:[%s761 + $0x18] sm:$0xff] %v768
                %v770 = vld [vmem:[%s760 + $0x20] sm:$0xff]
                %771 = vst [vmem:[%s761 + $0x20] sm:$0xff] %v770
                %v772 = vld [vmem:[%s760 + $0x28] sm:$0xff]
                %773 = vst [vmem:[%s761 + $0x28] sm:$0xff] %v772
                %v774 = vld [vmem:[%s760 + $0x30] sm:$0xff]
                %775 = vst [vmem:[%s761 + $0x30] sm:$0xff] %v774
                %v776 = vld [vmem:[%s760 + $0x38] sm:$0xff]
                %777 = vst [vmem:[%s761 + $0x38] sm:$0xff] %v776
                %v778 = vld [vmem:[%s760 + $0x80] sm:$0xff]
                %779 = vst [vmem:[%s761 + $0x40] sm:$0xff] %v778
                %v780 = vld [vmem:[%s760 + $0x88] sm:$0xff]
                %781 = vst [vmem:[%s761 + $0x48] sm:$0xff] %v780
                %v782 = vld [vmem:[%s760 + $0x90] sm:$0xff]
                %783 = vst [vmem:[%s761 + $0x50] sm:$0xff] %v782
                %v784 = vld [vmem:[%s760 + $0x98] sm:$0xff]
                %785 = vst [vmem:[%s761 + $0x58] sm:$0xff] %v784
                %v786 = vld [vmem:[%s760 + $0xa0] sm:$0xff]
                %787 = vst [vmem:[%s761 + $0x60] sm:$0xff] %v786
                %v788 = vld [vmem:[%s760 + $0xa8] sm:$0xff]
                %789 = vst [vmem:[%s761 + $0x68] sm:$0xff] %v788
                %v790 = vld [vmem:[%s760 + $0xb0] sm:$0xff]
                %791 = vst [vmem:[%s761 + $0x70] sm:$0xff] %v790
                %v792 = vld [vmem:[%s760 + $0xb8] sm:$0xff]
                %793 = vst [vmem:[%s761 + $0x78] sm:$0xff] %v792
                %v794 = vld [vmem:[%s760 + $0x100] sm:$0xff]
                %795 = vst [vmem:[%s761 + $0x80] sm:$0xff] %v794
                %v796 = vld [vmem:[%s760 + $0x108] sm:$0xff]
                %797 = vst [vmem:[%s761 + $0x88] sm:$0xff] %v796
                %v798 = vld [vmem:[%s760 + $0x110] sm:$0xff]
                %799 = vst [vmem:[%s761 + $0x90] sm:$0xff] %v798
                %v800 = vld [vmem:[%s760 + $0x118] sm:$0xff]
                %801 = vst [vmem:[%s761 + $0x98] sm:$0xff] %v800
                %v802 = vld [vmem:[%s760 + $0x120] sm:$0xff]
                %803 = vst [vmem:[%s761 + $0xa0] sm:$0xff] %v802
                %v804 = vld [vmem:[%s760 + $0x128] sm:$0xff]
                %805 = vst [vmem:[%s761 + $0xa8] sm:$0xff] %v804
                %v806 = vld [vmem:[%s760 + $0x130] sm:$0xff]
                %807 = vst [vmem:[%s761 + $0xb0] sm:$0xff] %v806
                %v808 = vld [vmem:[%s760 + $0x138] sm:$0xff]
                %809 = vst [vmem:[%s761 + $0xb8] sm:$0xff] %v808
                %v810 = vld [vmem:[%s760 + $0x180] sm:$0xff]
                %811 = vst [vmem:[%s761 + $0xc0] sm:$0xff] %v810
                %v812 = vld [vmem:[%s760 + $0x188] sm:$0xff]
                %813 = vst [vmem:[%s761 + $0xc8] sm:$0xff] %v812
                %v814 = vld [vmem:[%s760 + $0x190] sm:$0xff]
                %815 = vst [vmem:[%s761 + $0xd0] sm:$0xff] %v814
                %v816 = vld [vmem:[%s760 + $0x198] sm:$0xff]
                %817 = vst [vmem:[%s761 + $0xd8] sm:$0xff] %v816
                %v818 = vld [vmem:[%s760 + $0x1a0] sm:$0xff]
                %819 = vst [vmem:[%s761 + $0xe0] sm:$0xff] %v818
                %v820 = vld [vmem:[%s760 + $0x1a8] sm:$0xff]
                %821 = vst [vmem:[%s761 + $0xe8] sm:$0xff] %v820
                %v822 = vld [vmem:[%s760 + $0x1b0] sm:$0xff]
                %823 = vst [vmem:[%s761 + $0xf0] sm:$0xff] %v822
                %v824 = vld [vmem:[%s760 + $0x1b8] sm:$0xff]
                %825 = vst [vmem:[%s761 + $0xf8] sm:$0xff] %v824
                %v826 = vld [vmem:[%s760 + $0x200] sm:$0xff]
                %827 = vst [vmem:[%s761 + $0x100] sm:$0xff] %v826
                %v828 = vld [vmem:[%s760 + $0x208] sm:$0xff]
                %829 = vst [vmem:[%s761 + $0x108] sm:$0xff] %v828
                %v830 = vld [vmem:[%s760 + $0x210] sm:$0xff]
                %831 = vst [vmem:[%s761 + $0x110] sm:$0xff] %v830
                %v832 = vld [vmem:[%s760 + $0x218] sm:$0xff]
                %833 = vst [vmem:[%s761 + $0x118] sm:$0xff] %v832
                %v834 = vld [vmem:[%s760 + $0x220] sm:$0xff]
                %835 = vst [vmem:[%s761 + $0x120] sm:$0xff] %v834
                %v836 = vld [vmem:[%s760 + $0x228] sm:$0xff]
                %837 = vst [vmem:[%s761 + $0x128] sm:$0xff] %v836
                %v838 = vld [vmem:[%s760 + $0x230] sm:$0xff]
                %839 = vst [vmem:[%s761 + $0x130] sm:$0xff] %v838
                %v840 = vld [vmem:[%s760 + $0x238] sm:$0xff]
                %841 = vst [vmem:[%s761 + $0x138] sm:$0xff] %v840
                %v842 = vld [vmem:[%s760 + $0x280] sm:$0xff]
                %843 = vst [vmem:[%s761 + $0x140] sm:$0xff] %v842
                %v844 = vld [vmem:[%s760 + $0x288] sm:$0xff]
                %845 = vst [vmem:[%s761 + $0x148] sm:$0xff] %v844
                %v846 = vld [vmem:[%s760 + $0x290] sm:$0xff]
                %847 = vst [vmem:[%s761 + $0x150] sm:$0xff] %v846
                %v848 = vld [vmem:[%s760 + $0x298] sm:$0xff]
                %849 = vst [vmem:[%s761 + $0x158] sm:$0xff] %v848
                %v850 = vld [vmem:[%s760 + $0x2a0] sm:$0xff]
                %851 = vst [vmem:[%s761 + $0x160] sm:$0xff] %v850
                %v852 = vld [vmem:[%s760 + $0x2a8] sm:$0xff]
                %853 = vst [vmem:[%s761 + $0x168] sm:$0xff] %v852
                %v854 = vld [vmem:[%s760 + $0x2b0] sm:$0xff]
                %855 = vst [vmem:[%s761 + $0x170] sm:$0xff] %v854
                %v856 = vld [vmem:[%s760 + $0x2b8] sm:$0xff]
                %857 = vst [vmem:[%s761 + $0x178] sm:$0xff] %v856
                %v858 = vld [vmem:[%s760 + $0x300] sm:$0xff]
                %859 = vst [vmem:[%s761 + $0x180] sm:$0xff] %v858
                %v860 = vld [vmem:[%s760 + $0x308] sm:$0xff]
                %861 = vst [vmem:[%s761 + $0x188] sm:$0xff] %v860
                %v862 = vld [vmem:[%s760 + $0x310] sm:$0xff]
                %863 = vst [vmem:[%s761 + $0x190] sm:$0xff] %v862
                %v864 = vld [vmem:[%s760 + $0x318] sm:$0xff]
                %865 = vst [vmem:[%s761 + $0x198] sm:$0xff] %v864
                %v866 = vld [vmem:[%s760 + $0x320] sm:$0xff]
                %867 = vst [vmem:[%s761 + $0x1a0] sm:$0xff] %v866
                %v868 = vld [vmem:[%s760 + $0x328] sm:$0xff]
                %869 = vst [vmem:[%s761 + $0x1a8] sm:$0xff] %v868
                %v870 = vld [vmem:[%s760 + $0x330] sm:$0xff]
                %871 = vst [vmem:[%s761 + $0x1b0] sm:$0xff] %v870
                %v872 = vld [vmem:[%s760 + $0x338] sm:$0xff]
                %873 = vst [vmem:[%s761 + $0x1b8] sm:$0xff] %v872
                %v874 = vld [vmem:[%s760 + $0x380] sm:$0xff]
                %875 = vst [vmem:[%s761 + $0x1c0] sm:$0xff] %v874
                %v876 = vld [vmem:[%s760 + $0x388] sm:$0xff]
                %877 = vst [vmem:[%s761 + $0x1c8] sm:$0xff] %v876
                %v878 = vld [vmem:[%s760 + $0x390] sm:$0xff]
                %879 = vst [vmem:[%s761 + $0x1d0] sm:$0xff] %v878
                %v880 = vld [vmem:[%s760 + $0x398] sm:$0xff]
                %881 = vst [vmem:[%s761 + $0x1d8] sm:$0xff] %v880
                %v882 = vld [vmem:[%s760 + $0x3a0] sm:$0xff]
                %883 = vst [vmem:[%s761 + $0x1e0] sm:$0xff] %v882
                %v884 = vld [vmem:[%s760 + $0x3a8] sm:$0xff]
                %885 = vst [vmem:[%s761 + $0x1e8] sm:$0xff] %v884
                %v886 = vld [vmem:[%s760 + $0x3b0] sm:$0xff]
                %887 = vst [vmem:[%s761 + $0x1f0] sm:$0xff] %v886
                %v888 = vld [vmem:[%s760 + $0x3b8] sm:$0xff]
                %889 = vst [vmem:[%s761 + $0x1f8] sm:$0xff] %v888
                %v890 = vld [vmem:[%s760 + $0x400] sm:$0xff]
                %891 = vst [vmem:[%s761 + $0x200] sm:$0xff] %v890
                %v892 = vld [vmem:[%s760 + $0x408] sm:$0xff]
                %893 = vst [vmem:[%s761 + $0x208] sm:$0xff] %v892
                %v894 = vld [vmem:[%s760 + $0x410] sm:$0xff]
                %895 = vst [vmem:[%s761 + $0x210] sm:$0xff] %v894
                %v896 = vld [vmem:[%s760 + $0x418] sm:$0xff]
                %897 = vst [vmem:[%s761 + $0x218] sm:$0xff] %v896
                %v898 = vld [vmem:[%s760 + $0x420] sm:$0xff]
                %899 = vst [vmem:[%s761 + $0x220] sm:$0xff] %v898
                %v900 = vld [vmem:[%s760 + $0x428] sm:$0xff]
                %901 = vst [vmem:[%s761 + $0x228] sm:$0xff] %v900
                %v902 = vld [vmem:[%s760 + $0x430] sm:$0xff]
                %903 = vst [vmem:[%s761 + $0x230] sm:$0xff] %v902
                %v904 = vld [vmem:[%s760 + $0x438] sm:$0xff]
                %905 = vst [vmem:[%s761 + $0x238] sm:$0xff] %v904
                %v906 = vld [vmem:[%s760 + $0x480] sm:$0xff]
                %907 = vst [vmem:[%s761 + $0x240] sm:$0xff] %v906
                %v908 = vld [vmem:[%s760 + $0x488] sm:$0xff]
                %909 = vst [vmem:[%s761 + $0x248] sm:$0xff] %v908
                %v910 = vld [vmem:[%s760 + $0x490] sm:$0xff]
                %911 = vst [vmem:[%s761 + $0x250] sm:$0xff] %v910
                %v912 = vld [vmem:[%s760 + $0x498] sm:$0xff]
                %913 = vst [vmem:[%s761 + $0x258] sm:$0xff] %v912
                %v914 = vld [vmem:[%s760 + $0x4a0] sm:$0xff]
                %915 = vst [vmem:[%s761 + $0x260] sm:$0xff] %v914
                %v916 = vld [vmem:[%s760 + $0x4a8] sm:$0xff]
                %917 = vst [vmem:[%s761 + $0x268] sm:$0xff] %v916
                %v918 = vld [vmem:[%s760 + $0x4b0] sm:$0xff]
                %919 = vst [vmem:[%s761 + $0x270] sm:$0xff] %v918
                %v920 = vld [vmem:[%s760 + $0x4b8] sm:$0xff]
                %921 = vst [vmem:[%s761 + $0x278] sm:$0xff] %v920
                %v922 = vld [vmem:[%s760 + $0x500] sm:$0xff]
                %923 = vst [vmem:[%s761 + $0x280] sm:$0xff] %v922
                %v924 = vld [vmem:[%s760 + $0x508] sm:$0xff]
                %925 = vst [vmem:[%s761 + $0x288] sm:$0xff] %v924
                %v926 = vld [vmem:[%s760 + $0x510] sm:$0xff]
                %927 = vst [vmem:[%s761 + $0x290] sm:$0xff] %v926
                %v928 = vld [vmem:[%s760 + $0x518] sm:$0xff]
                %929 = vst [vmem:[%s761 + $0x298] sm:$0xff] %v928
                %v930 = vld [vmem:[%s760 + $0x520] sm:$0xff]
                %931 = vst [vmem:[%s761 + $0x2a0] sm:$0xff] %v930
                %v932 = vld [vmem:[%s760 + $0x528] sm:$0xff]
                %933 = vst [vmem:[%s761 + $0x2a8] sm:$0xff] %v932
                %v934 = vld [vmem:[%s760 + $0x530] sm:$0xff]
                %935 = vst [vmem:[%s761 + $0x2b0] sm:$0xff] %v934
                %v936 = vld [vmem:[%s760 + $0x538] sm:$0xff]
                %937 = vst [vmem:[%s761 + $0x2b8] sm:$0xff] %v936
                %v938 = vld [vmem:[%s760 + $0x580] sm:$0xff]
                %939 = vst [vmem:[%s761 + $0x2c0] sm:$0xff] %v938
                %v940 = vld [vmem:[%s760 + $0x588] sm:$0xff]
                %941 = vst [vmem:[%s761 + $0x2c8] sm:$0xff] %v940
                %v942 = vld [vmem:[%s760 + $0x590] sm:$0xff]
                %943 = vst [vmem:[%s761 + $0x2d0] sm:$0xff] %v942
                %v944 = vld [vmem:[%s760 + $0x598] sm:$0xff]
                %945 = vst [vmem:[%s761 + $0x2d8] sm:$0xff] %v944
                %v946 = vld [vmem:[%s760 + $0x5a0] sm:$0xff]
                %947 = vst [vmem:[%s761 + $0x2e0] sm:$0xff] %v946
                %v948 = vld [vmem:[%s760 + $0x5a8] sm:$0xff]
                %949 = vst [vmem:[%s761 + $0x2e8] sm:$0xff] %v948
                %v950 = vld [vmem:[%s760 + $0x5b0] sm:$0xff]
                %951 = vst [vmem:[%s761 + $0x2f0] sm:$0xff] %v950
                %v952 = vld [vmem:[%s760 + $0x5b8] sm:$0xff]
                %953 = vst [vmem:[%s761 + $0x2f8] sm:$0xff] %v952
                %v954 = vld [vmem:[%s760 + $0x600] sm:$0xff]
                %955 = vst [vmem:[%s761 + $0x300] sm:$0xff] %v954
                %v956 = vld [vmem:[%s760 + $0x608] sm:$0xff]
                %957 = vst [vmem:[%s761 + $0x308] sm:$0xff] %v956
                %v958 = vld [vmem:[%s760 + $0x610] sm:$0xff]
                %959 = vst [vmem:[%s761 + $0x310] sm:$0xff] %v958
                %v960 = vld [vmem:[%s760 + $0x618] sm:$0xff]
                %961 = vst [vmem:[%s761 + $0x318] sm:$0xff] %v960
                %v962 = vld [vmem:[%s760 + $0x620] sm:$0xff]
                %963 = vst [vmem:[%s761 + $0x320] sm:$0xff] %v962
                %v964 = vld [vmem:[%s760 + $0x628] sm:$0xff]
                %965 = vst [vmem:[%s761 + $0x328] sm:$0xff] %v964
                %v966 = vld [vmem:[%s760 + $0x630] sm:$0xff]
                %967 = vst [vmem:[%s761 + $0x330] sm:$0xff] %v966
                %v968 = vld [vmem:[%s760 + $0x638] sm:$0xff]
                %969 = vst [vmem:[%s761 + $0x338] sm:$0xff] %v968
                %v970 = vld [vmem:[%s760 + $0x680] sm:$0xff]
                %971 = vst [vmem:[%s761 + $0x340] sm:$0xff] %v970
                %v972 = vld [vmem:[%s760 + $0x688] sm:$0xff]
                %973 = vst [vmem:[%s761 + $0x348] sm:$0xff] %v972
                %v974 = vld [vmem:[%s760 + $0x690] sm:$0xff]
                %975 = vst [vmem:[%s761 + $0x350] sm:$0xff] %v974
                %v976 = vld [vmem:[%s760 + $0x698] sm:$0xff]
                %977 = vst [vmem:[%s761 + $0x358] sm:$0xff] %v976
                %v978 = vld [vmem:[%s760 + $0x6a0] sm:$0xff]
                %979 = vst [vmem:[%s761 + $0x360] sm:$0xff] %v978
                %v980 = vld [vmem:[%s760 + $0x6a8] sm:$0xff]
                %981 = vst [vmem:[%s761 + $0x368] sm:$0xff] %v980
                %v982 = vld [vmem:[%s760 + $0x6b0] sm:$0xff]
                %983 = vst [vmem:[%s761 + $0x370] sm:$0xff] %v982
                %v984 = vld [vmem:[%s760 + $0x6b8] sm:$0xff]
                %985 = vst [vmem:[%s761 + $0x378] sm:$0xff] %v984
                %v986 = vld [vmem:[%s760 + $0x700] sm:$0xff]
                %987 = vst [vmem:[%s761 + $0x380] sm:$0xff] %v986
                %v988 = vld [vmem:[%s760 + $0x708] sm:$0xff]
                %989 = vst [vmem:[%s761 + $0x388] sm:$0xff] %v988
                %v990 = vld [vmem:[%s760 + $0x710] sm:$0xff]
                %991 = vst [vmem:[%s761 + $0x390] sm:$0xff] %v990
                %v992 = vld [vmem:[%s760 + $0x718] sm:$0xff]
                %993 = vst [vmem:[%s761 + $0x398] sm:$0xff] %v992
                %v994 = vld [vmem:[%s760 + $0x720] sm:$0xff]
                %995 = vst [vmem:[%s761 + $0x3a0] sm:$0xff] %v994
                %v996 = vld [vmem:[%s760 + $0x728] sm:$0xff]
                %997 = vst [vmem:[%s761 + $0x3a8] sm:$0xff] %v996
                %v998 = vld [vmem:[%s760 + $0x730] sm:$0xff]
                %999 = vst [vmem:[%s761 + $0x3b0] sm:$0xff] %v998
                %v1000 = vld [vmem:[%s760 + $0x738] sm:$0xff]
                %1001 = vst [vmem:[%s761 + $0x3b8] sm:$0xff] %v1000
                %v1002 = vld [vmem:[%s760 + $0x780] sm:$0xff]
                %1003 = vst [vmem:[%s761 + $0x3c0] sm:$0xff] %v1002
                %v1004 = vld [vmem:[%s760 + $0x788] sm:$0xff]
                %1005 = vst [vmem:[%s761 + $0x3c8] sm:$0xff] %v1004
                %v1006 = vld [vmem:[%s760 + $0x790] sm:$0xff]
                %1007 = vst [vmem:[%s761 + $0x3d0] sm:$0xff] %v1006
                %v1008 = vld [vmem:[%s760 + $0x798] sm:$0xff]
                %1009 = vst [vmem:[%s761 + $0x3d8] sm:$0xff] %v1008
                %v1010 = vld [vmem:[%s760 + $0x7a0] sm:$0xff]
                %1011 = vst [vmem:[%s761 + $0x3e0] sm:$0xff] %v1010
                %v1012 = vld [vmem:[%s760 + $0x7a8] sm:$0xff]
                %1013 = vst [vmem:[%s761 + $0x3e8] sm:$0xff] %v1012
                %v1014 = vld [vmem:[%s760 + $0x7b0] sm:$0xff]
                %1015 = vst [vmem:[%s761 + $0x3f0] sm:$0xff] %v1014
                %v1016 = vld [vmem:[%s760 + $0x7b8] sm:$0xff]
                %1017 = vst [vmem:[%s761 + $0x3f8] sm:$0xff] %v1016
              $region90: #{tpu_custom_call.1} parent=84 // loop_footer
                %s759 = sadd.s32 1, %s755
              $region91: #{tpu_custom_call.1} parent=84 // loop_footer_branch
                %754 = sbr.rel target = $region87
              $region92: #{tpu_custom_call.1} parent=84 // loop_exit
                _
            $region85: #{tpu_custom_call.1} parent=76 // pred_fallthru
              _
          $region77: #{tpu_custom_call.1} parent=72 // pred_fallthru
            _
          %1286 = vnop
        $region73: #{tpu_custom_call.1} parent=27 // pred_fallthru
          _
      $region28: #{tpu_custom_call.1} parent=5 // pred_fallthru
        _
      %p1287 = scmp.le.s32.totalorder 1, %s11
      %p1288 = scmp.lt.s32.totalorder %s11, 3
      %p1289 = pnand %p1287, %p1288
      %p1290 = pneg %p1289
      // Predicated region
      $region108: #{tpu_custom_call.1} parent=5 // pred_check
        _
      $region109: #{tpu_custom_call.1} parent=5 // pred_check_branch
        %1292 = sbr.rel (%p1289) target = $region111
      $region110: #{tpu_custom_call.1} parent=5 // pred_region
        %s1293 = ssub.s32 %s11, 1
        %s1294 = sand.u32 %s24, 1
        %s1295 = sand.u32 %s24, 1
        %s1296 = smul.addr %s1295, 512
        %s1297 = scalar_lea.vmem [#allocation2], %s1296
        // Predicated region
        $region112: #{tpu_custom_call.1} parent=110 // pred_check
          %p1298 = pneg %p37
        $region113: #{tpu_custom_call.1} parent=110 // pred_check_branch
          %1300 = sbr.rel (%p1298) target = $region115
        $region114: #{tpu_custom_call.1} parent=110 // pred_region
          _
        $region115: #{tpu_custom_call.1} parent=110 // pred_fallthru
          _
        %s1301 = sand.u32 %s50, 1
        %s1302 = sand.u32 %s50, 1
        %s1303 = smul.addr %s1302, 1024
        %s1304 = scalar_lea.vmem [#allocation3], %s1303
        // Predicated region
        $region116: #{tpu_custom_call.1} parent=110 // pred_check
          %p1305 = pneg %p63
        $region117: #{tpu_custom_call.1} parent=110 // pred_check_branch
          %1307 = sbr.rel (%p1305) target = $region119
        $region118: #{tpu_custom_call.1} parent=110 // pred_region
          _
        $region119: #{tpu_custom_call.1} parent=110 // pred_fallthru
          _
        %s1308 = sand.u32 %s24, 1
        %s1309 = sand.u32 %s24, 1
        %s1310 = smul.addr %s1309, 512
        %s1311 = scalar_lea.vmem [#allocation2], %s1310
        %p1312 = pneg %p37
        %p1313 = pneg %p34
        %s1314 = sand.u32 %s50, 1
        %s1315 = sand.u32 %s50, 1
        %s1316 = smul.addr %s1315, 1024
        %s1317 = scalar_lea.vmem [#allocation3], %s1316
        %p1318 = pneg %p63
        %p1319 = pneg %p60
        %p1320 = pneg %p84
        %p1321 = pneg %p81
        %p1322 = pneg %p105
        %p1323 = pneg %p102
        %p1324 = pneg %p126
        %p1325 = pneg %p123
        %p1326 = pneg %p152
        %p1327 = pneg %p149
        %s1328 = smul.u32 8, %s16
        %p1329 = scmp.lt.s32.totalorder %s1328, 15
        %s1330 = scalar_select %p1329, %s1328, 15
        %s1331 = smul.addr %s1330, 8
        %s1332 = scalar_lea.vmem %s5, %s1331
        %s1333 = smul.u32 8, %s16
        %s1334 = smul.u32 8, %s16
        %s1335 = smul.u32 8, %s16
        %p1336 = scmp.lt.s32.totalorder %s1335, 15
        %s1337 = scalar_select %p1336, %s1335, 15
        %s1338 = smul.addr %s1337, 8
        %s1339 = scalar_lea.vmem %s5, %s1338
        %s1340 = smul.u32 8, %s16
        %v1342 = vld [vmem:[%s2] sm:$0x3]
        %v1343 = vld [vmem:[%s3] sm:$0x7]
        %v1344 = vld [vmem:[%s1297] sm:$0xf]
        %v1345 = vld [vmem:[%s1297 + $0x4] sm:$0xf]
        %v1346 = vld [vmem:[%s1297 + $0x8] sm:$0xf]
        %v1347 = vld [vmem:[%s1297 + $0xc] sm:$0xf]
        %v1348 = vld [vmem:[%s1297 + $0x10] sm:$0xf]
        %v1349 = vld [vmem:[%s1297 + $0x14] sm:$0xf]
        %v1350 = vld [vmem:[%s1297 + $0x18] sm:$0xf]
        %v1351 = vld [vmem:[%s1297 + $0x1c] sm:$0xf]
        %v1352 = vld [vmem:[%s1304] sm:$0xff]
        %v1353 = vld [vmem:[%s1304 + $0x8] sm:$0xff]
        %v1354 = vld [vmem:[%s1304 + $0x10] sm:$0xff]
        %v1355 = vld [vmem:[%s1304 + $0x18] sm:$0xff]
        %v1356 = vld [vmem:[%s1304 + $0x20] sm:$0xff]
        %v1357 = vld [vmem:[%s1304 + $0x28] sm:$0xff]
        %v1358 = vld [vmem:[%s1304 + $0x30] sm:$0xff]
        %v1359 = vld [vmem:[%s1304 + $0x38] sm:$0xff]
        %1361 = vset.pattern.permute.xlu0 0
        %1362 = vperm.xlu0 %1361, %v1352
        %v1363 = vpop.permute.xlu0 %1362
        %1366 = vset.pattern.permute.xlu0 0
        %1367 = vperm.xlu0 %1366, %v1353
        %v1368 = vpop.permute.xlu0 %1367
        %1371 = vset.pattern.permute.xlu0 0
        %1372 = vperm.xlu0 %1371, %v1354
        %v1373 = vpop.permute.xlu0 %1372
        %1376 = vset.pattern.permute.xlu0 0
        %1377 = vperm.xlu0 %1376, %v1355
        %v1378 = vpop.permute.xlu0 %1377
        %1381 = vset.pattern.permute.xlu0 0
        %1382 = vperm.xlu0 %1381, %v1356
        %v1383 = vpop.permute.xlu0 %1382
        %1386 = vset.pattern.permute.xlu0 0
        %1387 = vperm.xlu0 %1386, %v1357
        %v1388 = vpop.permute.xlu0 %1387
        %1391 = vset.pattern.permute.xlu0 0
        %1392 = vperm.xlu0 %1391, %v1358
        %v1393 = vpop.permute.xlu0 %1392
        %1396 = vset.pattern.permute.xlu0 0
        %1397 = vperm.xlu0 %1396, %v1359
        %v1398 = vpop.permute.xlu0 %1397
        %v1400 = vlaneseq
        %v1401 = vshrl.u32 %v1400, 7
        %v1402 = vsub.s32 0, %v1401
        %v1403 = vrot.slane %v1343, %v1402
        %v1404 = vmul.f32 %v1363, %v1403
        %v1405 = vmul.f32 %v1368, %v1403
        %v1406 = vmul.f32 %v1373, %v1403
        %v1407 = vmul.f32 %v1378, %v1403
        %v1408 = vmul.f32 %v1383, %v1403
        %v1409 = vmul.f32 %v1388, %v1403
        %v1410 = vmul.f32 %v1393, %v1403
        %v1411 = vmul.f32 %v1398, %v1403
        %v1420 = vunpack.c.l.b16 %v1344
        %v1421 = vunpack.c.l.b16 %v1345
        %v1422 = vunpack.c.l.b16 %v1346
        %v1423 = vunpack.c.l.b16 %v1347
        %v1424 = vunpack.c.l.b16 %v1348
        %v1425 = vunpack.c.l.b16 %v1349
        %v1426 = vunpack.c.l.b16 %v1350
        %v1427 = vunpack.c.l.b16 %v1351
        %v1428 = vpack.c.b16 %v1421, %v1420
        %v1429 = vpack.c.b16 %v1423, %v1422
        %v1430 = vpack.c.b16 %v1425, %v1424
        %v1431 = vpack.c.b16 %v1427, %v1426
        %vm1432 = vcmask 31744
        %v1434 = vsel %vm1432, %v1428, 0
        %v1437 = vsel %vm1432, %v1429, 0
        %v1440 = vsel %vm1432, %v1430, 0
        %v1443 = vsel %vm1432, %v1431, 0
        %vm1445 = vcmask 1041408
        %v1447 = vsel %vm1445, %v1342, 0
        %1449 = vmatprep.subr.bf16.mxu0 0
        %1450 = vmatpush1.bf16.msra.mxu0 %v1447
        %1451 = vmatprep.subr.bf16.mxu0 0
        %1452 = vmatpush1.bf16.msra.mxu0 0
        %1453 = vmatprep.subr.bf16.mxu0 0
        %1454 = vmatpush1.bf16.msra.mxu0 0
        %1455 = vmatprep.subr.bf16.mxu0 0
        %1456 = vmatpush1.bf16.msra.mxu0 0
        %1457 = vmatprep.subr.bf16.mxu0 0
        %1458 = vmatpush1.bf16.msra.mxu0 0
        %1459 = vmatprep.subr.bf16.mxu0 0
        %1460 = vmatpush1.bf16.msra.mxu0 0
        %1461 = vmatprep.subr.bf16.mxu0 0
        %1462 = vmatpush1.bf16.msra.mxu0 0
        %1463 = vmatprep.subr.bf16.mxu0 0
        %1464 = vmatpush1.bf16.msra.mxu0 0
        %1465 = vmatprep.subr.bf16.mxu0 0
        %1466 = vmatpush1.bf16.msra.mxu0 0
        %1467 = vmatprep.subr.bf16.mxu0 0
        %1468 = vmatpush1.bf16.msra.mxu0 0
        %1469 = vmatprep.subr.bf16.mxu0 0
        %1470 = vmatpush1.bf16.msra.mxu0 0
        %1471 = vmatprep.subr.bf16.mxu0 0
        %1472 = vmatpush1.bf16.msra.mxu0 0
        %1473 = vmatprep.subr.bf16.mxu0 0
        %1474 = vmatpush1.bf16.msra.mxu0 0
        %1475 = vmatprep.subr.bf16.mxu0 0
        %1476 = vmatpush1.bf16.msra.mxu0 0
        %1477 = vmatprep.subr.bf16.mxu0 0
        %1478 = vmatpush1.bf16.msra.mxu0 0
        %1479 = vmatprep.subr.bf16.mxu0 0
        %1480 = vmatpush1.bf16.msra.mxu0 0
        %1481 = vmatprep.mubr.bf16.mxu0 0
        %1482 = vmatmul.mubr.bf16.gmra.mrb[0].mxu0 %v1434
        %v1483 = vpop.f32.mrb[0].mxu0
        %v1484 = vadd.f32 %v1404, %v1483
        %v1485 = vpop.f32.mrb[0].mxu0
        %v1486 = vpop.f32.mrb[0].mxu0
        %v1487 = vadd.f32 %v1405, %v1486
        %v1488 = vpop.f32.mrb[0].mxu0
        %1489 = vmatprep.mubr.bf16.mxu0 0
        %1490 = vmatmul.mubr.bf16.gmra.mrb[0].mxu0 %v1437
        %v1491 = vpop.f32.mrb[0].mxu0
        %v1492 = vadd.f32 %v1406, %v1491
        %v1493 = vpop.f32.mrb[0].mxu0
        %v1494 = vpop.f32.mrb[0].mxu0
        %v1495 = vadd.f32 %v1407, %v1494
        %v1496 = vpop.f32.mrb[0].mxu0
        %1497 = vmatprep.mubr.bf16.mxu0 0
        %1498 = vmatmul.mubr.bf16.gmra.mrb[0].mxu0 %v1440
        %v1499 = vpop.f32.mrb[0].mxu0
        %v1500 = vadd.f32 %v1408, %v1499
        %v1501 = vpop.f32.mrb[0].mxu0
        %v1502 = vpop.f32.mrb[0].mxu0
        %v1503 = vadd.f32 %v1409, %v1502
        %v1504 = vpop.f32.mrb[0].mxu0
        %1505 = vmatprep.mubr.bf16.mxu0 0
        %1506 = vmatmul.mubr.bf16.gmra.mrb[0].mxu0 %v1443
        %v1507 = vpop.f32.mrb[0].mxu0
        %v1508 = vadd.f32 %v1410, %v1507
        %v1509 = vpop.f32.mrb[0].mxu0
        %v1510 = vpop.f32.mrb[0].mxu0
        %v1511 = vadd.f32 %v1411, %v1510
        %v1512 = vpop.f32.mrb[0].mxu0
        %1513 = vdwg.mxu0
        %1514 = vset.pattern.permute.xlu0 1
        %1515 = vperm.xlu0 %1514, %v1352
        %v1516 = vpop.permute.xlu0 %1515
        %1518 = vset.pattern.permute.xlu0 1
        %1519 = vperm.xlu0 %1518, %v1353
        %v1520 = vpop.permute.xlu0 %1519
        %1522 = vset.pattern.permute.xlu0 1
        %1523 = vperm.xlu0 %1522, %v1354
        %v1524 = vpop.permute.xlu0 %1523
        %1526 = vset.pattern.permute.xlu0 1
        %1527 = vperm.xlu0 %1526, %v1355
        %v1528 = vpop.permute.xlu0 %1527
        %1530 = vset.pattern.permute.xlu0 1
        %1531 = vperm.xlu0 %1530, %v1356
        %v1532 = vpop.permute.xlu0 %1531
        %1534 = vset.pattern.permute.xlu0 1
        %1535 = vperm.xlu0 %1534, %v1357
        %v1536 = vpop.permute.xlu0 %1535
        %1538 = vset.pattern.permute.xlu0 1
        %1539 = vperm.xlu0 %1538, %v1358
        %v1540 = vpop.permute.xlu0 %1539
        %1542 = vset.pattern.permute.xlu0 1
        %1543 = vperm.xlu0 %1542, %v1359
        %v1544 = vpop.permute.xlu0 %1543
        %v1546 = vlaneseq
        %v1547 = vshrl.u32 %v1546, 7
        %v1548 = vsub.s32 1, %v1547
        %v1549 = vrot.slane %v1343, %v1548
        %v1550 = vmul.f32 %v1516, %v1549
        %v1551 = vmul.f32 %v1520, %v1549
        %v1552 = vmul.f32 %v1524, %v1549
        %v1553 = vmul.f32 %v1528, %v1549
        %v1554 = vmul.f32 %v1532, %v1549
        %v1555 = vmul.f32 %v1536, %v1549
        %v1556 = vmul.f32 %v1540, %v1549
        %v1557 = vmul.f32 %v1544, %v1549
        %v1558 = vadd.f32 %v1484, %v1550
        %v1559 = vadd.f32 %v1487, %v1551
        %v1560 = vadd.f32 %v1492, %v1552
        %v1561 = vadd.f32 %v1495, %v1553
        %v1562 = vadd.f32 %v1500, %v1554
        %v1563 = vadd.f32 %v1503, %v1555
        %v1564 = vadd.f32 %v1508, %v1556
        %v1565 = vadd.f32 %v1511, %v1557
        %1566 = vset.pattern.permute.xlu0 2
        %1567 = vperm.xlu0 %1566, %v1352
        %v1568 = vpop.permute.xlu0 %1567
        %1570 = vset.pattern.permute.xlu0 2
        %1571 = vperm.xlu0 %1570, %v1353
        %v1572 = vpop.permute.xlu0 %1571
        %1574 = vset.pattern.permute.xlu0 2
        %1575 = vperm.xlu0 %1574, %v1354
        %v1576 = vpop.permute.xlu0 %1575
        %1578 = vset.pattern.permute.xlu0 2
        %1579 = vperm.xlu0 %1578, %v1355
        %v1580 = vpop.permute.xlu0 %1579
        %1582 = vset.pattern.permute.xlu0 2
        %1583 = vperm.xlu0 %1582, %v1356
        %v1584 = vpop.permute.xlu0 %1583
        %1586 = vset.pattern.permute.xlu0 2
        %1587 = vperm.xlu0 %1586, %v1357
        %v1588 = vpop.permute.xlu0 %1587
        %1590 = vset.pattern.permute.xlu0 2
        %1591 = vperm.xlu0 %1590, %v1358
        %v1592 = vpop.permute.xlu0 %1591
        %1594 = vset.pattern.permute.xlu0 2
        %1595 = vperm.xlu0 %1594, %v1359
        %v1596 = vpop.permute.xlu0 %1595
        %v1598 = vlaneseq
        %v1599 = vshrl.u32 %v1598, 7
        %v1600 = vsub.s32 2, %v1599
        %v1601 = vrot.slane %v1343, %v1600
        %v1602 = vmul.f32 %v1568, %v1601
        %v1603 = vmul.f32 %v1572, %v1601
        %v1604 = vmul.f32 %v1576, %v1601
        %v1605 = vmul.f32 %v1580, %v1601
        %v1606 = vmul.f32 %v1584, %v1601
        %v1607 = vmul.f32 %v1588, %v1601
        %v1608 = vmul.f32 %v1592, %v1601
        %v1609 = vmul.f32 %v1596, %v1601
        %v1610 = vadd.f32 %v1558, %v1602
        %v1611 = vadd.f32 %v1559, %v1603
        %v1612 = vadd.f32 %v1560, %v1604
        %v1613 = vadd.f32 %v1561, %v1605
        %v1614 = vadd.f32 %v1562, %v1606
        %v1615 = vadd.f32 %v1563, %v1607
        %v1616 = vadd.f32 %v1564, %v1608
        %v1617 = vadd.f32 %v1565, %v1609
        %s1618 = scalar_lea.vmem %s1297, 32 [#allocation2]
        %v1619 = vld [vmem:[%s1618] sm:$0xf]
        %v1620 = vld [vmem:[%s1618 + $0x4] sm:$0xf]
        %v1621 = vld [vmem:[%s1618 + $0x8] sm:$0xf]
        %v1622 = vld [vmem:[%s1618 + $0xc] sm:$0xf]
        %v1623 = vld [vmem:[%s1618 + $0x10] sm:$0xf]
        %v1624 = vld [vmem:[%s1618 + $0x14] sm:$0xf]
        %v1625 = vld [vmem:[%s1618 + $0x18] sm:$0xf]
        %v1626 = vld [vmem:[%s1618 + $0x1c] sm:$0xf]
        %s1627 = scalar_lea.vmem %s1304, 64 [#allocation3]
        %v1628 = vld [vmem:[%s1627] sm:$0xff]
        %v1629 = vld [vmem:[%s1627 + $0x8] sm:$0xff]
        %v1630 = vld [vmem:[%s1627 + $0x10] sm:$0xff]
        %v1631 = vld [vmem:[%s1627 + $0x18] sm:$0xff]
        %v1632 = vld [vmem:[%s1627 + $0x20] sm:$0xff]
        %v1633 = vld [vmem:[%s1627 + $0x28] sm:$0xff]
        %v1634 = vld [vmem:[%s1627 + $0x30] sm:$0xff]
        %v1635 = vld [vmem:[%s1627 + $0x38] sm:$0xff]
        %1637 = vset.pattern.permute.xlu0 0
        %1638 = vperm.xlu0 %1637, %v1628
        %v1639 = vpop.permute.xlu0 %1638
        %1642 = vset.pattern.permute.xlu0 0
        %1643 = vperm.xlu0 %1642, %v1629
        %v1644 = vpop.permute.xlu0 %1643
        %1647 = vset.pattern.permute.xlu0 0
        %1648 = vperm.xlu0 %1647, %v1630
        %v1649 = vpop.permute.xlu0 %1648
        %1652 = vset.pattern.permute.xlu0 0
        %1653 = vperm.xlu0 %1652, %v1631
        %v1654 = vpop.permute.xlu0 %1653
        %1657 = vset.pattern.permute.xlu0 0
        %1658 = vperm.xlu0 %1657, %v1632
        %v1659 = vpop.permute.xlu0 %1658
        %1662 = vset.pattern.permute.xlu0 0
        %1663 = vperm.xlu0 %1662, %v1633
        %v1664 = vpop.permute.xlu0 %1663
        %1667 = vset.pattern.permute.xlu0 0
        %1668 = vperm.xlu0 %1667, %v1634
        %v1669 = vpop.permute.xlu0 %1668
        %1672 = vset.pattern.permute.xlu0 0
        %1673 = vperm.xlu0 %1672, %v1635
        %v1674 = vpop.permute.xlu0 %1673
        %v1676 = vmul.f32 %v1639, %v1403
        %v1677 = vmul.f32 %v1644, %v1403
        %v1678 = vmul.f32 %v1649, %v1403
        %v1679 = vmul.f32 %v1654, %v1403
        %v1680 = vmul.f32 %v1659, %v1403
        %v1681 = vmul.f32 %v1664, %v1403
        %v1682 = vmul.f32 %v1669, %v1403
        %v1683 = vmul.f32 %v1674, %v1403
        %v1692 = vunpack.c.l.b16 %v1619
        %v1693 = vunpack.c.l.b16 %v1620
        %v1694 = vunpack.c.l.b16 %v1621
        %v1695 = vunpack.c.l.b16 %v1622
        %v1696 = vunpack.c.l.b16 %v1623
        %v1697 = vunpack.c.l.b16 %v1624
        %v1698 = vunpack.c.l.b16 %v1625
        %v1699 = vunpack.c.l.b16 %v1626
        %v1700 = vpack.c.b16 %v1693, %v1692
        %v1701 = vpack.c.b16 %v1695, %v1694
        %v1702 = vpack.c.b16 %v1697, %v1696
        %v1703 = vpack.c.b16 %v1699, %v1698
        %v1705 = vsel %vm1432, %v1700, 0
        %v1708 = vsel %vm1432, %v1701, 0
        %v1711 = vsel %vm1432, %v1702, 0
        %v1714 = vsel %vm1432, %v1703, 0
        %1716 = vmatprep.subr.bf16.mxu0 0
        %1717 = vmatpush1.bf16.msra.mxu0 %v1447
        %1718 = vmatprep.subr.bf16.mxu0 0
        %1719 = vmatpush1.bf16.msra.mxu0 0
        %1720 = vmatprep.subr.bf16.mxu0 0
        %1721 = vmatpush1.bf16.msra.mxu0 0
        %1722 = vmatprep.subr.bf16.mxu0 0
        %1723 = vmatpush1.bf16.msra.mxu0 0
        %1724 = vmatprep.subr.bf16.mxu0 0
        %1725 = vmatpush1.bf16.msra.mxu0 0
        %1726 = vmatprep.subr.bf16.mxu0 0
        %1727 = vmatpush1.bf16.msra.mxu0 0
        %1728 = vmatprep.subr.bf16.mxu0 0
        %1729 = vmatpush1.bf16.msra.mxu0 0
        %1730 = vmatprep.subr.bf16.mxu0 0
        %1731 = vmatpush1.bf16.msra.mxu0 0
        %1732 = vmatprep.subr.bf16.mxu0 0
        %1733 = vmatpush1.bf16.msra.mxu0 0
        %1734 = vmatprep.subr.bf16.mxu0 0
        %1735 = vmatpush1.bf16.msra.mxu0 0
        %1736 = vmatprep.subr.bf16.mxu0 0
        %1737 = vmatpush1.bf16.msra.mxu0 0
        %1738 = vmatprep.subr.bf16.mxu0 0
        %1739 = vmatpush1.bf16.msra.mxu0 0
        %1740 = vmatprep.subr.bf16.mxu0 0
        %1741 = vmatpush1.bf16.msra.mxu0 0
        %1742 = vmatprep.subr.bf16.mxu0 0
        %1743 = vmatpush1.bf16.msra.mxu0 0
        %1744 = vmatprep.subr.bf16.mxu0 0
        %1745 = vmatpush1.bf16.msra.mxu0 0
        %1746 = vmatprep.subr.bf16.mxu0 0
        %1747 = vmatpush1.bf16.msra.mxu0 0
        %1748 = vmatprep.mubr.bf16.mxu0 0
        %1749 = vmatmul.mubr.bf16.gmra.mrb[0].mxu0 %v1705
        %v1750 = vpop.f32.mrb[0].mxu0
        %v1751 = vadd.f32 %v1676, %v1750
        %v1752 = vpop.f32.mrb[0].mxu0
        %v1753 = vpop.f32.mrb[0].mxu0
        %v1754 = vadd.f32 %v1677, %v1753
        %v1755 = vpop.f32.mrb[0].mxu0
        %1756 = vmatprep.mubr.bf16.mxu0 0
        %1757 = vmatmul.mubr.bf16.gmra.mrb[0].mxu0 %v1708
        %v1758 = vpop.f32.mrb[0].mxu0
        %v1759 = vadd.f32 %v1678, %v1758
        %v1760 = vpop.f32.mrb[0].mxu0
        %v1761 = vpop.f32.mrb[0].mxu0
        %v1762 = vadd.f32 %v1679, %v1761
        %v1763 = vpop.f32.mrb[0].mxu0
        %1764 = vmatprep.mubr.bf16.mxu0 0
        %1765 = vmatmul.mubr.bf16.gmra.mrb[0].mxu0 %v1711
        %v1766 = vpop.f32.mrb[0].mxu0
        %v1767 = vadd.f32 %v1680, %v1766
        %v1768 = vpop.f32.mrb[0].mxu0
        %v1769 = vpop.f32.mrb[0].mxu0
        %v1770 = vadd.f32 %v1681, %v1769
        %v1771 = vpop.f32.mrb[0].mxu0
        %1772 = vmatprep.mubr.bf16.mxu0 0
        %1773 = vmatmul.mubr.bf16.gmra.mrb[0].mxu0 %v1714
        %v1774 = vpop.f32.mrb[0].mxu0
        %v1775 = vadd.f32 %v1682, %v1774
        %v1776 = vpop.f32.mrb[0].mxu0
        %v1777 = vpop.f32.mrb[0].mxu0
        %v1778 = vadd.f32 %v1683, %v1777
        %v1779 = vpop.f32.mrb[0].mxu0
        %1780 = vdwg.mxu0
        %1781 = vset.pattern.permute.xlu0 1
        %1782 = vperm.xlu0 %1781, %v1628
        %v1783 = vpop.permute.xlu0 %1782
        %1785 = vset.pattern.permute.xlu0 1
        %1786 = vperm.xlu0 %1785, %v1629
        %v1787 = vpop.permute.xlu0 %1786
        %1789 = vset.pattern.permute.xlu0 1
        %1790 = vperm.xlu0 %1789, %v1630
        %v1791 = vpop.permute.xlu0 %1790
        %1793 = vset.pattern.permute.xlu0 1
        %1794 = vperm.xlu0 %1793, %v1631
        %v1795 = vpop.permute.xlu0 %1794
        %1797 = vset.pattern.permute.xlu0 1
        %1798 = vperm.xlu0 %1797, %v1632
        %v1799 = vpop.permute.xlu0 %1798
        %1801 = vset.pattern.permute.xlu0 1
        %1802 = vperm.xlu0 %1801, %v1633
        %v1803 = vpop.permute.xlu0 %1802
        %1805 = vset.pattern.permute.xlu0 1
        %1806 = vperm.xlu0 %1805, %v1634
        %v1807 = vpop.permute.xlu0 %1806
        %1809 = vset.pattern.permute.xlu0 1
        %1810 = vperm.xlu0 %1809, %v1635
        %v1811 = vpop.permute.xlu0 %1810
        %v1813 = vmul.f32 %v1783, %v1549
        %v1814 = vmul.f32 %v1787, %v1549
        %v1815 = vmul.f32 %v1791, %v1549
        %v1816 = vmul.f32 %v1795, %v1549
        %v1817 = vmul.f32 %v1799, %v1549
        %v1818 = vmul.f32 %v1803, %v1549
        %v1819 = vmul.f32 %v1807, %v1549
        %v1820 = vmul.f32 %v1811, %v1549
        %v1821 = vadd.f32 %v1751, %v1813
        %v1822 = vadd.f32 %v1754, %v1814
        %v1823 = vadd.f32 %v1759, %v1815
        %v1824 = vadd.f32 %v1762, %v1816
        %v1825 = vadd.f32 %v1767, %v1817
        %v1826 = vadd.f32 %v1770, %v1818
        %v1827 = vadd.f32 %v1775, %v1819
        %v1828 = vadd.f32 %v1778, %v1820
        %1829 = vset.pattern.permute.xlu0 2
        %1830 = vperm.xlu0 %1829, %v1628
        %v1831 = vpop.permute.xlu0 %1830
        %1833 = vset.pattern.permute.xlu0 2
        %1834 = vperm.xlu0 %1833, %v1629
        %v1835 = vpop.permute.xlu0 %1834
        %1837 = vset.pattern.permute.xlu0 2
        %1838 = vperm.xlu0 %1837, %v1630
        %v1839 = vpop.permute.xlu0 %1838
        %1841 = vset.pattern.permute.xlu0 2
        %1842 = vperm.xlu0 %1841, %v1631
        %v1843 = vpop.permute.xlu0 %1842
        %1845 = vset.pattern.permute.xlu0 2
        %1846 = vperm.xlu0 %1845, %v1632
        %v1847 = vpop.permute.xlu0 %1846
        %1849 = vset.pattern.permute.xlu0 2
        %1850 = vperm.xlu0 %1849, %v1633
        %v1851 = vpop.permute.xlu0 %1850
        %1853 = vset.pattern.permute.xlu0 2
        %1854 = vperm.xlu0 %1853, %v1634
        %v1855 = vpop.permute.xlu0 %1854
        %1857 = vset.pattern.permute.xlu0 2
        %1858 = vperm.xlu0 %1857, %v1635
        %v1859 = vpop.permute.xlu0 %1858
        %v1861 = vmul.f32 %v1831, %v1601
        %v1862 = vmul.f32 %v1835, %v1601
        %v1863 = vmul.f32 %v1839, %v1601
        %v1864 = vmul.f32 %v1843, %v1601
        %v1865 = vmul.f32 %v1847, %v1601
        %v1866 = vmul.f32 %v1851, %v1601
        %v1867 = vmul.f32 %v1855, %v1601
        %v1868 = vmul.f32 %v1859, %v1601
        %v1869 = vadd.f32 %v1821, %v1861
        %v1870 = vadd.f32 %v1822, %v1862
        %v1871 = vadd.f32 %v1823, %v1863
        %v1872 = vadd.f32 %v1824, %v1864
        %v1873 = vadd.f32 %v1825, %v1865
        %v1874 = vadd.f32 %v1826, %v1866
        %v1875 = vadd.f32 %v1827, %v1867
        %v1876 = vadd.f32 %v1828, %v1868
        %v1877 = vmax.f32 %v1610, %v1869
        %v1878 = vmax.f32 %v1611, %v1870
        %v1879 = vmax.f32 %v1612, %v1871
        %v1880 = vmax.f32 %v1613, %v1872
        %v1881 = vmax.f32 %v1614, %v1873
        %v1882 = vmax.f32 %v1615, %v1874
        %v1883 = vmax.f32 %v1616, %v1875
        %v1884 = vmax.f32 %v1617, %v1876
        %s1885 = scalar_lea.vmem %s1297, 64 [#allocation2]
        %v1886 = vld [vmem:[%s1885] sm:$0xf]
        %v1887 = vld [vmem:[%s1885 + $0x4] sm:$0xf]
        %v1888 = vld [vmem:[%s1885 + $0x8] sm:$0xf]
        %v1889 = vld [vmem:[%s1885 + $0xc] sm:$0xf]
        %v1890 = vld [vmem:[%s1885 + $0x10] sm:$0xf]
        %v1891 = vld [vmem:[%s1885 + $0x14] sm:$0xf]
        %v1892 = vld [vmem:[%s1885 + $0x18] sm:$0xf]
        %v1893 = vld [vmem:[%s1885 + $0x1c] sm:$0xf]
        %s1894 = scalar_lea.vmem %s1304, 128 [#allocation3]
        %v1895 = vld [vmem:[%s1894] sm:$0xff]
        %v1896 = vld [vmem:[%s1894 + $0x8] sm:$0xff]
        %v1897 = vld [vmem:[%s1894 + $0x10] sm:$0xff]
        %v1898 = vld [vmem:[%s1894 + $0x18] sm:$0xff]
        %v1899 = vld [vmem:[%s1894 + $0x20] sm:$0xff]
        %v1900 = vld [vmem:[%s1894 + $0x28] sm:$0xff]
        %v1901 = vld [vmem:[%s1894 + $0x30] sm:$0xff]
        %v1902 = vld [vmem:[%s1894 + $0x38] sm:$0xff]
        %1904 = vset.pattern.permute.xlu0 0
        %1905 = vperm.xlu0 %1904, %v1895
        %v1906 = vpop.permute.xlu0 %1905
        %1909 = vset.pattern.permute.xlu0 0
        %1910 = vperm.xlu0 %1909, %v1896
        %v1911 = vpop.permute.xlu0 %1910
        %1914 = vset.pattern.permute.xlu0 0
        %1915 = vperm.xlu0 %1914, %v1897
        %v1916 = vpop.permute.xlu0 %1915
        %1919 = vset.pattern.permute.xlu0 0
        %1920 = vperm.xlu0 %1919, %v1898
        %v1921 = vpop.permute.xlu0 %1920
        %1924 = vset.pattern.permute.xlu0 0
        %1925 = vperm.xlu0 %1924, %v1899
        %v1926 = vpop.permute.xlu0 %1925
        %1929 = vset.pattern.permute.xlu0 0
        %1930 = vperm.xlu0 %1929, %v1900
        %v1931 = vpop.permute.xlu0 %1930
        %1934 = vset.pattern.permute.xlu0 0
        %1935 = vperm.xlu0 %1934, %v1901
        %v1936 = vpop.permute.xlu0 %1935
        %1939 = vset.pattern.permute.xlu0 0
        %1940 = vperm.xlu0 %1939, %v1902
        %v1941 = vpop.permute.xlu0 %1940
        %v1943 = vmul.f32 %v1906, %v1403
        %v1944 = vmul.f32 %v1911, %v1403
        %v1945 = vmul.f32 %v1916, %v1403
        %v1946 = vmul.f32 %v1921, %v1403
        %v1947 = vmul.f32 %v1926, %v1403
        %v1948 = vmul.f32 %v1931, %v1403
        %v1949 = vmul.f32 %v1936, %v1403
        %v1950 = vmul.f32 %v1941, %v1403
        %v1959 = vunpack.c.l.b16 %v1886
        %v1960 = vunpack.c.l.b16 %v1887
        %v1961 = vunpack.c.l.b16 %v1888
        %v1962 = vunpack.c.l.b16 %v1889
        %v1963 = vunpack.c.l.b16 %v1890
        %v1964 = vunpack.c.l.b16 %v1891
        %v1965 = vunpack.c.l.b16 %v1892
        %v1966 = vunpack.c.l.b16 %v1893
        %v1967 = vpack.c.b16 %v1960, %v1959
        %v1968 = vpack.c.b16 %v1962, %v1961
        %v1969 = vpack.c.b16 %v1964, %v1963
        %v1970 = vpack.c.b16 %v1966, %v1965
        %v1972 = vsel %vm1432, %v1967, 0
        %v1975 = vsel %vm1432, %v1968, 0
        %v1978 = vsel %vm1432, %v1969, 0
        %v1981 = vsel %vm1432, %v1970, 0
        %1983 = vmatprep.subr.bf16.mxu0 0
        %1984 = vmatpush1.bf16.msra.mxu0 %v1447
        %1985 = vmatprep.subr.bf16.mxu0 0
        %1986 = vmatpush1.bf16.msra.mxu0 0
        %1987 = vmatprep.subr.bf16.mxu0 0
        %1988 = vmatpush1.bf16.msra.mxu0 0
        %1989 = vmatprep.subr.bf16.mxu0 0
        %1990 = vmatpush1.bf16.msra.mxu0 0
        %1991 = vmatprep.subr.bf16.mxu0 0
        %1992 = vmatpush1.bf16.msra.mxu0 0
        %1993 = vmatprep.subr.bf16.mxu0 0
        %1994 = vmatpush1.bf16.msra.mxu0 0
        %1995 = vmatprep.subr.bf16.mxu0 0
        %1996 = vmatpush1.bf16.msra.mxu0 0
        %1997 = vmatprep.subr.bf16.mxu0 0
        %1998 = vmatpush1.bf16.msra.mxu0 0
        %1999 = vmatprep.subr.bf16.mxu0 0
        %2000 = vmatpush1.bf16.msra.mxu0 0
        %2001 = vmatprep.subr.bf16.mxu0 0
        %2002 = vmatpush1.bf16.msra.mxu0 0
        %2003 = vmatprep.subr.bf16.mxu0 0
        %2004 = vmatpush1.bf16.msra.mxu0 0
        %2005 = vmatprep.subr.bf16.mxu0 0
        %2006 = vmatpush1.bf16.msra.mxu0 0
        %2007 = vmatprep.subr.bf16.mxu0 0
        %2008 = vmatpush1.bf16.msra.mxu0 0
        %2009 = vmatprep.subr.bf16.mxu0 0
        %2010 = vmatpush1.bf16.msra.mxu0 0
        %2011 = vmatprep.subr.bf16.mxu0 0
        %2012 = vmatpush1.bf16.msra.mxu0 0
        %2013 = vmatprep.subr.bf16.mxu0 0
        %2014 = vmatpush1.bf16.msra.mxu0 0
        %2015 = vmatprep.mubr.bf16.mxu0 0
        %2016 = vmatmul.mubr.bf16.gmra.mrb[0].mxu0 %v1972
        %v2017 = vpop.f32.mrb[0].mxu0
        %v2018 = vadd.f32 %v1943, %v2017
        %v2019 = vpop.f32.mrb[0].mxu0
        %v2020 = vpop.f32.mrb[0].mxu0
        %v2021 = vadd.f32 %v1944, %v2020
        %v2022 = vpop.f32.mrb[0].mxu0
        %2023 = vmatprep.mubr.bf16.mxu0 0
        %2024 = vmatmul.mubr.bf16.gmra.mrb[0].mxu0 %v1975
        %v2025 = vpop.f32.mrb[0].mxu0
        %v2026 = vadd.f32 %v1945, %v2025
        %v2027 = vpop.f32.mrb[0].mxu0
        %v2028 = vpop.f32.mrb[0].mxu0
        %v2029 = vadd.f32 %v1946, %v2028
        %v2030 = vpop.f32.mrb[0].mxu0
        %2031 = vmatprep.mubr.bf16.mxu0 0
        %2032 = vmatmul.mubr.bf16.gmra.mrb[0].mxu0 %v1978
        %v2033 = vpop.f32.mrb[0].mxu0
        %v2034 = vadd.f32 %v1947, %v2033
        %v2035 = vpop.f32.mrb[0].mxu0
        %v2036 = vpop.f32.mrb[0].mxu0
        %v2037 = vadd.f32 %v1948, %v2036
        %v2038 = vpop.f32.mrb[0].mxu0
        %2039 = vmatprep.mubr.bf16.mxu0 0
        %2040 = vmatmul.mubr.bf16.gmra.mrb[0].mxu0 %v1981
        %v2041 = vpop.f32.mrb[0].mxu0
        %v2042 = vadd.f32 %v1949, %v2041
        %v2043 = vpop.f32.mrb[0].mxu0
        %v2044 = vpop.f32.mrb[0].mxu0
        %v2045 = vadd.f32 %v1950, %v2044
        %v2046 = vpop.f32.mrb[0].mxu0
        %2047 = vdwg.mxu0
        %2048 = vset.pattern.permute.xlu0 1
        %2049 = vperm.xlu0 %2048, %v1895
        %v2050 = vpop.permute.xlu0 %2049
        %2052 = vset.pattern.permute.xlu0 1
        %2053 = vperm.xlu0 %2052, %v1896
        %v2054 = vpop.permute.xlu0 %2053
        %2056 = vset.pattern.permute.xlu0 1
        %2057 = vperm.xlu0 %2056, %v1897
        %v2058 = vpop.permute.xlu0 %2057
        %2060 = vset.pattern.permute.xlu0 1
        %2061 = vperm.xlu0 %2060, %v1898
        %v2062 = vpop.permute.xlu0 %2061
        %2064 = vset.pattern.permute.xlu0 1
        %2065 = vperm.xlu0 %2064, %v1899
        %v2066 = vpop.permute.xlu0 %2065
        %2068 = vset.pattern.permute.xlu0 1
        %2069 = vperm.xlu0 %2068, %v1900
        %v2070 = vpop.permute.xlu0 %2069
        %2072 = vset.pattern.permute.xlu0 1
        %2073 = vperm.xlu0 %2072, %v1901
        %v2074 = vpop.permute.xlu0 %2073
        %2076 = vset.pattern.permute.xlu0 1
        %2077 = vperm.xlu0 %2076, %v1902
        %v2078 = vpop.permute.xlu0 %2077
        %v2080 = vmul.f32 %v2050, %v1549
        %v2081 = vmul.f32 %v2054, %v1549
        %v2082 = vmul.f32 %v2058, %v1549
        %v2083 = vmul.f32 %v2062, %v1549
        %v2084 = vmul.f32 %v2066, %v1549
        %v2085 = vmul.f32 %v2070, %v1549
        %v2086 = vmul.f32 %v2074, %v1549
        %v2087 = vmul.f32 %v2078, %v1549
        %v2088 = vadd.f32 %v2018, %v2080
        %v2089 = vadd.f32 %v2021, %v2081
        %v2090 = vadd.f32 %v2026, %v2082
        %v2091 = vadd.f32 %v2029, %v2083
        %v2092 = vadd.f32 %v2034, %v2084
        %v2093 = vadd.f32 %v2037, %v2085
        %v2094 = vadd.f32 %v2042, %v2086
        %v2095 = vadd.f32 %v2045, %v2087
        %2096 = vset.pattern.permute.xlu0 2
        %2097 = vperm.xlu0 %2096, %v1895
        %v2098 = vpop.permute.xlu0 %2097
        %2100 = vset.pattern.permute.xlu0 2
        %2101 = vperm.xlu0 %2100, %v1896
        %v2102 = vpop.permute.xlu0 %2101
        %2104 = vset.pattern.permute.xlu0 2
        %2105 = vperm.xlu0 %2104, %v1897
        %v2106 = vpop.permute.xlu0 %2105
        %2108 = vset.pattern.permute.xlu0 2
        %2109 = vperm.xlu0 %2108, %v1898
        %v2110 = vpop.permute.xlu0 %2109
        %2112 = vset.pattern.permute.xlu0 2
        %2113 = vperm.xlu0 %2112, %v1899
        %v2114 = vpop.permute.xlu0 %2113
        %2116 = vset.pattern.permute.xlu0 2
        %2117 = vperm.xlu0 %2116, %v1900
        %v2118 = vpop.permute.xlu0 %2117
        %2120 = vset.pattern.permute.xlu0 2
        %2121 = vperm.xlu0 %2120, %v1901
        %v2122 = vpop.permute.xlu0 %2121
        %2124 = vset.pattern.permute.xlu0 2
        %2125 = vperm.xlu0 %2124, %v1902
        %v2126 = vpop.permute.xlu0 %2125
        %v2128 = vmul.f32 %v2098, %v1601
        %v2129 = vmul.f32 %v2102, %v1601
        %v2130 = vmul.f32 %v2106, %v1601
        %v2131 = vmul.f32 %v2110, %v1601
        %v2132 = vmul.f32 %v2114, %v1601
        %v2133 = vmul.f32 %v2118, %v1601
        %v2134 = vmul.f32 %v2122, %v1601
        %v2135 = vmul.f32 %v2126, %v1601
        %v2136 = vadd.f32 %v2088, %v2128
        %v2137 = vadd.f32 %v2089, %v2129
        %v2138 = vadd.f32 %v2090, %v2130
        %v2139 = vadd.f32 %v2091, %v2131
        %v2140 = vadd.f32 %v2092, %v2132
        %v2141 = vadd.f32 %v2093, %v2133
        %v2142 = vadd.f32 %v2094, %v2134
        %v2143 = vadd.f32 %v2095, %v2135
        %v2144 = vmax.f32 %v1877, %v2136
        %v2145 = vmax.f32 %v1878, %v2137
        %v2146 = vmax.f32 %v1879, %v2138
        %v2147 = vmax.f32 %v1880, %v2139
        %v2148 = vmax.f32 %v1881, %v2140
        %v2149 = vmax.f32 %v1882, %v2141
        %v2150 = vmax.f32 %v1883, %v2142
        %v2151 = vmax.f32 %v1884, %v2143
        %s2152 = scalar_lea.vmem %s1297, 96 [#allocation2]
        %v2153 = vld [vmem:[%s2152] sm:$0xf]
        %v2154 = vld [vmem:[%s2152 + $0x4] sm:$0xf]
        %v2155 = vld [vmem:[%s2152 + $0x8] sm:$0xf]
        %v2156 = vld [vmem:[%s2152 + $0xc] sm:$0xf]
        %v2157 = vld [vmem:[%s2152 + $0x10] sm:$0xf]
        %v2158 = vld [vmem:[%s2152 + $0x14] sm:$0xf]
        %v2159 = vld [vmem:[%s2152 + $0x18] sm:$0xf]
        %v2160 = vld [vmem:[%s2152 + $0x1c] sm:$0xf]
        %s2161 = scalar_lea.vmem %s1304, 192 [#allocation3]
        %v2162 = vld [vmem:[%s2161] sm:$0xff]
        %v2163 = vld [vmem:[%s2161 + $0x8] sm:$0xff]
        %v2164 = vld [vmem:[%s2161 + $0x10] sm:$0xff]
        %v2165 = vld [vmem:[%s2161 + $0x18] sm:$0xff]
        %v2166 = vld [vmem:[%s2161 + $0x20] sm:$0xff]
        %v2167 = vld [vmem:[%s2161 + $0x28] sm:$0xff]
        %v2168 = vld [vmem:[%s2161 + $0x30] sm:$0xff]
        %v2169 = vld [vmem:[%s2161 + $0x38] sm:$0xff]
        %2171 = vset.pattern.permute.xlu0 0
        %2172 = vperm.xlu0 %2171, %v2162
        %v2173 = vpop.permute.xlu0 %2172
        %2176 = vset.pattern.permute.xlu0 0
        %2177 = vperm.xlu0 %2176, %v2163
        %v2178 = vpop.permute.xlu0 %2177
        %2181 = vset.pattern.permute.xlu0 0
        %2182 = vperm.xlu0 %2181, %v2164
        %v2183 = vpop.permute.xlu0 %2182
        %2186 = vset.pattern.permute.xlu0 0
        %2187 = vperm.xlu0 %2186, %v2165
        %v2188 = vpop.permute.xlu0 %2187
        %2191 = vset.pattern.permute.xlu0 0
        %2192 = vperm.xlu0 %2191, %v2166
        %v2193 = vpop.permute.xlu0 %2192
        %2196 = vset.pattern.permute.xlu0 0
        %2197 = vperm.xlu0 %2196, %v2167
        %v2198 = vpop.permute.xlu0 %2197
        %2201 = vset.pattern.permute.xlu0 0
        %2202 = vperm.xlu0 %2201, %v2168
        %v2203 = vpop.permute.xlu0 %2202
        %2206 = vset.pattern.permute.xlu0 0
        %2207 = vperm.xlu0 %2206, %v2169
        %v2208 = vpop.permute.xlu0 %2207
        %v2210 = vmul.f32 %v2173, %v1403
        %v2211 = vmul.f32 %v2178, %v1403
        %v2212 = vmul.f32 %v2183, %v1403
        %v2213 = vmul.f32 %v2188, %v1403
        %v2214 = vmul.f32 %v2193, %v1403
        %v2215 = vmul.f32 %v2198, %v1403
        %v2216 = vmul.f32 %v2203, %v1403
        %v2217 = vmul.f32 %v2208, %v1403
        %v2226 = vunpack.c.l.b16 %v2153
        %v2227 = vunpack.c.l.b16 %v2154
        %v2228 = vunpack.c.l.b16 %v2155
        %v2229 = vunpack.c.l.b16 %v2156
        %v2230 = vunpack.c.l.b16 %v2157
        %v2231 = vunpack.c.l.b16 %v2158
        %v2232 = vunpack.c.l.b16 %v2159
        %v2233 = vunpack.c.l.b16 %v2160
        %v2234 = vpack.c.b16 %v2227, %v2226
        %v2235 = vpack.c.b16 %v2229, %v2228
        %v2236 = vpack.c.b16 %v2231, %v2230
        %v2237 = vpack.c.b16 %v2233, %v2232
        %v2239 = vsel %vm1432, %v2234, 0
        %v2242 = vsel %vm1432, %v2235, 0
        %v2245 = vsel %vm1432, %v2236, 0
        %v2248 = vsel %vm1432, %v2237, 0
        %2250 = vmatprep.subr.bf16.mxu0 0
        %2251 = vmatpush1.bf16.msra.mxu0 %v1447
        %2252 = vmatprep.subr.bf16.mxu0 0
        %2253 = vmatpush1.bf16.msra.mxu0 0
        %2254 = vmatprep.subr.bf16.mxu0 0
        %2255 = vmatpush1.bf16.msra.mxu0 0
        %2256 = vmatprep.subr.bf16.mxu0 0
        %2257 = vmatpush1.bf16.msra.mxu0 0
        %2258 = vmatprep.subr.bf16.mxu0 0
        %2259 = vmatpush1.bf16.msra.mxu0 0
        %2260 = vmatprep.subr.bf16.mxu0 0
        %2261 = vmatpush1.bf16.msra.mxu0 0
        %2262 = vmatprep.subr.bf16.mxu0 0
        %2263 = vmatpush1.bf16.msra.mxu0 0
        %2264 = vmatprep.subr.bf16.mxu0 0
        %2265 = vmatpush1.bf16.msra.mxu0 0
        %2266 = vmatprep.subr.bf16.mxu0 0
        %2267 = vmatpush1.bf16.msra.mxu0 0
        %2268 = vmatprep.subr.bf16.mxu0 0
        %2269 = vmatpush1.bf16.msra.mxu0 0
        %2270 = vmatprep.subr.bf16.mxu0 0
        %2271 = vmatpush1.bf16.msra.mxu0 0
        %2272 = vmatprep.subr.bf16.mxu0 0
        %2273 = vmatpush1.bf16.msra.mxu0 0
        %2274 = vmatprep.subr.bf16.mxu0 0
        %2275 = vmatpush1.bf16.msra.mxu0 0
        %2276 = vmatprep.subr.bf16.mxu0 0
        %2277 = vmatpush1.bf16.msra.mxu0 0
        %2278 = vmatprep.subr.bf16.mxu0 0
        %2279 = vmatpush1.bf16.msra.mxu0 0
        %2280 = vmatprep.subr.bf16.mxu0 0
        %2281 = vmatpush1.bf16.msra.mxu0 0
        %2282 = vmatprep.mubr.bf16.mxu0 0
        %2283 = vmatmul.mubr.bf16.gmra.mrb[0].mxu0 %v2239
        %v2284 = vpop.f32.mrb[0].mxu0
        %v2285 = vadd.f32 %v2210, %v2284
        %v2286 = vpop.f32.mrb[0].mxu0
        %v2287 = vpop.f32.mrb[0].mxu0
        %v2288 = vadd.f32 %v2211, %v2287
        %v2289 = vpop.f32.mrb[0].mxu0
        %2290 = vmatprep.mubr.bf16.mxu0 0
        %2291 = vmatmul.mubr.bf16.gmra.mrb[0].mxu0 %v2242
        %v2292 = vpop.f32.mrb[0].mxu0
        %v2293 = vadd.f32 %v2212, %v2292
        %v2294 = vpop.f32.mrb[0].mxu0
        %v2295 = vpop.f32.mrb[0].mxu0
        %v2296 = vadd.f32 %v2213, %v2295
        %v2297 = vpop.f32.mrb[0].mxu0
        %2298 = vmatprep.mubr.bf16.mxu0 0
        %2299 = vmatmul.mubr.bf16.gmra.mrb[0].mxu0 %v2245
        %v2300 = vpop.f32.mrb[0].mxu0
        %v2301 = vadd.f32 %v2214, %v2300
        %v2302 = vpop.f32.mrb[0].mxu0
        %v2303 = vpop.f32.mrb[0].mxu0
        %v2304 = vadd.f32 %v2215, %v2303
        %v2305 = vpop.f32.mrb[0].mxu0
        %2306 = vmatprep.mubr.bf16.mxu0 0
        %2307 = vmatmul.mubr.bf16.gmra.mrb[0].mxu0 %v2248
        %v2308 = vpop.f32.mrb[0].mxu0
        %v2309 = vadd.f32 %v2216, %v2308
        %v2310 = vpop.f32.mrb[0].mxu0
        %v2311 = vpop.f32.mrb[0].mxu0
        %v2312 = vadd.f32 %v2217, %v2311
        %v2313 = vpop.f32.mrb[0].mxu0
        %2314 = vdwg.mxu0
        %2315 = vset.pattern.permute.xlu0 1
        %2316 = vperm.xlu0 %2315, %v2162
        %v2317 = vpop.permute.xlu0 %2316
        %2319 = vset.pattern.permute.xlu0 1
        %2320 = vperm.xlu0 %2319, %v2163
        %v2321 = vpop.permute.xlu0 %2320
        %2323 = vset.pattern.permute.xlu0 1
        %2324 = vperm.xlu0 %2323, %v2164
        %v2325 = vpop.permute.xlu0 %2324
        %2327 = vset.pattern.permute.xlu0 1
        %2328 = vperm.xlu0 %2327, %v2165
        %v2329 = vpop.permute.xlu0 %2328
        %2331 = vset.pattern.permute.xlu0 1
        %2332 = vperm.xlu0 %2331, %v2166
        %v2333 = vpop.permute.xlu0 %2332
        %2335 = vset.pattern.permute.xlu0 1
        %2336 = vperm.xlu0 %2335, %v2167
        %v2337 = vpop.permute.xlu0 %2336
        %2339 = vset.pattern.permute.xlu0 1
        %2340 = vperm.xlu0 %2339, %v2168
        %v2341 = vpop.permute.xlu0 %2340
        %2343 = vset.pattern.permute.xlu0 1
        %2344 = vperm.xlu0 %2343, %v2169
        %v2345 = vpop.permute.xlu0 %2344
        %v2347 = vmul.f32 %v2317, %v1549
        %v2348 = vmul.f32 %v2321, %v1549
        %v2349 = vmul.f32 %v2325, %v1549
        %v2350 = vmul.f32 %v2329, %v1549
        %v2351 = vmul.f32 %v2333, %v1549
        %v2352 = vmul.f32 %v2337, %v1549
        %v2353 = vmul.f32 %v2341, %v1549
        %v2354 = vmul.f32 %v2345, %v1549
        %v2355 = vadd.f32 %v2285, %v2347
        %v2356 = vadd.f32 %v2288, %v2348
        %v2357 = vadd.f32 %v2293, %v2349
        %v2358 = vadd.f32 %v2296, %v2350
        %v2359 = vadd.f32 %v2301, %v2351
        %v2360 = vadd.f32 %v2304, %v2352
        %v2361 = vadd.f32 %v2309, %v2353
        %v2362 = vadd.f32 %v2312, %v2354
        %2363 = vset.pattern.permute.xlu0 2
        %2364 = vperm.xlu0 %2363, %v2162
        %v2365 = vpop.permute.xlu0 %2364
        %2367 = vset.pattern.permute.xlu0 2
        %2368 = vperm.xlu0 %2367, %v2163
        %v2369 = vpop.permute.xlu0 %2368
        %2371 = vset.pattern.permute.xlu0 2
        %2372 = vperm.xlu0 %2371, %v2164
        %v2373 = vpop.permute.xlu0 %2372
        %2375 = vset.pattern.permute.xlu0 2
        %2376 = vperm.xlu0 %2375, %v2165
        %v2377 = vpop.permute.xlu0 %2376
        %2379 = vset.pattern.permute.xlu0 2
        %2380 = vperm.xlu0 %2379, %v2166
        %v2381 = vpop.permute.xlu0 %2380
        %2383 = vset.pattern.permute.xlu0 2
        %2384 = vperm.xlu0 %2383, %v2167
        %v2385 = vpop.permute.xlu0 %2384
        %2387 = vset.pattern.permute.xlu0 2
        %2388 = vperm.xlu0 %2387, %v2168
        %v2389 = vpop.permute.xlu0 %2388
        %2391 = vset.pattern.permute.xlu0 2
        %2392 = vperm.xlu0 %2391, %v2169
        %v2393 = vpop.permute.xlu0 %2392
        %v2395 = vmul.f32 %v2365, %v1601
        %v2396 = vmul.f32 %v2369, %v1601
        %v2397 = vmul.f32 %v2373, %v1601
        %v2398 = vmul.f32 %v2377, %v1601
        %v2399 = vmul.f32 %v2381, %v1601
        %v2400 = vmul.f32 %v2385, %v1601
        %v2401 = vmul.f32 %v2389, %v1601
        %v2402 = vmul.f32 %v2393, %v1601
        %v2403 = vadd.f32 %v2355, %v2395
        %v2404 = vadd.f32 %v2356, %v2396
        %v2405 = vadd.f32 %v2357, %v2397
        %v2406 = vadd.f32 %v2358, %v2398
        %v2407 = vadd.f32 %v2359, %v2399
        %v2408 = vadd.f32 %v2360, %v2400
        %v2409 = vadd.f32 %v2361, %v2401
        %v2410 = vadd.f32 %v2362, %v2402
        %v2411 = vmax.f32 %v2144, %v2403
        %v2412 = vmax.f32 %v2145, %v2404
        %v2413 = vmax.f32 %v2146, %v2405
        %v2414 = vmax.f32 %v2147, %v2406
        %v2415 = vmax.f32 %v2148, %v2407
        %v2416 = vmax.f32 %v2149, %v2408
        %v2417 = vmax.f32 %v2150, %v2409
        %v2418 = vmax.f32 %v2151, %v2410
        %s2419 = scalar_lea.vmem %s1297, 128 [#allocation2]
        %v2420 = vld [vmem:[%s2419] sm:$0xf]
        %v2421 = vld [vmem:[%s2419 + $0x4] sm:$0xf]
        %v2422 = vld [vmem:[%s2419 + $0x8] sm:$0xf]
        %v2423 = vld [vmem:[%s2419 + $0xc] sm:$0xf]
        %v2424 = vld [vmem:[%s2419 + $0x10] sm:$0xf]
        %v2425 = vld [vmem:[%s2419 + $0x14] sm:$0xf]
        %v2426 = vld [vmem:[%s2419 + $0x18] sm:$0xf]
        %v2427 = vld [vmem:[%s2419 + $0x1c] sm:$0xf]
        %s2428 = scalar_lea.vmem %s1304, 256 [#allocation3]
        %v2429 = vld [vmem:[%s2428] sm:$0xff]
        %v2430 = vld [vmem:[%s2428 + $0x8] sm:$0xff]
        %v2431 = vld [vmem:[%s2428 + $0x10] sm:$0xff]
        %v2432 = vld [vmem:[%s2428 + $0x18] sm:$0xff]
        %v2433 = vld [vmem:[%s2428 + $0x20] sm:$0xff]
        %v2434 = vld [vmem:[%s2428 + $0x28] sm:$0xff]
        %v2435 = vld [vmem:[%s2428 + $0x30] sm:$0xff]
        %v2436 = vld [vmem:[%s2428 + $0x38] sm:$0xff]
        %2438 = vset.pattern.permute.xlu0 0
        %2439 = vperm.xlu0 %2438, %v2429
        %v2440 = vpop.permute.xlu0 %2439
        %2443 = vset.pattern.permute.xlu0 0
        %2444 = vperm.xlu0 %2443, %v2430
        %v2445 = vpop.permute.xlu0 %2444
        %2448 = vset.pattern.permute.xlu0 0
        %2449 = vperm.xlu0 %2448, %v2431
        %v2450 = vpop.permute.xlu0 %2449
        %2453 = vset.pattern.permute.xlu0 0
        %2454 = vperm.xlu0 %2453, %v2432
        %v2455 = vpop.permute.xlu0 %2454
        %2458 = vset.pattern.permute.xlu0 0
        %2459 = vperm.xlu0 %2458, %v2433
        %v2460 = vpop.permute.xlu0 %2459
        %2463 = vset.pattern.permute.xlu0 0
        %2464 = vperm.xlu0 %2463, %v2434
        %v2465 = vpop.permute.xlu0 %2464
        %2468 = vset.pattern.permute.xlu0 0
        %2469 = vperm.xlu0 %2468, %v2435
        %v2470 = vpop.permute.xlu0 %2469
        %2473 = vset.pattern.permute.xlu0 0
        %2474 = vperm.xlu0 %2473, %v2436
        %v2475 = vpop.permute.xlu0 %2474
        %v2477 = vmul.f32 %v2440, %v1403
        %v2478 = vmul.f32 %v2445, %v1403
        %v2479 = vmul.f32 %v2450, %v1403
        %v2480 = vmul.f32 %v2455, %v1403
        %v2481 = vmul.f32 %v2460, %v1403
        %v2482 = vmul.f32 %v2465, %v1403
        %v2483 = vmul.f32 %v2470, %v1403
        %v2484 = vmul.f32 %v2475, %v1403
        %v2493 = vunpack.c.l.b16 %v2420
        %v2494 = vunpack.c.l.b16 %v2421
        %v2495 = vunpack.c.l.b16 %v2422
        %v2496 = vunpack.c.l.b16 %v2423
        %v2497 = vunpack.c.l.b16 %v2424
        %v2498 = vunpack.c.l.b16 %v2425
        %v2499 = vunpack.c.l.b16 %v2426
        %v2500 = vunpack.c.l.b16 %v2427
        %v2501 = vpack.c.b16 %v2494, %v2493
        %v2502 = vpack.c.b16 %v2496, %v2495
        %v2503 = vpack.c.b16 %v2498, %v2497
        %v2504 = vpack.c.b16 %v2500, %v2499
        %v2506 = vsel %vm1432, %v2501, 0
        %v2509 = vsel %vm1432, %v2502, 0
        %v2512 = vsel %vm1432, %v2503, 0
        %v2515 = vsel %vm1432, %v2504, 0
        %2517 = vmatprep.subr.bf16.mxu0 0
        %2518 = vmatpush1.bf16.msra.mxu0 %v1447
        %2519 = vmatprep.subr.bf16.mxu0 0
        %2520 = vmatpush1.bf16.msra.mxu0 0
        %2521 = vmatprep.subr.bf16.mxu0 0
        %2522 = vmatpush1.bf16.msra.mxu0 0
        %2523 = vmatprep.subr.bf16.mxu0 0
        %2524 = vmatpush1.bf16.msra.mxu0 0
        %2525 = vmatprep.subr.bf16.mxu0 0
        %2526 = vmatpush1.bf16.msra.mxu0 0
        %2527 = vmatprep.subr.bf16.mxu0 0
        %2528 = vmatpush1.bf16.msra.mxu0 0
        %2529 = vmatprep.subr.bf16.mxu0 0
        %2530 = vmatpush1.bf16.msra.mxu0 0
        %2531 = vmatprep.subr.bf16.mxu0 0
        %2532 = vmatpush1.bf16.msra.mxu0 0
        %2533 = vmatprep.subr.bf16.mxu0 0
        %2534 = vmatpush1.bf16.msra.mxu0 0
        %2535 = vmatprep.subr.bf16.mxu0 0
        %2536 = vmatpush1.bf16.msra.mxu0 0
        %2537 = vmatprep.subr.bf16.mxu0 0
        %2538 = vmatpush1.bf16.msra.mxu0 0
        %2539 = vmatprep.subr.bf16.mxu0 0
        %2540 = vmatpush1.bf16.msra.mxu0 0
        %2541 = vmatprep.subr.bf16.mxu0 0
        %2542 = vmatpush1.bf16.msra.mxu0 0
        %2543 = vmatprep.subr.bf16.mxu0 0
        %2544 = vmatpush1.bf16.msra.mxu0 0
        %2545 = vmatprep.subr.bf16.mxu0 0
        %2546 = vmatpush1.bf16.msra.mxu0 0
        %2547 = vmatprep.subr.bf16.mxu0 0
        %2548 = vmatpush1.bf16.msra.mxu0 0
        %2549 = vmatprep.mubr.bf16.mxu0 0
        %2550 = vmatmul.mubr.bf16.gmra.mrb[0].mxu0 %v2506
        %v2551 = vpop.f32.mrb[0].mxu0
        %v2552 = vadd.f32 %v2477, %v2551
        %v2553 = vpop.f32.mrb[0].mxu0
        %v2554 = vpop.f32.mrb[0].mxu0
        %v2555 = vadd.f32 %v2478, %v2554
        %v2556 = vpop.f32.mrb[0].mxu0
        %2557 = vmatprep.mubr.bf16.mxu0 0
        %2558 = vmatmul.mubr.bf16.gmra.mrb[0].mxu0 %v2509
        %v2559 = vpop.f32.mrb[0].mxu0
        %v2560 = vadd.f32 %v2479, %v2559
        %v2561 = vpop.f32.mrb[0].mxu0
        %v2562 = vpop.f32.mrb[0].mxu0
        %v2563 = vadd.f32 %v2480, %v2562
        %v2564 = vpop.f32.mrb[0].mxu0
        %2565 = vmatprep.mubr.bf16.mxu0 0
        %2566 = vmatmul.mubr.bf16.gmra.mrb[0].mxu0 %v2512
        %v2567 = vpop.f32.mrb[0].mxu0
        %v2568 = vadd.f32 %v2481, %v2567
        %v2569 = vpop.f32.mrb[0].mxu0
        %v2570 = vpop.f32.mrb[0].mxu0
        %v2571 = vadd.f32 %v2482, %v2570
        %v2572 = vpop.f32.mrb[0].mxu0
        %2573 = vmatprep.mubr.bf16.mxu0 0
        %2574 = vmatmul.mubr.bf16.gmra.mrb[0].mxu0 %v2515
        %v2575 = vpop.f32.mrb[0].mxu0
        %v2576 = vadd.f32 %v2483, %v2575
        %v2577 = vpop.f32.mrb[0].mxu0
        %v2578 = vpop.f32.mrb[0].mxu0
        %v2579 = vadd.f32 %v2484, %v2578
        %v2580 = vpop.f32.mrb[0].mxu0
        %2581 = vdwg.mxu0
        %2582 = vset.pattern.permute.xlu0 1
        %2583 = vperm.xlu0 %2582, %v2429
        %v2584 = vpop.permute.xlu0 %2583
        %2586 = vset.pattern.permute.xlu0 1
        %2587 = vperm.xlu0 %2586, %v2430
        %v2588 = vpop.permute.xlu0 %2587
        %2590 = vset.pattern.permute.xlu0 1
        %2591 = vperm.xlu0 %2590, %v2431
        %v2592 = vpop.permute.xlu0 %2591
        %2594 = vset.pattern.permute.xlu0 1
        %2595 = vperm.xlu0 %2594, %v2432
        %v2596 = vpop.permute.xlu0 %2595
        %2598 = vset.pattern.permute.xlu0 1
        %2599 = vperm.xlu0 %2598, %v2433
        %v2600 = vpop.permute.xlu0 %2599
        %2602 = vset.pattern.permute.xlu0 1
        %2603 = vperm.xlu0 %2602, %v2434
        %v2604 = vpop.permute.xlu0 %2603
        %2606 = vset.pattern.permute.xlu0 1
        %2607 = vperm.xlu0 %2606, %v2435
        %v2608 = vpop.permute.xlu0 %2607
        %2610 = vset.pattern.permute.xlu0 1
        %2611 = vperm.xlu0 %2610, %v2436
        %v2612 = vpop.permute.xlu0 %2611
        %v2614 = vmul.f32 %v2584, %v1549
        %v2615 = vmul.f32 %v2588, %v1549
        %v2616 = vmul.f32 %v2592, %v1549
        %v2617 = vmul.f32 %v2596, %v1549
        %v2618 = vmul.f32 %v2600, %v1549
        %v2619 = vmul.f32 %v2604, %v1549
        %v2620 = vmul.f32 %v2608, %v1549
        %v2621 = vmul.f32 %v2612, %v1549
        %v2622 = vadd.f32 %v2552, %v2614
        %v2623 = vadd.f32 %v2555, %v2615
        %v2624 = vadd.f32 %v2560, %v2616
        %v2625 = vadd.f32 %v2563, %v2617
        %v2626 = vadd.f32 %v2568, %v2618
        %v2627 = vadd.f32 %v2571, %v2619
        %v2628 = vadd.f32 %v2576, %v2620
        %v2629 = vadd.f32 %v2579, %v2621
        %2630 = vset.pattern.permute.xlu0 2
        %2631 = vperm.xlu0 %2630, %v2429
        %v2632 = vpop.permute.xlu0 %2631
        %2634 = vset.pattern.permute.xlu0 2
        %2635 = vperm.xlu0 %2634, %v2430
        %v2636 = vpop.permute.xlu0 %2635
        %2638 = vset.pattern.permute.xlu0 2
        %2639 = vperm.xlu0 %2638, %v2431
        %v2640 = vpop.permute.xlu0 %2639
        %2642 = vset.pattern.permute.xlu0 2
        %2643 = vperm.xlu0 %2642, %v2432
        %v2644 = vpop.permute.xlu0 %2643
        %2646 = vset.pattern.permute.xlu0 2
        %2647 = vperm.xlu0 %2646, %v2433
        %v2648 = vpop.permute.xlu0 %2647
        %2650 = vset.pattern.permute.xlu0 2
        %2651 = vperm.xlu0 %2650, %v2434
        %v2652 = vpop.permute.xlu0 %2651
        %2654 = vset.pattern.permute.xlu0 2
        %2655 = vperm.xlu0 %2654, %v2435
        %v2656 = vpop.permute.xlu0 %2655
        %2658 = vset.pattern.permute.xlu0 2
        %2659 = vperm.xlu0 %2658, %v2436
        %v2660 = vpop.permute.xlu0 %2659
        %v2662 = vmul.f32 %v2632, %v1601
        %v2663 = vmul.f32 %v2636, %v1601
        %v2664 = vmul.f32 %v2640, %v1601
        %v2665 = vmul.f32 %v2644, %v1601
        %v2666 = vmul.f32 %v2648, %v1601
        %v2667 = vmul.f32 %v2652, %v1601
        %v2668 = vmul.f32 %v2656, %v1601
        %v2669 = vmul.f32 %v2660, %v1601
        %v2670 = vadd.f32 %v2622, %v2662
        %v2671 = vadd.f32 %v2623, %v2663
        %v2672 = vadd.f32 %v2624, %v2664
        %v2673 = vadd.f32 %v2625, %v2665
        %v2674 = vadd.f32 %v2626, %v2666
        %v2675 = vadd.f32 %v2627, %v2667
        %v2676 = vadd.f32 %v2628, %v2668
        %v2677 = vadd.f32 %v2629, %v2669
        %v2678 = vmax.f32 %v2411, %v2670
        %v2679 = vmax.f32 %v2412, %v2671
        %v2680 = vmax.f32 %v2413, %v2672
        %v2681 = vmax.f32 %v2414, %v2673
        %v2682 = vmax.f32 %v2415, %v2674
        %v2683 = vmax.f32 %v2416, %v2675
        %v2684 = vmax.f32 %v2417, %v2676
        %v2685 = vmax.f32 %v2418, %v2677
        %s2686 = scalar_lea.vmem %s1297, 160 [#allocation2]
        %v2687 = vld [vmem:[%s2686] sm:$0xf]
        %v2688 = vld [vmem:[%s2686 + $0x4] sm:$0xf]
        %v2689 = vld [vmem:[%s2686 + $0x8] sm:$0xf]
        %v2690 = vld [vmem:[%s2686 + $0xc] sm:$0xf]
        %v2691 = vld [vmem:[%s2686 + $0x10] sm:$0xf]
        %v2692 = vld [vmem:[%s2686 + $0x14] sm:$0xf]
        %v2693 = vld [vmem:[%s2686 + $0x18] sm:$0xf]
        %v2694 = vld [vmem:[%s2686 + $0x1c] sm:$0xf]
        %s2695 = scalar_lea.vmem %s1304, 320 [#allocation3]
        %v2696 = vld [vmem:[%s2695] sm:$0xff]
        %v2697 = vld [vmem:[%s2695 + $0x8] sm:$0xff]
        %v2698 = vld [vmem:[%s2695 + $0x10] sm:$0xff]
        %v2699 = vld [vmem:[%s2695 + $0x18] sm:$0xff]
        %v2700 = vld [vmem:[%s2695 + $0x20] sm:$0xff]
        %v2701 = vld [vmem:[%s2695 + $0x28] sm:$0xff]
        %v2702 = vld [vmem:[%s2695 + $0x30] sm:$0xff]
        %v2703 = vld [vmem:[%s2695 + $0x38] sm:$0xff]
        %2705 = vset.pattern.permute.xlu0 0
        %2706 = vperm.xlu0 %2705, %v2696
        %v2707 = vpop.permute.xlu0 %2706
        %2710 = vset.pattern.permute.xlu0 0
        %2711 = vperm.xlu0 %2710, %v2697
        %v2712 = vpop.permute.xlu0 %2711
        %2715 = vset.pattern.permute.xlu0 0
        %2716 = vperm.xlu0 %2715, %v2698
        %v2717 = vpop.permute.xlu0 %2716
        %2720 = vset.pattern.permute.xlu0 0
        %2721 = vperm.xlu0 %2720, %v2699
        %v2722 = vpop.permute.xlu0 %2721
        %2725 = vset.pattern.permute.xlu0 0
        %2726 = vperm.xlu0 %2725, %v2700
        %v2727 = vpop.permute.xlu0 %2726
        %2730 = vset.pattern.permute.xlu0 0
        %2731 = vperm.xlu0 %2730, %v2701
        %v2732 = vpop.permute.xlu0 %2731
        %2735 = vset.pattern.permute.xlu0 0
        %2736 = vperm.xlu0 %2735, %v2702
        %v2737 = vpop.permute.xlu0 %2736
        %2740 = vset.pattern.permute.xlu0 0
        %2741 = vperm.xlu0 %2740, %v2703
        %v2742 = vpop.permute.xlu0 %2741
        %v2744 = vmul.f32 %v2707, %v1403
        %v2745 = vmul.f32 %v2712, %v1403
        %v2746 = vmul.f32 %v2717, %v1403
        %v2747 = vmul.f32 %v2722, %v1403
        %v2748 = vmul.f32 %v2727, %v1403
        %v2749 = vmul.f32 %v2732, %v1403
        %v2750 = vmul.f32 %v2737, %v1403
        %v2751 = vmul.f32 %v2742, %v1403
        %v2760 = vunpack.c.l.b16 %v2687
        %v2761 = vunpack.c.l.b16 %v2688
        %v2762 = vunpack.c.l.b16 %v2689
        %v2763 = vunpack.c.l.b16 %v2690
        %v2764 = vunpack.c.l.b16 %v2691
        %v2765 = vunpack.c.l.b16 %v2692
        %v2766 = vunpack.c.l.b16 %v2693
        %v2767 = vunpack.c.l.b16 %v2694
        %v2768 = vpack.c.b16 %v2761, %v2760
        %v2769 = vpack.c.b16 %v2763, %v2762
        %v2770 = vpack.c.b16 %v2765, %v2764
        %v2771 = vpack.c.b16 %v2767, %v2766
        %v2773 = vsel %vm1432, %v2768, 0
        %v2776 = vsel %vm1432, %v2769, 0
        %v2779 = vsel %vm1432, %v2770, 0
        %v2782 = vsel %vm1432, %v2771, 0
        %2784 = vmatprep.subr.bf16.mxu0 0
        %2785 = vmatpush1.bf16.msra.mxu0 %v1447
        %2786 = vmatprep.subr.bf16.mxu0 0
        %2787 = vmatpush1.bf16.msra.mxu0 0
        %2788 = vmatprep.subr.bf16.mxu0 0
        %2789 = vmatpush1.bf16.msra.mxu0 0
        %2790 = vmatprep.subr.bf16.mxu0 0
        %2791 = vmatpush1.bf16.msra.mxu0 0
        %2792 = vmatprep.subr.bf16.mxu0 0
        %2793 = vmatpush1.bf16.msra.mxu0 0
        %2794 = vmatprep.subr.bf16.mxu0 0
        %2795 = vmatpush1.bf16.msra.mxu0 0
        %2796 = vmatprep.subr.bf16.mxu0 0
        %2797 = vmatpush1.bf16.msra.mxu0 0
        %2798 = vmatprep.subr.bf16.mxu0 0
        %2799 = vmatpush1.bf16.msra.mxu0 0
        %2800 = vmatprep.subr.bf16.mxu0 0
        %2801 = vmatpush1.bf16.msra.mxu0 0
        %2802 = vmatprep.subr.bf16.mxu0 0
        %2803 = vmatpush1.bf16.msra.mxu0 0
        %2804 = vmatprep.subr.bf16.mxu0 0
        %2805 = vmatpush1.bf16.msra.mxu0 0
        %2806 = vmatprep.subr.bf16.mxu0 0
        %2807 = vmatpush1.bf16.msra.mxu0 0
        %2808 = vmatprep.subr.bf16.mxu0 0
        %2809 = vmatpush1.bf16.msra.mxu0 0
        %2810 = vmatprep.subr.bf16.mxu0 0
        %2811 = vmatpush1.bf16.msra.mxu0 0
        %2812 = vmatprep.subr.bf16.mxu0 0
        %2813 = vmatpush1.bf16.msra.mxu0 0
        %2814 = vmatprep.subr.bf16.mxu0 0
        %2815 = vmatpush1.bf16.msra.mxu0 0
        %2816 = vmatprep.mubr.bf16.mxu0 0
        %2817 = vmatmul.mubr.bf16.gmra.mrb[0].mxu0 %v2773
        %v2818 = vpop.f32.mrb[0].mxu0
        %v2819 = vadd.f32 %v2744, %v2818
        %v2820 = vpop.f32.mrb[0].mxu0
        %v2821 = vpop.f32.mrb[0].mxu0
        %v2822 = vadd.f32 %v2745, %v2821
        %v2823 = vpop.f32.mrb[0].mxu0
        %2824 = vmatprep.mubr.bf16.mxu0 0
        %2825 = vmatmul.mubr.bf16.gmra.mrb[0].mxu0 %v2776
        %v2826 = vpop.f32.mrb[0].mxu0
        %v2827 = vadd.f32 %v2746, %v2826
        %v2828 = vpop.f32.mrb[0].mxu0
        %v2829 = vpop.f32.mrb[0].mxu0
        %v2830 = vadd.f32 %v2747, %v2829
        %v2831 = vpop.f32.mrb[0].mxu0
        %2832 = vmatprep.mubr.bf16.mxu0 0
        %2833 = vmatmul.mubr.bf16.gmra.mrb[0].mxu0 %v2779
        %v2834 = vpop.f32.mrb[0].mxu0
        %v2835 = vadd.f32 %v2748, %v2834
        %v2836 = vpop.f32.mrb[0].mxu0
        %v2837 = vpop.f32.mrb[0].mxu0
        %v2838 = vadd.f32 %v2749, %v2837
        %v2839 = vpop.f32.mrb[0].mxu0
        %2840 = vmatprep.mubr.bf16.mxu0 0
        %2841 = vmatmul.mubr.bf16.gmra.mrb[0].mxu0 %v2782
        %v2842 = vpop.f32.mrb[0].mxu0
        %v2843 = vadd.f32 %v2750, %v2842
        %v2844 = vpop.f32.mrb[0].mxu0
        %v2845 = vpop.f32.mrb[0].mxu0
        %v2846 = vadd.f32 %v2751, %v2845
        %v2847 = vpop.f32.mrb[0].mxu0
        %2848 = vdwg.mxu0
        %2849 = vset.pattern.permute.xlu0 1
        %2850 = vperm.xlu0 %2849, %v2696
        %v2851 = vpop.permute.xlu0 %2850
        %2853 = vset.pattern.permute.xlu0 1
        %2854 = vperm.xlu0 %2853, %v2697
        %v2855 = vpop.permute.xlu0 %2854
        %2857 = vset.pattern.permute.xlu0 1
        %2858 = vperm.xlu0 %2857, %v2698
        %v2859 = vpop.permute.xlu0 %2858
        %2861 = vset.pattern.permute.xlu0 1
        %2862 = vperm.xlu0 %2861, %v2699
        %v2863 = vpop.permute.xlu0 %2862
        %2865 = vset.pattern.permute.xlu0 1
        %2866 = vperm.xlu0 %2865, %v2700
        %v2867 = vpop.permute.xlu0 %2866
        %2869 = vset.pattern.permute.xlu0 1
        %2870 = vperm.xlu0 %2869, %v2701
        %v2871 = vpop.permute.xlu0 %2870
        %2873 = vset.pattern.permute.xlu0 1
        %2874 = vperm.xlu0 %2873, %v2702
        %v2875 = vpop.permute.xlu0 %2874
        %2877 = vset.pattern.permute.xlu0 1
        %2878 = vperm.xlu0 %2877, %v2703
        %v2879 = vpop.permute.xlu0 %2878
        %v2881 = vmul.f32 %v2851, %v1549
        %v2882 = vmul.f32 %v2855, %v1549
        %v2883 = vmul.f32 %v2859, %v1549
        %v2884 = vmul.f32 %v2863, %v1549
        %v2885 = vmul.f32 %v2867, %v1549
        %v2886 = vmul.f32 %v2871, %v1549
        %v2887 = vmul.f32 %v2875, %v1549
        %v2888 = vmul.f32 %v2879, %v1549
        %v2889 = vadd.f32 %v2819, %v2881
        %v2890 = vadd.f32 %v2822, %v2882
        %v2891 = vadd.f32 %v2827, %v2883
        %v2892 = vadd.f32 %v2830, %v2884
        %v2893 = vadd.f32 %v2835, %v2885
        %v2894 = vadd.f32 %v2838, %v2886
        %v2895 = vadd.f32 %v2843, %v2887
        %v2896 = vadd.f32 %v2846, %v2888
        %2897 = vset.pattern.permute.xlu0 2
        %2898 = vperm.xlu0 %2897, %v2696
        %v2899 = vpop.permute.xlu0 %2898
        %2901 = vset.pattern.permute.xlu0 2
        %2902 = vperm.xlu0 %2901, %v2697
        %v2903 = vpop.permute.xlu0 %2902
        %2905 = vset.pattern.permute.xlu0 2
        %2906 = vperm.xlu0 %2905, %v2698
        %v2907 = vpop.permute.xlu0 %2906
        %2909 = vset.pattern.permute.xlu0 2
        %2910 = vperm.xlu0 %2909, %v2699
        %v2911 = vpop.permute.xlu0 %2910
        %2913 = vset.pattern.permute.xlu0 2
        %2914 = vperm.xlu0 %2913, %v2700
        %v2915 = vpop.permute.xlu0 %2914
        %2917 = vset.pattern.permute.xlu0 2
        %2918 = vperm.xlu0 %2917, %v2701
        %v2919 = vpop.permute.xlu0 %2918
        %2921 = vset.pattern.permute.xlu0 2
        %2922 = vperm.xlu0 %2921, %v2702
        %v2923 = vpop.permute.xlu0 %2922
        %2925 = vset.pattern.permute.xlu0 2
        %2926 = vperm.xlu0 %2925, %v2703
        %v2927 = vpop.permute.xlu0 %2926
        %v2929 = vmul.f32 %v2899, %v1601
        %v2930 = vmul.f32 %v2903, %v1601
        %v2931 = vmul.f32 %v2907, %v1601
        %v2932 = vmul.f32 %v2911, %v1601
        %v2933 = vmul.f32 %v2915, %v1601
        %v2934 = vmul.f32 %v2919, %v1601
        %v2935 = vmul.f32 %v2923, %v1601
        %v2936 = vmul.f32 %v2927, %v1601
        %v2937 = vadd.f32 %v2889, %v2929
        %v2938 = vadd.f32 %v2890, %v2930
        %v2939 = vadd.f32 %v2891, %v2931
        %v2940 = vadd.f32 %v2892, %v2932
        %v2941 = vadd.f32 %v2893, %v2933
        %v2942 = vadd.f32 %v2894, %v2934
        %v2943 = vadd.f32 %v2895, %v2935
        %v2944 = vadd.f32 %v2896, %v2936
        %v2945 = vmax.f32 %v2678, %v2937
        %v2946 = vmax.f32 %v2679, %v2938
        %v2947 = vmax.f32 %v2680, %v2939
        %v2948 = vmax.f32 %v2681, %v2940
        %v2949 = vmax.f32 %v2682, %v2941
        %v2950 = vmax.f32 %v2683, %v2942
        %v2951 = vmax.f32 %v2684, %v2943
        %v2952 = vmax.f32 %v2685, %v2944
        %s2953 = scalar_lea.vmem %s1297, 192 [#allocation2]
        %v2954 = vld [vmem:[%s2953] sm:$0xf]
        %v2955 = vld [vmem:[%s2953 + $0x4] sm:$0xf]
        %v2956 = vld [vmem:[%s2953 + $0x8] sm:$0xf]
        %v2957 = vld [vmem:[%s2953 + $0xc] sm:$0xf]
        %v2958 = vld [vmem:[%s2953 + $0x10] sm:$0xf]
        %v2959 = vld [vmem:[%s2953 + $0x14] sm:$0xf]
        %v2960 = vld [vmem:[%s2953 + $0x18] sm:$0xf]
        %v2961 = vld [vmem:[%s2953 + $0x1c] sm:$0xf]
        %s2962 = scalar_lea.vmem %s1304, 384 [#allocation3]
        %v2963 = vld [vmem:[%s2962] sm:$0xff]
        %v2964 = vld [vmem:[%s2962 + $0x8] sm:$0xff]
        %v2965 = vld [vmem:[%s2962 + $0x10] sm:$0xff]
        %v2966 = vld [vmem:[%s2962 + $0x18] sm:$0xff]
        %v2967 = vld [vmem:[%s2962 + $0x20] sm:$0xff]
        %v2968 = vld [vmem:[%s2962 + $0x28] sm:$0xff]
        %v2969 = vld [vmem:[%s2962 + $0x30] sm:$0xff]
        %v2970 = vld [vmem:[%s2962 + $0x38] sm:$0xff]
        %2972 = vset.pattern.permute.xlu0 0
        %2973 = vperm.xlu0 %2972, %v2963
        %v2974 = vpop.permute.xlu0 %2973
        %2977 = vset.pattern.permute.xlu0 0
        %2978 = vperm.xlu0 %2977, %v2964
        %v2979 = vpop.permute.xlu0 %2978
        %2982 = vset.pattern.permute.xlu0 0
        %2983 = vperm.xlu0 %2982, %v2965
        %v2984 = vpop.permute.xlu0 %2983
        %2987 = vset.pattern.permute.xlu0 0
        %2988 = vperm.xlu0 %2987, %v2966
        %v2989 = vpop.permute.xlu0 %2988
        %2992 = vset.pattern.permute.xlu0 0
        %2993 = vperm.xlu0 %2992, %v2967
        %v2994 = vpop.permute.xlu0 %2993
        %2997 = vset.pattern.permute.xlu0 0
        %2998 = vperm.xlu0 %2997, %v2968
        %v2999 = vpop.permute.xlu0 %2998
        %3002 = vset.pattern.permute.xlu0 0
        %3003 = vperm.xlu0 %3002, %v2969
        %v3004 = vpop.permute.xlu0 %3003
        %3007 = vset.pattern.permute.xlu0 0
        %3008 = vperm.xlu0 %3007, %v2970
        %v3009 = vpop.permute.xlu0 %3008
        %v3011 = vmul.f32 %v2974, %v1403
        %v3012 = vmul.f32 %v2979, %v1403
        %v3013 = vmul.f32 %v2984, %v1403
        %v3014 = vmul.f32 %v2989, %v1403
        %v3015 = vmul.f32 %v2994, %v1403
        %v3016 = vmul.f32 %v2999, %v1403
        %v3017 = vmul.f32 %v3004, %v1403
        %v3018 = vmul.f32 %v3009, %v1403
        %v3027 = vunpack.c.l.b16 %v2954
        %v3028 = vunpack.c.l.b16 %v2955
        %v3029 = vunpack.c.l.b16 %v2956
        %v3030 = vunpack.c.l.b16 %v2957
        %v3031 = vunpack.c.l.b16 %v2958
        %v3032 = vunpack.c.l.b16 %v2959
        %v3033 = vunpack.c.l.b16 %v2960
        %v3034 = vunpack.c.l.b16 %v2961
        %v3035 = vpack.c.b16 %v3028, %v3027
        %v3036 = vpack.c.b16 %v3030, %v3029
        %v3037 = vpack.c.b16 %v3032, %v3031
        %v3038 = vpack.c.b16 %v3034, %v3033
        %v3040 = vsel %vm1432, %v3035, 0
        %v3043 = vsel %vm1432, %v3036, 0
        %v3046 = vsel %vm1432, %v3037, 0
        %v3049 = vsel %vm1432, %v3038, 0
        %3051 = vmatprep.subr.bf16.mxu0 0
        %3052 = vmatpush1.bf16.msra.mxu0 %v1447
        %3053 = vmatprep.subr.bf16.mxu0 0
        %3054 = vmatpush1.bf16.msra.mxu0 0
        %3055 = vmatprep.subr.bf16.mxu0 0
        %3056 = vmatpush1.bf16.msra.mxu0 0
        %3057 = vmatprep.subr.bf16.mxu0 0
        %3058 = vmatpush1.bf16.msra.mxu0 0
        %3059 = vmatprep.subr.bf16.mxu0 0
        %3060 = vmatpush1.bf16.msra.mxu0 0
        %3061 = vmatprep.subr.bf16.mxu0 0
        %3062 = vmatpush1.bf16.msra.mxu0 0
        %3063 = vmatprep.subr.bf16.mxu0 0
        %3064 = vmatpush1.bf16.msra.mxu0 0
        %3065 = vmatprep.subr.bf16.mxu0 0
        %3066 = vmatpush1.bf16.msra.mxu0 0
        %3067 = vmatprep.subr.bf16.mxu0 0
        %3068 = vmatpush1.bf16.msra.mxu0 0
        %3069 = vmatprep.subr.bf16.mxu0 0
        %3070 = vmatpush1.bf16.msra.mxu0 0
        %3071 = vmatprep.subr.bf16.mxu0 0
        %3072 = vmatpush1.bf16.msra.mxu0 0
        %3073 = vmatprep.subr.bf16.mxu0 0
        %3074 = vmatpush1.bf16.msra.mxu0 0
        %3075 = vmatprep.subr.bf16.mxu0 0
        %3076 = vmatpush1.bf16.msra.mxu0 0
        %3077 = vmatprep.subr.bf16.mxu0 0
        %3078 = vmatpush1.bf16.msra.mxu0 0
        %3079 = vmatprep.subr.bf16.mxu0 0
        %3080 = vmatpush1.bf16.msra.mxu0 0
        %3081 = vmatprep.subr.bf16.mxu0 0
        %3082 = vmatpush1.bf16.msra.mxu0 0
        %3083 = vmatprep.mubr.bf16.mxu0 0
        %3084 = vmatmul.mubr.bf16.gmra.mrb[0].mxu0 %v3040
        %v3085 = vpop.f32.mrb[0].mxu0
        %v3086 = vadd.f32 %v3011, %v3085
        %v3087 = vpop.f32.mrb[0].mxu0
        %v3088 = vpop.f32.mrb[0].mxu0
        %v3089 = vadd.f32 %v3012, %v3088
        %v3090 = vpop.f32.mrb[0].mxu0
        %3091 = vmatprep.mubr.bf16.mxu0 0
        %3092 = vmatmul.mubr.bf16.gmra.mrb[0].mxu0 %v3043
        %v3093 = vpop.f32.mrb[0].mxu0
        %v3094 = vadd.f32 %v3013, %v3093
        %v3095 = vpop.f32.mrb[0].mxu0
        %v3096 = vpop.f32.mrb[0].mxu0
        %v3097 = vadd.f32 %v3014, %v3096
        %v3098 = vpop.f32.mrb[0].mxu0
        %3099 = vmatprep.mubr.bf16.mxu0 0
        %3100 = vmatmul.mubr.bf16.gmra.mrb[0].mxu0 %v3046
        %v3101 = vpop.f32.mrb[0].mxu0
        %v3102 = vadd.f32 %v3015, %v3101
        %v3103 = vpop.f32.mrb[0].mxu0
        %v3104 = vpop.f32.mrb[0].mxu0
        %v3105 = vadd.f32 %v3016, %v3104
        %v3106 = vpop.f32.mrb[0].mxu0
        %3107 = vmatprep.mubr.bf16.mxu0 0
        %3108 = vmatmul.mubr.bf16.gmra.mrb[0].mxu0 %v3049
        %v3109 = vpop.f32.mrb[0].mxu0
        %v3110 = vadd.f32 %v3017, %v3109
        %v3111 = vpop.f32.mrb[0].mxu0
        %v3112 = vpop.f32.mrb[0].mxu0
        %v3113 = vadd.f32 %v3018, %v3112
        %v3114 = vpop.f32.mrb[0].mxu0
        %3115 = vdwg.mxu0
        %3116 = vset.pattern.permute.xlu0 1
        %3117 = vperm.xlu0 %3116, %v2963
        %v3118 = vpop.permute.xlu0 %3117
        %3120 = vset.pattern.permute.xlu0 1
        %3121 = vperm.xlu0 %3120, %v2964
        %v3122 = vpop.permute.xlu0 %3121
        %3124 = vset.pattern.permute.xlu0 1
        %3125 = vperm.xlu0 %3124, %v2965
        %v3126 = vpop.permute.xlu0 %3125
        %3128 = vset.pattern.permute.xlu0 1
        %3129 = vperm.xlu0 %3128, %v2966
        %v3130 = vpop.permute.xlu0 %3129
        %3132 = vset.pattern.permute.xlu0 1
        %3133 = vperm.xlu0 %3132, %v2967
        %v3134 = vpop.permute.xlu0 %3133
        %3136 = vset.pattern.permute.xlu0 1
        %3137 = vperm.xlu0 %3136, %v2968
        %v3138 = vpop.permute.xlu0 %3137
        %3140 = vset.pattern.permute.xlu0 1
        %3141 = vperm.xlu0 %3140, %v2969
        %v3142 = vpop.permute.xlu0 %3141
        %3144 = vset.pattern.permute.xlu0 1
        %3145 = vperm.xlu0 %3144, %v2970
        %v3146 = vpop.permute.xlu0 %3145
        %v3148 = vmul.f32 %v3118, %v1549
        %v3149 = vmul.f32 %v3122, %v1549
        %v3150 = vmul.f32 %v3126, %v1549
        %v3151 = vmul.f32 %v3130, %v1549
        %v3152 = vmul.f32 %v3134, %v1549
        %v3153 = vmul.f32 %v3138, %v1549
        %v3154 = vmul.f32 %v3142, %v1549
        %v3155 = vmul.f32 %v3146, %v1549
        %v3156 = vadd.f32 %v3086, %v3148
        %v3157 = vadd.f32 %v3089, %v3149
        %v3158 = vadd.f32 %v3094, %v3150
        %v3159 = vadd.f32 %v3097, %v3151
        %v3160 = vadd.f32 %v3102, %v3152
        %v3161 = vadd.f32 %v3105, %v3153
        %v3162 = vadd.f32 %v3110, %v3154
        %v3163 = vadd.f32 %v3113, %v3155
        %3164 = vset.pattern.permute.xlu0 2
        %3165 = vperm.xlu0 %3164, %v2963
        %v3166 = vpop.permute.xlu0 %3165
        %3168 = vset.pattern.permute.xlu0 2
        %3169 = vperm.xlu0 %3168, %v2964
        %v3170 = vpop.permute.xlu0 %3169
        %3172 = vset.pattern.permute.xlu0 2
        %3173 = vperm.xlu0 %3172, %v2965
        %v3174 = vpop.permute.xlu0 %3173
        %3176 = vset.pattern.permute.xlu0 2
        %3177 = vperm.xlu0 %3176, %v2966
        %v3178 = vpop.permute.xlu0 %3177
        %3180 = vset.pattern.permute.xlu0 2
        %3181 = vperm.xlu0 %3180, %v2967
        %v3182 = vpop.permute.xlu0 %3181
        %3184 = vset.pattern.permute.xlu0 2
        %3185 = vperm.xlu0 %3184, %v2968
        %v3186 = vpop.permute.xlu0 %3185
        %3188 = vset.pattern.permute.xlu0 2
        %3189 = vperm.xlu0 %3188, %v2969
        %v3190 = vpop.permute.xlu0 %3189
        %3192 = vset.pattern.permute.xlu0 2
        %3193 = vperm.xlu0 %3192, %v2970
        %v3194 = vpop.permute.xlu0 %3193
        %v3196 = vmul.f32 %v3166, %v1601
        %v3197 = vmul.f32 %v3170, %v1601
        %v3198 = vmul.f32 %v3174, %v1601
        %v3199 = vmul.f32 %v3178, %v1601
        %v3200 = vmul.f32 %v3182, %v1601
        %v3201 = vmul.f32 %v3186, %v1601
        %v3202 = vmul.f32 %v3190, %v1601
        %v3203 = vmul.f32 %v3194, %v1601
        %v3204 = vadd.f32 %v3156, %v3196
        %v3205 = vadd.f32 %v3157, %v3197
        %v3206 = vadd.f32 %v3158, %v3198
        %v3207 = vadd.f32 %v3159, %v3199
        %v3208 = vadd.f32 %v3160, %v3200
        %v3209 = vadd.f32 %v3161, %v3201
        %v3210 = vadd.f32 %v3162, %v3202
        %v3211 = vadd.f32 %v3163, %v3203
        %v3212 = vmax.f32 %v2945, %v3204
        %v3213 = vmax.f32 %v2946, %v3205
        %v3214 = vmax.f32 %v2947, %v3206
        %v3215 = vmax.f32 %v2948, %v3207
        %v3216 = vmax.f32 %v2949, %v3208
        %v3217 = vmax.f32 %v2950, %v3209
        %v3218 = vmax.f32 %v2951, %v3210
        %v3219 = vmax.f32 %v2952, %v3211
        %s3220 = scalar_lea.vmem %s1297, 224 [#allocation2]
        %v3221 = vld [vmem:[%s3220] sm:$0xf]
        %v3222 = vld [vmem:[%s3220 + $0x4] sm:$0xf]
        %v3223 = vld [vmem:[%s3220 + $0x8] sm:$0xf]
        %v3224 = vld [vmem:[%s3220 + $0xc] sm:$0xf]
        %v3225 = vld [vmem:[%s3220 + $0x10] sm:$0xf]
        %v3226 = vld [vmem:[%s3220 + $0x14] sm:$0xf]
        %v3227 = vld [vmem:[%s3220 + $0x18] sm:$0xf]
        %v3228 = vld [vmem:[%s3220 + $0x1c] sm:$0xf]
        %s3229 = scalar_lea.vmem %s1304, 448 [#allocation3]
        %v3230 = vld [vmem:[%s3229] sm:$0xff]
        %v3231 = vld [vmem:[%s3229 + $0x8] sm:$0xff]
        %v3232 = vld [vmem:[%s3229 + $0x10] sm:$0xff]
        %v3233 = vld [vmem:[%s3229 + $0x18] sm:$0xff]
        %v3234 = vld [vmem:[%s3229 + $0x20] sm:$0xff]
        %v3235 = vld [vmem:[%s3229 + $0x28] sm:$0xff]
        %v3236 = vld [vmem:[%s3229 + $0x30] sm:$0xff]
        %v3237 = vld [vmem:[%s3229 + $0x38] sm:$0xff]
        %3239 = vset.pattern.permute.xlu0 0
        %3240 = vperm.xlu0 %3239, %v3230
        %v3241 = vpop.permute.xlu0 %3240
        %3244 = vset.pattern.permute.xlu0 0
        %3245 = vperm.xlu0 %3244, %v3231
        %v3246 = vpop.permute.xlu0 %3245
        %3249 = vset.pattern.permute.xlu0 0
        %3250 = vperm.xlu0 %3249, %v3232
        %v3251 = vpop.permute.xlu0 %3250
        %3254 = vset.pattern.permute.xlu0 0
        %3255 = vperm.xlu0 %3254, %v3233
        %v3256 = vpop.permute.xlu0 %3255
        %3259 = vset.pattern.permute.xlu0 0
        %3260 = vperm.xlu0 %3259, %v3234
        %v3261 = vpop.permute.xlu0 %3260
        %3264 = vset.pattern.permute.xlu0 0
        %3265 = vperm.xlu0 %3264, %v3235
        %v3266 = vpop.permute.xlu0 %3265
        %3269 = vset.pattern.permute.xlu0 0
        %3270 = vperm.xlu0 %3269, %v3236
        %v3271 = vpop.permute.xlu0 %3270
        %3274 = vset.pattern.permute.xlu0 0
        %3275 = vperm.xlu0 %3274, %v3237
        %v3276 = vpop.permute.xlu0 %3275
        %v3278 = vmul.f32 %v3241, %v1403
        %v3279 = vmul.f32 %v3246, %v1403
        %v3280 = vmul.f32 %v3251, %v1403
        %v3281 = vmul.f32 %v3256, %v1403
        %v3282 = vmul.f32 %v3261, %v1403
        %v3283 = vmul.f32 %v3266, %v1403
        %v3284 = vmul.f32 %v3271, %v1403
        %v3285 = vmul.f32 %v3276, %v1403
        %v3294 = vunpack.c.l.b16 %v3221
        %v3295 = vunpack.c.l.b16 %v3222
        %v3296 = vunpack.c.l.b16 %v3223
        %v3297 = vunpack.c.l.b16 %v3224
        %v3298 = vunpack.c.l.b16 %v3225
        %v3299 = vunpack.c.l.b16 %v3226
        %v3300 = vunpack.c.l.b16 %v3227
        %v3301 = vunpack.c.l.b16 %v3228
        %v3302 = vpack.c.b16 %v3295, %v3294
        %v3303 = vpack.c.b16 %v3297, %v3296
        %v3304 = vpack.c.b16 %v3299, %v3298
        %v3305 = vpack.c.b16 %v3301, %v3300
        %v3307 = vsel %vm1432, %v3302, 0
        %v3310 = vsel %vm1432, %v3303, 0
        %v3313 = vsel %vm1432, %v3304, 0
        %v3316 = vsel %vm1432, %v3305, 0
        %3318 = vmatprep.subr.bf16.mxu0 0
        %3319 = vmatpush1.bf16.msra.mxu0 %v1447
        %3320 = vmatprep.subr.bf16.mxu0 0
        %3321 = vmatpush1.bf16.msra.mxu0 0
        %3322 = vmatprep.subr.bf16.mxu0 0
        %3323 = vmatpush1.bf16.msra.mxu0 0
        %3324 = vmatprep.subr.bf16.mxu0 0
        %3325 = vmatpush1.bf16.msra.mxu0 0
        %3326 = vmatprep.subr.bf16.mxu0 0
        %3327 = vmatpush1.bf16.msra.mxu0 0
        %3328 = vmatprep.subr.bf16.mxu0 0
        %3329 = vmatpush1.bf16.msra.mxu0 0
        %3330 = vmatprep.subr.bf16.mxu0 0
        %3331 = vmatpush1.bf16.msra.mxu0 0
        %3332 = vmatprep.subr.bf16.mxu0 0
        %3333 = vmatpush1.bf16.msra.mxu0 0
        %3334 = vmatprep.subr.bf16.mxu0 0
        %3335 = vmatpush1.bf16.msra.mxu0 0
        %3336 = vmatprep.subr.bf16.mxu0 0
        %3337 = vmatpush1.bf16.msra.mxu0 0
        %3338 = vmatprep.subr.bf16.mxu0 0
        %3339 = vmatpush1.bf16.msra.mxu0 0
        %3340 = vmatprep.subr.bf16.mxu0 0
        %3341 = vmatpush1.bf16.msra.mxu0 0
        %3342 = vmatprep.subr.bf16.mxu0 0
        %3343 = vmatpush1.bf16.msra.mxu0 0
        %3344 = vmatprep.subr.bf16.mxu0 0
        %3345 = vmatpush1.bf16.msra.mxu0 0
        %3346 = vmatprep.subr.bf16.mxu0 0
        %3347 = vmatpush1.bf16.msra.mxu0 0
        %3348 = vmatprep.subr.bf16.mxu0 0
        %3349 = vmatpush1.bf16.msra.mxu0 0
        %3350 = vmatprep.mubr.bf16.mxu0 0
        %3351 = vmatmul.mubr.bf16.gmra.mrb[0].mxu0 %v3307
        %v3352 = vpop.f32.mrb[0].mxu0
        %v3353 = vadd.f32 %v3278, %v3352
        %v3354 = vpop.f32.mrb[0].mxu0
        %v3355 = vpop.f32.mrb[0].mxu0
        %v3356 = vadd.f32 %v3279, %v3355
        %v3357 = vpop.f32.mrb[0].mxu0
        %3358 = vmatprep.mubr.bf16.mxu0 0
        %3359 = vmatmul.mubr.bf16.gmra.mrb[0].mxu0 %v3310
        %v3360 = vpop.f32.mrb[0].mxu0
        %v3361 = vadd.f32 %v3280, %v3360
        %v3362 = vpop.f32.mrb[0].mxu0
        %v3363 = vpop.f32.mrb[0].mxu0
        %v3364 = vadd.f32 %v3281, %v3363
        %v3365 = vpop.f32.mrb[0].mxu0
        %3366 = vmatprep.mubr.bf16.mxu0 0
        %3367 = vmatmul.mubr.bf16.gmra.mrb[0].mxu0 %v3313
        %v3368 = vpop.f32.mrb[0].mxu0
        %v3369 = vadd.f32 %v3282, %v3368
        %v3370 = vpop.f32.mrb[0].mxu0
        %v3371 = vpop.f32.mrb[0].mxu0
        %v3372 = vadd.f32 %v3283, %v3371
        %v3373 = vpop.f32.mrb[0].mxu0
        %3374 = vmatprep.mubr.bf16.mxu0 0
        %3375 = vmatmul.mubr.bf16.gmra.mrb[0].mxu0 %v3316
        %v3376 = vpop.f32.mrb[0].mxu0
        %v3377 = vadd.f32 %v3284, %v3376
        %v3378 = vpop.f32.mrb[0].mxu0
        %v3379 = vpop.f32.mrb[0].mxu0
        %v3380 = vadd.f32 %v3285, %v3379
        %v3381 = vpop.f32.mrb[0].mxu0
        %3382 = vdwg.mxu0
        %3383 = vset.pattern.permute.xlu0 1
        %3384 = vperm.xlu0 %3383, %v3230
        %v3385 = vpop.permute.xlu0 %3384
        %3387 = vset.pattern.permute.xlu0 1
        %3388 = vperm.xlu0 %3387, %v3231
        %v3389 = vpop.permute.xlu0 %3388
        %3391 = vset.pattern.permute.xlu0 1
        %3392 = vperm.xlu0 %3391, %v3232
        %v3393 = vpop.permute.xlu0 %3392
        %3395 = vset.pattern.permute.xlu0 1
        %3396 = vperm.xlu0 %3395, %v3233
        %v3397 = vpop.permute.xlu0 %3396
        %3399 = vset.pattern.permute.xlu0 1
        %3400 = vperm.xlu0 %3399, %v3234
        %v3401 = vpop.permute.xlu0 %3400
        %3403 = vset.pattern.permute.xlu0 1
        %3404 = vperm.xlu0 %3403, %v3235
        %v3405 = vpop.permute.xlu0 %3404
        %3407 = vset.pattern.permute.xlu0 1
        %3408 = vperm.xlu0 %3407, %v3236
        %v3409 = vpop.permute.xlu0 %3408
        %3411 = vset.pattern.permute.xlu0 1
        %3412 = vperm.xlu0 %3411, %v3237
        %v3413 = vpop.permute.xlu0 %3412
        %v3415 = vmul.f32 %v3385, %v1549
        %v3416 = vmul.f32 %v3389, %v1549
        %v3417 = vmul.f32 %v3393, %v1549
        %v3418 = vmul.f32 %v3397, %v1549
        %v3419 = vmul.f32 %v3401, %v1549
        %v3420 = vmul.f32 %v3405, %v1549
        %v3421 = vmul.f32 %v3409, %v1549
        %v3422 = vmul.f32 %v3413, %v1549
        %v3423 = vadd.f32 %v3353, %v3415
        %v3424 = vadd.f32 %v3356, %v3416
        %v3425 = vadd.f32 %v3361, %v3417
        %v3426 = vadd.f32 %v3364, %v3418
        %v3427 = vadd.f32 %v3369, %v3419
        %v3428 = vadd.f32 %v3372, %v3420
        %v3429 = vadd.f32 %v3377, %v3421
        %v3430 = vadd.f32 %v3380, %v3422
        %3431 = vset.pattern.permute.xlu0 2
        %3432 = vperm.xlu0 %3431, %v3230
        %v3433 = vpop.permute.xlu0 %3432
        %3435 = vset.pattern.permute.xlu0 2
        %3436 = vperm.xlu0 %3435, %v3231
        %v3437 = vpop.permute.xlu0 %3436
        %3439 = vset.pattern.permute.xlu0 2
        %3440 = vperm.xlu0 %3439, %v3232
        %v3441 = vpop.permute.xlu0 %3440
        %3443 = vset.pattern.permute.xlu0 2
        %3444 = vperm.xlu0 %3443, %v3233
        %v3445 = vpop.permute.xlu0 %3444
        %3447 = vset.pattern.permute.xlu0 2
        %3448 = vperm.xlu0 %3447, %v3234
        %v3449 = vpop.permute.xlu0 %3448
        %3451 = vset.pattern.permute.xlu0 2
        %3452 = vperm.xlu0 %3451, %v3235
        %v3453 = vpop.permute.xlu0 %3452
        %3455 = vset.pattern.permute.xlu0 2
        %3456 = vperm.xlu0 %3455, %v3236
        %v3457 = vpop.permute.xlu0 %3456
        %3459 = vset.pattern.permute.xlu0 2
        %3460 = vperm.xlu0 %3459, %v3237
        %v3461 = vpop.permute.xlu0 %3460
        %v3463 = vmul.f32 %v3433, %v1601
        %v3464 = vmul.f32 %v3437, %v1601
        %v3465 = vmul.f32 %v3441, %v1601
        %v3466 = vmul.f32 %v3445, %v1601
        %v3467 = vmul.f32 %v3449, %v1601
        %v3468 = vmul.f32 %v3453, %v1601
        %v3469 = vmul.f32 %v3457, %v1601
        %v3470 = vmul.f32 %v3461, %v1601
        %v3471 = vadd.f32 %v3423, %v3463
        %v3472 = vadd.f32 %v3424, %v3464
        %v3473 = vadd.f32 %v3425, %v3465
        %v3474 = vadd.f32 %v3426, %v3466
        %v3475 = vadd.f32 %v3427, %v3467
        %v3476 = vadd.f32 %v3428, %v3468
        %v3477 = vadd.f32 %v3429, %v3469
        %v3478 = vadd.f32 %v3430, %v3470
        %v3479 = vmax.f32 %v3212, %v3471
        %v3480 = vmax.f32 %v3213, %v3472
        %v3481 = vmax.f32 %v3214, %v3473
        %v3482 = vmax.f32 %v3215, %v3474
        %v3483 = vmax.f32 %v3216, %v3475
        %v3484 = vmax.f32 %v3217, %v3476
        %v3485 = vmax.f32 %v3218, %v3477
        %v3486 = vmax.f32 %v3219, %v3478
        %s3487 = scalar_lea.vmem %s1297, 256 [#allocation2]
        %v3488 = vld [vmem:[%s3487] sm:$0xf]
        %v3489 = vld [vmem:[%s3487 + $0x4] sm:$0xf]
        %v3490 = vld [vmem:[%s3487 + $0x8] sm:$0xf]
        %v3491 = vld [vmem:[%s3487 + $0xc] sm:$0xf]
        %v3492 = vld [vmem:[%s3487 + $0x10] sm:$0xf]
        %v3493 = vld [vmem:[%s3487 + $0x14] sm:$0xf]
        %v3494 = vld [vmem:[%s3487 + $0x18] sm:$0xf]
        %v3495 = vld [vmem:[%s3487 + $0x1c] sm:$0xf]
        %s3496 = scalar_lea.vmem %s1304, 512 [#allocation3]
        %v3497 = vld [vmem:[%s3496] sm:$0xff]
        %v3498 = vld [vmem:[%s3496 + $0x8] sm:$0xff]
        %v3499 = vld [vmem:[%s3496 + $0x10] sm:$0xff]
        %v3500 = vld [vmem:[%s3496 + $0x18] sm:$0xff]
        %v3501 = vld [vmem:[%s3496 + $0x20] sm:$0xff]
        %v3502 = vld [vmem:[%s3496 + $0x28] sm:$0xff]
        %v3503 = vld [vmem:[%s3496 + $0x30] sm:$0xff]
        %v3504 = vld [vmem:[%s3496 + $0x38] sm:$0xff]
        %3506 = vset.pattern.permute.xlu0 0
        %3507 = vperm.xlu0 %3506, %v3497
        %v3508 = vpop.permute.xlu0 %3507
        %3511 = vset.pattern.permute.xlu0 0
        %3512 = vperm.xlu0 %3511, %v3498
        %v3513 = vpop.permute.xlu0 %3512
        %3516 = vset.pattern.permute.xlu0 0
        %3517 = vperm.xlu0 %3516, %v3499
        %v3518 = vpop.permute.xlu0 %3517
        %3521 = vset.pattern.permute.xlu0 0
        %3522 = vperm.xlu0 %3521, %v3500
        %v3523 = vpop.permute.xlu0 %3522
        %3526 = vset.pattern.permute.xlu0 0
        %3527 = vperm.xlu0 %3526, %v3501
        %v3528 = vpop.permute.xlu0 %3527
        %3531 = vset.pattern.permute.xlu0 0
        %3532 = vperm.xlu0 %3531, %v3502
        %v3533 = vpop.permute.xlu0 %3532
        %3536 = vset.pattern.permute.xlu0 0
        %3537 = vperm.xlu0 %3536, %v3503
        %v3538 = vpop.permute.xlu0 %3537
        %3541 = vset.pattern.permute.xlu0 0
        %3542 = vperm.xlu0 %3541, %v3504
        %v3543 = vpop.permute.xlu0 %3542
        %v3545 = vmul.f32 %v3508, %v1403
        %v3546 = vmul.f32 %v3513, %v1403
        %v3547 = vmul.f32 %v3518, %v1403
        %v3548 = vmul.f32 %v3523, %v1403
        %v3549 = vmul.f32 %v3528, %v1403
        %v3550 = vmul.f32 %v3533, %v1403
        %v3551 = vmul.f32 %v3538, %v1403
        %v3552 = vmul.f32 %v3543, %v1403
        %v3561 = vunpack.c.l.b16 %v3488
        %v3562 = vunpack.c.l.b16 %v3489
        %v3563 = vunpack.c.l.b16 %v3490
        %v3564 = vunpack.c.l.b16 %v3491
        %v3565 = vunpack.c.l.b16 %v3492
        %v3566 = vunpack.c.l.b16 %v3493
        %v3567 = vunpack.c.l.b16 %v3494
        %v3568 = vunpack.c.l.b16 %v3495
        %v3569 = vpack.c.b16 %v3562, %v3561
        %v3570 = vpack.c.b16 %v3564, %v3563
        %v3571 = vpack.c.b16 %v3566, %v3565
        %v3572 = vpack.c.b16 %v3568, %v3567
        %v3574 = vsel %vm1432, %v3569, 0
        %v3577 = vsel %vm1432, %v3570, 0
        %v3580 = vsel %vm1432, %v3571, 0
        %v3583 = vsel %vm1432, %v3572, 0
        %3585 = vmatprep.subr.bf16.mxu0 0
        %3586 = vmatpush1.bf16.msra.mxu0 %v1447
        %3587 = vmatprep.subr.bf16.mxu0 0
        %3588 = vmatpush1.bf16.msra.mxu0 0
        %3589 = vmatprep.subr.bf16.mxu0 0
        %3590 = vmatpush1.bf16.msra.mxu0 0
        %3591 = vmatprep.subr.bf16.mxu0 0
        %3592 = vmatpush1.bf16.msra.mxu0 0
        %3593 = vmatprep.subr.bf16.mxu0 0
        %3594 = vmatpush1.bf16.msra.mxu0 0
        %3595 = vmatprep.subr.bf16.mxu0 0
        %3596 = vmatpush1.bf16.msra.mxu0 0
        %3597 = vmatprep.subr.bf16.mxu0 0
        %3598 = vmatpush1.bf16.msra.mxu0 0
        %3599 = vmatprep.subr.bf16.mxu0 0
        %3600 = vmatpush1.bf16.msra.mxu0 0
        %3601 = vmatprep.subr.bf16.mxu0 0
        %3602 = vmatpush1.bf16.msra.mxu0 0
        %3603 = vmatprep.subr.bf16.mxu0 0
        %3604 = vmatpush1.bf16.msra.mxu0 0
        %3605 = vmatprep.subr.bf16.mxu0 0
        %3606 = vmatpush1.bf16.msra.mxu0 0
        %3607 = vmatprep.subr.bf16.mxu0 0
        %3608 = vmatpush1.bf16.msra.mxu0 0
        %3609 = vmatprep.subr.bf16.mxu0 0
        %3610 = vmatpush1.bf16.msra.mxu0 0
        %3611 = vmatprep.subr.bf16.mxu0 0
        %3612 = vmatpush1.bf16.msra.mxu0 0
        %3613 = vmatprep.subr.bf16.mxu0 0
        %3614 = vmatpush1.bf16.msra.mxu0 0
        %3615 = vmatprep.subr.bf16.mxu0 0
        %3616 = vmatpush1.bf16.msra.mxu0 0
        %3617 = vmatprep.mubr.bf16.mxu0 0
        %3618 = vmatmul.mubr.bf16.gmra.mrb[0].mxu0 %v3574
        %v3619 = vpop.f32.mrb[0].mxu0
        %v3620 = vadd.f32 %v3545, %v3619
        %v3621 = vpop.f32.mrb[0].mxu0
        %v3622 = vpop.f32.mrb[0].mxu0
        %v3623 = vadd.f32 %v3546, %v3622
        %v3624 = vpop.f32.mrb[0].mxu0
        %3625 = vmatprep.mubr.bf16.mxu0 0
        %3626 = vmatmul.mubr.bf16.gmra.mrb[0].mxu0 %v3577
        %v3627 = vpop.f32.mrb[0].mxu0
        %v3628 = vadd.f32 %v3547, %v3627
        %v3629 = vpop.f32.mrb[0].mxu0
        %v3630 = vpop.f32.mrb[0].mxu0
        %v3631 = vadd.f32 %v3548, %v3630
        %v3632 = vpop.f32.mrb[0].mxu0
        %3633 = vmatprep.mubr.bf16.mxu0 0
        %3634 = vmatmul.mubr.bf16.gmra.mrb[0].mxu0 %v3580
        %v3635 = vpop.f32.mrb[0].mxu0
        %v3636 = vadd.f32 %v3549, %v3635
        %v3637 = vpop.f32.mrb[0].mxu0
        %v3638 = vpop.f32.mrb[0].mxu0
        %v3639 = vadd.f32 %v3550, %v3638
        %v3640 = vpop.f32.mrb[0].mxu0
        %3641 = vmatprep.mubr.bf16.mxu0 0
        %3642 = vmatmul.mubr.bf16.gmra.mrb[0].mxu0 %v3583
        %v3643 = vpop.f32.mrb[0].mxu0
        %v3644 = vadd.f32 %v3551, %v3643
        %v3645 = vpop.f32.mrb[0].mxu0
        %v3646 = vpop.f32.mrb[0].mxu0
        %v3647 = vadd.f32 %v3552, %v3646
        %v3648 = vpop.f32.mrb[0].mxu0
        %3649 = vdwg.mxu0
        %3650 = vset.pattern.permute.xlu0 1
        %3651 = vperm.xlu0 %3650, %v3497
        %v3652 = vpop.permute.xlu0 %3651
        %3654 = vset.pattern.permute.xlu0 1
        %3655 = vperm.xlu0 %3654, %v3498
        %v3656 = vpop.permute.xlu0 %3655
        %3658 = vset.pattern.permute.xlu0 1
        %3659 = vperm.xlu0 %3658, %v3499
        %v3660 = vpop.permute.xlu0 %3659
        %3662 = vset.pattern.permute.xlu0 1
        %3663 = vperm.xlu0 %3662, %v3500
        %v3664 = vpop.permute.xlu0 %3663
        %3666 = vset.pattern.permute.xlu0 1
        %3667 = vperm.xlu0 %3666, %v3501
        %v3668 = vpop.permute.xlu0 %3667
        %3670 = vset.pattern.permute.xlu0 1
        %3671 = vperm.xlu0 %3670, %v3502
        %v3672 = vpop.permute.xlu0 %3671
        %3674 = vset.pattern.permute.xlu0 1
        %3675 = vperm.xlu0 %3674, %v3503
        %v3676 = vpop.permute.xlu0 %3675
        %3678 = vset.pattern.permute.xlu0 1
        %3679 = vperm.xlu0 %3678, %v3504
        %v3680 = vpop.permute.xlu0 %3679
        %v3682 = vmul.f32 %v3652, %v1549
        %v3683 = vmul.f32 %v3656, %v1549
        %v3684 = vmul.f32 %v3660, %v1549
        %v3685 = vmul.f32 %v3664, %v1549
        %v3686 = vmul.f32 %v3668, %v1549
        %v3687 = vmul.f32 %v3672, %v1549
        %v3688 = vmul.f32 %v3676, %v1549
        %v3689 = vmul.f32 %v3680, %v1549
        %v3690 = vadd.f32 %v3620, %v3682
        %v3691 = vadd.f32 %v3623, %v3683
        %v3692 = vadd.f32 %v3628, %v3684
        %v3693 = vadd.f32 %v3631, %v3685
        %v3694 = vadd.f32 %v3636, %v3686
        %v3695 = vadd.f32 %v3639, %v3687
        %v3696 = vadd.f32 %v3644, %v3688
        %v3697 = vadd.f32 %v3647, %v3689
        %3698 = vset.pattern.permute.xlu0 2
        %3699 = vperm.xlu0 %3698, %v3497
        %v3700 = vpop.permute.xlu0 %3699
        %3702 = vset.pattern.permute.xlu0 2
        %3703 = vperm.xlu0 %3702, %v3498
        %v3704 = vpop.permute.xlu0 %3703
        %3706 = vset.pattern.permute.xlu0 2
        %3707 = vperm.xlu0 %3706, %v3499
        %v3708 = vpop.permute.xlu0 %3707
        %3710 = vset.pattern.permute.xlu0 2
        %3711 = vperm.xlu0 %3710, %v3500
        %v3712 = vpop.permute.xlu0 %3711
        %3714 = vset.pattern.permute.xlu0 2
        %3715 = vperm.xlu0 %3714, %v3501
        %v3716 = vpop.permute.xlu0 %3715
        %3718 = vset.pattern.permute.xlu0 2
        %3719 = vperm.xlu0 %3718, %v3502
        %v3720 = vpop.permute.xlu0 %3719
        %3722 = vset.pattern.permute.xlu0 2
        %3723 = vperm.xlu0 %3722, %v3503
        %v3724 = vpop.permute.xlu0 %3723
        %3726 = vset.pattern.permute.xlu0 2
        %3727 = vperm.xlu0 %3726, %v3504
        %v3728 = vpop.permute.xlu0 %3727
        %v3730 = vmul.f32 %v3700, %v1601
        %v3731 = vmul.f32 %v3704, %v1601
        %v3732 = vmul.f32 %v3708, %v1601
        %v3733 = vmul.f32 %v3712, %v1601
        %v3734 = vmul.f32 %v3716, %v1601
        %v3735 = vmul.f32 %v3720, %v1601
        %v3736 = vmul.f32 %v3724, %v1601
        %v3737 = vmul.f32 %v3728, %v1601
        %v3738 = vadd.f32 %v3690, %v3730
        %v3739 = vadd.f32 %v3691, %v3731
        %v3740 = vadd.f32 %v3692, %v3732
        %v3741 = vadd.f32 %v3693, %v3733
        %v3742 = vadd.f32 %v3694, %v3734
        %v3743 = vadd.f32 %v3695, %v3735
        %v3744 = vadd.f32 %v3696, %v3736
        %v3745 = vadd.f32 %v3697, %v3737
        %v3746 = vmax.f32 %v3479, %v3738
        %v3747 = vmax.f32 %v3480, %v3739
        %v3748 = vmax.f32 %v3481, %v3740
        %v3749 = vmax.f32 %v3482, %v3741
        %v3750 = vmax.f32 %v3483, %v3742
        %v3751 = vmax.f32 %v3484, %v3743
        %v3752 = vmax.f32 %v3485, %v3744
        %v3753 = vmax.f32 %v3486, %v3745
        %s3754 = scalar_lea.vmem %s1297, 288 [#allocation2]
        %v3755 = vld [vmem:[%s3754] sm:$0xf]
        %v3756 = vld [vmem:[%s3754 + $0x4] sm:$0xf]
        %v3757 = vld [vmem:[%s3754 + $0x8] sm:$0xf]
        %v3758 = vld [vmem:[%s3754 + $0xc] sm:$0xf]
        %v3759 = vld [vmem:[%s3754 + $0x10] sm:$0xf]
        %v3760 = vld [vmem:[%s3754 + $0x14] sm:$0xf]
        %v3761 = vld [vmem:[%s3754 + $0x18] sm:$0xf]
        %v3762 = vld [vmem:[%s3754 + $0x1c] sm:$0xf]
        %s3763 = scalar_lea.vmem %s1304, 576 [#allocation3]
        %v3764 = vld [vmem:[%s3763] sm:$0xff]
        %v3765 = vld [vmem:[%s3763 + $0x8] sm:$0xff]
        %v3766 = vld [vmem:[%s3763 + $0x10] sm:$0xff]
        %v3767 = vld [vmem:[%s3763 + $0x18] sm:$0xff]
        %v3768 = vld [vmem:[%s3763 + $0x20] sm:$0xff]
        %v3769 = vld [vmem:[%s3763 + $0x28] sm:$0xff]
        %v3770 = vld [vmem:[%s3763 + $0x30] sm:$0xff]
        %v3771 = vld [vmem:[%s3763 + $0x38] sm:$0xff]
        %3773 = vset.pattern.permute.xlu0 0
        %3774 = vperm.xlu0 %3773, %v3764
        %v3775 = vpop.permute.xlu0 %3774
        %3778 = vset.pattern.permute.xlu0 0
        %3779 = vperm.xlu0 %3778, %v3765
        %v3780 = vpop.permute.xlu0 %3779
        %3783 = vset.pattern.permute.xlu0 0
        %3784 = vperm.xlu0 %3783, %v3766
        %v3785 = vpop.permute.xlu0 %3784
        %3788 = vset.pattern.permute.xlu0 0
        %3789 = vperm.xlu0 %3788, %v3767
        %v3790 = vpop.permute.xlu0 %3789
        %3793 = vset.pattern.permute.xlu0 0
        %3794 = vperm.xlu0 %3793, %v3768
        %v3795 = vpop.permute.xlu0 %3794
        %3798 = vset.pattern.permute.xlu0 0
        %3799 = vperm.xlu0 %3798, %v3769
        %v3800 = vpop.permute.xlu0 %3799
        %3803 = vset.pattern.permute.xlu0 0
        %3804 = vperm.xlu0 %3803, %v3770
        %v3805 = vpop.permute.xlu0 %3804
        %3808 = vset.pattern.permute.xlu0 0
        %3809 = vperm.xlu0 %3808, %v3771
        %v3810 = vpop.permute.xlu0 %3809
        %v3812 = vmul.f32 %v3775, %v1403
        %v3813 = vmul.f32 %v3780, %v1403
        %v3814 = vmul.f32 %v3785, %v1403
        %v3815 = vmul.f32 %v3790, %v1403
        %v3816 = vmul.f32 %v3795, %v1403
        %v3817 = vmul.f32 %v3800, %v1403
        %v3818 = vmul.f32 %v3805, %v1403
        %v3819 = vmul.f32 %v3810, %v1403
        %v3828 = vunpack.c.l.b16 %v3755
        %v3829 = vunpack.c.l.b16 %v3756
        %v3830 = vunpack.c.l.b16 %v3757
        %v3831 = vunpack.c.l.b16 %v3758
        %v3832 = vunpack.c.l.b16 %v3759
        %v3833 = vunpack.c.l.b16 %v3760
        %v3834 = vunpack.c.l.b16 %v3761
        %v3835 = vunpack.c.l.b16 %v3762
        %v3836 = vpack.c.b16 %v3829, %v3828
        %v3837 = vpack.c.b16 %v3831, %v3830
        %v3838 = vpack.c.b16 %v3833, %v3832
        %v3839 = vpack.c.b16 %v3835, %v3834
        %v3841 = vsel %vm1432, %v3836, 0
        %v3844 = vsel %vm1432, %v3837, 0
        %v3847 = vsel %vm1432, %v3838, 0
        %v3850 = vsel %vm1432, %v3839, 0
        %3852 = vmatprep.subr.bf16.mxu0 0
        %3853 = vmatpush1.bf16.msra.mxu0 %v1447
        %3854 = vmatprep.subr.bf16.mxu0 0
        %3855 = vmatpush1.bf16.msra.mxu0 0
        %3856 = vmatprep.subr.bf16.mxu0 0
        %3857 = vmatpush1.bf16.msra.mxu0 0
        %3858 = vmatprep.subr.bf16.mxu0 0
        %3859 = vmatpush1.bf16.msra.mxu0 0
        %3860 = vmatprep.subr.bf16.mxu0 0
        %3861 = vmatpush1.bf16.msra.mxu0 0
        %3862 = vmatprep.subr.bf16.mxu0 0
        %3863 = vmatpush1.bf16.msra.mxu0 0
        %3864 = vmatprep.subr.bf16.mxu0 0
        %3865 = vmatpush1.bf16.msra.mxu0 0
        %3866 = vmatprep.subr.bf16.mxu0 0
        %3867 = vmatpush1.bf16.msra.mxu0 0
        %3868 = vmatprep.subr.bf16.mxu0 0
        %3869 = vmatpush1.bf16.msra.mxu0 0
        %3870 = vmatprep.subr.bf16.mxu0 0
        %3871 = vmatpush1.bf16.msra.mxu0 0
        %3872 = vmatprep.subr.bf16.mxu0 0
        %3873 = vmatpush1.bf16.msra.mxu0 0
        %3874 = vmatprep.subr.bf16.mxu0 0
        %3875 = vmatpush1.bf16.msra.mxu0 0
        %3876 = vmatprep.subr.bf16.mxu0 0
        %3877 = vmatpush1.bf16.msra.mxu0 0
        %3878 = vmatprep.subr.bf16.mxu0 0
        %3879 = vmatpush1.bf16.msra.mxu0 0
        %3880 = vmatprep.subr.bf16.mxu0 0
        %3881 = vmatpush1.bf16.msra.mxu0 0
        %3882 = vmatprep.subr.bf16.mxu0 0
        %3883 = vmatpush1.bf16.msra.mxu0 0
        %3884 = vmatprep.mubr.bf16.mxu0 0
        %3885 = vmatmul.mubr.bf16.gmra.mrb[0].mxu0 %v3841
        %v3886 = vpop.f32.mrb[0].mxu0
        %v3887 = vadd.f32 %v3812, %v3886
        %v3888 = vpop.f32.mrb[0].mxu0
        %v3889 = vpop.f32.mrb[0].mxu0
        %v3890 = vadd.f32 %v3813, %v3889
        %v3891 = vpop.f32.mrb[0].mxu0
        %3892 = vmatprep.mubr.bf16.mxu0 0
        %3893 = vmatmul.mubr.bf16.gmra.mrb[0].mxu0 %v3844
        %v3894 = vpop.f32.mrb[0].mxu0
        %v3895 = vadd.f32 %v3814, %v3894
        %v3896 = vpop.f32.mrb[0].mxu0
        %v3897 = vpop.f32.mrb[0].mxu0
        %v3898 = vadd.f32 %v3815, %v3897
        %v3899 = vpop.f32.mrb[0].mxu0
        %3900 = vmatprep.mubr.bf16.mxu0 0
        %3901 = vmatmul.mubr.bf16.gmra.mrb[0].mxu0 %v3847
        %v3902 = vpop.f32.mrb[0].mxu0
        %v3903 = vadd.f32 %v3816, %v3902
        %v3904 = vpop.f32.mrb[0].mxu0
        %v3905 = vpop.f32.mrb[0].mxu0
        %v3906 = vadd.f32 %v3817, %v3905
        %v3907 = vpop.f32.mrb[0].mxu0
        %3908 = vmatprep.mubr.bf16.mxu0 0
        %3909 = vmatmul.mubr.bf16.gmra.mrb[0].mxu0 %v3850
        %v3910 = vpop.f32.mrb[0].mxu0
        %v3911 = vadd.f32 %v3818, %v3910
        %v3912 = vpop.f32.mrb[0].mxu0
        %v3913 = vpop.f32.mrb[0].mxu0
        %v3914 = vadd.f32 %v3819, %v3913
        %v3915 = vpop.f32.mrb[0].mxu0
        %3916 = vdwg.mxu0
        %3917 = vset.pattern.permute.xlu0 1
        %3918 = vperm.xlu0 %3917, %v3764
        %v3919 = vpop.permute.xlu0 %3918
        %3921 = vset.pattern.permute.xlu0 1
        %3922 = vperm.xlu0 %3921, %v3765
        %v3923 = vpop.permute.xlu0 %3922
        %3925 = vset.pattern.permute.xlu0 1
        %3926 = vperm.xlu0 %3925, %v3766
        %v3927 = vpop.permute.xlu0 %3926
        %3929 = vset.pattern.permute.xlu0 1
        %3930 = vperm.xlu0 %3929, %v3767
        %v3931 = vpop.permute.xlu0 %3930
        %3933 = vset.pattern.permute.xlu0 1
        %3934 = vperm.xlu0 %3933, %v3768
        %v3935 = vpop.permute.xlu0 %3934
        %3937 = vset.pattern.permute.xlu0 1
        %3938 = vperm.xlu0 %3937, %v3769
        %v3939 = vpop.permute.xlu0 %3938
        %3941 = vset.pattern.permute.xlu0 1
        %3942 = vperm.xlu0 %3941, %v3770
        %v3943 = vpop.permute.xlu0 %3942
        %3945 = vset.pattern.permute.xlu0 1
        %3946 = vperm.xlu0 %3945, %v3771
        %v3947 = vpop.permute.xlu0 %3946
        %v3949 = vmul.f32 %v3919, %v1549
        %v3950 = vmul.f32 %v3923, %v1549
        %v3951 = vmul.f32 %v3927, %v1549
        %v3952 = vmul.f32 %v3931, %v1549
        %v3953 = vmul.f32 %v3935, %v1549
        %v3954 = vmul.f32 %v3939, %v1549
        %v3955 = vmul.f32 %v3943, %v1549
        %v3956 = vmul.f32 %v3947, %v1549
        %v3957 = vadd.f32 %v3887, %v3949
        %v3958 = vadd.f32 %v3890, %v3950
        %v3959 = vadd.f32 %v3895, %v3951
        %v3960 = vadd.f32 %v3898, %v3952
        %v3961 = vadd.f32 %v3903, %v3953
        %v3962 = vadd.f32 %v3906, %v3954
        %v3963 = vadd.f32 %v3911, %v3955
        %v3964 = vadd.f32 %v3914, %v3956
        %3965 = vset.pattern.permute.xlu0 2
        %3966 = vperm.xlu0 %3965, %v3764
        %v3967 = vpop.permute.xlu0 %3966
        %3969 = vset.pattern.permute.xlu0 2
        %3970 = vperm.xlu0 %3969, %v3765
        %v3971 = vpop.permute.xlu0 %3970
        %3973 = vset.pattern.permute.xlu0 2
        %3974 = vperm.xlu0 %3973, %v3766
        %v3975 = vpop.permute.xlu0 %3974
        %3977 = vset.pattern.permute.xlu0 2
        %3978 = vperm.xlu0 %3977, %v3767
        %v3979 = vpop.permute.xlu0 %3978
        %3981 = vset.pattern.permute.xlu0 2
        %3982 = vperm.xlu0 %3981, %v3768
        %v3983 = vpop.permute.xlu0 %3982
        %3985 = vset.pattern.permute.xlu0 2
        %3986 = vperm.xlu0 %3985, %v3769
        %v3987 = vpop.permute.xlu0 %3986
        %3989 = vset.pattern.permute.xlu0 2
        %3990 = vperm.xlu0 %3989, %v3770
        %v3991 = vpop.permute.xlu0 %3990
        %3993 = vset.pattern.permute.xlu0 2
        %3994 = vperm.xlu0 %3993, %v3771
        %v3995 = vpop.permute.xlu0 %3994
        %v3997 = vmul.f32 %v3967, %v1601
        %v3998 = vmul.f32 %v3971, %v1601
        %v3999 = vmul.f32 %v3975, %v1601
        %v4000 = vmul.f32 %v3979, %v1601
        %v4001 = vmul.f32 %v3983, %v1601
        %v4002 = vmul.f32 %v3987, %v1601
        %v4003 = vmul.f32 %v3991, %v1601
        %v4004 = vmul.f32 %v3995, %v1601
        %v4005 = vadd.f32 %v3957, %v3997
        %v4006 = vadd.f32 %v3958, %v3998
        %v4007 = vadd.f32 %v3959, %v3999
        %v4008 = vadd.f32 %v3960, %v4000
        %v4009 = vadd.f32 %v3961, %v4001
        %v4010 = vadd.f32 %v3962, %v4002
        %v4011 = vadd.f32 %v3963, %v4003
        %v4012 = vadd.f32 %v3964, %v4004
        %v4013 = vmax.f32 %v3746, %v4005
        %v4014 = vmax.f32 %v3747, %v4006
        %v4015 = vmax.f32 %v3748, %v4007
        %v4016 = vmax.f32 %v3749, %v4008
        %v4017 = vmax.f32 %v3750, %v4009
        %v4018 = vmax.f32 %v3751, %v4010
        %v4019 = vmax.f32 %v3752, %v4011
        %v4020 = vmax.f32 %v3753, %v4012
        %s4021 = scalar_lea.vmem %s1297, 320 [#allocation2]
        %v4022 = vld [vmem:[%s4021] sm:$0xf]
        %v4023 = vld [vmem:[%s4021 + $0x4] sm:$0xf]
        %v4024 = vld [vmem:[%s4021 + $0x8] sm:$0xf]
        %v4025 = vld [vmem:[%s4021 + $0xc] sm:$0xf]
        %v4026 = vld [vmem:[%s4021 + $0x10] sm:$0xf]
        %v4027 = vld [vmem:[%s4021 + $0x14] sm:$0xf]
        %v4028 = vld [vmem:[%s4021 + $0x18] sm:$0xf]
        %v4029 = vld [vmem:[%s4021 + $0x1c] sm:$0xf]
        %s4030 = scalar_lea.vmem %s1304, 640 [#allocation3]
        %v4031 = vld [vmem:[%s4030] sm:$0xff]
        %v4032 = vld [vmem:[%s4030 + $0x8] sm:$0xff]
        %v4033 = vld [vmem:[%s4030 + $0x10] sm:$0xff]
        %v4034 = vld [vmem:[%s4030 + $0x18] sm:$0xff]
        %v4035 = vld [vmem:[%s4030 + $0x20] sm:$0xff]
        %v4036 = vld [vmem:[%s4030 + $0x28] sm:$0xff]
        %v4037 = vld [vmem:[%s4030 + $0x30] sm:$0xff]
        %v4038 = vld [vmem:[%s4030 + $0x38] sm:$0xff]
        %4040 = vset.pattern.permute.xlu0 0
        %4041 = vperm.xlu0 %4040, %v4031
        %v4042 = vpop.permute.xlu0 %4041
        %4045 = vset.pattern.permute.xlu0 0
        %4046 = vperm.xlu0 %4045, %v4032
        %v4047 = vpop.permute.xlu0 %4046
        %4050 = vset.pattern.permute.xlu0 0
        %4051 = vperm.xlu0 %4050, %v4033
        %v4052 = vpop.permute.xlu0 %4051
        %4055 = vset.pattern.permute.xlu0 0
        %4056 = vperm.xlu0 %4055, %v4034
        %v4057 = vpop.permute.xlu0 %4056
        %4060 = vset.pattern.permute.xlu0 0
        %4061 = vperm.xlu0 %4060, %v4035
        %v4062 = vpop.permute.xlu0 %4061
        %4065 = vset.pattern.permute.xlu0 0
        %4066 = vperm.xlu0 %4065, %v4036
        %v4067 = vpop.permute.xlu0 %4066
        %4070 = vset.pattern.permute.xlu0 0
        %4071 = vperm.xlu0 %4070, %v4037
        %v4072 = vpop.permute.xlu0 %4071
        %4075 = vset.pattern.permute.xlu0 0
        %4076 = vperm.xlu0 %4075, %v4038
        %v4077 = vpop.permute.xlu0 %4076
        %v4079 = vmul.f32 %v4042, %v1403
        %v4080 = vmul.f32 %v4047, %v1403
        %v4081 = vmul.f32 %v4052, %v1403
        %v4082 = vmul.f32 %v4057, %v1403
        %v4083 = vmul.f32 %v4062, %v1403
        %v4084 = vmul.f32 %v4067, %v1403
        %v4085 = vmul.f32 %v4072, %v1403
        %v4086 = vmul.f32 %v4077, %v1403
        %v4095 = vunpack.c.l.b16 %v4022
        %v4096 = vunpack.c.l.b16 %v4023
        %v4097 = vunpack.c.l.b16 %v4024
        %v4098 = vunpack.c.l.b16 %v4025
        %v4099 = vunpack.c.l.b16 %v4026
        %v4100 = vunpack.c.l.b16 %v4027
        %v4101 = vunpack.c.l.b16 %v4028
        %v4102 = vunpack.c.l.b16 %v4029
        %v4103 = vpack.c.b16 %v4096, %v4095
        %v4104 = vpack.c.b16 %v4098, %v4097
        %v4105 = vpack.c.b16 %v4100, %v4099
        %v4106 = vpack.c.b16 %v4102, %v4101
        %v4108 = vsel %vm1432, %v4103, 0
        %v4111 = vsel %vm1432, %v4104, 0
        %v4114 = vsel %vm1432, %v4105, 0
        %v4117 = vsel %vm1432, %v4106, 0
        %4119 = vmatprep.subr.bf16.mxu0 0
        %4120 = vmatpush1.bf16.msra.mxu0 %v1447
        %4121 = vmatprep.subr.bf16.mxu0 0
        %4122 = vmatpush1.bf16.msra.mxu0 0
        %4123 = vmatprep.subr.bf16.mxu0 0
        %4124 = vmatpush1.bf16.msra.mxu0 0
        %4125 = vmatprep.subr.bf16.mxu0 0
        %4126 = vmatpush1.bf16.msra.mxu0 0
        %4127 = vmatprep.subr.bf16.mxu0 0
        %4128 = vmatpush1.bf16.msra.mxu0 0
        %4129 = vmatprep.subr.bf16.mxu0 0
        %4130 = vmatpush1.bf16.msra.mxu0 0
        %4131 = vmatprep.subr.bf16.mxu0 0
        %4132 = vmatpush1.bf16.msra.mxu0 0
        %4133 = vmatprep.subr.bf16.mxu0 0
        %4134 = vmatpush1.bf16.msra.mxu0 0
        %4135 = vmatprep.subr.bf16.mxu0 0
        %4136 = vmatpush1.bf16.msra.mxu0 0
        %4137 = vmatprep.subr.bf16.mxu0 0
        %4138 = vmatpush1.bf16.msra.mxu0 0
        %4139 = vmatprep.subr.bf16.mxu0 0
        %4140 = vmatpush1.bf16.msra.mxu0 0
        %4141 = vmatprep.subr.bf16.mxu0 0
        %4142 = vmatpush1.bf16.msra.mxu0 0
        %4143 = vmatprep.subr.bf16.mxu0 0
        %4144 = vmatpush1.bf16.msra.mxu0 0
        %4145 = vmatprep.subr.bf16.mxu0 0
        %4146 = vmatpush1.bf16.msra.mxu0 0
        %4147 = vmatprep.subr.bf16.mxu0 0
        %4148 = vmatpush1.bf16.msra.mxu0 0
        %4149 = vmatprep.subr.bf16.mxu0 0
        %4150 = vmatpush1.bf16.msra.mxu0 0
        %4151 = vmatprep.mubr.bf16.mxu0 0
        %4152 = vmatmul.mubr.bf16.gmra.mrb[0].mxu0 %v4108
        %v4153 = vpop.f32.mrb[0].mxu0
        %v4154 = vadd.f32 %v4079, %v4153
        %v4155 = vpop.f32.mrb[0].mxu0
        %v4156 = vpop.f32.mrb[0].mxu0
        %v4157 = vadd.f32 %v4080, %v4156
        %v4158 = vpop.f32.mrb[0].mxu0
        %4159 = vmatprep.mubr.bf16.mxu0 0
        %4160 = vmatmul.mubr.bf16.gmra.mrb[0].mxu0 %v4111
        %v4161 = vpop.f32.mrb[0].mxu0
        %v4162 = vadd.f32 %v4081, %v4161
        %v4163 = vpop.f32.mrb[0].mxu0
        %v4164 = vpop.f32.mrb[0].mxu0
        %v4165 = vadd.f32 %v4082, %v4164
        %v4166 = vpop.f32.mrb[0].mxu0
        %4167 = vmatprep.mubr.bf16.mxu0 0
        %4168 = vmatmul.mubr.bf16.gmra.mrb[0].mxu0 %v4114
        %v4169 = vpop.f32.mrb[0].mxu0
        %v4170 = vadd.f32 %v4083, %v4169
        %v4171 = vpop.f32.mrb[0].mxu0
        %v4172 = vpop.f32.mrb[0].mxu0
        %v4173 = vadd.f32 %v4084, %v4172
        %v4174 = vpop.f32.mrb[0].mxu0
        %4175 = vmatprep.mubr.bf16.mxu0 0
        %4176 = vmatmul.mubr.bf16.gmra.mrb[0].mxu0 %v4117
        %v4177 = vpop.f32.mrb[0].mxu0
        %v4178 = vadd.f32 %v4085, %v4177
        %v4179 = vpop.f32.mrb[0].mxu0
        %v4180 = vpop.f32.mrb[0].mxu0
        %v4181 = vadd.f32 %v4086, %v4180
        %v4182 = vpop.f32.mrb[0].mxu0
        %4183 = vdwg.mxu0
        %4184 = vset.pattern.permute.xlu0 1
        %4185 = vperm.xlu0 %4184, %v4031
        %v4186 = vpop.permute.xlu0 %4185
        %4188 = vset.pattern.permute.xlu0 1
        %4189 = vperm.xlu0 %4188, %v4032
        %v4190 = vpop.permute.xlu0 %4189
        %4192 = vset.pattern.permute.xlu0 1
        %4193 = vperm.xlu0 %4192, %v4033
        %v4194 = vpop.permute.xlu0 %4193
        %4196 = vset.pattern.permute.xlu0 1
        %4197 = vperm.xlu0 %4196, %v4034
        %v4198 = vpop.permute.xlu0 %4197
        %4200 = vset.pattern.permute.xlu0 1
        %4201 = vperm.xlu0 %4200, %v4035
        %v4202 = vpop.permute.xlu0 %4201
        %4204 = vset.pattern.permute.xlu0 1
        %4205 = vperm.xlu0 %4204, %v4036
        %v4206 = vpop.permute.xlu0 %4205
        %4208 = vset.pattern.permute.xlu0 1
        %4209 = vperm.xlu0 %4208, %v4037
        %v4210 = vpop.permute.xlu0 %4209
        %4212 = vset.pattern.permute.xlu0 1
        %4213 = vperm.xlu0 %4212, %v4038
        %v4214 = vpop.permute.xlu0 %4213
        %v4216 = vmul.f32 %v4186, %v1549
        %v4217 = vmul.f32 %v4190, %v1549
        %v4218 = vmul.f32 %v4194, %v1549
        %v4219 = vmul.f32 %v4198, %v1549
        %v4220 = vmul.f32 %v4202, %v1549
        %v4221 = vmul.f32 %v4206, %v1549
        %v4222 = vmul.f32 %v4210, %v1549
        %v4223 = vmul.f32 %v4214, %v1549
        %v4224 = vadd.f32 %v4154, %v4216
        %v4225 = vadd.f32 %v4157, %v4217
        %v4226 = vadd.f32 %v4162, %v4218
        %v4227 = vadd.f32 %v4165, %v4219
        %v4228 = vadd.f32 %v4170, %v4220
        %v4229 = vadd.f32 %v4173, %v4221
        %v4230 = vadd.f32 %v4178, %v4222
        %v4231 = vadd.f32 %v4181, %v4223
        %4232 = vset.pattern.permute.xlu0 2
        %4233 = vperm.xlu0 %4232, %v4031
        %v4234 = vpop.permute.xlu0 %4233
        %4236 = vset.pattern.permute.xlu0 2
        %4237 = vperm.xlu0 %4236, %v4032
        %v4238 = vpop.permute.xlu0 %4237
        %4240 = vset.pattern.permute.xlu0 2
        %4241 = vperm.xlu0 %4240, %v4033
        %v4242 = vpop.permute.xlu0 %4241
        %4244 = vset.pattern.permute.xlu0 2
        %4245 = vperm.xlu0 %4244, %v4034
        %v4246 = vpop.permute.xlu0 %4245
        %4248 = vset.pattern.permute.xlu0 2
        %4249 = vperm.xlu0 %4248, %v4035
        %v4250 = vpop.permute.xlu0 %4249
        %4252 = vset.pattern.permute.xlu0 2
        %4253 = vperm.xlu0 %4252, %v4036
        %v4254 = vpop.permute.xlu0 %4253
        %4256 = vset.pattern.permute.xlu0 2
        %4257 = vperm.xlu0 %4256, %v4037
        %v4258 = vpop.permute.xlu0 %4257
        %4260 = vset.pattern.permute.xlu0 2
        %4261 = vperm.xlu0 %4260, %v4038
        %v4262 = vpop.permute.xlu0 %4261
        %v4264 = vmul.f32 %v4234, %v1601
        %v4265 = vmul.f32 %v4238, %v1601
        %v4266 = vmul.f32 %v4242, %v1601
        %v4267 = vmul.f32 %v4246, %v1601
        %v4268 = vmul.f32 %v4250, %v1601
        %v4269 = vmul.f32 %v4254, %v1601
        %v4270 = vmul.f32 %v4258, %v1601
        %v4271 = vmul.f32 %v4262, %v1601
        %v4272 = vadd.f32 %v4224, %v4264
        %v4273 = vadd.f32 %v4225, %v4265
        %v4274 = vadd.f32 %v4226, %v4266
        %v4275 = vadd.f32 %v4227, %v4267
        %v4276 = vadd.f32 %v4228, %v4268
        %v4277 = vadd.f32 %v4229, %v4269
        %v4278 = vadd.f32 %v4230, %v4270
        %v4279 = vadd.f32 %v4231, %v4271
        %v4280 = vmax.f32 %v4013, %v4272
        %v4281 = vmax.f32 %v4014, %v4273
        %v4282 = vmax.f32 %v4015, %v4274
        %v4283 = vmax.f32 %v4016, %v4275
        %v4284 = vmax.f32 %v4017, %v4276
        %v4285 = vmax.f32 %v4018, %v4277
        %v4286 = vmax.f32 %v4019, %v4278
        %v4287 = vmax.f32 %v4020, %v4279
        %s4288 = scalar_lea.vmem %s1297, 352 [#allocation2]
        %v4289 = vld [vmem:[%s4288] sm:$0xf]
        %v4290 = vld [vmem:[%s4288 + $0x4] sm:$0xf]
        %v4291 = vld [vmem:[%s4288 + $0x8] sm:$0xf]
        %v4292 = vld [vmem:[%s4288 + $0xc] sm:$0xf]
        %v4293 = vld [vmem:[%s4288 + $0x10] sm:$0xf]
        %v4294 = vld [vmem:[%s4288 + $0x14] sm:$0xf]
        %v4295 = vld [vmem:[%s4288 + $0x18] sm:$0xf]
        %v4296 = vld [vmem:[%s4288 + $0x1c] sm:$0xf]
        %s4297 = scalar_lea.vmem %s1304, 704 [#allocation3]
        %v4298 = vld [vmem:[%s4297] sm:$0xff]
        %v4299 = vld [vmem:[%s4297 + $0x8] sm:$0xff]
        %v4300 = vld [vmem:[%s4297 + $0x10] sm:$0xff]
        %v4301 = vld [vmem:[%s4297 + $0x18] sm:$0xff]
        %v4302 = vld [vmem:[%s4297 + $0x20] sm:$0xff]
        %v4303 = vld [vmem:[%s4297 + $0x28] sm:$0xff]
        %v4304 = vld [vmem:[%s4297 + $0x30] sm:$0xff]
        %v4305 = vld [vmem:[%s4297 + $0x38] sm:$0xff]
        %4307 = vset.pattern.permute.xlu0 0
        %4308 = vperm.xlu0 %4307, %v4298
        %v4309 = vpop.permute.xlu0 %4308
        %4312 = vset.pattern.permute.xlu0 0
        %4313 = vperm.xlu0 %4312, %v4299
        %v4314 = vpop.permute.xlu0 %4313
        %4317 = vset.pattern.permute.xlu0 0
        %4318 = vperm.xlu0 %4317, %v4300
        %v4319 = vpop.permute.xlu0 %4318
        %4322 = vset.pattern.permute.xlu0 0
        %4323 = vperm.xlu0 %4322, %v4301
        %v4324 = vpop.permute.xlu0 %4323
        %4327 = vset.pattern.permute.xlu0 0
        %4328 = vperm.xlu0 %4327, %v4302
        %v4329 = vpop.permute.xlu0 %4328
        %4332 = vset.pattern.permute.xlu0 0
        %4333 = vperm.xlu0 %4332, %v4303
        %v4334 = vpop.permute.xlu0 %4333
        %4337 = vset.pattern.permute.xlu0 0
        %4338 = vperm.xlu0 %4337, %v4304
        %v4339 = vpop.permute.xlu0 %4338
        %4342 = vset.pattern.permute.xlu0 0
        %4343 = vperm.xlu0 %4342, %v4305
        %v4344 = vpop.permute.xlu0 %4343
        %v4346 = vmul.f32 %v4309, %v1403
        %v4347 = vmul.f32 %v4314, %v1403
        %v4348 = vmul.f32 %v4319, %v1403
        %v4349 = vmul.f32 %v4324, %v1403
        %v4350 = vmul.f32 %v4329, %v1403
        %v4351 = vmul.f32 %v4334, %v1403
        %v4352 = vmul.f32 %v4339, %v1403
        %v4353 = vmul.f32 %v4344, %v1403
        %v4362 = vunpack.c.l.b16 %v4289
        %v4363 = vunpack.c.l.b16 %v4290
        %v4364 = vunpack.c.l.b16 %v4291
        %v4365 = vunpack.c.l.b16 %v4292
        %v4366 = vunpack.c.l.b16 %v4293
        %v4367 = vunpack.c.l.b16 %v4294
        %v4368 = vunpack.c.l.b16 %v4295
        %v4369 = vunpack.c.l.b16 %v4296
        %v4370 = vpack.c.b16 %v4363, %v4362
        %v4371 = vpack.c.b16 %v4365, %v4364
        %v4372 = vpack.c.b16 %v4367, %v4366
        %v4373 = vpack.c.b16 %v4369, %v4368
        %v4375 = vsel %vm1432, %v4370, 0
        %v4378 = vsel %vm1432, %v4371, 0
        %v4381 = vsel %vm1432, %v4372, 0
        %v4384 = vsel %vm1432, %v4373, 0
        %4386 = vmatprep.subr.bf16.mxu0 0
        %4387 = vmatpush1.bf16.msra.mxu0 %v1447
        %4388 = vmatprep.subr.bf16.mxu0 0
        %4389 = vmatpush1.bf16.msra.mxu0 0
        %4390 = vmatprep.subr.bf16.mxu0 0
        %4391 = vmatpush1.bf16.msra.mxu0 0
        %4392 = vmatprep.subr.bf16.mxu0 0
        %4393 = vmatpush1.bf16.msra.mxu0 0
        %4394 = vmatprep.subr.bf16.mxu0 0
        %4395 = vmatpush1.bf16.msra.mxu0 0
        %4396 = vmatprep.subr.bf16.mxu0 0
        %4397 = vmatpush1.bf16.msra.mxu0 0
        %4398 = vmatprep.subr.bf16.mxu0 0
        %4399 = vmatpush1.bf16.msra.mxu0 0
        %4400 = vmatprep.subr.bf16.mxu0 0
        %4401 = vmatpush1.bf16.msra.mxu0 0
        %4402 = vmatprep.subr.bf16.mxu0 0
        %4403 = vmatpush1.bf16.msra.mxu0 0
        %4404 = vmatprep.subr.bf16.mxu0 0
        %4405 = vmatpush1.bf16.msra.mxu0 0
        %4406 = vmatprep.subr.bf16.mxu0 0
        %4407 = vmatpush1.bf16.msra.mxu0 0
        %4408 = vmatprep.subr.bf16.mxu0 0
        %4409 = vmatpush1.bf16.msra.mxu0 0
        %4410 = vmatprep.subr.bf16.mxu0 0
        %4411 = vmatpush1.bf16.msra.mxu0 0
        %4412 = vmatprep.subr.bf16.mxu0 0
        %4413 = vmatpush1.bf16.msra.mxu0 0
        %4414 = vmatprep.subr.bf16.mxu0 0
        %4415 = vmatpush1.bf16.msra.mxu0 0
        %4416 = vmatprep.subr.bf16.mxu0 0
        %4417 = vmatpush1.bf16.msra.mxu0 0
        %4418 = vmatprep.mubr.bf16.mxu0 0
        %4419 = vmatmul.mubr.bf16.gmra.mrb[0].mxu0 %v4375
        %v4420 = vpop.f32.mrb[0].mxu0
        %v4421 = vadd.f32 %v4346, %v4420
        %v4422 = vpop.f32.mrb[0].mxu0
        %v4423 = vpop.f32.mrb[0].mxu0
        %v4424 = vadd.f32 %v4347, %v4423
        %v4425 = vpop.f32.mrb[0].mxu0
        %4426 = vmatprep.mubr.bf16.mxu0 0
        %4427 = vmatmul.mubr.bf16.gmra.mrb[0].mxu0 %v4378
        %v4428 = vpop.f32.mrb[0].mxu0
        %v4429 = vadd.f32 %v4348, %v4428
        %v4430 = vpop.f32.mrb[0].mxu0
        %v4431 = vpop.f32.mrb[0].mxu0
        %v4432 = vadd.f32 %v4349, %v4431
        %v4433 = vpop.f32.mrb[0].mxu0
        %4434 = vmatprep.mubr.bf16.mxu0 0
        %4435 = vmatmul.mubr.bf16.gmra.mrb[0].mxu0 %v4381
        %v4436 = vpop.f32.mrb[0].mxu0
        %v4437 = vadd.f32 %v4350, %v4436
        %v4438 = vpop.f32.mrb[0].mxu0
        %v4439 = vpop.f32.mrb[0].mxu0
        %v4440 = vadd.f32 %v4351, %v4439
        %v4441 = vpop.f32.mrb[0].mxu0
        %4442 = vmatprep.mubr.bf16.mxu0 0
        %4443 = vmatmul.mubr.bf16.gmra.mrb[0].mxu0 %v4384
        %v4444 = vpop.f32.mrb[0].mxu0
        %v4445 = vadd.f32 %v4352, %v4444
        %v4446 = vpop.f32.mrb[0].mxu0
        %v4447 = vpop.f32.mrb[0].mxu0
        %v4448 = vadd.f32 %v4353, %v4447
        %v4449 = vpop.f32.mrb[0].mxu0
        %4450 = vdwg.mxu0
        %4451 = vset.pattern.permute.xlu0 1
        %4452 = vperm.xlu0 %4451, %v4298
        %v4453 = vpop.permute.xlu0 %4452
        %4455 = vset.pattern.permute.xlu0 1
        %4456 = vperm.xlu0 %4455, %v4299
        %v4457 = vpop.permute.xlu0 %4456
        %4459 = vset.pattern.permute.xlu0 1
        %4460 = vperm.xlu0 %4459, %v4300
        %v4461 = vpop.permute.xlu0 %4460
        %4463 = vset.pattern.permute.xlu0 1
        %4464 = vperm.xlu0 %4463, %v4301
        %v4465 = vpop.permute.xlu0 %4464
        %4467 = vset.pattern.permute.xlu0 1
        %4468 = vperm.xlu0 %4467, %v4302
        %v4469 = vpop.permute.xlu0 %4468
        %4471 = vset.pattern.permute.xlu0 1
        %4472 = vperm.xlu0 %4471, %v4303
        %v4473 = vpop.permute.xlu0 %4472
        %4475 = vset.pattern.permute.xlu0 1
        %4476 = vperm.xlu0 %4475, %v4304
        %v4477 = vpop.permute.xlu0 %4476
        %4479 = vset.pattern.permute.xlu0 1
        %4480 = vperm.xlu0 %4479, %v4305
        %v4481 = vpop.permute.xlu0 %4480
        %v4483 = vmul.f32 %v4453, %v1549
        %v4484 = vmul.f32 %v4457, %v1549
        %v4485 = vmul.f32 %v4461, %v1549
        %v4486 = vmul.f32 %v4465, %v1549
        %v4487 = vmul.f32 %v4469, %v1549
        %v4488 = vmul.f32 %v4473, %v1549
        %v4489 = vmul.f32 %v4477, %v1549
        %v4490 = vmul.f32 %v4481, %v1549
        %v4491 = vadd.f32 %v4421, %v4483
        %v4492 = vadd.f32 %v4424, %v4484
        %v4493 = vadd.f32 %v4429, %v4485
        %v4494 = vadd.f32 %v4432, %v4486
        %v4495 = vadd.f32 %v4437, %v4487
        %v4496 = vadd.f32 %v4440, %v4488
        %v4497 = vadd.f32 %v4445, %v4489
        %v4498 = vadd.f32 %v4448, %v4490
        %4499 = vset.pattern.permute.xlu0 2
        %4500 = vperm.xlu0 %4499, %v4298
        %v4501 = vpop.permute.xlu0 %4500
        %4503 = vset.pattern.permute.xlu0 2
        %4504 = vperm.xlu0 %4503, %v4299
        %v4505 = vpop.permute.xlu0 %4504
        %4507 = vset.pattern.permute.xlu0 2
        %4508 = vperm.xlu0 %4507, %v4300
        %v4509 = vpop.permute.xlu0 %4508
        %4511 = vset.pattern.permute.xlu0 2
        %4512 = vperm.xlu0 %4511, %v4301
        %v4513 = vpop.permute.xlu0 %4512
        %4515 = vset.pattern.permute.xlu0 2
        %4516 = vperm.xlu0 %4515, %v4302
        %v4517 = vpop.permute.xlu0 %4516
        %4519 = vset.pattern.permute.xlu0 2
        %4520 = vperm.xlu0 %4519, %v4303
        %v4521 = vpop.permute.xlu0 %4520
        %4523 = vset.pattern.permute.xlu0 2
        %4524 = vperm.xlu0 %4523, %v4304
        %v4525 = vpop.permute.xlu0 %4524
        %4527 = vset.pattern.permute.xlu0 2
        %4528 = vperm.xlu0 %4527, %v4305
        %v4529 = vpop.permute.xlu0 %4528
        %v4531 = vmul.f32 %v4501, %v1601
        %v4532 = vmul.f32 %v4505, %v1601
        %v4533 = vmul.f32 %v4509, %v1601
        %v4534 = vmul.f32 %v4513, %v1601
        %v4535 = vmul.f32 %v4517, %v1601
        %v4536 = vmul.f32 %v4521, %v1601
        %v4537 = vmul.f32 %v4525, %v1601
        %v4538 = vmul.f32 %v4529, %v1601
        %v4539 = vadd.f32 %v4491, %v4531
        %v4540 = vadd.f32 %v4492, %v4532
        %v4541 = vadd.f32 %v4493, %v4533
        %v4542 = vadd.f32 %v4494, %v4534
        %v4543 = vadd.f32 %v4495, %v4535
        %v4544 = vadd.f32 %v4496, %v4536
        %v4545 = vadd.f32 %v4497, %v4537
        %v4546 = vadd.f32 %v4498, %v4538
        %v4547 = vmax.f32 %v4280, %v4539
        %v4548 = vmax.f32 %v4281, %v4540
        %v4549 = vmax.f32 %v4282, %v4541
        %v4550 = vmax.f32 %v4283, %v4542
        %v4551 = vmax.f32 %v4284, %v4543
        %v4552 = vmax.f32 %v4285, %v4544
        %v4553 = vmax.f32 %v4286, %v4545
        %v4554 = vmax.f32 %v4287, %v4546
        %s4555 = scalar_lea.vmem %s1297, 384 [#allocation2]
        %v4556 = vld [vmem:[%s4555] sm:$0xf]
        %v4557 = vld [vmem:[%s4555 + $0x4] sm:$0xf]
        %v4558 = vld [vmem:[%s4555 + $0x8] sm:$0xf]
        %v4559 = vld [vmem:[%s4555 + $0xc] sm:$0xf]
        %v4560 = vld [vmem:[%s4555 + $0x10] sm:$0xf]
        %v4561 = vld [vmem:[%s4555 + $0x14] sm:$0xf]
        %v4562 = vld [vmem:[%s4555 + $0x18] sm:$0xf]
        %v4563 = vld [vmem:[%s4555 + $0x1c] sm:$0xf]
        %s4564 = scalar_lea.vmem %s1304, 768 [#allocation3]
        %v4565 = vld [vmem:[%s4564] sm:$0xff]
        %v4566 = vld [vmem:[%s4564 + $0x8] sm:$0xff]
        %v4567 = vld [vmem:[%s4564 + $0x10] sm:$0xff]
        %v4568 = vld [vmem:[%s4564 + $0x18] sm:$0xff]
        %v4569 = vld [vmem:[%s4564 + $0x20] sm:$0xff]
        %v4570 = vld [vmem:[%s4564 + $0x28] sm:$0xff]
        %v4571 = vld [vmem:[%s4564 + $0x30] sm:$0xff]
        %v4572 = vld [vmem:[%s4564 + $0x38] sm:$0xff]
        %4574 = vset.pattern.permute.xlu0 0
        %4575 = vperm.xlu0 %4574, %v4565
        %v4576 = vpop.permute.xlu0 %4575
        %4579 = vset.pattern.permute.xlu0 0
        %4580 = vperm.xlu0 %4579, %v4566
        %v4581 = vpop.permute.xlu0 %4580
        %4584 = vset.pattern.permute.xlu0 0
        %4585 = vperm.xlu0 %4584, %v4567
        %v4586 = vpop.permute.xlu0 %4585
        %4589 = vset.pattern.permute.xlu0 0
        %4590 = vperm.xlu0 %4589, %v4568
        %v4591 = vpop.permute.xlu0 %4590
        %4594 = vset.pattern.permute.xlu0 0
        %4595 = vperm.xlu0 %4594, %v4569
        %v4596 = vpop.permute.xlu0 %4595
        %4599 = vset.pattern.permute.xlu0 0
        %4600 = vperm.xlu0 %4599, %v4570
        %v4601 = vpop.permute.xlu0 %4600
        %4604 = vset.pattern.permute.xlu0 0
        %4605 = vperm.xlu0 %4604, %v4571
        %v4606 = vpop.permute.xlu0 %4605
        %4609 = vset.pattern.permute.xlu0 0
        %4610 = vperm.xlu0 %4609, %v4572
        %v4611 = vpop.permute.xlu0 %4610
        %v4613 = vmul.f32 %v4576, %v1403
        %v4614 = vmul.f32 %v4581, %v1403
        %v4615 = vmul.f32 %v4586, %v1403
        %v4616 = vmul.f32 %v4591, %v1403
        %v4617 = vmul.f32 %v4596, %v1403
        %v4618 = vmul.f32 %v4601, %v1403
        %v4619 = vmul.f32 %v4606, %v1403
        %v4620 = vmul.f32 %v4611, %v1403
        %v4629 = vunpack.c.l.b16 %v4556
        %v4630 = vunpack.c.l.b16 %v4557
        %v4631 = vunpack.c.l.b16 %v4558
        %v4632 = vunpack.c.l.b16 %v4559
        %v4633 = vunpack.c.l.b16 %v4560
        %v4634 = vunpack.c.l.b16 %v4561
        %v4635 = vunpack.c.l.b16 %v4562
        %v4636 = vunpack.c.l.b16 %v4563
        %v4637 = vpack.c.b16 %v4630, %v4629
        %v4638 = vpack.c.b16 %v4632, %v4631
        %v4639 = vpack.c.b16 %v4634, %v4633
        %v4640 = vpack.c.b16 %v4636, %v4635
        %v4642 = vsel %vm1432, %v4637, 0
        %v4645 = vsel %vm1432, %v4638, 0
        %v4648 = vsel %vm1432, %v4639, 0
        %v4651 = vsel %vm1432, %v4640, 0
        %4653 = vmatprep.subr.bf16.mxu0 0
        %4654 = vmatpush1.bf16.msra.mxu0 %v1447
        %4655 = vmatprep.subr.bf16.mxu0 0
        %4656 = vmatpush1.bf16.msra.mxu0 0
        %4657 = vmatprep.subr.bf16.mxu0 0
        %4658 = vmatpush1.bf16.msra.mxu0 0
        %4659 = vmatprep.subr.bf16.mxu0 0
        %4660 = vmatpush1.bf16.msra.mxu0 0
        %4661 = vmatprep.subr.bf16.mxu0 0
        %4662 = vmatpush1.bf16.msra.mxu0 0
        %4663 = vmatprep.subr.bf16.mxu0 0
        %4664 = vmatpush1.bf16.msra.mxu0 0
        %4665 = vmatprep.subr.bf16.mxu0 0
        %4666 = vmatpush1.bf16.msra.mxu0 0
        %4667 = vmatprep.subr.bf16.mxu0 0
        %4668 = vmatpush1.bf16.msra.mxu0 0
        %4669 = vmatprep.subr.bf16.mxu0 0
        %4670 = vmatpush1.bf16.msra.mxu0 0
        %4671 = vmatprep.subr.bf16.mxu0 0
        %4672 = vmatpush1.bf16.msra.mxu0 0
        %4673 = vmatprep.subr.bf16.mxu0 0
        %4674 = vmatpush1.bf16.msra.mxu0 0
        %4675 = vmatprep.subr.bf16.mxu0 0
        %4676 = vmatpush1.bf16.msra.mxu0 0
        %4677 = vmatprep.subr.bf16.mxu0 0
        %4678 = vmatpush1.bf16.msra.mxu0 0
        %4679 = vmatprep.subr.bf16.mxu0 0
        %4680 = vmatpush1.bf16.msra.mxu0 0
        %4681 = vmatprep.subr.bf16.mxu0 0
        %4682 = vmatpush1.bf16.msra.mxu0 0
        %4683 = vmatprep.subr.bf16.mxu0 0
        %4684 = vmatpush1.bf16.msra.mxu0 0
        %4685 = vmatprep.mubr.bf16.mxu0 0
        %4686 = vmatmul.mubr.bf16.gmra.mrb[0].mxu0 %v4642
        %v4687 = vpop.f32.mrb[0].mxu0
        %v4688 = vadd.f32 %v4613, %v4687
        %v4689 = vpop.f32.mrb[0].mxu0
        %v4690 = vpop.f32.mrb[0].mxu0
        %v4691 = vadd.f32 %v4614, %v4690
        %v4692 = vpop.f32.mrb[0].mxu0
        %4693 = vmatprep.mubr.bf16.mxu0 0
        %4694 = vmatmul.mubr.bf16.gmra.mrb[0].mxu0 %v4645
        %v4695 = vpop.f32.mrb[0].mxu0
        %v4696 = vadd.f32 %v4615, %v4695
        %v4697 = vpop.f32.mrb[0].mxu0
        %v4698 = vpop.f32.mrb[0].mxu0
        %v4699 = vadd.f32 %v4616, %v4698
        %v4700 = vpop.f32.mrb[0].mxu0
        %4701 = vmatprep.mubr.bf16.mxu0 0
        %4702 = vmatmul.mubr.bf16.gmra.mrb[0].mxu0 %v4648
        %v4703 = vpop.f32.mrb[0].mxu0
        %v4704 = vadd.f32 %v4617, %v4703
        %v4705 = vpop.f32.mrb[0].mxu0
        %v4706 = vpop.f32.mrb[0].mxu0
        %v4707 = vadd.f32 %v4618, %v4706
        %v4708 = vpop.f32.mrb[0].mxu0
        %4709 = vmatprep.mubr.bf16.mxu0 0
        %4710 = vmatmul.mubr.bf16.gmra.mrb[0].mxu0 %v4651
        %v4711 = vpop.f32.mrb[0].mxu0
        %v4712 = vadd.f32 %v4619, %v4711
        %v4713 = vpop.f32.mrb[0].mxu0
        %v4714 = vpop.f32.mrb[0].mxu0
        %v4715 = vadd.f32 %v4620, %v4714
        %v4716 = vpop.f32.mrb[0].mxu0
        %4717 = vdwg.mxu0
        %4718 = vset.pattern.permute.xlu0 1
        %4719 = vperm.xlu0 %4718, %v4565
        %v4720 = vpop.permute.xlu0 %4719
        %4722 = vset.pattern.permute.xlu0 1
        %4723 = vperm.xlu0 %4722, %v4566
        %v4724 = vpop.permute.xlu0 %4723
        %4726 = vset.pattern.permute.xlu0 1
        %4727 = vperm.xlu0 %4726, %v4567
        %v4728 = vpop.permute.xlu0 %4727
        %4730 = vset.pattern.permute.xlu0 1
        %4731 = vperm.xlu0 %4730, %v4568
        %v4732 = vpop.permute.xlu0 %4731
        %4734 = vset.pattern.permute.xlu0 1
        %4735 = vperm.xlu0 %4734, %v4569
        %v4736 = vpop.permute.xlu0 %4735
        %4738 = vset.pattern.permute.xlu0 1
        %4739 = vperm.xlu0 %4738, %v4570
        %v4740 = vpop.permute.xlu0 %4739
        %4742 = vset.pattern.permute.xlu0 1
        %4743 = vperm.xlu0 %4742, %v4571
        %v4744 = vpop.permute.xlu0 %4743
        %4746 = vset.pattern.permute.xlu0 1
        %4747 = vperm.xlu0 %4746, %v4572
        %v4748 = vpop.permute.xlu0 %4747
        %v4750 = vmul.f32 %v4720, %v1549
        %v4751 = vmul.f32 %v4724, %v1549
        %v4752 = vmul.f32 %v4728, %v1549
        %v4753 = vmul.f32 %v4732, %v1549
        %v4754 = vmul.f32 %v4736, %v1549
        %v4755 = vmul.f32 %v4740, %v1549
        %v4756 = vmul.f32 %v4744, %v1549
        %v4757 = vmul.f32 %v4748, %v1549
        %v4758 = vadd.f32 %v4688, %v4750
        %v4759 = vadd.f32 %v4691, %v4751
        %v4760 = vadd.f32 %v4696, %v4752
        %v4761 = vadd.f32 %v4699, %v4753
        %v4762 = vadd.f32 %v4704, %v4754
        %v4763 = vadd.f32 %v4707, %v4755
        %v4764 = vadd.f32 %v4712, %v4756
        %v4765 = vadd.f32 %v4715, %v4757
        %4766 = vset.pattern.permute.xlu0 2
        %4767 = vperm.xlu0 %4766, %v4565
        %v4768 = vpop.permute.xlu0 %4767
        %4770 = vset.pattern.permute.xlu0 2
        %4771 = vperm.xlu0 %4770, %v4566
        %v4772 = vpop.permute.xlu0 %4771
        %4774 = vset.pattern.permute.xlu0 2
        %4775 = vperm.xlu0 %4774, %v4567
        %v4776 = vpop.permute.xlu0 %4775
        %4778 = vset.pattern.permute.xlu0 2
        %4779 = vperm.xlu0 %4778, %v4568
        %v4780 = vpop.permute.xlu0 %4779
        %4782 = vset.pattern.permute.xlu0 2
        %4783 = vperm.xlu0 %4782, %v4569
        %v4784 = vpop.permute.xlu0 %4783
        %4786 = vset.pattern.permute.xlu0 2
        %4787 = vperm.xlu0 %4786, %v4570
        %v4788 = vpop.permute.xlu0 %4787
        %4790 = vset.pattern.permute.xlu0 2
        %4791 = vperm.xlu0 %4790, %v4571
        %v4792 = vpop.permute.xlu0 %4791
        %4794 = vset.pattern.permute.xlu0 2
        %4795 = vperm.xlu0 %4794, %v4572
        %v4796 = vpop.permute.xlu0 %4795
        %v4798 = vmul.f32 %v4768, %v1601
        %v4799 = vmul.f32 %v4772, %v1601
        %v4800 = vmul.f32 %v4776, %v1601
        %v4801 = vmul.f32 %v4780, %v1601
        %v4802 = vmul.f32 %v4784, %v1601
        %v4803 = vmul.f32 %v4788, %v1601
        %v4804 = vmul.f32 %v4792, %v1601
        %v4805 = vmul.f32 %v4796, %v1601
        %v4806 = vadd.f32 %v4758, %v4798
        %v4807 = vadd.f32 %v4759, %v4799
        %v4808 = vadd.f32 %v4760, %v4800
        %v4809 = vadd.f32 %v4761, %v4801
        %v4810 = vadd.f32 %v4762, %v4802
        %v4811 = vadd.f32 %v4763, %v4803
        %v4812 = vadd.f32 %v4764, %v4804
        %v4813 = vadd.f32 %v4765, %v4805
        %v4814 = vmax.f32 %v4547, %v4806
        %v4815 = vmax.f32 %v4548, %v4807
        %v4816 = vmax.f32 %v4549, %v4808
        %v4817 = vmax.f32 %v4550, %v4809
        %v4818 = vmax.f32 %v4551, %v4810
        %v4819 = vmax.f32 %v4552, %v4811
        %v4820 = vmax.f32 %v4553, %v4812
        %v4821 = vmax.f32 %v4554, %v4813
        %s4822 = scalar_lea.vmem %s1297, 416 [#allocation2]
        %v4823 = vld [vmem:[%s4822] sm:$0xf]
        %v4824 = vld [vmem:[%s4822 + $0x4] sm:$0xf]
        %v4825 = vld [vmem:[%s4822 + $0x8] sm:$0xf]
        %v4826 = vld [vmem:[%s4822 + $0xc] sm:$0xf]
        %v4827 = vld [vmem:[%s4822 + $0x10] sm:$0xf]
        %v4828 = vld [vmem:[%s4822 + $0x14] sm:$0xf]
        %v4829 = vld [vmem:[%s4822 + $0x18] sm:$0xf]
        %v4830 = vld [vmem:[%s4822 + $0x1c] sm:$0xf]
        %s4831 = scalar_lea.vmem %s1304, 832 [#allocation3]
        %v4832 = vld [vmem:[%s4831] sm:$0xff]
        %v4833 = vld [vmem:[%s4831 + $0x8] sm:$0xff]
        %v4834 = vld [vmem:[%s4831 + $0x10] sm:$0xff]
        %v4835 = vld [vmem:[%s4831 + $0x18] sm:$0xff]
        %v4836 = vld [vmem:[%s4831 + $0x20] sm:$0xff]
        %v4837 = vld [vmem:[%s4831 + $0x28] sm:$0xff]
        %v4838 = vld [vmem:[%s4831 + $0x30] sm:$0xff]
        %v4839 = vld [vmem:[%s4831 + $0x38] sm:$0xff]
        %4841 = vset.pattern.permute.xlu0 0
        %4842 = vperm.xlu0 %4841, %v4832
        %v4843 = vpop.permute.xlu0 %4842
        %4846 = vset.pattern.permute.xlu0 0
        %4847 = vperm.xlu0 %4846, %v4833
        %v4848 = vpop.permute.xlu0 %4847
        %4851 = vset.pattern.permute.xlu0 0
        %4852 = vperm.xlu0 %4851, %v4834
        %v4853 = vpop.permute.xlu0 %4852
        %4856 = vset.pattern.permute.xlu0 0
        %4857 = vperm.xlu0 %4856, %v4835
        %v4858 = vpop.permute.xlu0 %4857
        %4861 = vset.pattern.permute.xlu0 0
        %4862 = vperm.xlu0 %4861, %v4836
        %v4863 = vpop.permute.xlu0 %4862
        %4866 = vset.pattern.permute.xlu0 0
        %4867 = vperm.xlu0 %4866, %v4837
        %v4868 = vpop.permute.xlu0 %4867
        %4871 = vset.pattern.permute.xlu0 0
        %4872 = vperm.xlu0 %4871, %v4838
        %v4873 = vpop.permute.xlu0 %4872
        %4876 = vset.pattern.permute.xlu0 0
        %4877 = vperm.xlu0 %4876, %v4839
        %v4878 = vpop.permute.xlu0 %4877
        %v4880 = vmul.f32 %v4843, %v1403
        %v4881 = vmul.f32 %v4848, %v1403
        %v4882 = vmul.f32 %v4853, %v1403
        %v4883 = vmul.f32 %v4858, %v1403
        %v4884 = vmul.f32 %v4863, %v1403
        %v4885 = vmul.f32 %v4868, %v1403
        %v4886 = vmul.f32 %v4873, %v1403
        %v4887 = vmul.f32 %v4878, %v1403
        %v4896 = vunpack.c.l.b16 %v4823
        %v4897 = vunpack.c.l.b16 %v4824
        %v4898 = vunpack.c.l.b16 %v4825
        %v4899 = vunpack.c.l.b16 %v4826
        %v4900 = vunpack.c.l.b16 %v4827
        %v4901 = vunpack.c.l.b16 %v4828
        %v4902 = vunpack.c.l.b16 %v4829
        %v4903 = vunpack.c.l.b16 %v4830
        %v4904 = vpack.c.b16 %v4897, %v4896
        %v4905 = vpack.c.b16 %v4899, %v4898
        %v4906 = vpack.c.b16 %v4901, %v4900
        %v4907 = vpack.c.b16 %v4903, %v4902
        %v4909 = vsel %vm1432, %v4904, 0
        %v4912 = vsel %vm1432, %v4905, 0
        %v4915 = vsel %vm1432, %v4906, 0
        %v4918 = vsel %vm1432, %v4907, 0
        %4920 = vmatprep.subr.bf16.mxu0 0
        %4921 = vmatpush1.bf16.msra.mxu0 %v1447
        %4922 = vmatprep.subr.bf16.mxu0 0
        %4923 = vmatpush1.bf16.msra.mxu0 0
        %4924 = vmatprep.subr.bf16.mxu0 0
        %4925 = vmatpush1.bf16.msra.mxu0 0
        %4926 = vmatprep.subr.bf16.mxu0 0
        %4927 = vmatpush1.bf16.msra.mxu0 0
        %4928 = vmatprep.subr.bf16.mxu0 0
        %4929 = vmatpush1.bf16.msra.mxu0 0
        %4930 = vmatprep.subr.bf16.mxu0 0
        %4931 = vmatpush1.bf16.msra.mxu0 0
        %4932 = vmatprep.subr.bf16.mxu0 0
        %4933 = vmatpush1.bf16.msra.mxu0 0
        %4934 = vmatprep.subr.bf16.mxu0 0
        %4935 = vmatpush1.bf16.msra.mxu0 0
        %4936 = vmatprep.subr.bf16.mxu0 0
        %4937 = vmatpush1.bf16.msra.mxu0 0
        %4938 = vmatprep.subr.bf16.mxu0 0
        %4939 = vmatpush1.bf16.msra.mxu0 0
        %4940 = vmatprep.subr.bf16.mxu0 0
        %4941 = vmatpush1.bf16.msra.mxu0 0
        %4942 = vmatprep.subr.bf16.mxu0 0
        %4943 = vmatpush1.bf16.msra.mxu0 0
        %4944 = vmatprep.subr.bf16.mxu0 0
        %4945 = vmatpush1.bf16.msra.mxu0 0
        %4946 = vmatprep.subr.bf16.mxu0 0
        %4947 = vmatpush1.bf16.msra.mxu0 0
        %4948 = vmatprep.subr.bf16.mxu0 0
        %4949 = vmatpush1.bf16.msra.mxu0 0
        %4950 = vmatprep.subr.bf16.mxu0 0
        %4951 = vmatpush1.bf16.msra.mxu0 0
        %4952 = vmatprep.mubr.bf16.mxu0 0
        %4953 = vmatmul.mubr.bf16.gmra.mrb[0].mxu0 %v4909
        %v4954 = vpop.f32.mrb[0].mxu0
        %v4955 = vadd.f32 %v4880, %v4954
        %v4956 = vpop.f32.mrb[0].mxu0
        %v4957 = vpop.f32.mrb[0].mxu0
        %v4958 = vadd.f32 %v4881, %v4957
        %v4959 = vpop.f32.mrb[0].mxu0
        %4960 = vmatprep.mubr.bf16.mxu0 0
        %4961 = vmatmul.mubr.bf16.gmra.mrb[0].mxu0 %v4912
        %v4962 = vpop.f32.mrb[0].mxu0
        %v4963 = vadd.f32 %v4882, %v4962
        %v4964 = vpop.f32.mrb[0].mxu0
        %v4965 = vpop.f32.mrb[0].mxu0
        %v4966 = vadd.f32 %v4883, %v4965
        %v4967 = vpop.f32.mrb[0].mxu0
        %4968 = vmatprep.mubr.bf16.mxu0 0
        %4969 = vmatmul.mubr.bf16.gmra.mrb[0].mxu0 %v4915
        %v4970 = vpop.f32.mrb[0].mxu0
        %v4971 = vadd.f32 %v4884, %v4970
        %v4972 = vpop.f32.mrb[0].mxu0
        %v4973 = vpop.f32.mrb[0].mxu0
        %v4974 = vadd.f32 %v4885, %v4973
        %v4975 = vpop.f32.mrb[0].mxu0
        %4976 = vmatprep.mubr.bf16.mxu0 0
        %4977 = vmatmul.mubr.bf16.gmra.mrb[0].mxu0 %v4918
        %v4978 = vpop.f32.mrb[0].mxu0
        %v4979 = vadd.f32 %v4886, %v4978
        %v4980 = vpop.f32.mrb[0].mxu0
        %v4981 = vpop.f32.mrb[0].mxu0
        %v4982 = vadd.f32 %v4887, %v4981
        %v4983 = vpop.f32.mrb[0].mxu0
        %4984 = vdwg.mxu0
        %4985 = vset.pattern.permute.xlu0 1
        %4986 = vperm.xlu0 %4985, %v4832
        %v4987 = vpop.permute.xlu0 %4986
        %4989 = vset.pattern.permute.xlu0 1
        %4990 = vperm.xlu0 %4989, %v4833
        %v4991 = vpop.permute.xlu0 %4990
        %4993 = vset.pattern.permute.xlu0 1
        %4994 = vperm.xlu0 %4993, %v4834
        %v4995 = vpop.permute.xlu0 %4994
        %4997 = vset.pattern.permute.xlu0 1
        %4998 = vperm.xlu0 %4997, %v4835
        %v4999 = vpop.permute.xlu0 %4998
        %5001 = vset.pattern.permute.xlu0 1
        %5002 = vperm.xlu0 %5001, %v4836
        %v5003 = vpop.permute.xlu0 %5002
        %5005 = vset.pattern.permute.xlu0 1
        %5006 = vperm.xlu0 %5005, %v4837
        %v5007 = vpop.permute.xlu0 %5006
        %5009 = vset.pattern.permute.xlu0 1
        %5010 = vperm.xlu0 %5009, %v4838
        %v5011 = vpop.permute.xlu0 %5010
        %5013 = vset.pattern.permute.xlu0 1
        %5014 = vperm.xlu0 %5013, %v4839
        %v5015 = vpop.permute.xlu0 %5014
        %v5017 = vmul.f32 %v4987, %v1549
        %v5018 = vmul.f32 %v4991, %v1549
        %v5019 = vmul.f32 %v4995, %v1549
        %v5020 = vmul.f32 %v4999, %v1549
        %v5021 = vmul.f32 %v5003, %v1549
        %v5022 = vmul.f32 %v5007, %v1549
        %v5023 = vmul.f32 %v5011, %v1549
        %v5024 = vmul.f32 %v5015, %v1549
        %v5025 = vadd.f32 %v4955, %v5017
        %v5026 = vadd.f32 %v4958, %v5018
        %v5027 = vadd.f32 %v4963, %v5019
        %v5028 = vadd.f32 %v4966, %v5020
        %v5029 = vadd.f32 %v4971, %v5021
        %v5030 = vadd.f32 %v4974, %v5022
        %v5031 = vadd.f32 %v4979, %v5023
        %v5032 = vadd.f32 %v4982, %v5024
        %5033 = vset.pattern.permute.xlu0 2
        %5034 = vperm.xlu0 %5033, %v4832
        %v5035 = vpop.permute.xlu0 %5034
        %5037 = vset.pattern.permute.xlu0 2
        %5038 = vperm.xlu0 %5037, %v4833
        %v5039 = vpop.permute.xlu0 %5038
        %5041 = vset.pattern.permute.xlu0 2
        %5042 = vperm.xlu0 %5041, %v4834
        %v5043 = vpop.permute.xlu0 %5042
        %5045 = vset.pattern.permute.xlu0 2
        %5046 = vperm.xlu0 %5045, %v4835
        %v5047 = vpop.permute.xlu0 %5046
        %5049 = vset.pattern.permute.xlu0 2
        %5050 = vperm.xlu0 %5049, %v4836
        %v5051 = vpop.permute.xlu0 %5050
        %5053 = vset.pattern.permute.xlu0 2
        %5054 = vperm.xlu0 %5053, %v4837
        %v5055 = vpop.permute.xlu0 %5054
        %5057 = vset.pattern.permute.xlu0 2
        %5058 = vperm.xlu0 %5057, %v4838
        %v5059 = vpop.permute.xlu0 %5058
        %5061 = vset.pattern.permute.xlu0 2
        %5062 = vperm.xlu0 %5061, %v4839
        %v5063 = vpop.permute.xlu0 %5062
        %v5065 = vmul.f32 %v5035, %v1601
        %v5066 = vmul.f32 %v5039, %v1601
        %v5067 = vmul.f32 %v5043, %v1601
        %v5068 = vmul.f32 %v5047, %v1601
        %v5069 = vmul.f32 %v5051, %v1601
        %v5070 = vmul.f32 %v5055, %v1601
        %v5071 = vmul.f32 %v5059, %v1601
        %v5072 = vmul.f32 %v5063, %v1601
        %v5073 = vadd.f32 %v5025, %v5065
        %v5074 = vadd.f32 %v5026, %v5066
        %v5075 = vadd.f32 %v5027, %v5067
        %v5076 = vadd.f32 %v5028, %v5068
        %v5077 = vadd.f32 %v5029, %v5069
        %v5078 = vadd.f32 %v5030, %v5070
        %v5079 = vadd.f32 %v5031, %v5071
        %v5080 = vadd.f32 %v5032, %v5072
        %v5081 = vmax.f32 %v4814, %v5073
        %v5082 = vmax.f32 %v4815, %v5074
        %v5083 = vmax.f32 %v4816, %v5075
        %v5084 = vmax.f32 %v4817, %v5076
        %v5085 = vmax.f32 %v4818, %v5077
        %v5086 = vmax.f32 %v4819, %v5078
        %v5087 = vmax.f32 %v4820, %v5079
        %v5088 = vmax.f32 %v4821, %v5080
        %s5089 = scalar_lea.vmem %s1297, 448 [#allocation2]
        %v5090 = vld [vmem:[%s5089] sm:$0xf]
        %v5091 = vld [vmem:[%s5089 + $0x4] sm:$0xf]
        %v5092 = vld [vmem:[%s5089 + $0x8] sm:$0xf]
        %v5093 = vld [vmem:[%s5089 + $0xc] sm:$0xf]
        %v5094 = vld [vmem:[%s5089 + $0x10] sm:$0xf]
        %v5095 = vld [vmem:[%s5089 + $0x14] sm:$0xf]
        %v5096 = vld [vmem:[%s5089 + $0x18] sm:$0xf]
        %v5097 = vld [vmem:[%s5089 + $0x1c] sm:$0xf]
        %s5098 = scalar_lea.vmem %s1304, 896 [#allocation3]
        %v5099 = vld [vmem:[%s5098] sm:$0xff]
        %v5100 = vld [vmem:[%s5098 + $0x8] sm:$0xff]
        %v5101 = vld [vmem:[%s5098 + $0x10] sm:$0xff]
        %v5102 = vld [vmem:[%s5098 + $0x18] sm:$0xff]
        %v5103 = vld [vmem:[%s5098 + $0x20] sm:$0xff]
        %v5104 = vld [vmem:[%s5098 + $0x28] sm:$0xff]
        %v5105 = vld [vmem:[%s5098 + $0x30] sm:$0xff]
        %v5106 = vld [vmem:[%s5098 + $0x38] sm:$0xff]
        %5108 = vset.pattern.permute.xlu0 0
        %5109 = vperm.xlu0 %5108, %v5099
        %v5110 = vpop.permute.xlu0 %5109
        %5113 = vset.pattern.permute.xlu0 0
        %5114 = vperm.xlu0 %5113, %v5100
        %v5115 = vpop.permute.xlu0 %5114
        %5118 = vset.pattern.permute.xlu0 0
        %5119 = vperm.xlu0 %5118, %v5101
        %v5120 = vpop.permute.xlu0 %5119
        %5123 = vset.pattern.permute.xlu0 0
        %5124 = vperm.xlu0 %5123, %v5102
        %v5125 = vpop.permute.xlu0 %5124
        %5128 = vset.pattern.permute.xlu0 0
        %5129 = vperm.xlu0 %5128, %v5103
        %v5130 = vpop.permute.xlu0 %5129
        %5133 = vset.pattern.permute.xlu0 0
        %5134 = vperm.xlu0 %5133, %v5104
        %v5135 = vpop.permute.xlu0 %5134
        %5138 = vset.pattern.permute.xlu0 0
        %5139 = vperm.xlu0 %5138, %v5105
        %v5140 = vpop.permute.xlu0 %5139
        %5143 = vset.pattern.permute.xlu0 0
        %5144 = vperm.xlu0 %5143, %v5106
        %v5145 = vpop.permute.xlu0 %5144
        %v5147 = vmul.f32 %v5110, %v1403
        %v5148 = vmul.f32 %v5115, %v1403
        %v5149 = vmul.f32 %v5120, %v1403
        %v5150 = vmul.f32 %v5125, %v1403
        %v5151 = vmul.f32 %v5130, %v1403
        %v5152 = vmul.f32 %v5135, %v1403
        %v5153 = vmul.f32 %v5140, %v1403
        %v5154 = vmul.f32 %v5145, %v1403
        %v5163 = vunpack.c.l.b16 %v5090
        %v5164 = vunpack.c.l.b16 %v5091
        %v5165 = vunpack.c.l.b16 %v5092
        %v5166 = vunpack.c.l.b16 %v5093
        %v5167 = vunpack.c.l.b16 %v5094
        %v5168 = vunpack.c.l.b16 %v5095
        %v5169 = vunpack.c.l.b16 %v5096
        %v5170 = vunpack.c.l.b16 %v5097
        %v5171 = vpack.c.b16 %v5164, %v5163
        %v5172 = vpack.c.b16 %v5166, %v5165
        %v5173 = vpack.c.b16 %v5168, %v5167
        %v5174 = vpack.c.b16 %v5170, %v5169
        %v5176 = vsel %vm1432, %v5171, 0
        %v5179 = vsel %vm1432, %v5172, 0
        %v5182 = vsel %vm1432, %v5173, 0
        %v5185 = vsel %vm1432, %v5174, 0
        %5187 = vmatprep.subr.bf16.mxu0 0
        %5188 = vmatpush1.bf16.msra.mxu0 %v1447
        %5189 = vmatprep.subr.bf16.mxu0 0
        %5190 = vmatpush1.bf16.msra.mxu0 0
        %5191 = vmatprep.subr.bf16.mxu0 0
        %5192 = vmatpush1.bf16.msra.mxu0 0
        %5193 = vmatprep.subr.bf16.mxu0 0
        %5194 = vmatpush1.bf16.msra.mxu0 0
        %5195 = vmatprep.subr.bf16.mxu0 0
        %5196 = vmatpush1.bf16.msra.mxu0 0
        %5197 = vmatprep.subr.bf16.mxu0 0
        %5198 = vmatpush1.bf16.msra.mxu0 0
        %5199 = vmatprep.subr.bf16.mxu0 0
        %5200 = vmatpush1.bf16.msra.mxu0 0
        %5201 = vmatprep.subr.bf16.mxu0 0
        %5202 = vmatpush1.bf16.msra.mxu0 0
        %5203 = vmatprep.subr.bf16.mxu0 0
        %5204 = vmatpush1.bf16.msra.mxu0 0
        %5205 = vmatprep.subr.bf16.mxu0 0
        %5206 = vmatpush1.bf16.msra.mxu0 0
        %5207 = vmatprep.subr.bf16.mxu0 0
        %5208 = vmatpush1.bf16.msra.mxu0 0
        %5209 = vmatprep.subr.bf16.mxu0 0
        %5210 = vmatpush1.bf16.msra.mxu0 0
        %5211 = vmatprep.subr.bf16.mxu0 0
        %5212 = vmatpush1.bf16.msra.mxu0 0
        %5213 = vmatprep.subr.bf16.mxu0 0
        %5214 = vmatpush1.bf16.msra.mxu0 0
        %5215 = vmatprep.subr.bf16.mxu0 0
        %5216 = vmatpush1.bf16.msra.mxu0 0
        %5217 = vmatprep.subr.bf16.mxu0 0
        %5218 = vmatpush1.bf16.msra.mxu0 0
        %5219 = vmatprep.mubr.bf16.mxu0 0
        %5220 = vmatmul.mubr.bf16.gmra.mrb[0].mxu0 %v5176
        %v5221 = vpop.f32.mrb[0].mxu0
        %v5222 = vadd.f32 %v5147, %v5221
        %v5223 = vpop.f32.mrb[0].mxu0
        %v5224 = vpop.f32.mrb[0].mxu0
        %v5225 = vadd.f32 %v5148, %v5224
        %v5226 = vpop.f32.mrb[0].mxu0
        %5227 = vmatprep.mubr.bf16.mxu0 0
        %5228 = vmatmul.mubr.bf16.gmra.mrb[0].mxu0 %v5179
        %v5229 = vpop.f32.mrb[0].mxu0
        %v5230 = vadd.f32 %v5149, %v5229
        %v5231 = vpop.f32.mrb[0].mxu0
        %v5232 = vpop.f32.mrb[0].mxu0
        %v5233 = vadd.f32 %v5150, %v5232
        %v5234 = vpop.f32.mrb[0].mxu0
        %5235 = vmatprep.mubr.bf16.mxu0 0
        %5236 = vmatmul.mubr.bf16.gmra.mrb[0].mxu0 %v5182
        %v5237 = vpop.f32.mrb[0].mxu0
        %v5238 = vadd.f32 %v5151, %v5237
        %v5239 = vpop.f32.mrb[0].mxu0
        %v5240 = vpop.f32.mrb[0].mxu0
        %v5241 = vadd.f32 %v5152, %v5240
        %v5242 = vpop.f32.mrb[0].mxu0
        %5243 = vmatprep.mubr.bf16.mxu0 0
        %5244 = vmatmul.mubr.bf16.gmra.mrb[0].mxu0 %v5185
        %v5245 = vpop.f32.mrb[0].mxu0
        %v5246 = vadd.f32 %v5153, %v5245
        %v5247 = vpop.f32.mrb[0].mxu0
        %v5248 = vpop.f32.mrb[0].mxu0
        %v5249 = vadd.f32 %v5154, %v5248
        %v5250 = vpop.f32.mrb[0].mxu0
        %5251 = vdwg.mxu0
        %5252 = vset.pattern.permute.xlu0 1
        %5253 = vperm.xlu0 %5252, %v5099
        %v5254 = vpop.permute.xlu0 %5253
        %5256 = vset.pattern.permute.xlu0 1
        %5257 = vperm.xlu0 %5256, %v5100
        %v5258 = vpop.permute.xlu0 %5257
        %5260 = vset.pattern.permute.xlu0 1
        %5261 = vperm.xlu0 %5260, %v5101
        %v5262 = vpop.permute.xlu0 %5261
        %5264 = vset.pattern.permute.xlu0 1
        %5265 = vperm.xlu0 %5264, %v5102
        %v5266 = vpop.permute.xlu0 %5265
        %5268 = vset.pattern.permute.xlu0 1
        %5269 = vperm.xlu0 %5268, %v5103
        %v5270 = vpop.permute.xlu0 %5269
        %5272 = vset.pattern.permute.xlu0 1
        %5273 = vperm.xlu0 %5272, %v5104
        %v5274 = vpop.permute.xlu0 %5273
        %5276 = vset.pattern.permute.xlu0 1
        %5277 = vperm.xlu0 %5276, %v5105
        %v5278 = vpop.permute.xlu0 %5277
        %5280 = vset.pattern.permute.xlu0 1
        %5281 = vperm.xlu0 %5280, %v5106
        %v5282 = vpop.permute.xlu0 %5281
        %v5284 = vmul.f32 %v5254, %v1549
        %v5285 = vmul.f32 %v5258, %v1549
        %v5286 = vmul.f32 %v5262, %v1549
        %v5287 = vmul.f32 %v5266, %v1549
        %v5288 = vmul.f32 %v5270, %v1549
        %v5289 = vmul.f32 %v5274, %v1549
        %v5290 = vmul.f32 %v5278, %v1549
        %v5291 = vmul.f32 %v5282, %v1549
        %v5292 = vadd.f32 %v5222, %v5284
        %v5293 = vadd.f32 %v5225, %v5285
        %v5294 = vadd.f32 %v5230, %v5286
        %v5295 = vadd.f32 %v5233, %v5287
        %v5296 = vadd.f32 %v5238, %v5288
        %v5297 = vadd.f32 %v5241, %v5289
        %v5298 = vadd.f32 %v5246, %v5290
        %v5299 = vadd.f32 %v5249, %v5291
        %5300 = vset.pattern.permute.xlu0 2
        %5301 = vperm.xlu0 %5300, %v5099
        %v5302 = vpop.permute.xlu0 %5301
        %5304 = vset.pattern.permute.xlu0 2
        %5305 = vperm.xlu0 %5304, %v5100
        %v5306 = vpop.permute.xlu0 %5305
        %5308 = vset.pattern.permute.xlu0 2
        %5309 = vperm.xlu0 %5308, %v5101
        %v5310 = vpop.permute.xlu0 %5309
        %5312 = vset.pattern.permute.xlu0 2
        %5313 = vperm.xlu0 %5312, %v5102
        %v5314 = vpop.permute.xlu0 %5313
        %5316 = vset.pattern.permute.xlu0 2
        %5317 = vperm.xlu0 %5316, %v5103
        %v5318 = vpop.permute.xlu0 %5317
        %5320 = vset.pattern.permute.xlu0 2
        %5321 = vperm.xlu0 %5320, %v5104
        %v5322 = vpop.permute.xlu0 %5321
        %5324 = vset.pattern.permute.xlu0 2
        %5325 = vperm.xlu0 %5324, %v5105
        %v5326 = vpop.permute.xlu0 %5325
        %5328 = vset.pattern.permute.xlu0 2
        %5329 = vperm.xlu0 %5328, %v5106
        %v5330 = vpop.permute.xlu0 %5329
        %v5332 = vmul.f32 %v5302, %v1601
        %v5333 = vmul.f32 %v5306, %v1601
        %v5334 = vmul.f32 %v5310, %v1601
        %v5335 = vmul.f32 %v5314, %v1601
        %v5336 = vmul.f32 %v5318, %v1601
        %v5337 = vmul.f32 %v5322, %v1601
        %v5338 = vmul.f32 %v5326, %v1601
        %v5339 = vmul.f32 %v5330, %v1601
        %v5340 = vadd.f32 %v5292, %v5332
        %v5341 = vadd.f32 %v5293, %v5333
        %v5342 = vadd.f32 %v5294, %v5334
        %v5343 = vadd.f32 %v5295, %v5335
        %v5344 = vadd.f32 %v5296, %v5336
        %v5345 = vadd.f32 %v5297, %v5337
        %v5346 = vadd.f32 %v5298, %v5338
        %v5347 = vadd.f32 %v5299, %v5339
        %v5348 = vmax.f32 %v5081, %v5340
        %v5349 = vmax.f32 %v5082, %v5341
        %v5350 = vmax.f32 %v5083, %v5342
        %v5351 = vmax.f32 %v5084, %v5343
        %v5352 = vmax.f32 %v5085, %v5344
        %v5353 = vmax.f32 %v5086, %v5345
        %v5354 = vmax.f32 %v5087, %v5346
        %v5355 = vmax.f32 %v5088, %v5347
        %s5356 = scalar_lea.vmem %s1297, 480 [#allocation2]
        %v5357 = vld [vmem:[%s5356] sm:$0xf]
        %v5358 = vld [vmem:[%s5356 + $0x4] sm:$0xf]
        %v5359 = vld [vmem:[%s5356 + $0x8] sm:$0xf]
        %v5360 = vld [vmem:[%s5356 + $0xc] sm:$0xf]
        %v5361 = vld [vmem:[%s5356 + $0x10] sm:$0xf]
        %v5362 = vld [vmem:[%s5356 + $0x14] sm:$0xf]
        %v5363 = vld [vmem:[%s5356 + $0x18] sm:$0xf]
        %v5364 = vld [vmem:[%s5356 + $0x1c] sm:$0xf]
        %s5365 = scalar_lea.vmem %s1304, 960 [#allocation3]
        %v5366 = vld [vmem:[%s5365] sm:$0xff]
        %v5367 = vld [vmem:[%s5365 + $0x8] sm:$0xff]
        %v5368 = vld [vmem:[%s5365 + $0x10] sm:$0xff]
        %v5369 = vld [vmem:[%s5365 + $0x18] sm:$0xff]
        %v5370 = vld [vmem:[%s5365 + $0x20] sm:$0xff]
        %v5371 = vld [vmem:[%s5365 + $0x28] sm:$0xff]
        %v5372 = vld [vmem:[%s5365 + $0x30] sm:$0xff]
        %v5373 = vld [vmem:[%s5365 + $0x38] sm:$0xff]
        %5375 = vset.pattern.permute.xlu0 0
        %5376 = vperm.xlu0 %5375, %v5366
        %v5377 = vpop.permute.xlu0 %5376
        %5380 = vset.pattern.permute.xlu0 0
        %5381 = vperm.xlu0 %5380, %v5367
        %v5382 = vpop.permute.xlu0 %5381
        %5385 = vset.pattern.permute.xlu0 0
        %5386 = vperm.xlu0 %5385, %v5368
        %v5387 = vpop.permute.xlu0 %5386
        %5390 = vset.pattern.permute.xlu0 0
        %5391 = vperm.xlu0 %5390, %v5369
        %v5392 = vpop.permute.xlu0 %5391
        %5395 = vset.pattern.permute.xlu0 0
        %5396 = vperm.xlu0 %5395, %v5370
        %v5397 = vpop.permute.xlu0 %5396
        %5400 = vset.pattern.permute.xlu0 0
        %5401 = vperm.xlu0 %5400, %v5371
        %v5402 = vpop.permute.xlu0 %5401
        %5405 = vset.pattern.permute.xlu0 0
        %5406 = vperm.xlu0 %5405, %v5372
        %v5407 = vpop.permute.xlu0 %5406
        %5410 = vset.pattern.permute.xlu0 0
        %5411 = vperm.xlu0 %5410, %v5373
        %v5412 = vpop.permute.xlu0 %5411
        %v5414 = vmul.f32 %v5377, %v1403
        %v5415 = vmul.f32 %v5382, %v1403
        %v5416 = vmul.f32 %v5387, %v1403
        %v5417 = vmul.f32 %v5392, %v1403
        %v5418 = vmul.f32 %v5397, %v1403
        %v5419 = vmul.f32 %v5402, %v1403
        %v5420 = vmul.f32 %v5407, %v1403
        %v5421 = vmul.f32 %v5412, %v1403
        %v5430 = vunpack.c.l.b16 %v5357
        %v5431 = vunpack.c.l.b16 %v5358
        %v5432 = vunpack.c.l.b16 %v5359
        %v5433 = vunpack.c.l.b16 %v5360
        %v5434 = vunpack.c.l.b16 %v5361
        %v5435 = vunpack.c.l.b16 %v5362
        %v5436 = vunpack.c.l.b16 %v5363
        %v5437 = vunpack.c.l.b16 %v5364
        %v5438 = vpack.c.b16 %v5431, %v5430
        %v5439 = vpack.c.b16 %v5433, %v5432
        %v5440 = vpack.c.b16 %v5435, %v5434
        %v5441 = vpack.c.b16 %v5437, %v5436
        %v5443 = vsel %vm1432, %v5438, 0
        %v5446 = vsel %vm1432, %v5439, 0
        %v5449 = vsel %vm1432, %v5440, 0
        %v5452 = vsel %vm1432, %v5441, 0
        %5454 = vmatprep.subr.bf16.mxu0 0
        %5455 = vmatpush1.bf16.msra.mxu0 %v1447
        %5456 = vmatprep.subr.bf16.mxu0 0
        %5457 = vmatpush1.bf16.msra.mxu0 0
        %5458 = vmatprep.subr.bf16.mxu0 0
        %5459 = vmatpush1.bf16.msra.mxu0 0
        %5460 = vmatprep.subr.bf16.mxu0 0
        %5461 = vmatpush1.bf16.msra.mxu0 0
        %5462 = vmatprep.subr.bf16.mxu0 0
        %5463 = vmatpush1.bf16.msra.mxu0 0
        %5464 = vmatprep.subr.bf16.mxu0 0
        %5465 = vmatpush1.bf16.msra.mxu0 0
        %5466 = vmatprep.subr.bf16.mxu0 0
        %5467 = vmatpush1.bf16.msra.mxu0 0
        %5468 = vmatprep.subr.bf16.mxu0 0
        %5469 = vmatpush1.bf16.msra.mxu0 0
        %5470 = vmatprep.subr.bf16.mxu0 0
        %5471 = vmatpush1.bf16.msra.mxu0 0
        %5472 = vmatprep.subr.bf16.mxu0 0
        %5473 = vmatpush1.bf16.msra.mxu0 0
        %5474 = vmatprep.subr.bf16.mxu0 0
        %5475 = vmatpush1.bf16.msra.mxu0 0
        %5476 = vmatprep.subr.bf16.mxu0 0
        %5477 = vmatpush1.bf16.msra.mxu0 0
        %5478 = vmatprep.subr.bf16.mxu0 0
        %5479 = vmatpush1.bf16.msra.mxu0 0
        %5480 = vmatprep.subr.bf16.mxu0 0
        %5481 = vmatpush1.bf16.msra.mxu0 0
        %5482 = vmatprep.subr.bf16.mxu0 0
        %5483 = vmatpush1.bf16.msra.mxu0 0
        %5484 = vmatprep.subr.bf16.mxu0 0
        %5485 = vmatpush1.bf16.msra.mxu0 0
        %5486 = vmatprep.mubr.bf16.mxu0 0
        %5487 = vmatmul.mubr.bf16.gmra.mrb[0].mxu0 %v5443
        %v5488 = vpop.f32.mrb[0].mxu0
        %v5489 = vadd.f32 %v5414, %v5488
        %v5490 = vpop.f32.mrb[0].mxu0
        %v5491 = vpop.f32.mrb[0].mxu0
        %v5492 = vadd.f32 %v5415, %v5491
        %v5493 = vpop.f32.mrb[0].mxu0
        %5494 = vmatprep.mubr.bf16.mxu0 0
        %5495 = vmatmul.mubr.bf16.gmra.mrb[0].mxu0 %v5446
        %v5496 = vpop.f32.mrb[0].mxu0
        %v5497 = vadd.f32 %v5416, %v5496
        %v5498 = vpop.f32.mrb[0].mxu0
        %v5499 = vpop.f32.mrb[0].mxu0
        %v5500 = vadd.f32 %v5417, %v5499
        %v5501 = vpop.f32.mrb[0].mxu0
        %5502 = vmatprep.mubr.bf16.mxu0 0
        %5503 = vmatmul.mubr.bf16.gmra.mrb[0].mxu0 %v5449
        %v5504 = vpop.f32.mrb[0].mxu0
        %v5505 = vadd.f32 %v5418, %v5504
        %v5506 = vpop.f32.mrb[0].mxu0
        %v5507 = vpop.f32.mrb[0].mxu0
        %v5508 = vadd.f32 %v5419, %v5507
        %v5509 = vpop.f32.mrb[0].mxu0
        %5510 = vmatprep.mubr.bf16.mxu0 0
        %5511 = vmatmul.mubr.bf16.gmra.mrb[0].mxu0 %v5452
        %v5512 = vpop.f32.mrb[0].mxu0
        %v5513 = vadd.f32 %v5420, %v5512
        %v5514 = vpop.f32.mrb[0].mxu0
        %v5515 = vpop.f32.mrb[0].mxu0
        %v5516 = vadd.f32 %v5421, %v5515
        %v5517 = vpop.f32.mrb[0].mxu0
        %5518 = vdwg.mxu0
        %5519 = vset.pattern.permute.xlu0 1
        %5520 = vperm.xlu0 %5519, %v5366
        %v5521 = vpop.permute.xlu0 %5520
        %5523 = vset.pattern.permute.xlu0 1
        %5524 = vperm.xlu0 %5523, %v5367
        %v5525 = vpop.permute.xlu0 %5524
        %5527 = vset.pattern.permute.xlu0 1
        %5528 = vperm.xlu0 %5527, %v5368
        %v5529 = vpop.permute.xlu0 %5528
        %5531 = vset.pattern.permute.xlu0 1
        %5532 = vperm.xlu0 %5531, %v5369
        %v5533 = vpop.permute.xlu0 %5532
        %5535 = vset.pattern.permute.xlu0 1
        %5536 = vperm.xlu0 %5535, %v5370
        %v5537 = vpop.permute.xlu0 %5536
        %5539 = vset.pattern.permute.xlu0 1
        %5540 = vperm.xlu0 %5539, %v5371
        %v5541 = vpop.permute.xlu0 %5540
        %5543 = vset.pattern.permute.xlu0 1
        %5544 = vperm.xlu0 %5543, %v5372
        %v5545 = vpop.permute.xlu0 %5544
        %5547 = vset.pattern.permute.xlu0 1
        %5548 = vperm.xlu0 %5547, %v5373
        %v5549 = vpop.permute.xlu0 %5548
        %v5551 = vmul.f32 %v5521, %v1549
        %v5552 = vmul.f32 %v5525, %v1549
        %v5553 = vmul.f32 %v5529, %v1549
        %v5554 = vmul.f32 %v5533, %v1549
        %v5555 = vmul.f32 %v5537, %v1549
        %v5556 = vmul.f32 %v5541, %v1549
        %v5557 = vmul.f32 %v5545, %v1549
        %v5558 = vmul.f32 %v5549, %v1549
        %v5559 = vadd.f32 %v5489, %v5551
        %v5560 = vadd.f32 %v5492, %v5552
        %v5561 = vadd.f32 %v5497, %v5553
        %v5562 = vadd.f32 %v5500, %v5554
        %v5563 = vadd.f32 %v5505, %v5555
        %v5564 = vadd.f32 %v5508, %v5556
        %v5565 = vadd.f32 %v5513, %v5557
        %v5566 = vadd.f32 %v5516, %v5558
        %5567 = vset.pattern.permute.xlu0 2
        %5568 = vperm.xlu0 %5567, %v5366
        %v5569 = vpop.permute.xlu0 %5568
        %5571 = vset.pattern.permute.xlu0 2
        %5572 = vperm.xlu0 %5571, %v5367
        %v5573 = vpop.permute.xlu0 %5572
        %5575 = vset.pattern.permute.xlu0 2
        %5576 = vperm.xlu0 %5575, %v5368
        %v5577 = vpop.permute.xlu0 %5576
        %5579 = vset.pattern.permute.xlu0 2
        %5580 = vperm.xlu0 %5579, %v5369
        %v5581 = vpop.permute.xlu0 %5580
        %5583 = vset.pattern.permute.xlu0 2
        %5584 = vperm.xlu0 %5583, %v5370
        %v5585 = vpop.permute.xlu0 %5584
        %5587 = vset.pattern.permute.xlu0 2
        %5588 = vperm.xlu0 %5587, %v5371
        %v5589 = vpop.permute.xlu0 %5588
        %5591 = vset.pattern.permute.xlu0 2
        %5592 = vperm.xlu0 %5591, %v5372
        %v5593 = vpop.permute.xlu0 %5592
        %5595 = vset.pattern.permute.xlu0 2
        %5596 = vperm.xlu0 %5595, %v5373
        %v5597 = vpop.permute.xlu0 %5596
        %v5599 = vmul.f32 %v5569, %v1601
        %v5600 = vmul.f32 %v5573, %v1601
        %v5601 = vmul.f32 %v5577, %v1601
        %v5602 = vmul.f32 %v5581, %v1601
        %v5603 = vmul.f32 %v5585, %v1601
        %v5604 = vmul.f32 %v5589, %v1601
        %v5605 = vmul.f32 %v5593, %v1601
        %v5606 = vmul.f32 %v5597, %v1601
        %v5607 = vadd.f32 %v5559, %v5599
        %v5608 = vadd.f32 %v5560, %v5600
        %v5609 = vadd.f32 %v5561, %v5601
        %v5610 = vadd.f32 %v5562, %v5602
        %v5611 = vadd.f32 %v5563, %v5603
        %v5612 = vadd.f32 %v5564, %v5604
        %v5613 = vadd.f32 %v5565, %v5605
        %v5614 = vadd.f32 %v5566, %v5606
        %v5615 = vmax.f32 %v5348, %v5607
        %v5616 = vmax.f32 %v5349, %v5608
        %v5617 = vmax.f32 %v5350, %v5609
        %v5618 = vmax.f32 %v5351, %v5610
        %v5619 = vmax.f32 %v5352, %v5611
        %v5620 = vmax.f32 %v5353, %v5612
        %v5621 = vmax.f32 %v5354, %v5613
        %v5622 = vmax.f32 %v5355, %v5614
        %v5623 = vld [vmem:[%s4] sm:$0x1]
        %v5625 = vlaneseq
        %v5626 = vshrl.u32 %v5625, 7
        %v5627 = vsub.s32 0, %v5626
        %v5628 = vrot.slane %v5623, %v5627
        %v5630 = vadd.f32 %v5615, %v5628
        %v5631 = vadd.f32 %v5616, %v5628
        %v5632 = vadd.f32 %v5617, %v5628
        %v5633 = vadd.f32 %v5618, %v5628
        %v5634 = vadd.f32 %v5619, %v5628
        %v5635 = vadd.f32 %v5620, %v5628
        %v5636 = vadd.f32 %v5621, %v5628
        %v5637 = vadd.f32 %v5622, %v5628
        %v5638 = vmax.f32 %v5630, 0.0
        %v5639 = vmax.f32 %v5631, 0.0
        %v5640 = vmax.f32 %v5632, 0.0
        %v5641 = vmax.f32 %v5633, 0.0
        %v5642 = vmax.f32 %v5634, 0.0
        %v5643 = vmax.f32 %v5635, 0.0
        %v5644 = vmax.f32 %v5636, 0.0
        %v5645 = vmax.f32 %v5637, 0.0
        %vm5646 = vcmask 261120
        %5647 = vst.msk [vmem:[%s1339] sm:$0xff] %vm5646, %v5638
        %5648 = vst.msk [vmem:[%s1339 + $0x8] sm:$0xff] %vm5646, %v5639
        %5649 = vst.msk [vmem:[%s1339 + $0x10] sm:$0xff] %vm5646, %v5640
        %5650 = vst.msk [vmem:[%s1339 + $0x18] sm:$0xff] %vm5646, %v5641
        %5651 = vst.msk [vmem:[%s1339 + $0x20] sm:$0xff] %vm5646, %v5642
        %5652 = vst.msk [vmem:[%s1339 + $0x28] sm:$0xff] %vm5646, %v5643
        %5653 = vst.msk [vmem:[%s1339 + $0x30] sm:$0xff] %vm5646, %v5644
        %5654 = vst.msk [vmem:[%s1339 + $0x38] sm:$0xff] %vm5646, %v5645
        %s5655 = smul.u32 8, %s16
        %p5656 = scmp.lt.s32.totalorder %s5655, 15
        %s5657 = scalar_select %p5656, %s5655, 15
        %s5658 = smul.addr %s5657, 8
        %s5659 = scalar_lea.vmem %s5, %s5658
        // Predicated region
        $region120: #{tpu_custom_call.1} parent=110 // pred_check
          %p5660 = pneg %p149
        $region121: #{tpu_custom_call.1} parent=110 // pred_check_branch
          %5662 = sbr.rel (%p5660) target = $region123
        $region122: #{tpu_custom_call.1} parent=110 // pred_region
          %s5663 = smul.u32 8, %s16
        $region123: #{tpu_custom_call.1} parent=110 // pred_fallthru
          _
      $region111: #{tpu_custom_call.1} parent=5 // pred_fallthru
        _
      %p5664 = scmp.le.s32.totalorder 2, %s11
      // Predicated region
      $region124: #{tpu_custom_call.1} parent=5 // pred_check
        %p5665 = pneg %p5664
      $region125: #{tpu_custom_call.1} parent=5 // pred_check_branch
        %5667 = sbr.rel (%p5665) target = $region127
      $region126: #{tpu_custom_call.1} parent=5 // pred_region
        %s5668 = ssub.s32 %s11, 2
        // Predicated region
        $region128: #{tpu_custom_call.1} parent=126 // pred_check
          %p5669 = pneg %p155
        $region129: #{tpu_custom_call.1} parent=126 // pred_check_branch
          %5671 = sbr.rel (%p5669) target = $region131
        $region130: #{tpu_custom_call.1} parent=126 // pred_region
          %s5672 = smul.u32 8, %s17
          %p5673 = scmp.lt.s32.totalorder %s5672, 15
          %s5674 = scalar_select %p5673, %s5672, 15
          %s5675 = smul.addr %s5674, 8
          %s5676 = scalar_lea.vmem %s5, %s5675
        $region131: #{tpu_custom_call.1} parent=126 // pred_fallthru
          _
      $region127: #{tpu_custom_call.1} parent=5 // pred_fallthru
        _
    $region6: #{tpu_custom_call.1} parent=1 // loop_footer
      %s15 = sadd.s32 1, %s11
    $region7: #{tpu_custom_call.1} parent=1 // loop_footer_branch
      %10 = sbr.rel target = $region3
    $region8: #{tpu_custom_call.1} parent=1 // loop_exit
      _

</llo_original>
